<compile_context>
chip_gen: v6e
topology: v6e:2x2x1
jax: 0.10.0
libtpu: 0.0.40
codegen_flags: <defaults>
</compile_context>

<pallas_src>
import math

import numpy as np
import jax
import jax.numpy as jnp
from jax.experimental import pallas as pl
from jax.experimental.pallas import tpu as pltpu


# ----------------------------------------------------------------------------
# Config (synthetic, small) — mirrors EfficientNetConfig fields used by the encoder.
# ----------------------------------------------------------------------------
CONFIG = dict(
    width_coefficient=0.05,
    depth_coefficient=1.0,
    depth_divisor=8,
    in_channels=(160, 320),      # rounds to (8, 16)
    out_channels=(320, 480),     # rounds to (16, 24)
    strides=(1, 2),
    kernel_sizes=(3, 5),
    expand_ratios=(1, 6),
    num_block_repeats=(1, 2),
    squeeze_expansion_ratio=0.25,
    depthwise_padding=(),
    drop_connect_rate=0.2,
    batch_norm_eps=1e-3,
    hidden_act="swish",
)


def round_filters(cfg, num_channels):
    divisor = cfg["depth_divisor"]
    num_channels *= cfg["width_coefficient"]
    new_dim = max(divisor, int(num_channels + divisor / 2) // divisor * divisor)
    if new_dim < 0.9 * num_channels:
        new_dim += divisor
    return int(new_dim)


def correct_pad(kernel_size, adjust=True):
    if isinstance(kernel_size, int):
        kernel_size = (kernel_size, kernel_size)
    correct = (kernel_size[0] // 2, kernel_size[1] // 2)
    if adjust:
        return (correct[1] - 1, correct[1], correct[0] - 1, correct[0])
    return (correct[1], correct[1], correct[0], correct[0])


# ----------------------------------------------------------------------------
# Encoder structure (mirrors EfficientNetEncoder.__init__) + parameter init
# ----------------------------------------------------------------------------
def build_block_specs(cfg):
    def round_repeats(r):
        return int(math.ceil(cfg["depth_coefficient"] * r))

    num_base = len(cfg["in_channels"])
    num_blocks = sum(round_repeats(n) for n in cfg["num_block_repeats"])
    curr = 0
    specs = []
    for i in range(num_base):
        in_dim = round_filters(cfg, cfg["in_channels"][i])
        out_dim = round_filters(cfg, cfg["out_channels"][i])
        stride = cfg["strides"][i]
        kernel_size = cfg["kernel_sizes"][i]
        expand_ratio = cfg["expand_ratios"][i]
        for j in range(round_repeats(cfg["num_block_repeats"][i])):
            id_skip = j == 0
            stride_j = 1 if j > 0 else stride
            in_dim_j = out_dim if j > 0 else in_dim
            adjust_padding = curr not in cfg["depthwise_padding"]
            drop_rate = cfg["drop_connect_rate"] * curr / num_blocks
            expand = expand_ratio != 1
            expand_dim = in_dim_j * expand_ratio
            dw_dim = expand_dim if expand else in_dim_j
            dim_se = max(1, int(in_dim_j * cfg["squeeze_expansion_ratio"]))
            specs.append(dict(
                in_dim=in_dim_j, out_dim=out_dim, stride=stride_j,
                kernel_size=kernel_size, expand=expand, expand_dim=expand_dim,
                dw_dim=dw_dim, dim_se=dim_se, id_skip=id_skip,
                adjust_padding=adjust_padding, drop_rate=drop_rate,
                apply_dropout=(stride_j == 1 and not id_skip),
            ))
            curr += 1
    return specs


def bn_params(key, c):
    k1, k2, k3, k4 = jax.random.split(key, 4)
    return dict(
        gamma=1.0 + 0.1 * jax.random.normal(k1, (c,), jnp.float32),
        beta=0.05 * jax.random.normal(k2, (c,), jnp.float32),
        mean=0.05 * jax.random.normal(k3, (c,), jnp.float32),
        var=1.0 + 0.1 * jnp.abs(jax.random.normal(k4, (c,), jnp.float32)),
    )


def fold_bn(bn, eps):
    s = bn["gamma"] / jnp.sqrt(bn["var"] + eps)
    b = bn["beta"] - bn["mean"] * s
    return s, b


def init_params(key, specs, cfg):
    params = {"blocks": []}
    for blk in specs:
        key, *ks = jax.random.split(key, 11)
        ks = iter(ks)
        cin, cdw, cout, k = blk["in_dim"], blk["dw_dim"], blk["out_dim"], blk["kernel_size"]
        p = {}
        if blk["expand"]:
            p["expand_w"] = jax.random.normal(next(ks), (cin, blk["expand_dim"]), jnp.float32) / math.sqrt(cin)
            p["expand_bn"] = bn_params(next(ks), blk["expand_dim"])
        p["dw_w"] = jax.random.normal(next(ks), (k, k, cdw), jnp.float32) / float(k)
        p["dw_bn"] = bn_params(next(ks), cdw)
        p["se_reduce_w"] = jax.random.normal(next(ks), (cdw, blk["dim_se"]), jnp.float32) / math.sqrt(cdw)
        p["se_reduce_b"] = 0.05 * jax.random.normal(next(ks), (blk["dim_se"],), jnp.float32)
        p["se_expand_w"] = jax.random.normal(next(ks), (blk["dim_se"], cdw), jnp.float32) / math.sqrt(blk["dim_se"])
        p["se_expand_b"] = 0.05 * jax.random.normal(next(ks), (cdw,), jnp.float32)
        p["project_w"] = jax.random.normal(next(ks), (cdw, cout), jnp.float32) / math.sqrt(cdw)
        p["project_bn"] = bn_params(next(ks), cout)
        params["blocks"].append(p)
    key, k1, k2 = jax.random.split(key, 3)
    cin = specs[-1]["out_dim"]
    hidden = round_filters(cfg, 1280)
    params["top_w"] = jax.random.normal(k1, (cin, hidden), jnp.float32) / math.sqrt(cin)
    params["top_bn"] = bn_params(k2, hidden)
    return params


# ----------------------------------------------------------------------------
# Static geometry, packed weights and phase-scatter matrices (wrapper-side, once)
# ----------------------------------------------------------------------------
def build_meta(specs, H0, W0):
    metas, sel_specs = [], []
    H, W = H0, W0
    for blk in specs:
        k, s = blk["kernel_size"], blk["stride"]
        cin, cdw = blk["in_dim"], blk["dw_dim"]
        cout, cse = blk["out_dim"], blk["dim_se"]
        if s == 1:
            pad_t = pad_b = pad_l = pad_r = k // 2      # 'same', stride 1, odd kernel
        else:
            pad_l, pad_r, pad_t, pad_b = correct_pad(k, adjust=blk["adjust_padding"])
        Hp, Wp = H + pad_t + pad_b, W + pad_l + pad_r
        Ho, Wo = (Hp - k) // s + 1, (Wp - k) // s + 1
        m = dict(expand=blk["expand"], K=k, s=s, H=H, W=W, Ho=Ho, Wo=Wo,
                 pad_t=pad_t, pad_l=pad_l, cin=cin, cdw=cdw, cout=cout, cse=cse,
                 residual=blk["apply_dropout"], sel_idx=None)
        if m["residual"]:
            assert s == 1 and cin == cout, "residual path needs stride 1 and cin == cout"
        if s == 1:
            m["Hph"], m["Wph"] = Hp, Wp
            m["scr_shape"] = (Hp, Wp, cdw)
        else:
            Hph = max((k - 1) // s + Ho, (pad_t + H - 1) // s + 1)
            Wph = max((k - 1) // s + Wo, (pad_l + W - 1) // s + 1)
            Wph = -(-Wph // 8) * 8                       # 8-aligned second-minor for reshape
            m["Hph"], m["Wph"] = Hph, Wph
            m["scr_shape"] = (s * s * Hph, Wph, cdw)
            m["sel_idx"] = len(sel_specs)
            sel_specs.append(dict(H=H, W=W, s=s, pad_t=pad_t, pad_l=pad_l,
                                  Hph=Hph, Wph=Wph))
        metas.append(m)
        H, W = Ho, Wo
    return metas, sel_specs, H, W


def build_phase_scatter(H, W, s, pad_t, pad_l, Hph, Wph):
    """0/1 matrix scattering (H*W, C) rows into a zero-padded, phase-split grid."""
    sel = np.zeros((s * s * Hph * Wph, H * W), np.float32)
    for ph in range(s * s):
        a, b = ph // s, ph % s
        for Ip in range(Hph):
            i = s * Ip + a - pad_t
            if i < 0 or i >= H:
                continue
            for Jp in range(Wph):
                j = s * Jp + b - pad_l
                if j < 0 or j >= W:
                    continue
                sel[(ph * Hph + Ip) * Wph + Jp, i * W + j] = 1.0
    return jnp.asarray(sel)


def pack_params(params, specs, cfg):
    """Fold all BN scales into conv weights and pack everything into one matrix."""
    eps = cfg["batch_norm_eps"]
    pieces = []
    row = [0]

    def add(arr):
        arr = np.asarray(arr, np.float32)
        if arr.ndim == 1:
            arr = arr.reshape(1, -1)
        off = row[0]
        pieces.append((off, arr))
        row[0] += -(-arr.shape[0] // 8) * 8              # 8-row aligned sections
        return off

    block_offs = []
    for blk, p in zip(specs, params["blocks"]):
        o = {}
        k, cdw = blk["kernel_size"], blk["dw_dim"]
        if blk["expand"]:
            es, eb = fold_bn(p["expand_bn"], eps)
            o["we"] = add(np.asarray(p["expand_w"]) * np.asarray(es)[None, :])
            o["eb"] = add(np.asarray(eb))
        dws, dwb = fold_bn(p["dw_bn"], eps)
        o["dw"] = add(np.asarray(p["dw_w"]).reshape(k * k, cdw) * np.asarray(dws)[None, :])
        o["dwb"] = add(np.asarray(dwb))
        o["srw"] = add(np.asarray(p["se_reduce_w"]))
        o["srb"] = add(np.asarray(p["se_reduce_b"]))
        o["sew"] = add(np.asarray(p["se_expand_w"]))
        o["seb"] = add(np.asarray(p["se_expand_b"]))
        ps_, pb_ = fold_bn(p["project_bn"], eps)
        o["pw"] = add(np.asarray(p["project_w"]) * np.asarray(ps_)[None, :])
        o["pb"] = add(np.asarray(pb_))
        block_offs.append(o)
    ts, tb = fold_bn(params["top_bn"], eps)
    top_offs = {"w": add(np.asarray(params["top_w"]) * np.asarray(ts)[None, :]),
                "b": add(np.asarray(tb))}

    lw = max(a.shape[1] for _, a in pieces)
    wmat = np.zeros((row[0], lw), np.float32)
    for off, a in pieces:
        wmat[off:off + a.shape[0], :a.shape[1]] = a
    return jnp.asarray(wmat), block_offs, top_offs


# ----------------------------------------------------------------------------
# The single fused encoder kernel
# ----------------------------------------------------------------------------
def make_encoder_kernel(metas, top_meta, n_sel):
    n_blocks = len(metas)

    def kernel(*refs):
        x_ref = refs[0]
        w_ref = refs[1]
        sel_refs = refs[2:2 + n_sel]
        o_ref = refs[2 + n_sel]
        scr_refs = refs[3 + n_sel:3 + n_sel + n_blocks]

        def wslab(off, rows, cols):
            return w_ref[pl.ds(off, rows), pl.ds(0, cols)]

        def swish(v):
            return v * jax.nn.sigmoid(v)

        x0 = x_ref[0]                                    # (H0, W0, C0)
        cur = x0.reshape(x0.shape[0] * x0.shape[1], x0.shape[2])

        for bi, bm in enumerate(metas):
            o = bm["offs"]
            scr = scr_refs[bi]
            K, s = bm["K"], bm["s"]
            H, W, Ho, Wo = bm["H"], bm["W"], bm["Ho"], bm["Wo"]
            Hph, Wph = bm["Hph"], bm["Wph"]
            cin, cdw, cout, cse = bm["cin"], bm["cdw"], bm["cout"], bm["cse"]
            block_in = cur                               # residual source

            # --- 1) expansion 1x1 conv (BN scale folded into weights) + swish
            if bm["expand"]:
                we = wslab(o["we"], cin, cdw)
                eb = wslab(o["eb"], 1, cdw)
                h = swish(jnp.dot(cur, we, preferred_element_type=jnp.float32) + eb)
            else:
                h = cur                                  # (H*W, cdw); cdw == cin

            # --- 2) zero-padded (and phase-split for stride 2) activation in VMEM.
            if s == 1:
                scr[...] = jnp.zeros_like(scr)
                scr[pl.ds(bm["pad_t"], H), pl.ds(bm["pad_l"], W), :] = h.reshape(H, W, cdw)
            else:
                # Scatter the real rows into the padded phase grid with one matmul
                # against a constant 0/1 matrix; pad rows stay exactly zero, which
                # reproduces "pad AFTER expand+BN+swish" semantics exactly.
                sel = sel_refs[bm["sel_idx"]][...]
                h_ph = jnp.dot(sel, h, preferred_element_type=jnp.float32)
                scr[...] = h_ph.reshape(s * s * Hph, Wph, cdw)

            # --- 3) depthwise KxK conv (BN scale folded) + swish, kept as a value.
            dww = wslab(o["dw"], K * K, cdw)             # (K*K, cdw)
            dwb = wslab(o["dwb"], 1, cdw)
            acc = jnp.zeros((Ho, Wo, cdw), jnp.float32)
            for kh in range(K):
                for kw in range(K):
                    ph = (kh % s) * s + (kw % s)
                    patch = scr[pl.ds(ph * Hph + kh // s, Ho),
                                pl.ds(kw // s, Wo), :]
                    acc = acc + patch * dww[kh * K + kw]
            y = swish(acc.reshape(Ho * Wo, cdw) + dwb)

            # --- 4) squeeze-and-excite, entirely in VMEM/vregs.
            pooled = jnp.sum(y, axis=0, keepdims=True) * (1.0 / float(Ho * Wo))
            srw = wslab(o["srw"], cdw, cse)
            srb = wslab(o["srb"], 1, cse)
            sew = wslab(o["sew"], cse, cdw)
            seb = wslab(o["seb"], 1, cdw)
            red = swish(jnp.dot(pooled, srw, preferred_element_type=jnp.float32) + srb)
            exc = jax.nn.sigmoid(
                jnp.dot(red, sew, preferred_element_type=jnp.float32) + seb)

            # --- 5) projection 1x1 conv (BN scale folded) [+ residual; dropout = id]
            pw = wslab(o["pw"], cdw, cout)
            pb = wslab(o["pb"], 1, cout)
            z = jnp.dot(y * exc, pw, preferred_element_type=jnp.float32) + pb
            if bm["residual"]:
                z = z + block_in
            cur = z                                      # (Ho*Wo, cout)

        # --- top 1x1 conv (BN folded) + swish
        tw = wslab(top_meta["off_w"], top_meta["cin"], top_meta["cout"])
        tb = wslab(top_meta["off_b"], 1, top_meta["cout"])
        t = jnp.dot(cur, tw, preferred_element_type=jnp.float32) + tb
        o_ref[0] = swish(t).astype(o_ref.dtype)

    return kernel


def efficientnet_encoder_forward(x_nchw, wmat, sel_mats, metas, top_meta):
    N = x_nchw.shape[0]
    x = jnp.transpose(x_nchw, (0, 2, 3, 1))              # NCHW -> NHWC
    _, H0, W0, C0 = x.shape
    n_sel = len(sel_mats)
    kernel = make_encoder_kernel(metas, top_meta, n_sel)
    Mo, Co = top_meta["M"], top_meta["cout"]

    in_specs = [pl.BlockSpec((1, H0, W0, C0), lambda n: (n, 0, 0, 0)),
                pl.BlockSpec(wmat.shape, lambda n: (0, 0))]
    for smat in sel_mats:
        in_specs.append(pl.BlockSpec(smat.shape, lambda n: (0, 0)))

    out = pl.pallas_call(
        kernel,
        out_shape=jax.ShapeDtypeStruct((N, Mo, Co), x.dtype),
        grid=(N,),
        in_specs=in_specs,
        out_specs=pl.BlockSpec((1, Mo, Co), lambda n: (n, 0, 0)),
        scratch_shapes=[pltpu.VMEM(bm["scr_shape"], jnp.float32) for bm in metas],
        compiler_params=pltpu.CompilerParams(dimension_semantics=("parallel",)),
    )(x, wmat, *sel_mats)

    Hf, Wf = top_meta["Ho"], top_meta["Wo"]
    return jnp.transpose(out.reshape(N, Hf, Wf, Co), (0, 3, 1, 2))  # -> NCHW


# ----------------------------------------------------------------------------
# Pure-JAX reference (same eval semantics) for a correctness check
# ----------------------------------------------------------------------------
def reference_forward(x_nchw, params, specs, cfg):
    eps = cfg["batch_norm_eps"]
    x = jnp.transpose(x_nchw, (0, 2, 3, 1))
    for blk, p in zip(specs, params["blocks"]):
        inp = x
        h = x
        if blk["expand"]:
            es, eb = fold_bn(p["expand_bn"], eps)
            h = jnp.einsum("nhwc,cd->nhwd", h, p["expand_w"]) * es + eb
            h = h * jax.nn.sigmoid(h)
        k, s = blk["kernel_size"], blk["stride"]
        if s == 2:
            pl_, pr_, pt_, pb_ = correct_pad(k, adjust=blk["adjust_padding"])
        else:
            pl_ = pr_ = pt_ = pb_ = k // 2
        hp = jnp.pad(h, ((0, 0), (pt_, pb_), (pl_, pr_), (0, 0)))
        dws, dwb = fold_bn(p["dw_bn"], eps)
        N, Hp, Wp, C = hp.shape
        Ho, Wo = (Hp - k) // s + 1, (Wp - k) // s + 1
        acc = jnp.zeros((N, Ho, Wo, C), jnp.float32)
        for kh in range(k):
            for kw in range(k):
                acc = acc + hp[:, kh:kh + s * Ho:s, kw:kw + s * Wo:s, :] * p["dw_w"][kh, kw]
        y = acc * dws + dwb
        y = y * jax.nn.sigmoid(y)
        pooled = jnp.mean(y, axis=(1, 2), keepdims=True)
        red = jnp.einsum("nhwc,cd->nhwd", pooled, p["se_reduce_w"]) + p["se_reduce_b"]
        red = red * jax.nn.sigmoid(red)
        exc = jax.nn.sigmoid(jnp.einsum("nhwc,cd->nhwd", red, p["se_expand_w"]) + p["se_expand_b"])
        y = y * exc
        ps_, pb2_ = fold_bn(p["project_bn"], eps)
        z = jnp.einsum("nhwc,cd->nhwd", y, p["project_w"]) * ps_ + pb2_
        if blk["apply_dropout"]:
            z = z + inp
        x = z
    ts, tb = fold_bn(params["top_bn"], eps)
    t = jnp.einsum("nhwc,cd->nhwd", x, params["top_w"]) * ts + tb
    t = t * jax.nn.sigmoid(t)
    return jnp.transpose(t, (0, 3, 1, 2))


# ----------------------------------------------------------------------------
if __name__ == "__main__":
    cfg = CONFIG
    specs = build_block_specs(cfg)
    key = jax.random.PRNGKey(0)
    kp, kx = jax.random.split(key)
    params = init_params(kp, specs, cfg)

    N, H0, W0 = 2, 16, 16
    in_ch = specs[0]["in_dim"]                            # 8
    x = jax.random.normal(kx, (N, in_ch, H0, W0), jnp.float32)   # NCHW input

    wmat, block_offs, top_offs = pack_params(params, specs, cfg)
    metas, sel_specs, Hf, Wf = build_meta(specs, H0, W0)
    for m, o in zip(metas, block_offs):
        m["offs"] = o
    sel_mats = [build_phase_scatter(**ss) for ss in sel_specs]
    hidden = round_filters(cfg, 1280)                     # 64
    top_meta = dict(cin=specs[-1]["out_dim"], cout=hidden, Ho=Hf, Wo=Wf,
                    M=Hf * Wf, off_w=top_offs["w"], off_b=top_offs["b"])

    fwd = jax.jit(lambda xx, ww, ss: efficientnet_encoder_forward(xx, ww, ss, metas, top_meta))
    out = jax.block_until_ready(fwd(x, wmat, sel_mats))

    assert out.shape == (N, hidden, Hf, Wf), out.shape
    assert bool(jnp.all(jnp.isfinite(out)))

    ref = reference_forward(x, params, specs, cfg)
    max_err = float(jnp.max(jnp.abs(out - ref)))
    assert bool(jnp.allclose(out, ref, rtol=0.1, atol=0.1)), f"max abs err {max_err}"
    print("KERNEL_OK")
</pallas_src>

<mosaic_0001>
module attributes {stable_mosaic.version = 11 : i64} {
  func.func @kernel(%arg0: i32, %arg1: memref<1x16x16x8xf32, #tpu.memory_space<vmem>>, %arg2: memref<784x144xf32, #tpu.memory_space<vmem>>, %arg3: memref<640x256xf32, #tpu.memory_space<vmem>>, %arg4: memref<1x64x64xf32, #tpu.memory_space<vmem>>, %arg5: memref<18x18x8xf32, #tpu.memory_space<vmem>>, %arg6: memref<40x16x96xf32, #tpu.memory_space<vmem>>, %arg7: memref<12x12x144xf32, #tpu.memory_space<vmem>>) attributes {dimension_semantics = [#tpu.dimension_semantics<parallel>], iteration_bounds = array<i64: 2>, scalar_prefetch = 0 : i64, scratch_operands = 3 : i64, tpu.core_type = #tpu.core_type<tc>, window_params = [{transform_indices = @transform_0, window_bounds = array<i64: 1, 16, 16, 8>}, {pipeline_mode = #tpu.pipeline_mode<synchronous>, transform_indices = @transform_1, window_bounds = array<i64: 784, 144>}, {pipeline_mode = #tpu.pipeline_mode<synchronous>, transform_indices = @transform_2, window_bounds = array<i64: 640, 256>}, {transform_indices = @transform_3, window_bounds = array<i64: 1, 64, 64>}]} {
    %c0 = arith.constant 0 : index
    %c0_0 = arith.constant 0 : index
    %c0_1 = arith.constant 0 : index
    %c0_2 = arith.constant 0 : index
    %0 = vector.load %arg1[%c0, %c0_0, %c0_1, %c0_2] : memref<1x16x16x8xf32, #tpu.memory_space<vmem>>, vector<1x16x16x8xf32>
    %1 = vector.shape_cast %0 : vector<1x16x16x8xf32> to vector<16x16x8xf32>
    %2 = vector.shape_cast %1 : vector<16x16x8xf32> to vector<256x8xf32>
    %cst = arith.constant 0.000000e+00 : f32
    %3 = vector.broadcast %cst : f32 to vector<18x18x8xf32>
    %c0_3 = arith.constant 0 : index
    %c0_4 = arith.constant 0 : index
    %c0_5 = arith.constant 0 : index
    %4 = vector.load %arg5[%c0_3, %c0_4, %c0_5] : memref<18x18x8xf32, #tpu.memory_space<vmem>>, vector<18x18x8xf32>
    tpu.vector_store %arg5[%c0_3, %c0_4, %c0_5], %3 {strides = array<i32>} : memref<18x18x8xf32, #tpu.memory_space<vmem>>, vector<18x18x8xf32>,
    %5 = vector.shape_cast %2 : vector<256x8xf32> to vector<16x16x8xf32>
    %c1 = arith.constant 1 : index
    %c1_6 = arith.constant 1 : index
    %c0_7 = arith.constant 0 : index
    %6 = vector.load %arg5[%c1, %c1_6, %c0_7] : memref<18x18x8xf32, #tpu.memory_space<vmem>>, vector<16x16x8xf32>
    tpu.vector_store %arg5[%c1, %c1_6, %c0_7], %5 {strides = array<i32>} : memref<18x18x8xf32, #tpu.memory_space<vmem>>, vector<16x16x8xf32>,
    %c0_8 = arith.constant 0 : index
    %c0_9 = arith.constant 0 : index
    %7 = vector.load %arg2[%c0_8, %c0_9] : memref<784x144xf32, #tpu.memory_space<vmem>>, vector<9x8xf32>
    %c16 = arith.constant 16 : index
    %c0_10 = arith.constant 0 : index
    %8 = vector.load %arg2[%c16, %c0_10] : memref<784x144xf32, #tpu.memory_space<vmem>>, vector<1x8xf32>
    %cst_11 = arith.constant 0.000000e+00 : f32
    %9 = vector.broadcast %cst_11 : f32 to vector<16x16x8xf32>
    %c0_12 = arith.constant 0 : index
    %c0_13 = arith.constant 0 : index
    %c0_14 = arith.constant 0 : index
    %10 = vector.load %arg5[%c0_12, %c0_13, %c0_14] : memref<18x18x8xf32, #tpu.memory_space<vmem>>, vector<16x16x8xf32>
    %11 = vector.extract_strided_slice %7 {offsets = [0, 0], sizes = [1, 8], strides = [1, 1]} : vector<9x8xf32> to vector<1x8xf32>
    %12 = vector.shape_cast %11 : vector<1x8xf32> to vector<8xf32>
    %13 = vector.shape_cast %12 : vector<8xf32> to vector<1x1x8xf32>
    %14 = vector.broadcast %13 : vector<1x1x8xf32> to vector<16x16x8xf32>
    %15 = arith.mulf %10, %14 : vector<16x16x8xf32>
    %16 = arith.addf %9, %15 : vector<16x16x8xf32>
    %c0_15 = arith.constant 0 : index
    %c1_16 = arith.constant 1 : index
    %c0_17 = arith.constant 0 : index
    %17 = vector.load %arg5[%c0_15, %c1_16, %c0_17] : memref<18x18x8xf32, #tpu.memory_space<vmem>>, vector<16x16x8xf32>
    %18 = vector.extract_strided_slice %7 {offsets = [1, 0], sizes = [1, 8], strides = [1, 1]} : vector<9x8xf32> to vector<1x8xf32>
    %19 = vector.shape_cast %18 : vector<1x8xf32> to vector<8xf32>
    %20 = vector.shape_cast %19 : vector<8xf32> to vector<1x1x8xf32>
    %21 = vector.broadcast %20 : vector<1x1x8xf32> to vector<16x16x8xf32>
    %22 = arith.mulf %17, %21 : vector<16x16x8xf32>
    %23 = arith.addf %16, %22 : vector<16x16x8xf32>
    %c0_18 = arith.constant 0 : index
    %c2 = arith.constant 2 : index
    %c0_19 = arith.constant 0 : index
    %24 = vector.load %arg5[%c0_18, %c2, %c0_19] : memref<18x18x8xf32, #tpu.memory_space<vmem>>, vector<16x16x8xf32>
    %25 = vector.extract_strided_slice %7 {offsets = [2, 0], sizes = [1, 8], strides = [1, 1]} : vector<9x8xf32> to vector<1x8xf32>
    %26 = vector.shape_cast %25 : vector<1x8xf32> to vector<8xf32>
    %27 = vector.shape_cast %26 : vector<8xf32> to vector<1x1x8xf32>
    %28 = vector.broadcast %27 : vector<1x1x8xf32> to vector<16x16x8xf32>
    %29 = arith.mulf %24, %28 : vector<16x16x8xf32>
    %30 = arith.addf %23, %29 : vector<16x16x8xf32>
    %c1_20 = arith.constant 1 : index
    %c0_21 = arith.constant 0 : index
    %c0_22 = arith.constant 0 : index
    %31 = vector.load %arg5[%c1_20, %c0_21, %c0_22] : memref<18x18x8xf32, #tpu.memory_space<vmem>>, vector<16x16x8xf32>
    %32 = vector.extract_strided_slice %7 {offsets = [3, 0], sizes = [1, 8], strides = [1, 1]} : vector<9x8xf32> to vector<1x8xf32>
    %33 = vector.shape_cast %32 : vector<1x8xf32> to vector<8xf32>
    %34 = vector.shape_cast %33 : vector<8xf32> to vector<1x1x8xf32>
    %35 = vector.broadcast %34 : vector<1x1x8xf32> to vector<16x16x8xf32>
    %36 = arith.mulf %31, %35 : vector<16x16x8xf32>
    %37 = arith.addf %30, %36 : vector<16x16x8xf32>
    %c1_23 = arith.constant 1 : index
    %c1_24 = arith.constant 1 : index
    %c0_25 = arith.constant 0 : index
    %38 = vector.load %arg5[%c1_23, %c1_24, %c0_25] : memref<18x18x8xf32, #tpu.memory_space<vmem>>, vector<16x16x8xf32>
    %39 = vector.extract_strided_slice %7 {offsets = [4, 0], sizes = [1, 8], strides = [1, 1]} : vector<9x8xf32> to vector<1x8xf32>
    %40 = vector.shape_cast %39 : vector<1x8xf32> to vector<8xf32>
    %41 = vector.shape_cast %40 : vector<8xf32> to vector<1x1x8xf32>
    %42 = vector.broadcast %41 : vector<1x1x8xf32> to vector<16x16x8xf32>
    %43 = arith.mulf %38, %42 : vector<16x16x8xf32>
    %44 = arith.addf %37, %43 : vector<16x16x8xf32>
    %c1_26 = arith.constant 1 : index
    %c2_27 = arith.constant 2 : index
    %c0_28 = arith.constant 0 : index
    %45 = vector.load %arg5[%c1_26, %c2_27, %c0_28] : memref<18x18x8xf32, #tpu.memory_space<vmem>>, vector<16x16x8xf32>
    %46 = vector.extract_strided_slice %7 {offsets = [5, 0], sizes = [1, 8], strides = [1, 1]} : vector<9x8xf32> to vector<1x8xf32>
    %47 = vector.shape_cast %46 : vector<1x8xf32> to vector<8xf32>
    %48 = vector.shape_cast %47 : vector<8xf32> to vector<1x1x8xf32>
    %49 = vector.broadcast %48 : vector<1x1x8xf32> to vector<16x16x8xf32>
    %50 = arith.mulf %45, %49 : vector<16x16x8xf32>
    %51 = arith.addf %44, %50 : vector<16x16x8xf32>
    %c2_29 = arith.constant 2 : index
    %c0_30 = arith.constant 0 : index
    %c0_31 = arith.constant 0 : index
    %52 = vector.load %arg5[%c2_29, %c0_30, %c0_31] : memref<18x18x8xf32, #tpu.memory_space<vmem>>, vector<16x16x8xf32>
    %53 = vector.extract_strided_slice %7 {offsets = [6, 0], sizes = [1, 8], strides = [1, 1]} : vector<9x8xf32> to vector<1x8xf32>
    %54 = vector.shape_cast %53 : vector<1x8xf32> to vector<8xf32>
    %55 = vector.shape_cast %54 : vector<8xf32> to vector<1x1x8xf32>
    %56 = vector.broadcast %55 : vector<1x1x8xf32> to vector<16x16x8xf32>
    %57 = arith.mulf %52, %56 : vector<16x16x8xf32>
    %58 = arith.addf %51, %57 : vector<16x16x8xf32>
    %c2_32 = arith.constant 2 : index
    %c1_33 = arith.constant 1 : index
    %c0_34 = arith.constant 0 : index
    %59 = vector.load %arg5[%c2_32, %c1_33, %c0_34] : memref<18x18x8xf32, #tpu.memory_space<vmem>>, vector<16x16x8xf32>
    %60 = vector.extract_strided_slice %7 {offsets = [7, 0], sizes = [1, 8], strides = [1, 1]} : vector<9x8xf32> to vector<1x8xf32>
    %61 = vector.shape_cast %60 : vector<1x8xf32> to vector<8xf32>
    %62 = vector.shape_cast %61 : vector<8xf32> to vector<1x1x8xf32>
    %63 = vector.broadcast %62 : vector<1x1x8xf32> to vector<16x16x8xf32>
    %64 = arith.mulf %59, %63 : vector<16x16x8xf32>
    %65 = arith.addf %58, %64 : vector<16x16x8xf32>
    %c2_35 = arith.constant 2 : index
    %c2_36 = arith.constant 2 : index
    %c0_37 = arith.constant 0 : index
    %66 = vector.load %arg5[%c2_35, %c2_36, %c0_37] : memref<18x18x8xf32, #tpu.memory_space<vmem>>, vector<16x16x8xf32>
    %67 = vector.extract_strided_slice %7 {offsets = [8, 0], sizes = [1, 8], strides = [1, 1]} : vector<9x8xf32> to vector<1x8xf32>
    %68 = vector.shape_cast %67 : vector<1x8xf32> to vector<8xf32>
    %69 = vector.shape_cast %68 : vector<8xf32> to vector<1x1x8xf32>
    %70 = vector.broadcast %69 : vector<1x1x8xf32> to vector<16x16x8xf32>
    %71 = arith.mulf %66, %70 : vector<16x16x8xf32>
    %72 = arith.addf %65, %71 : vector<16x16x8xf32>
    %73 = vector.shape_cast %72 : vector<16x16x8xf32> to vector<256x8xf32>
    %74 = vector.broadcast %8 : vector<1x8xf32> to vector<256x8xf32>
    %75 = arith.addf %73, %74 : vector<256x8xf32>
    %76 = arith.negf %75 : vector<256x8xf32>
    %77 = math.exp %76 : vector<256x8xf32>
    %cst_38 = arith.constant 1.000000e+00 : f32
    %78 = vector.broadcast %cst_38 : f32 to vector<256x8xf32>
    %79 = arith.addf %78, %77 : vector<256x8xf32>
    %80 = arith.divf %78, %79 : vector<256x8xf32>
    %81 = arith.mulf %75, %80 : vector<256x8xf32>
    %cst_39 = arith.constant dense<0.000000e+00> : vector<8xf32>
    %82 = vector.multi_reduction <add>, %81, %cst_39 [0] : vector<256x8xf32> to vector<8xf32>
    %83 = vector.shape_cast %82 : vector<8xf32> to vector<1x8xf32>
    %cst_40 = arith.constant 3.906250e-03 : f32
    %84 = vector.broadcast %cst_40 : f32 to vector<1x8xf32>
    %85 = arith.mulf %83, %84 : vector<1x8xf32>
    %c24 = arith.constant 24 : index
    %c0_41 = arith.constant 0 : index
    %86 = vector.load %arg2[%c24, %c0_41] : memref<784x144xf32, #tpu.memory_space<vmem>>, vector<8x2xf32>
    %c32 = arith.constant 32 : index
    %c0_42 = arith.constant 0 : index
    %87 = vector.load %arg2[%c32, %c0_42] : memref<784x144xf32, #tpu.memory_space<vmem>>, vector<1x2xf32>
    %c40 = arith.constant 40 : index
    %c0_43 = arith.constant 0 : index
    %88 = vector.load %arg2[%c40, %c0_43] : memref<784x144xf32, #tpu.memory_space<vmem>>, vector<2x8xf32>
    %c48 = arith.constant 48 : index
    %c0_44 = arith.constant 0 : index
    %89 = vector.load %arg2[%c48, %c0_44] : memref<784x144xf32, #tpu.memory_space<vmem>>, vector<1x8xf32>
    %cst_45 = arith.constant dense<0.000000e+00> : vector<1x2xf32>
    %90 = tpu.matmul %85, %86, %cst_45 {dimension_numbers = #tpu.dot_dimension_numbers<[1], [0], [0], [1], [0, 0, 1, 1], [], []>} : vector<1x8xf32>, vector<8x2xf32>, vector<1x2xf32> -> vector<1x2xf32>
    %91 = arith.addf %90, %87 : vector<1x2xf32>
    %92 = arith.negf %91 : vector<1x2xf32>
    %93 = math.exp %92 : vector<1x2xf32>
    %cst_46 = arith.constant 1.000000e+00 : f32
    %94 = vector.broadcast %cst_46 : f32 to vector<1x2xf32>
    %95 = arith.addf %94, %93 : vector<1x2xf32>
    %96 = arith.divf %94, %95 : vector<1x2xf32>
    %97 = arith.mulf %91, %96 : vector<1x2xf32>
    %cst_47 = arith.constant dense<0.000000e+00> : vector<1x8xf32>
    %98 = tpu.matmul %97, %88, %cst_47 {dimension_numbers = #tpu.dot_dimension_numbers<[1], [0], [0], [1], [0, 0, 1, 1], [], []>} : vector<1x2xf32>, vector<2x8xf32>, vector<1x8xf32> -> vector<1x8xf32>
    %99 = arith.addf %98, %89 : vector<1x8xf32>
    %100 = arith.negf %99 : vector<1x8xf32>
    %101 = math.exp %100 : vector<1x8xf32>
    %cst_48 = arith.constant 1.000000e+00 : f32
    %102 = vector.broadcast %cst_48 : f32 to vector<1x8xf32>
    %103 = arith.addf %102, %101 : vector<1x8xf32>
    %104 = arith.divf %102, %103 : vector<1x8xf32>
    %c56 = arith.constant 56 : index
    %c0_49 = arith.constant 0 : index
    %105 = vector.load %arg2[%c56, %c0_49] : memref<784x144xf32, #tpu.memory_space<vmem>>, vector<8x16xf32>
    %c64 = arith.constant 64 : index
    %c0_50 = arith.constant 0 : index
    %106 = vector.load %arg2[%c64, %c0_50] : memref<784x144xf32, #tpu.memory_space<vmem>>, vector<1x16xf32>
    %107 = vector.broadcast %104 : vector<1x8xf32> to vector<256x8xf32>
    %108 = arith.mulf %81, %107 : vector<256x8xf32>
    %cst_51 = arith.constant dense<0.000000e+00> : vector<256x16xf32>
    %109 = tpu.matmul %108, %105, %cst_51 {dimension_numbers = #tpu.dot_dimension_numbers<[1], [0], [0], [1], [0, 0, 1, 1], [], []>} : vector<256x8xf32>, vector<8x16xf32>, vector<256x16xf32> -> vector<256x16xf32>
    %110 = vector.broadcast %106 : vector<1x16xf32> to vector<256x16xf32>
    %111 = arith.addf %109, %110 : vector<256x16xf32>
    %c72 = arith.constant 72 : index
    %c0_52 = arith.constant 0 : index
    %112 = vector.load %arg2[%c72, %c0_52] : memref<784x144xf32, #tpu.memory_space<vmem>>, vector<16x96xf32>
    %c88 = arith.constant 88 : index
    %c0_53 = arith.constant 0 : index
    %113 = vector.load %arg2[%c88, %c0_53] : memref<784x144xf32, #tpu.memory_space<vmem>>, vector<1x96xf32>
    %cst_54 = arith.constant dense<0.000000e+00> : vector<256x96xf32>
    %114 = tpu.matmul %111, %112, %cst_54 {dimension_numbers = #tpu.dot_dimension_numbers<[1], [0], [0], [1], [0, 0, 1, 1], [], []>} : vector<256x16xf32>, vector<16x96xf32>, vector<256x96xf32> -> vector<256x96xf32>
    %115 = vector.broadcast %113 : vector<1x96xf32> to vector<256x96xf32>
    %116 = arith.addf %114, %115 : vector<256x96xf32>
    %117 = arith.negf %116 : vector<256x96xf32>
    %118 = math.exp %117 : vector<256x96xf32>
    %cst_55 = arith.constant 1.000000e+00 : f32
    %119 = vector.broadcast %cst_55 : f32 to vector<256x96xf32>
    %120 = arith.addf %119, %118 : vector<256x96xf32>
    %121 = arith.divf %119, %120 : vector<256x96xf32>
    %122 = arith.mulf %116, %121 : vector<256x96xf32>
    %c0_56 = arith.constant 0 : index
    %c0_57 = arith.constant 0 : index
    %123 = vector.load %arg3[%c0_56, %c0_57] : memref<640x256xf32, #tpu.memory_space<vmem>>, vector<640x256xf32>
    %cst_58 = arith.constant dense<0.000000e+00> : vector<640x96xf32>
    %124 = tpu.matmul %123, %122, %cst_58 {dimension_numbers = #tpu.dot_dimension_numbers<[1], [0], [0], [1], [0, 0, 1, 1], [], []>} : vector<640x256xf32>, vector<256x96xf32>, vector<640x96xf32> -> vector<640x96xf32>
    %125 = vector.shape_cast %124 : vector<640x96xf32> to vector<40x16x96xf32>
    %c0_59 = arith.constant 0 : index
    %c0_60 = arith.constant 0 : index
    %c0_61 = arith.constant 0 : index
    %126 = vector.load %arg6[%c0_59, %c0_60, %c0_61] : memref<40x16x96xf32, #tpu.memory_space<vmem>>, vector<40x16x96xf32>
    tpu.vector_store %arg6[%c0_59, %c0_60, %c0_61], %125 {strides = array<i32>} : memref<40x16x96xf32, #tpu.memory_space<vmem>>, vector<40x16x96xf32>,
    %c96 = arith.constant 96 : index
    %c0_62 = arith.constant 0 : index
    %127 = vector.load %arg2[%c96, %c0_62] : memref<784x144xf32, #tpu.memory_space<vmem>>, vector<25x96xf32>
    %c128 = arith.constant 128 : index
    %c0_63 = arith.constant 0 : index
    %128 = vector.load %arg2[%c128, %c0_63] : memref<784x144xf32, #tpu.memory_space<vmem>>, vector<1x96xf32>
    %cst_64 = arith.constant 0.000000e+00 : f32
    %129 = vector.broadcast %cst_64 : f32 to vector<8x8x96xf32>
    %c0_65 = arith.constant 0 : index
    %c0_66 = arith.constant 0 : index
    %c0_67 = arith.constant 0 : index
    %130 = vector.load %arg6[%c0_65, %c0_66, %c0_67] : memref<40x16x96xf32, #tpu.memory_space<vmem>>, vector<8x8x96xf32>
    %131 = vector.extract_strided_slice %127 {offsets = [0, 0], sizes = [1, 96], strides = [1, 1]} : vector<25x96xf32> to vector<1x96xf32>
    %132 = vector.shape_cast %131 : vector<1x96xf32> to vector<96xf32>
    %133 = vector.shape_cast %132 : vector<96xf32> to vector<1x1x96xf32>
    %134 = vector.broadcast %133 : vector<1x1x96xf32> to vector<8x8x96xf32>
    %135 = arith.mulf %130, %134 : vector<8x8x96xf32>
    %136 = arith.addf %129, %135 : vector<8x8x96xf32>
    %c10 = arith.constant 10 : index
    %c0_68 = arith.constant 0 : index
    %c0_69 = arith.constant 0 : index
    %137 = vector.load %arg6[%c10, %c0_68, %c0_69] : memref<40x16x96xf32, #tpu.memory_space<vmem>>, vector<8x8x96xf32>
    %138 = vector.extract_strided_slice %127 {offsets = [1, 0], sizes = [1, 96], strides = [1, 1]} : vector<25x96xf32> to vector<1x96xf32>
    %139 = vector.shape_cast %138 : vector<1x96xf32> to vector<96xf32>
    %140 = vector.shape_cast %139 : vector<96xf32> to vector<1x1x96xf32>
    %141 = vector.broadcast %140 : vector<1x1x96xf32> to vector<8x8x96xf32>
    %142 = arith.mulf %137, %141 : vector<8x8x96xf32>
    %143 = arith.addf %136, %142 : vector<8x8x96xf32>
    %c0_70 = arith.constant 0 : index
    %c1_71 = arith.constant 1 : index
    %c0_72 = arith.constant 0 : index
    %144 = vector.load %arg6[%c0_70, %c1_71, %c0_72] : memref<40x16x96xf32, #tpu.memory_space<vmem>>, vector<8x8x96xf32>
    %145 = vector.extract_strided_slice %127 {offsets = [2, 0], sizes = [1, 96], strides = [1, 1]} : vector<25x96xf32> to vector<1x96xf32>
    %146 = vector.shape_cast %145 : vector<1x96xf32> to vector<96xf32>
    %147 = vector.shape_cast %146 : vector<96xf32> to vector<1x1x96xf32>
    %148 = vector.broadcast %147 : vector<1x1x96xf32> to vector<8x8x96xf32>
    %149 = arith.mulf %144, %148 : vector<8x8x96xf32>
    %150 = arith.addf %143, %149 : vector<8x8x96xf32>
    %c10_73 = arith.constant 10 : index
    %c1_74 = arith.constant 1 : index
    %c0_75 = arith.constant 0 : index
    %151 = vector.load %arg6[%c10_73, %c1_74, %c0_75] : memref<40x16x96xf32, #tpu.memory_space<vmem>>, vector<8x8x96xf32>
    %152 = vector.extract_strided_slice %127 {offsets = [3, 0], sizes = [1, 96], strides = [1, 1]} : vector<25x96xf32> to vector<1x96xf32>
    %153 = vector.shape_cast %152 : vector<1x96xf32> to vector<96xf32>
    %154 = vector.shape_cast %153 : vector<96xf32> to vector<1x1x96xf32>
    %155 = vector.broadcast %154 : vector<1x1x96xf32> to vector<8x8x96xf32>
    %156 = arith.mulf %151, %155 : vector<8x8x96xf32>
    %157 = arith.addf %150, %156 : vector<8x8x96xf32>
    %c0_76 = arith.constant 0 : index
    %c2_77 = arith.constant 2 : index
    %c0_78 = arith.constant 0 : index
    %158 = vector.load %arg6[%c0_76, %c2_77, %c0_78] : memref<40x16x96xf32, #tpu.memory_space<vmem>>, vector<8x8x96xf32>
    %159 = vector.extract_strided_slice %127 {offsets = [4, 0], sizes = [1, 96], strides = [1, 1]} : vector<25x96xf32> to vector<1x96xf32>
    %160 = vector.shape_cast %159 : vector<1x96xf32> to vector<96xf32>
    %161 = vector.shape_cast %160 : vector<96xf32> to vector<1x1x96xf32>
    %162 = vector.broadcast %161 : vector<1x1x96xf32> to vector<8x8x96xf32>
    %163 = arith.mulf %158, %162 : vector<8x8x96xf32>
    %164 = arith.addf %157, %163 : vector<8x8x96xf32>
    %c20 = arith.constant 20 : index
    %c0_79 = arith.constant 0 : index
    %c0_80 = arith.constant 0 : index
    %165 = vector.load %arg6[%c20, %c0_79, %c0_80] : memref<40x16x96xf32, #tpu.memory_space<vmem>>, vector<8x8x96xf32>
    %166 = vector.extract_strided_slice %127 {offsets = [5, 0], sizes = [1, 96], strides = [1, 1]} : vector<25x96xf32> to vector<1x96xf32>
    %167 = vector.shape_cast %166 : vector<1x96xf32> to vector<96xf32>
    %168 = vector.shape_cast %167 : vector<96xf32> to vector<1x1x96xf32>
    %169 = vector.broadcast %168 : vector<1x1x96xf32> to vector<8x8x96xf32>
    %170 = arith.mulf %165, %169 : vector<8x8x96xf32>
    %171 = arith.addf %164, %170 : vector<8x8x96xf32>
    %c30 = arith.constant 30 : index
    %c0_81 = arith.constant 0 : index
    %c0_82 = arith.constant 0 : index
    %172 = vector.load %arg6[%c30, %c0_81, %c0_82] : memref<40x16x96xf32, #tpu.memory_space<vmem>>, vector<8x8x96xf32>
    %173 = vector.extract_strided_slice %127 {offsets = [6, 0], sizes = [1, 96], strides = [1, 1]} : vector<25x96xf32> to vector<1x96xf32>
    %174 = vector.shape_cast %173 : vector<1x96xf32> to vector<96xf32>
    %175 = vector.shape_cast %174 : vector<96xf32> to vector<1x1x96xf32>
    %176 = vector.broadcast %175 : vector<1x1x96xf32> to vector<8x8x96xf32>
    %177 = arith.mulf %172, %176 : vector<8x8x96xf32>
    %178 = arith.addf %171, %177 : vector<8x8x96xf32>
    %c20_83 = arith.constant 20 : index
    %c1_84 = arith.constant 1 : index
    %c0_85 = arith.constant 0 : index
    %179 = vector.load %arg6[%c20_83, %c1_84, %c0_85] : memref<40x16x96xf32, #tpu.memory_space<vmem>>, vector<8x8x96xf32>
    %180 = vector.extract_strided_slice %127 {offsets = [7, 0], sizes = [1, 96], strides = [1, 1]} : vector<25x96xf32> to vector<1x96xf32>
    %181 = vector.shape_cast %180 : vector<1x96xf32> to vector<96xf32>
    %182 = vector.shape_cast %181 : vector<96xf32> to vector<1x1x96xf32>
    %183 = vector.broadcast %182 : vector<1x1x96xf32> to vector<8x8x96xf32>
    %184 = arith.mulf %179, %183 : vector<8x8x96xf32>
    %185 = arith.addf %178, %184 : vector<8x8x96xf32>
    %c30_86 = arith.constant 30 : index
    %c1_87 = arith.constant 1 : index
    %c0_88 = arith.constant 0 : index
    %186 = vector.load %arg6[%c30_86, %c1_87, %c0_88] : memref<40x16x96xf32, #tpu.memory_space<vmem>>, vector<8x8x96xf32>
    %187 = vector.extract_strided_slice %127 {offsets = [8, 0], sizes = [1, 96], strides = [1, 1]} : vector<25x96xf32> to vector<1x96xf32>
    %188 = vector.shape_cast %187 : vector<1x96xf32> to vector<96xf32>
    %189 = vector.shape_cast %188 : vector<96xf32> to vector<1x1x96xf32>
    %190 = vector.broadcast %189 : vector<1x1x96xf32> to vector<8x8x96xf32>
    %191 = arith.mulf %186, %190 : vector<8x8x96xf32>
    %192 = arith.addf %185, %191 : vector<8x8x96xf32>
    %c20_89 = arith.constant 20 : index
    %c2_90 = arith.constant 2 : index
    %c0_91 = arith.constant 0 : index
    %193 = vector.load %arg6[%c20_89, %c2_90, %c0_91] : memref<40x16x96xf32, #tpu.memory_space<vmem>>, vector<8x8x96xf32>
    %194 = vector.extract_strided_slice %127 {offsets = [9, 0], sizes = [1, 96], strides = [1, 1]} : vector<25x96xf32> to vector<1x96xf32>
    %195 = vector.shape_cast %194 : vector<1x96xf32> to vector<96xf32>
    %196 = vector.shape_cast %195 : vector<96xf32> to vector<1x1x96xf32>
    %197 = vector.broadcast %196 : vector<1x1x96xf32> to vector<8x8x96xf32>
    %198 = arith.mulf %193, %197 : vector<8x8x96xf32>
    %199 = arith.addf %192, %198 : vector<8x8x96xf32>
    %c1_92 = arith.constant 1 : index
    %c0_93 = arith.constant 0 : index
    %c0_94 = arith.constant 0 : index
    %200 = vector.load %arg6[%c1_92, %c0_93, %c0_94] : memref<40x16x96xf32, #tpu.memory_space<vmem>>, vector<8x8x96xf32>
    %201 = vector.extract_strided_slice %127 {offsets = [10, 0], sizes = [1, 96], strides = [1, 1]} : vector<25x96xf32> to vector<1x96xf32>
    %202 = vector.shape_cast %201 : vector<1x96xf32> to vector<96xf32>
    %203 = vector.shape_cast %202 : vector<96xf32> to vector<1x1x96xf32>
    %204 = vector.broadcast %203 : vector<1x1x96xf32> to vector<8x8x96xf32>
    %205 = arith.mulf %200, %204 : vector<8x8x96xf32>
    %206 = arith.addf %199, %205 : vector<8x8x96xf32>
    %c11 = arith.constant 11 : index
    %c0_95 = arith.constant 0 : index
    %c0_96 = arith.constant 0 : index
    %207 = vector.load %arg6[%c11, %c0_95, %c0_96] : memref<40x16x96xf32, #tpu.memory_space<vmem>>, vector<8x8x96xf32>
    %208 = vector.extract_strided_slice %127 {offsets = [11, 0], sizes = [1, 96], strides = [1, 1]} : vector<25x96xf32> to vector<1x96xf32>
    %209 = vector.shape_cast %208 : vector<1x96xf32> to vector<96xf32>
    %210 = vector.shape_cast %209 : vector<96xf32> to vector<1x1x96xf32>
    %211 = vector.broadcast %210 : vector<1x1x96xf32> to vector<8x8x96xf32>
    %212 = arith.mulf %207, %211 : vector<8x8x96xf32>
    %213 = arith.addf %206, %212 : vector<8x8x96xf32>
    %c1_97 = arith.constant 1 : index
    %c1_98 = arith.constant 1 : index
    %c0_99 = arith.constant 0 : index
    %214 = vector.load %arg6[%c1_97, %c1_98, %c0_99] : memref<40x16x96xf32, #tpu.memory_space<vmem>>, vector<8x8x96xf32>
    %215 = vector.extract_strided_slice %127 {offsets = [12, 0], sizes = [1, 96], strides = [1, 1]} : vector<25x96xf32> to vector<1x96xf32>
    %216 = vector.shape_cast %215 : vector<1x96xf32> to vector<96xf32>
    %217 = vector.shape_cast %216 : vector<96xf32> to vector<1x1x96xf32>
    %218 = vector.broadcast %217 : vector<1x1x96xf32> to vector<8x8x96xf32>
    %219 = arith.mulf %214, %218 : vector<8x8x96xf32>
    %220 = arith.addf %213, %219 : vector<8x8x96xf32>
    %c11_100 = arith.constant 11 : index
    %c1_101 = arith.constant 1 : index
    %c0_102 = arith.constant 0 : index
    %221 = vector.load %arg6[%c11_100, %c1_101, %c0_102] : memref<40x16x96xf32, #tpu.memory_space<vmem>>, vector<8x8x96xf32>
    %222 = vector.extract_strided_slice %127 {offsets = [13, 0], sizes = [1, 96], strides = [1, 1]} : vector<25x96xf32> to vector<1x96xf32>
    %223 = vector.shape_cast %222 : vector<1x96xf32> to vector<96xf32>
    %224 = vector.shape_cast %223 : vector<96xf32> to vector<1x1x96xf32>
    %225 = vector.broadcast %224 : vector<1x1x96xf32> to vector<8x8x96xf32>
    %226 = arith.mulf %221, %225 : vector<8x8x96xf32>
    %227 = arith.addf %220, %226 : vector<8x8x96xf32>
    %c1_103 = arith.constant 1 : index
    %c2_104 = arith.constant 2 : index
    %c0_105 = arith.constant 0 : index
    %228 = vector.load %arg6[%c1_103, %c2_104, %c0_105] : memref<40x16x96xf32, #tpu.memory_space<vmem>>, vector<8x8x96xf32>
    %229 = vector.extract_strided_slice %127 {offsets = [14, 0], sizes = [1, 96], strides = [1, 1]} : vector<25x96xf32> to vector<1x96xf32>
    %230 = vector.shape_cast %229 : vector<1x96xf32> to vector<96xf32>
    %231 = vector.shape_cast %230 : vector<96xf32> to vector<1x1x96xf32>
    %232 = vector.broadcast %231 : vector<1x1x96xf32> to vector<8x8x96xf32>
    %233 = arith.mulf %228, %232 : vector<8x8x96xf32>
    %234 = arith.addf %227, %233 : vector<8x8x96xf32>
    %c21 = arith.constant 21 : index
    %c0_106 = arith.constant 0 : index
    %c0_107 = arith.constant 0 : index
    %235 = vector.load %arg6[%c21, %c0_106, %c0_107] : memref<40x16x96xf32, #tpu.memory_space<vmem>>, vector<8x8x96xf32>
    %236 = vector.extract_strided_slice %127 {offsets = [15, 0], sizes = [1, 96], strides = [1, 1]} : vector<25x96xf32> to vector<1x96xf32>
    %237 = vector.shape_cast %236 : vector<1x96xf32> to vector<96xf32>
    %238 = vector.shape_cast %237 : vector<96xf32> to vector<1x1x96xf32>
    %239 = vector.broadcast %238 : vector<1x1x96xf32> to vector<8x8x96xf32>
    %240 = arith.mulf %235, %239 : vector<8x8x96xf32>
    %241 = arith.addf %234, %240 : vector<8x8x96xf32>
    %c31 = arith.constant 31 : index
    %c0_108 = arith.constant 0 : index
    %c0_109 = arith.constant 0 : index
    %242 = vector.load %arg6[%c31, %c0_108, %c0_109] : memref<40x16x96xf32, #tpu.memory_space<vmem>>, vector<8x8x96xf32>
    %243 = vector.extract_strided_slice %127 {offsets = [16, 0], sizes = [1, 96], strides = [1, 1]} : vector<25x96xf32> to vector<1x96xf32>
    %244 = vector.shape_cast %243 : vector<1x96xf32> to vector<96xf32>
    %245 = vector.shape_cast %244 : vector<96xf32> to vector<1x1x96xf32>
    %246 = vector.broadcast %245 : vector<1x1x96xf32> to vector<8x8x96xf32>
    %247 = arith.mulf %242, %246 : vector<8x8x96xf32>
    %248 = arith.addf %241, %247 : vector<8x8x96xf32>
    %c21_110 = arith.constant 21 : index
    %c1_111 = arith.constant 1 : index
    %c0_112 = arith.constant 0 : index
    %249 = vector.load %arg6[%c21_110, %c1_111, %c0_112] : memref<40x16x96xf32, #tpu.memory_space<vmem>>, vector<8x8x96xf32>
    %250 = vector.extract_strided_slice %127 {offsets = [17, 0], sizes = [1, 96], strides = [1, 1]} : vector<25x96xf32> to vector<1x96xf32>
    %251 = vector.shape_cast %250 : vector<1x96xf32> to vector<96xf32>
    %252 = vector.shape_cast %251 : vector<96xf32> to vector<1x1x96xf32>
    %253 = vector.broadcast %252 : vector<1x1x96xf32> to vector<8x8x96xf32>
    %254 = arith.mulf %249, %253 : vector<8x8x96xf32>
    %255 = arith.addf %248, %254 : vector<8x8x96xf32>
    %c31_113 = arith.constant 31 : index
    %c1_114 = arith.constant 1 : index
    %c0_115 = arith.constant 0 : index
    %256 = vector.load %arg6[%c31_113, %c1_114, %c0_115] : memref<40x16x96xf32, #tpu.memory_space<vmem>>, vector<8x8x96xf32>
    %257 = vector.extract_strided_slice %127 {offsets = [18, 0], sizes = [1, 96], strides = [1, 1]} : vector<25x96xf32> to vector<1x96xf32>
    %258 = vector.shape_cast %257 : vector<1x96xf32> to vector<96xf32>
    %259 = vector.shape_cast %258 : vector<96xf32> to vector<1x1x96xf32>
    %260 = vector.broadcast %259 : vector<1x1x96xf32> to vector<8x8x96xf32>
    %261 = arith.mulf %256, %260 : vector<8x8x96xf32>
    %262 = arith.addf %255, %261 : vector<8x8x96xf32>
    %c21_116 = arith.constant 21 : index
    %c2_117 = arith.constant 2 : index
    %c0_118 = arith.constant 0 : index
    %263 = vector.load %arg6[%c21_116, %c2_117, %c0_118] : memref<40x16x96xf32, #tpu.memory_space<vmem>>, vector<8x8x96xf32>
    %264 = vector.extract_strided_slice %127 {offsets = [19, 0], sizes = [1, 96], strides = [1, 1]} : vector<25x96xf32> to vector<1x96xf32>
    %265 = vector.shape_cast %264 : vector<1x96xf32> to vector<96xf32>
    %266 = vector.shape_cast %265 : vector<96xf32> to vector<1x1x96xf32>
    %267 = vector.broadcast %266 : vector<1x1x96xf32> to vector<8x8x96xf32>
    %268 = arith.mulf %263, %267 : vector<8x8x96xf32>
    %269 = arith.addf %262, %268 : vector<8x8x96xf32>
    %c2_119 = arith.constant 2 : index
    %c0_120 = arith.constant 0 : index
    %c0_121 = arith.constant 0 : index
    %270 = vector.load %arg6[%c2_119, %c0_120, %c0_121] : memref<40x16x96xf32, #tpu.memory_space<vmem>>, vector<8x8x96xf32>
    %271 = vector.extract_strided_slice %127 {offsets = [20, 0], sizes = [1, 96], strides = [1, 1]} : vector<25x96xf32> to vector<1x96xf32>
    %272 = vector.shape_cast %271 : vector<1x96xf32> to vector<96xf32>
    %273 = vector.shape_cast %272 : vector<96xf32> to vector<1x1x96xf32>
    %274 = vector.broadcast %273 : vector<1x1x96xf32> to vector<8x8x96xf32>
    %275 = arith.mulf %270, %274 : vector<8x8x96xf32>
    %276 = arith.addf %269, %275 : vector<8x8x96xf32>
    %c12 = arith.constant 12 : index
    %c0_122 = arith.constant 0 : index
    %c0_123 = arith.constant 0 : index
    %277 = vector.load %arg6[%c12, %c0_122, %c0_123] : memref<40x16x96xf32, #tpu.memory_space<vmem>>, vector<8x8x96xf32>
    %278 = vector.extract_strided_slice %127 {offsets = [21, 0], sizes = [1, 96], strides = [1, 1]} : vector<25x96xf32> to vector<1x96xf32>
    %279 = vector.shape_cast %278 : vector<1x96xf32> to vector<96xf32>
    %280 = vector.shape_cast %279 : vector<96xf32> to vector<1x1x96xf32>
    %281 = vector.broadcast %280 : vector<1x1x96xf32> to vector<8x8x96xf32>
    %282 = arith.mulf %277, %281 : vector<8x8x96xf32>
    %283 = arith.addf %276, %282 : vector<8x8x96xf32>
    %c2_124 = arith.constant 2 : index
    %c1_125 = arith.constant 1 : index
    %c0_126 = arith.constant 0 : index
    %284 = vector.load %arg6[%c2_124, %c1_125, %c0_126] : memref<40x16x96xf32, #tpu.memory_space<vmem>>, vector<8x8x96xf32>
    %285 = vector.extract_strided_slice %127 {offsets = [22, 0], sizes = [1, 96], strides = [1, 1]} : vector<25x96xf32> to vector<1x96xf32>
    %286 = vector.shape_cast %285 : vector<1x96xf32> to vector<96xf32>
    %287 = vector.shape_cast %286 : vector<96xf32> to vector<1x1x96xf32>
    %288 = vector.broadcast %287 : vector<1x1x96xf32> to vector<8x8x96xf32>
    %289 = arith.mulf %284, %288 : vector<8x8x96xf32>
    %290 = arith.addf %283, %289 : vector<8x8x96xf32>
    %c12_127 = arith.constant 12 : index
    %c1_128 = arith.constant 1 : index
    %c0_129 = arith.constant 0 : index
    %291 = vector.load %arg6[%c12_127, %c1_128, %c0_129] : memref<40x16x96xf32, #tpu.memory_space<vmem>>, vector<8x8x96xf32>
    %292 = vector.extract_strided_slice %127 {offsets = [23, 0], sizes = [1, 96], strides = [1, 1]} : vector<25x96xf32> to vector<1x96xf32>
    %293 = vector.shape_cast %292 : vector<1x96xf32> to vector<96xf32>
    %294 = vector.shape_cast %293 : vector<96xf32> to vector<1x1x96xf32>
    %295 = vector.broadcast %294 : vector<1x1x96xf32> to vector<8x8x96xf32>
    %296 = arith.mulf %291, %295 : vector<8x8x96xf32>
    %297 = arith.addf %290, %296 : vector<8x8x96xf32>
    %c2_130 = arith.constant 2 : index
    %c2_131 = arith.constant 2 : index
    %c0_132 = arith.constant 0 : index
    %298 = vector.load %arg6[%c2_130, %c2_131, %c0_132] : memref<40x16x96xf32, #tpu.memory_space<vmem>>, vector<8x8x96xf32>
    %299 = vector.extract_strided_slice %127 {offsets = [24, 0], sizes = [1, 96], strides = [1, 1]} : vector<25x96xf32> to vector<1x96xf32>
    %300 = vector.shape_cast %299 : vector<1x96xf32> to vector<96xf32>
    %301 = vector.shape_cast %300 : vector<96xf32> to vector<1x1x96xf32>
    %302 = vector.broadcast %301 : vector<1x1x96xf32> to vector<8x8x96xf32>
    %303 = arith.mulf %298, %302 : vector<8x8x96xf32>
    %304 = arith.addf %297, %303 : vector<8x8x96xf32>
    %305 = vector.shape_cast %304 : vector<8x8x96xf32> to vector<64x96xf32>
    %306 = vector.broadcast %128 : vector<1x96xf32> to vector<64x96xf32>
    %307 = arith.addf %305, %306 : vector<64x96xf32>
    %308 = arith.negf %307 : vector<64x96xf32>
    %309 = math.exp %308 : vector<64x96xf32>
    %cst_133 = arith.constant 1.000000e+00 : f32
    %310 = vector.broadcast %cst_133 : f32 to vector<64x96xf32>
    %311 = arith.addf %310, %309 : vector<64x96xf32>
    %312 = arith.divf %310, %311 : vector<64x96xf32>
    %313 = arith.mulf %307, %312 : vector<64x96xf32>
    %cst_134 = arith.constant dense<0.000000e+00> : vector<96xf32>
    %314 = vector.multi_reduction <add>, %313, %cst_134 [0] : vector<64x96xf32> to vector<96xf32>
    %315 = vector.shape_cast %314 : vector<96xf32> to vector<1x96xf32>
    %cst_135 = arith.constant 1.562500e-02 : f32
    %316 = vector.broadcast %cst_135 : f32 to vector<1x96xf32>
    %317 = arith.mulf %315, %316 : vector<1x96xf32>
    %c136 = arith.constant 136 : index
    %c0_136 = arith.constant 0 : index
    %318 = vector.load %arg2[%c136, %c0_136] : memref<784x144xf32, #tpu.memory_space<vmem>>, vector<96x4xf32>
    %c232 = arith.constant 232 : index
    %c0_137 = arith.constant 0 : index
    %319 = vector.load %arg2[%c232, %c0_137] : memref<784x144xf32, #tpu.memory_space<vmem>>, vector<1x4xf32>
    %c240 = arith.constant 240 : index
    %c0_138 = arith.constant 0 : index
    %320 = vector.load %arg2[%c240, %c0_138] : memref<784x144xf32, #tpu.memory_space<vmem>>, vector<4x96xf32>
    %c248 = arith.constant 248 : index
    %c0_139 = arith.constant 0 : index
    %321 = vector.load %arg2[%c248, %c0_139] : memref<784x144xf32, #tpu.memory_space<vmem>>, vector<1x96xf32>
    %cst_140 = arith.constant dense<0.000000e+00> : vector<1x4xf32>
    %322 = tpu.matmul %317, %318, %cst_140 {dimension_numbers = #tpu.dot_dimension_numbers<[1], [0], [0], [1], [0, 0, 1, 1], [], []>} : vector<1x96xf32>, vector<96x4xf32>, vector<1x4xf32> -> vector<1x4xf32>
    %323 = arith.addf %322, %319 : vector<1x4xf32>
    %324 = arith.negf %323 : vector<1x4xf32>
    %325 = math.exp %324 : vector<1x4xf32>
    %cst_141 = arith.constant 1.000000e+00 : f32
    %326 = vector.broadcast %cst_141 : f32 to vector<1x4xf32>
    %327 = arith.addf %326, %325 : vector<1x4xf32>
    %328 = arith.divf %326, %327 : vector<1x4xf32>
    %329 = arith.mulf %323, %328 : vector<1x4xf32>
    %cst_142 = arith.constant dense<0.000000e+00> : vector<1x96xf32>
    %330 = tpu.matmul %329, %320, %cst_142 {dimension_numbers = #tpu.dot_dimension_numbers<[1], [0], [0], [1], [0, 0, 1, 1], [], []>} : vector<1x4xf32>, vector<4x96xf32>, vector<1x96xf32> -> vector<1x96xf32>
    %331 = arith.addf %330, %321 : vector<1x96xf32>
    %332 = arith.negf %331 : vector<1x96xf32>
    %333 = math.exp %332 : vector<1x96xf32>
    %cst_143 = arith.constant 1.000000e+00 : f32
    %334 = vector.broadcast %cst_143 : f32 to vector<1x96xf32>
    %335 = arith.addf %334, %333 : vector<1x96xf32>
    %336 = arith.divf %334, %335 : vector<1x96xf32>
    %c256 = arith.constant 256 : index
    %c0_144 = arith.constant 0 : index
    %337 = vector.load %arg2[%c256, %c0_144] : memref<784x144xf32, #tpu.memory_space<vmem>>, vector<96x24xf32>
    %c352 = arith.constant 352 : index
    %c0_145 = arith.constant 0 : index
    %338 = vector.load %arg2[%c352, %c0_145] : memref<784x144xf32, #tpu.memory_space<vmem>>, vector<1x24xf32>
    %339 = vector.broadcast %336 : vector<1x96xf32> to vector<64x96xf32>
    %340 = arith.mulf %313, %339 : vector<64x96xf32>
    %cst_146 = arith.constant dense<0.000000e+00> : vector<64x24xf32>
    %341 = tpu.matmul %340, %337, %cst_146 {dimension_numbers = #tpu.dot_dimension_numbers<[1], [0], [0], [1], [0, 0, 1, 1], [], []>} : vector<64x96xf32>, vector<96x24xf32>, vector<64x24xf32> -> vector<64x24xf32>
    %342 = vector.broadcast %338 : vector<1x24xf32> to vector<64x24xf32>
    %343 = arith.addf %341, %342 : vector<64x24xf32>
    %c360 = arith.constant 360 : index
    %c0_147 = arith.constant 0 : index
    %344 = vector.load %arg2[%c360, %c0_147] : memref<784x144xf32, #tpu.memory_space<vmem>>, vector<24x144xf32>
    %c384 = arith.constant 384 : index
    %c0_148 = arith.constant 0 : index
    %345 = vector.load %arg2[%c384, %c0_148] : memref<784x144xf32, #tpu.memory_space<vmem>>, vector<1x144xf32>
    %cst_149 = arith.constant dense<0.000000e+00> : vector<64x144xf32>
    %346 = tpu.matmul %343, %344, %cst_149 {dimension_numbers = #tpu.dot_dimension_numbers<[1], [0], [0], [1], [0, 0, 1, 1], [], []>} : vector<64x24xf32>, vector<24x144xf32>, vector<64x144xf32> -> vector<64x144xf32>
    %347 = vector.broadcast %345 : vector<1x144xf32> to vector<64x144xf32>
    %348 = arith.addf %346, %347 : vector<64x144xf32>
    %349 = arith.negf %348 : vector<64x144xf32>
    %350 = math.exp %349 : vector<64x144xf32>
    %cst_150 = arith.constant 1.000000e+00 : f32
    %351 = vector.broadcast %cst_150 : f32 to vector<64x144xf32>
    %352 = arith.addf %351, %350 : vector<64x144xf32>
    %353 = arith.divf %351, %352 : vector<64x144xf32>
    %354 = arith.mulf %348, %353 : vector<64x144xf32>
    %cst_151 = arith.constant 0.000000e+00 : f32
    %355 = vector.broadcast %cst_151 : f32 to vector<12x12x144xf32>
    %c0_152 = arith.constant 0 : index
    %c0_153 = arith.constant 0 : index
    %c0_154 = arith.constant 0 : index
    %356 = vector.load %arg7[%c0_152, %c0_153, %c0_154] : memref<12x12x144xf32, #tpu.memory_space<vmem>>, vector<12x12x144xf32>
    tpu.vector_store %arg7[%c0_152, %c0_153, %c0_154], %355 {strides = array<i32>} : memref<12x12x144xf32, #tpu.memory_space<vmem>>, vector<12x12x144xf32>,
    %357 = vector.shape_cast %354 : vector<64x144xf32> to vector<8x8x144xf32>
    %c2_155 = arith.constant 2 : index
    %c2_156 = arith.constant 2 : index
    %c0_157 = arith.constant 0 : index
    %358 = vector.load %arg7[%c2_155, %c2_156, %c0_157] : memref<12x12x144xf32, #tpu.memory_space<vmem>>, vector<8x8x144xf32>
    tpu.vector_store %arg7[%c2_155, %c2_156, %c0_157], %357 {strides = array<i32>} : memref<12x12x144xf32, #tpu.memory_space<vmem>>, vector<8x8x144xf32>,
    %c392 = arith.constant 392 : index
    %c0_158 = arith.constant 0 : index
    %359 = vector.load %arg2[%c392, %c0_158] : memref<784x144xf32, #tpu.memory_space<vmem>>, vector<25x144xf32>
    %c424 = arith.constant 424 : index
    %c0_159 = arith.constant 0 : index
    %360 = vector.load %arg2[%c424, %c0_159] : memref<784x144xf32, #tpu.memory_space<vmem>>, vector<1x144xf32>
    %cst_160 = arith.constant 0.000000e+00 : f32
    %361 = vector.broadcast %cst_160 : f32 to vector<8x8x144xf32>
    %c0_161 = arith.constant 0 : index
    %c0_162 = arith.constant 0 : index
    %c0_163 = arith.constant 0 : index
    %362 = vector.load %arg7[%c0_161, %c0_162, %c0_163] : memref<12x12x144xf32, #tpu.memory_space<vmem>>, vector<8x8x144xf32>
    %363 = vector.extract_strided_slice %359 {offsets = [0, 0], sizes = [1, 144], strides = [1, 1]} : vector<25x144xf32> to vector<1x144xf32>
    %364 = vector.shape_cast %363 : vector<1x144xf32> to vector<144xf32>
    %365 = vector.shape_cast %364 : vector<144xf32> to vector<1x1x144xf32>
    %366 = vector.broadcast %365 : vector<1x1x144xf32> to vector<8x8x144xf32>
    %367 = arith.mulf %362, %366 : vector<8x8x144xf32>
    %368 = arith.addf %361, %367 : vector<8x8x144xf32>
    %c0_164 = arith.constant 0 : index
    %c1_165 = arith.constant 1 : index
    %c0_166 = arith.constant 0 : index
    %369 = vector.load %arg7[%c0_164, %c1_165, %c0_166] : memref<12x12x144xf32, #tpu.memory_space<vmem>>, vector<8x8x144xf32>
    %370 = vector.extract_strided_slice %359 {offsets = [1, 0], sizes = [1, 144], strides = [1, 1]} : vector<25x144xf32> to vector<1x144xf32>
    %371 = vector.shape_cast %370 : vector<1x144xf32> to vector<144xf32>
    %372 = vector.shape_cast %371 : vector<144xf32> to vector<1x1x144xf32>
    %373 = vector.broadcast %372 : vector<1x1x144xf32> to vector<8x8x144xf32>
    %374 = arith.mulf %369, %373 : vector<8x8x144xf32>
    %375 = arith.addf %368, %374 : vector<8x8x144xf32>
    %c0_167 = arith.constant 0 : index
    %c2_168 = arith.constant 2 : index
    %c0_169 = arith.constant 0 : index
    %376 = vector.load %arg7[%c0_167, %c2_168, %c0_169] : memref<12x12x144xf32, #tpu.memory_space<vmem>>, vector<8x8x144xf32>
    %377 = vector.extract_strided_slice %359 {offsets = [2, 0], sizes = [1, 144], strides = [1, 1]} : vector<25x144xf32> to vector<1x144xf32>
    %378 = vector.shape_cast %377 : vector<1x144xf32> to vector<144xf32>
    %379 = vector.shape_cast %378 : vector<144xf32> to vector<1x1x144xf32>
    %380 = vector.broadcast %379 : vector<1x1x144xf32> to vector<8x8x144xf32>
    %381 = arith.mulf %376, %380 : vector<8x8x144xf32>
    %382 = arith.addf %375, %381 : vector<8x8x144xf32>
    %c0_170 = arith.constant 0 : index
    %c3 = arith.constant 3 : index
    %c0_171 = arith.constant 0 : index
    %383 = vector.load %arg7[%c0_170, %c3, %c0_171] : memref<12x12x144xf32, #tpu.memory_space<vmem>>, vector<8x8x144xf32>
    %384 = vector.extract_strided_slice %359 {offsets = [3, 0], sizes = [1, 144], strides = [1, 1]} : vector<25x144xf32> to vector<1x144xf32>
    %385 = vector.shape_cast %384 : vector<1x144xf32> to vector<144xf32>
    %386 = vector.shape_cast %385 : vector<144xf32> to vector<1x1x144xf32>
    %387 = vector.broadcast %386 : vector<1x1x144xf32> to vector<8x8x144xf32>
    %388 = arith.mulf %383, %387 : vector<8x8x144xf32>
    %389 = arith.addf %382, %388 : vector<8x8x144xf32>
    %c0_172 = arith.constant 0 : index
    %c4 = arith.constant 4 : index
    %c0_173 = arith.constant 0 : index
    %390 = vector.load %arg7[%c0_172, %c4, %c0_173] : memref<12x12x144xf32, #tpu.memory_space<vmem>>, vector<8x8x144xf32>
    %391 = vector.extract_strided_slice %359 {offsets = [4, 0], sizes = [1, 144], strides = [1, 1]} : vector<25x144xf32> to vector<1x144xf32>
    %392 = vector.shape_cast %391 : vector<1x144xf32> to vector<144xf32>
    %393 = vector.shape_cast %392 : vector<144xf32> to vector<1x1x144xf32>
    %394 = vector.broadcast %393 : vector<1x1x144xf32> to vector<8x8x144xf32>
    %395 = arith.mulf %390, %394 : vector<8x8x144xf32>
    %396 = arith.addf %389, %395 : vector<8x8x144xf32>
    %c1_174 = arith.constant 1 : index
    %c0_175 = arith.constant 0 : index
    %c0_176 = arith.constant 0 : index
    %397 = vector.load %arg7[%c1_174, %c0_175, %c0_176] : memref<12x12x144xf32, #tpu.memory_space<vmem>>, vector<8x8x144xf32>
    %398 = vector.extract_strided_slice %359 {offsets = [5, 0], sizes = [1, 144], strides = [1, 1]} : vector<25x144xf32> to vector<1x144xf32>
    %399 = vector.shape_cast %398 : vector<1x144xf32> to vector<144xf32>
    %400 = vector.shape_cast %399 : vector<144xf32> to vector<1x1x144xf32>
    %401 = vector.broadcast %400 : vector<1x1x144xf32> to vector<8x8x144xf32>
    %402 = arith.mulf %397, %401 : vector<8x8x144xf32>
    %403 = arith.addf %396, %402 : vector<8x8x144xf32>
    %c1_177 = arith.constant 1 : index
    %c1_178 = arith.constant 1 : index
    %c0_179 = arith.constant 0 : index
    %404 = vector.load %arg7[%c1_177, %c1_178, %c0_179] : memref<12x12x144xf32, #tpu.memory_space<vmem>>, vector<8x8x144xf32>
    %405 = vector.extract_strided_slice %359 {offsets = [6, 0], sizes = [1, 144], strides = [1, 1]} : vector<25x144xf32> to vector<1x144xf32>
    %406 = vector.shape_cast %405 : vector<1x144xf32> to vector<144xf32>
    %407 = vector.shape_cast %406 : vector<144xf32> to vector<1x1x144xf32>
    %408 = vector.broadcast %407 : vector<1x1x144xf32> to vector<8x8x144xf32>
    %409 = arith.mulf %404, %408 : vector<8x8x144xf32>
    %410 = arith.addf %403, %409 : vector<8x8x144xf32>
    %c1_180 = arith.constant 1 : index
    %c2_181 = arith.constant 2 : index
    %c0_182 = arith.constant 0 : index
    %411 = vector.load %arg7[%c1_180, %c2_181, %c0_182] : memref<12x12x144xf32, #tpu.memory_space<vmem>>, vector<8x8x144xf32>
    %412 = vector.extract_strided_slice %359 {offsets = [7, 0], sizes = [1, 144], strides = [1, 1]} : vector<25x144xf32> to vector<1x144xf32>
    %413 = vector.shape_cast %412 : vector<1x144xf32> to vector<144xf32>
    %414 = vector.shape_cast %413 : vector<144xf32> to vector<1x1x144xf32>
    %415 = vector.broadcast %414 : vector<1x1x144xf32> to vector<8x8x144xf32>
    %416 = arith.mulf %411, %415 : vector<8x8x144xf32>
    %417 = arith.addf %410, %416 : vector<8x8x144xf32>
    %c1_183 = arith.constant 1 : index
    %c3_184 = arith.constant 3 : index
    %c0_185 = arith.constant 0 : index
    %418 = vector.load %arg7[%c1_183, %c3_184, %c0_185] : memref<12x12x144xf32, #tpu.memory_space<vmem>>, vector<8x8x144xf32>
    %419 = vector.extract_strided_slice %359 {offsets = [8, 0], sizes = [1, 144], strides = [1, 1]} : vector<25x144xf32> to vector<1x144xf32>
    %420 = vector.shape_cast %419 : vector<1x144xf32> to vector<144xf32>
    %421 = vector.shape_cast %420 : vector<144xf32> to vector<1x1x144xf32>
    %422 = vector.broadcast %421 : vector<1x1x144xf32> to vector<8x8x144xf32>
    %423 = arith.mulf %418, %422 : vector<8x8x144xf32>
    %424 = arith.addf %417, %423 : vector<8x8x144xf32>
    %c1_186 = arith.constant 1 : index
    %c4_187 = arith.constant 4 : index
    %c0_188 = arith.constant 0 : index
    %425 = vector.load %arg7[%c1_186, %c4_187, %c0_188] : memref<12x12x144xf32, #tpu.memory_space<vmem>>, vector<8x8x144xf32>
    %426 = vector.extract_strided_slice %359 {offsets = [9, 0], sizes = [1, 144], strides = [1, 1]} : vector<25x144xf32> to vector<1x144xf32>
    %427 = vector.shape_cast %426 : vector<1x144xf32> to vector<144xf32>
    %428 = vector.shape_cast %427 : vector<144xf32> to vector<1x1x144xf32>
    %429 = vector.broadcast %428 : vector<1x1x144xf32> to vector<8x8x144xf32>
    %430 = arith.mulf %425, %429 : vector<8x8x144xf32>
    %431 = arith.addf %424, %430 : vector<8x8x144xf32>
    %c2_189 = arith.constant 2 : index
    %c0_190 = arith.constant 0 : index
    %c0_191 = arith.constant 0 : index
    %432 = vector.load %arg7[%c2_189, %c0_190, %c0_191] : memref<12x12x144xf32, #tpu.memory_space<vmem>>, vector<8x8x144xf32>
    %433 = vector.extract_strided_slice %359 {offsets = [10, 0], sizes = [1, 144], strides = [1, 1]} : vector<25x144xf32> to vector<1x144xf32>
    %434 = vector.shape_cast %433 : vector<1x144xf32> to vector<144xf32>
    %435 = vector.shape_cast %434 : vector<144xf32> to vector<1x1x144xf32>
    %436 = vector.broadcast %435 : vector<1x1x144xf32> to vector<8x8x144xf32>
    %437 = arith.mulf %432, %436 : vector<8x8x144xf32>
    %438 = arith.addf %431, %437 : vector<8x8x144xf32>
    %c2_192 = arith.constant 2 : index
    %c1_193 = arith.constant 1 : index
    %c0_194 = arith.constant 0 : index
    %439 = vector.load %arg7[%c2_192, %c1_193, %c0_194] : memref<12x12x144xf32, #tpu.memory_space<vmem>>, vector<8x8x144xf32>
    %440 = vector.extract_strided_slice %359 {offsets = [11, 0], sizes = [1, 144], strides = [1, 1]} : vector<25x144xf32> to vector<1x144xf32>
    %441 = vector.shape_cast %440 : vector<1x144xf32> to vector<144xf32>
    %442 = vector.shape_cast %441 : vector<144xf32> to vector<1x1x144xf32>
    %443 = vector.broadcast %442 : vector<1x1x144xf32> to vector<8x8x144xf32>
    %444 = arith.mulf %439, %443 : vector<8x8x144xf32>
    %445 = arith.addf %438, %444 : vector<8x8x144xf32>
    %c2_195 = arith.constant 2 : index
    %c2_196 = arith.constant 2 : index
    %c0_197 = arith.constant 0 : index
    %446 = vector.load %arg7[%c2_195, %c2_196, %c0_197] : memref<12x12x144xf32, #tpu.memory_space<vmem>>, vector<8x8x144xf32>
    %447 = vector.extract_strided_slice %359 {offsets = [12, 0], sizes = [1, 144], strides = [1, 1]} : vector<25x144xf32> to vector<1x144xf32>
    %448 = vector.shape_cast %447 : vector<1x144xf32> to vector<144xf32>
    %449 = vector.shape_cast %448 : vector<144xf32> to vector<1x1x144xf32>
    %450 = vector.broadcast %449 : vector<1x1x144xf32> to vector<8x8x144xf32>
    %451 = arith.mulf %446, %450 : vector<8x8x144xf32>
    %452 = arith.addf %445, %451 : vector<8x8x144xf32>
    %c2_198 = arith.constant 2 : index
    %c3_199 = arith.constant 3 : index
    %c0_200 = arith.constant 0 : index
    %453 = vector.load %arg7[%c2_198, %c3_199, %c0_200] : memref<12x12x144xf32, #tpu.memory_space<vmem>>, vector<8x8x144xf32>
    %454 = vector.extract_strided_slice %359 {offsets = [13, 0], sizes = [1, 144], strides = [1, 1]} : vector<25x144xf32> to vector<1x144xf32>
    %455 = vector.shape_cast %454 : vector<1x144xf32> to vector<144xf32>
    %456 = vector.shape_cast %455 : vector<144xf32> to vector<1x1x144xf32>
    %457 = vector.broadcast %456 : vector<1x1x144xf32> to vector<8x8x144xf32>
    %458 = arith.mulf %453, %457 : vector<8x8x144xf32>
    %459 = arith.addf %452, %458 : vector<8x8x144xf32>
    %c2_201 = arith.constant 2 : index
    %c4_202 = arith.constant 4 : index
    %c0_203 = arith.constant 0 : index
    %460 = vector.load %arg7[%c2_201, %c4_202, %c0_203] : memref<12x12x144xf32, #tpu.memory_space<vmem>>, vector<8x8x144xf32>
    %461 = vector.extract_strided_slice %359 {offsets = [14, 0], sizes = [1, 144], strides = [1, 1]} : vector<25x144xf32> to vector<1x144xf32>
    %462 = vector.shape_cast %461 : vector<1x144xf32> to vector<144xf32>
    %463 = vector.shape_cast %462 : vector<144xf32> to vector<1x1x144xf32>
    %464 = vector.broadcast %463 : vector<1x1x144xf32> to vector<8x8x144xf32>
    %465 = arith.mulf %460, %464 : vector<8x8x144xf32>
    %466 = arith.addf %459, %465 : vector<8x8x144xf32>
    %c3_204 = arith.constant 3 : index
    %c0_205 = arith.constant 0 : index
    %c0_206 = arith.constant 0 : index
    %467 = vector.load %arg7[%c3_204, %c0_205, %c0_206] : memref<12x12x144xf32, #tpu.memory_space<vmem>>, vector<8x8x144xf32>
    %468 = vector.extract_strided_slice %359 {offsets = [15, 0], sizes = [1, 144], strides = [1, 1]} : vector<25x144xf32> to vector<1x144xf32>
    %469 = vector.shape_cast %468 : vector<1x144xf32> to vector<144xf32>
    %470 = vector.shape_cast %469 : vector<144xf32> to vector<1x1x144xf32>
    %471 = vector.broadcast %470 : vector<1x1x144xf32> to vector<8x8x144xf32>
    %472 = arith.mulf %467, %471 : vector<8x8x144xf32>
    %473 = arith.addf %466, %472 : vector<8x8x144xf32>
    %c3_207 = arith.constant 3 : index
    %c1_208 = arith.constant 1 : index
    %c0_209 = arith.constant 0 : index
    %474 = vector.load %arg7[%c3_207, %c1_208, %c0_209] : memref<12x12x144xf32, #tpu.memory_space<vmem>>, vector<8x8x144xf32>
    %475 = vector.extract_strided_slice %359 {offsets = [16, 0], sizes = [1, 144], strides = [1, 1]} : vector<25x144xf32> to vector<1x144xf32>
    %476 = vector.shape_cast %475 : vector<1x144xf32> to vector<144xf32>
    %477 = vector.shape_cast %476 : vector<144xf32> to vector<1x1x144xf32>
    %478 = vector.broadcast %477 : vector<1x1x144xf32> to vector<8x8x144xf32>
    %479 = arith.mulf %474, %478 : vector<8x8x144xf32>
    %480 = arith.addf %473, %479 : vector<8x8x144xf32>
    %c3_210 = arith.constant 3 : index
    %c2_211 = arith.constant 2 : index
    %c0_212 = arith.constant 0 : index
    %481 = vector.load %arg7[%c3_210, %c2_211, %c0_212] : memref<12x12x144xf32, #tpu.memory_space<vmem>>, vector<8x8x144xf32>
    %482 = vector.extract_strided_slice %359 {offsets = [17, 0], sizes = [1, 144], strides = [1, 1]} : vector<25x144xf32> to vector<1x144xf32>
    %483 = vector.shape_cast %482 : vector<1x144xf32> to vector<144xf32>
    %484 = vector.shape_cast %483 : vector<144xf32> to vector<1x1x144xf32>
    %485 = vector.broadcast %484 : vector<1x1x144xf32> to vector<8x8x144xf32>
    %486 = arith.mulf %481, %485 : vector<8x8x144xf32>
    %487 = arith.addf %480, %486 : vector<8x8x144xf32>
    %c3_213 = arith.constant 3 : index
    %c3_214 = arith.constant 3 : index
    %c0_215 = arith.constant 0 : index
    %488 = vector.load %arg7[%c3_213, %c3_214, %c0_215] : memref<12x12x144xf32, #tpu.memory_space<vmem>>, vector<8x8x144xf32>
    %489 = vector.extract_strided_slice %359 {offsets = [18, 0], sizes = [1, 144], strides = [1, 1]} : vector<25x144xf32> to vector<1x144xf32>
    %490 = vector.shape_cast %489 : vector<1x144xf32> to vector<144xf32>
    %491 = vector.shape_cast %490 : vector<144xf32> to vector<1x1x144xf32>
    %492 = vector.broadcast %491 : vector<1x1x144xf32> to vector<8x8x144xf32>
    %493 = arith.mulf %488, %492 : vector<8x8x144xf32>
    %494 = arith.addf %487, %493 : vector<8x8x144xf32>
    %c3_216 = arith.constant 3 : index
    %c4_217 = arith.constant 4 : index
    %c0_218 = arith.constant 0 : index
    %495 = vector.load %arg7[%c3_216, %c4_217, %c0_218] : memref<12x12x144xf32, #tpu.memory_space<vmem>>, vector<8x8x144xf32>
    %496 = vector.extract_strided_slice %359 {offsets = [19, 0], sizes = [1, 144], strides = [1, 1]} : vector<25x144xf32> to vector<1x144xf32>
    %497 = vector.shape_cast %496 : vector<1x144xf32> to vector<144xf32>
    %498 = vector.shape_cast %497 : vector<144xf32> to vector<1x1x144xf32>
    %499 = vector.broadcast %498 : vector<1x1x144xf32> to vector<8x8x144xf32>
    %500 = arith.mulf %495, %499 : vector<8x8x144xf32>
    %501 = arith.addf %494, %500 : vector<8x8x144xf32>
    %c4_219 = arith.constant 4 : index
    %c0_220 = arith.constant 0 : index
    %c0_221 = arith.constant 0 : index
    %502 = vector.load %arg7[%c4_219, %c0_220, %c0_221] : memref<12x12x144xf32, #tpu.memory_space<vmem>>, vector<8x8x144xf32>
    %503 = vector.extract_strided_slice %359 {offsets = [20, 0], sizes = [1, 144], strides = [1, 1]} : vector<25x144xf32> to vector<1x144xf32>
    %504 = vector.shape_cast %503 : vector<1x144xf32> to vector<144xf32>
    %505 = vector.shape_cast %504 : vector<144xf32> to vector<1x1x144xf32>
    %506 = vector.broadcast %505 : vector<1x1x144xf32> to vector<8x8x144xf32>
    %507 = arith.mulf %502, %506 : vector<8x8x144xf32>
    %508 = arith.addf %501, %507 : vector<8x8x144xf32>
    %c4_222 = arith.constant 4 : index
    %c1_223 = arith.constant 1 : index
    %c0_224 = arith.constant 0 : index
    %509 = vector.load %arg7[%c4_222, %c1_223, %c0_224] : memref<12x12x144xf32, #tpu.memory_space<vmem>>, vector<8x8x144xf32>
    %510 = vector.extract_strided_slice %359 {offsets = [21, 0], sizes = [1, 144], strides = [1, 1]} : vector<25x144xf32> to vector<1x144xf32>
    %511 = vector.shape_cast %510 : vector<1x144xf32> to vector<144xf32>
    %512 = vector.shape_cast %511 : vector<144xf32> to vector<1x1x144xf32>
    %513 = vector.broadcast %512 : vector<1x1x144xf32> to vector<8x8x144xf32>
    %514 = arith.mulf %509, %513 : vector<8x8x144xf32>
    %515 = arith.addf %508, %514 : vector<8x8x144xf32>
    %c4_225 = arith.constant 4 : index
    %c2_226 = arith.constant 2 : index
    %c0_227 = arith.constant 0 : index
    %516 = vector.load %arg7[%c4_225, %c2_226, %c0_227] : memref<12x12x144xf32, #tpu.memory_space<vmem>>, vector<8x8x144xf32>
    %517 = vector.extract_strided_slice %359 {offsets = [22, 0], sizes = [1, 144], strides = [1, 1]} : vector<25x144xf32> to vector<1x144xf32>
    %518 = vector.shape_cast %517 : vector<1x144xf32> to vector<144xf32>
    %519 = vector.shape_cast %518 : vector<144xf32> to vector<1x1x144xf32>
    %520 = vector.broadcast %519 : vector<1x1x144xf32> to vector<8x8x144xf32>
    %521 = arith.mulf %516, %520 : vector<8x8x144xf32>
    %522 = arith.addf %515, %521 : vector<8x8x144xf32>
    %c4_228 = arith.constant 4 : index
    %c3_229 = arith.constant 3 : index
    %c0_230 = arith.constant 0 : index
    %523 = vector.load %arg7[%c4_228, %c3_229, %c0_230] : memref<12x12x144xf32, #tpu.memory_space<vmem>>, vector<8x8x144xf32>
    %524 = vector.extract_strided_slice %359 {offsets = [23, 0], sizes = [1, 144], strides = [1, 1]} : vector<25x144xf32> to vector<1x144xf32>
    %525 = vector.shape_cast %524 : vector<1x144xf32> to vector<144xf32>
    %526 = vector.shape_cast %525 : vector<144xf32> to vector<1x1x144xf32>
    %527 = vector.broadcast %526 : vector<1x1x144xf32> to vector<8x8x144xf32>
    %528 = arith.mulf %523, %527 : vector<8x8x144xf32>
    %529 = arith.addf %522, %528 : vector<8x8x144xf32>
    %c4_231 = arith.constant 4 : index
    %c4_232 = arith.constant 4 : index
    %c0_233 = arith.constant 0 : index
    %530 = vector.load %arg7[%c4_231, %c4_232, %c0_233] : memref<12x12x144xf32, #tpu.memory_space<vmem>>, vector<8x8x144xf32>
    %531 = vector.extract_strided_slice %359 {offsets = [24, 0], sizes = [1, 144], strides = [1, 1]} : vector<25x144xf32> to vector<1x144xf32>
    %532 = vector.shape_cast %531 : vector<1x144xf32> to vector<144xf32>
    %533 = vector.shape_cast %532 : vector<144xf32> to vector<1x1x144xf32>
    %534 = vector.broadcast %533 : vector<1x1x144xf32> to vector<8x8x144xf32>
    %535 = arith.mulf %530, %534 : vector<8x8x144xf32>
    %536 = arith.addf %529, %535 : vector<8x8x144xf32>
    %537 = vector.shape_cast %536 : vector<8x8x144xf32> to vector<64x144xf32>
    %538 = vector.broadcast %360 : vector<1x144xf32> to vector<64x144xf32>
    %539 = arith.addf %537, %538 : vector<64x144xf32>
    %540 = arith.negf %539 : vector<64x144xf32>
    %541 = math.exp %540 : vector<64x144xf32>
    %cst_234 = arith.constant 1.000000e+00 : f32
    %542 = vector.broadcast %cst_234 : f32 to vector<64x144xf32>
    %543 = arith.addf %542, %541 : vector<64x144xf32>
    %544 = arith.divf %542, %543 : vector<64x144xf32>
    %545 = arith.mulf %539, %544 : vector<64x144xf32>
    %cst_235 = arith.constant dense<0.000000e+00> : vector<144xf32>
    %546 = vector.multi_reduction <add>, %545, %cst_235 [0] : vector<64x144xf32> to vector<144xf32>
    %547 = vector.shape_cast %546 : vector<144xf32> to vector<1x144xf32>
    %cst_236 = arith.constant 1.562500e-02 : f32
    %548 = vector.broadcast %cst_236 : f32 to vector<1x144xf32>
    %549 = arith.mulf %547, %548 : vector<1x144xf32>
    %c432 = arith.constant 432 : index
    %c0_237 = arith.constant 0 : index
    %550 = vector.load %arg2[%c432, %c0_237] : memref<784x144xf32, #tpu.memory_space<vmem>>, vector<144x6xf32>
    %c576 = arith.constant 576 : index
    %c0_238 = arith.constant 0 : index
    %551 = vector.load %arg2[%c576, %c0_238] : memref<784x144xf32, #tpu.memory_space<vmem>>, vector<1x6xf32>
    %c584 = arith.constant 584 : index
    %c0_239 = arith.constant 0 : index
    %552 = vector.load %arg2[%c584, %c0_239] : memref<784x144xf32, #tpu.memory_space<vmem>>, vector<6x144xf32>
    %c592 = arith.constant 592 : index
    %c0_240 = arith.constant 0 : index
    %553 = vector.load %arg2[%c592, %c0_240] : memref<784x144xf32, #tpu.memory_space<vmem>>, vector<1x144xf32>
    %cst_241 = arith.constant dense<0.000000e+00> : vector<1x6xf32>
    %554 = tpu.matmul %549, %550, %cst_241 {dimension_numbers = #tpu.dot_dimension_numbers<[1], [0], [0], [1], [0, 0, 1, 1], [], []>} : vector<1x144xf32>, vector<144x6xf32>, vector<1x6xf32> -> vector<1x6xf32>
    %555 = arith.addf %554, %551 : vector<1x6xf32>
    %556 = arith.negf %555 : vector<1x6xf32>
    %557 = math.exp %556 : vector<1x6xf32>
    %cst_242 = arith.constant 1.000000e+00 : f32
    %558 = vector.broadcast %cst_242 : f32 to vector<1x6xf32>
    %559 = arith.addf %558, %557 : vector<1x6xf32>
    %560 = arith.divf %558, %559 : vector<1x6xf32>
    %561 = arith.mulf %555, %560 : vector<1x6xf32>
    %cst_243 = arith.constant dense<0.000000e+00> : vector<1x144xf32>
    %562 = tpu.matmul %561, %552, %cst_243 {dimension_numbers = #tpu.dot_dimension_numbers<[1], [0], [0], [1], [0, 0, 1, 1], [], []>} : vector<1x6xf32>, vector<6x144xf32>, vector<1x144xf32> -> vector<1x144xf32>
    %563 = arith.addf %562, %553 : vector<1x144xf32>
    %564 = arith.negf %563 : vector<1x144xf32>
    %565 = math.exp %564 : vector<1x144xf32>
    %cst_244 = arith.constant 1.000000e+00 : f32
    %566 = vector.broadcast %cst_244 : f32 to vector<1x144xf32>
    %567 = arith.addf %566, %565 : vector<1x144xf32>
    %568 = arith.divf %566, %567 : vector<1x144xf32>
    %c600 = arith.constant 600 : index
    %c0_245 = arith.constant 0 : index
    %569 = vector.load %arg2[%c600, %c0_245] : memref<784x144xf32, #tpu.memory_space<vmem>>, vector<144x24xf32>
    %c744 = arith.constant 744 : index
    %c0_246 = arith.constant 0 : index
    %570 = vector.load %arg2[%c744, %c0_246] : memref<784x144xf32, #tpu.memory_space<vmem>>, vector<1x24xf32>
    %571 = vector.broadcast %568 : vector<1x144xf32> to vector<64x144xf32>
    %572 = arith.mulf %545, %571 : vector<64x144xf32>
    %cst_247 = arith.constant dense<0.000000e+00> : vector<64x24xf32>
    %573 = tpu.matmul %572, %569, %cst_247 {dimension_numbers = #tpu.dot_dimension_numbers<[1], [0], [0], [1], [0, 0, 1, 1], [], []>} : vector<64x144xf32>, vector<144x24xf32>, vector<64x24xf32> -> vector<64x24xf32>
    %574 = vector.broadcast %570 : vector<1x24xf32> to vector<64x24xf32>
    %575 = arith.addf %573, %574 : vector<64x24xf32>
    %576 = arith.addf %575, %343 : vector<64x24xf32>
    %c752 = arith.constant 752 : index
    %c0_248 = arith.constant 0 : index
    %577 = vector.load %arg2[%c752, %c0_248] : memref<784x144xf32, #tpu.memory_space<vmem>>, vector<24x64xf32>
    %c776 = arith.constant 776 : index
    %c0_249 = arith.constant 0 : index
    %578 = vector.load %arg2[%c776, %c0_249] : memref<784x144xf32, #tpu.memory_space<vmem>>, vector<1x64xf32>
    %cst_250 = arith.constant dense<0.000000e+00> : vector<64x64xf32>
    %579 = tpu.matmul %576, %577, %cst_250 {dimension_numbers = #tpu.dot_dimension_numbers<[1], [0], [0], [1], [0, 0, 1, 1], [], []>} : vector<64x24xf32>, vector<24x64xf32>, vector<64x64xf32> -> vector<64x64xf32>
    %580 = vector.broadcast %578 : vector<1x64xf32> to vector<64x64xf32>
    %581 = arith.addf %579, %580 : vector<64x64xf32>
    %582 = arith.negf %581 : vector<64x64xf32>
    %583 = math.exp %582 : vector<64x64xf32>
    %cst_251 = arith.constant 1.000000e+00 : f32
    %584 = vector.broadcast %cst_251 : f32 to vector<64x64xf32>
    %585 = arith.addf %584, %583 : vector<64x64xf32>
    %586 = arith.divf %584, %585 : vector<64x64xf32>
    %587 = arith.mulf %581, %586 : vector<64x64xf32>
    %c0_252 = arith.constant 0 : index
    %c0_253 = arith.constant 0 : index
    %c0_254 = arith.constant 0 : index
    %588 = vector.load %arg4[%c0_252, %c0_253, %c0_254] : memref<1x64x64xf32, #tpu.memory_space<vmem>>, vector<1x64x64xf32>
    %589 = vector.shape_cast %588 : vector<1x64x64xf32> to vector<64x64xf32>
    %590 = vector.shape_cast %587 : vector<64x64xf32> to vector<1x64x64xf32>
    tpu.vector_store %arg4[%c0_252, %c0_253, %c0_254], %590 {strides = array<i32>} : memref<1x64x64xf32, #tpu.memory_space<vmem>>, vector<1x64x64xf32>,
    return
  }
  func.func @transform_0(%arg0: i32) -> (i32, i32, i32, i32) {
    %c0_i32 = arith.constant 0 : i32
    %c0_i32_0 = arith.constant 0 : i32
    %c0_i32_1 = arith.constant 0 : i32
    %c0_i32_2 = arith.constant 0 : i32
    return %arg0, %c0_i32, %c0_i32_0, %c0_i32_1 : i32, i32, i32, i32
  }
  func.func @transform_1(%arg0: i32) -> (i32, i32) {
    %c0_i32 = arith.constant 0 : i32
    %c0_i32_0 = arith.constant 0 : i32
    %c0_i32_1 = arith.constant 0 : i32
    return %c0_i32, %c0_i32_0 : i32, i32
  }
  func.func @transform_2(%arg0: i32) -> (i32, i32) {
    %c0_i32 = arith.constant 0 : i32
    %c0_i32_0 = arith.constant 0 : i32
    %c0_i32_1 = arith.constant 0 : i32
    return %c0_i32, %c0_i32_0 : i32, i32
  }
  func.func @transform_3(%arg0: i32) -> (i32, i32, i32) {
    %c0_i32 = arith.constant 0 : i32
    %c0_i32_0 = arith.constant 0 : i32
    %c0_i32_1 = arith.constant 0 : i32
    return %arg0, %c0_i32, %c0_i32_0 : i32, i32, i32
  }
}

</mosaic_0001>

<llo_original>
// kernel: _lambda_.1
$region0: #{_lambda_.1}
  #allocation0 [shape = 'u32[]', space=smem, size = 0x4, offset = 0x4, fixed_abs, tag = 'smem constant byte address 0x4 - core index']
  #allocation1 [shape = 'u32[144,128]{1,0:T(1,128)}', space=vmem, size = 0x12000, scoped, tag = 'internal scratch']
  #allocation2 [shape = 'f32[18,18,8]{2,1,0:T(8,128)}', space=vmem, size = 0x36000, scoped, tag = 'scratch operand']
  #allocation3 [shape = 'f32[40,16,96]{2,1,0:T(8,128)}', space=vmem, size = 0x50000, scoped, tag = 'scratch operand']
  #allocation4 [shape = 'f32[12,12,144]{2,1,0:T(8,128)}', space=vmem, size = 0x30000, scoped, tag = 'scratch operand']
  %s0 = inlined_call_operand.vmem [shape: f32[2,16,16,8], index: 0, kind: input, shape index: {}]
  %s1 = inlined_call_operand.vmem [shape: f32[784,144], index: 1, kind: input, shape index: {}]
  %s2 = inlined_call_operand.vmem [shape: f32[640,256], index: 2, kind: input, shape index: {}]
  %s3 = inlined_call_operand.hbm [shape: f32[2,64,64], index: 3, kind: output, shape index: {}]
  %s4 = sld [smem:[#allocation0]]
  $region45: #{_lambda_.1} parent=0
    _
  %s6 = ssub.s32 1, %s4
  %s7 = scalar_select 0, %s6, %s4
  $region1: #{_lambda_.1} parent=0
    #allocation5 [shape = 'u8[65536]{0}', space=vmem, size = 0x10000, scoped, tag = 'output window, operand 0']
    #allocation6 [shape = 's32[2]{0}', space=sflag, size = 0x8, scoped, tag = 'scoped memory for _lambda_.1']
    %8 = vsyncpa [#allocation6], 0
    %s9 = scalar_lea.sflag [#allocation6], 1
    %10 = vsyncpa %s9, 0
    loop: start=0, step=1, limit=4
    $region2: #{_lambda_.1} parent=1 // loop_pre_header
      _
    $region3: #{_lambda_.1} parent=1 // loop_header
      %s12 = sphi 0, %s16
      %p13 = scmp.ge.s32.totalorder %s12, 4
      %s22 = sphi 0, %s24
      %s25 = sphi 0, %s22
      %s26 = sphi 0, %s25
      %s42 = sphi 0, %s26
      %s46 = sphi 0, %s46
      %s48 = sphi 0, %s46
      %s49 = sphi 0, %s48
      %s63 = sphi 0, %s49
      %s67 = sphi 0, %s67
      %s69 = sphi 0, %s67
      %s70 = sphi 0, %s69
      %s84 = sphi 0, %s70
      %s90 = sphi 0, %s92
      %s93 = sphi 0, %s90
      %s94 = sphi 0, %s93
      %s110 = sphi 0, %s94
    $region4: #{_lambda_.1} parent=1 // loop_header_branch
      %15 = sbr.rel (%p13) target = $region8
    $region5: #{_lambda_.1} parent=1 // loop_body
      %s17 = ssub.s32 %s12, 1
      %s18 = ssub.s32 %s12, 2
      %s19 = sadd.s32 %s12, 1
      %s20 = ssub.s32 %s12, %s19
      %p21 = scmp.eq.s32.totalorder %s20, 0
      %s23 = sadd.s32 %s22, 1
      %s24 = scalar_select %p21, %s22, %s23
      %p27 = pneg %p21
      %p28 = scmp.eq.s32.totalorder %s12, 1
      %p29 = por %p27, %p28
      %p30 = scmp.ne.s32.totalorder %s22, %s25
      %p31 = scmp.eq.s32.totalorder %s12, 0
      %p32 = por %p30, %p31
      %p33 = scmp.ne.s32.totalorder %s22, %s25
      %p34 = scmp.eq.s32.totalorder %s17, 1
      %p35 = por %p33, %p34
      %p36 = scmp.ne.s32.totalorder %s25, %s26
      %p37 = scmp.eq.s32.totalorder %s17, 0
      %p38 = por %p36, %p37
      %p39 = scmp.ne.s32.totalorder %s25, %s26
      %p40 = scmp.eq.s32.totalorder %s18, 1
      %p41 = por %p39, %p40
      %p43 = scmp.ne.s32.totalorder %s26, %s42
      %p44 = scmp.eq.s32.totalorder %s18, 0
      %p45 = por %p43, %p44
      %s47 = sadd.s32 %s46, 1
      %p50 = scmp.eq.s32.totalorder %s12, 1
      %p51 = scmp.ne.s32.totalorder %s46, %s48
      %p52 = scmp.eq.s32.totalorder %s12, 0
      %p53 = por %p51, %p52
      %p54 = scmp.ne.s32.totalorder %s46, %s48
      %p55 = scmp.eq.s32.totalorder %s17, 1
      %p56 = por %p54, %p55
      %p57 = scmp.ne.s32.totalorder %s48, %s49
      %p58 = scmp.eq.s32.totalorder %s17, 0
      %p59 = por %p57, %p58
      %p60 = scmp.ne.s32.totalorder %s48, %s49
      %p61 = scmp.eq.s32.totalorder %s18, 1
      %p62 = por %p60, %p61
      %p64 = scmp.ne.s32.totalorder %s49, %s63
      %p65 = scmp.eq.s32.totalorder %s18, 0
      %p66 = por %p64, %p65
      %s68 = sadd.s32 %s67, 1
      %p71 = scmp.eq.s32.totalorder %s12, 1
      %p72 = scmp.ne.s32.totalorder %s67, %s69
      %p73 = scmp.eq.s32.totalorder %s12, 0
      %p74 = por %p72, %p73
      %p75 = scmp.ne.s32.totalorder %s67, %s69
      %p76 = scmp.eq.s32.totalorder %s17, 1
      %p77 = por %p75, %p76
      %p78 = scmp.ne.s32.totalorder %s69, %s70
      %p79 = scmp.eq.s32.totalorder %s17, 0
      %p80 = por %p78, %p79
      %p81 = scmp.ne.s32.totalorder %s69, %s70
      %p82 = scmp.eq.s32.totalorder %s18, 1
      %p83 = por %p81, %p82
      %p85 = scmp.ne.s32.totalorder %s70, %s84
      %p86 = scmp.eq.s32.totalorder %s18, 0
      %p87 = por %p85, %p86
      %s88 = ssub.s32 %s12, %s19
      %p89 = scmp.eq.s32.totalorder %s88, 0
      %s91 = sadd.s32 %s90, 1
      %s92 = scalar_select %p89, %s90, %s91
      %p95 = pneg %p89
      %p96 = scmp.eq.s32.totalorder %s12, 1
      %p97 = por %p95, %p96
      %p98 = scmp.ne.s32.totalorder %s90, %s93
      %p99 = scmp.eq.s32.totalorder %s12, 0
      %p100 = por %p98, %p99
      %p101 = scmp.ne.s32.totalorder %s90, %s93
      %p102 = scmp.eq.s32.totalorder %s17, 1
      %p103 = por %p101, %p102
      %p104 = scmp.ne.s32.totalorder %s93, %s94
      %p105 = scmp.eq.s32.totalorder %s17, 0
      %p106 = por %p104, %p105
      %p107 = scmp.ne.s32.totalorder %s93, %s94
      %p108 = scmp.eq.s32.totalorder %s18, 1
      %p109 = por %p107, %p108
      %p111 = scmp.ne.s32.totalorder %s94, %s110
      %p112 = scmp.eq.s32.totalorder %s18, 0
      %p113 = por %p111, %p112
      %p114 = scmp.le.s32.totalorder 1, %s12
      %p115 = scmp.lt.s32.totalorder %s12, 3
      %p116 = pnand %p114, %p115
      %p117 = pneg %p116
      // Predicated region
      $region9: #{_lambda_.1} parent=5 // pred_check
        _
      $region10: #{_lambda_.1} parent=5 // pred_check_branch
        %119 = sbr.rel (%p116) target = $region12
      $region11: #{_lambda_.1} parent=5 // pred_region
        %s120 = ssub.s32 %s12, 1
        // Predicated region
        $region13: #{_lambda_.1} parent=11 // pred_check
          %p121 = pneg %p59
        $region14: #{_lambda_.1} parent=11 // pred_check_branch
          %123 = sbr.rel (%p121) target = $region16
        $region15: #{_lambda_.1} parent=11 // pred_region
          _
        $region16: #{_lambda_.1} parent=11 // pred_fallthru
          _
        // Predicated region
        $region17: #{_lambda_.1} parent=11 // pred_check
          %p124 = pneg %p80
        $region18: #{_lambda_.1} parent=11 // pred_check_branch
          %126 = sbr.rel (%p124) target = $region20
        $region19: #{_lambda_.1} parent=11 // pred_region
          _
        $region20: #{_lambda_.1} parent=11 // pred_fallthru
          _
      $region12: #{_lambda_.1} parent=5 // pred_fallthru
        _
      %p127 = scmp.lt.s32.totalorder %s12, 2
      // Predicated region
      $region21: #{_lambda_.1} parent=5 // pred_check
        %p128 = pneg %p127
      $region22: #{_lambda_.1} parent=5 // pred_check_branch
        %130 = sbr.rel (%p128) target = $region24
      $region23: #{_lambda_.1} parent=5 // pred_region
        // Predicated region
        $region25: #{_lambda_.1} parent=23 // pred_check
          %p131 = pneg %p32
        $region26: #{_lambda_.1} parent=23 // pred_check_branch
          %133 = sbr.rel (%p131) target = $region28
        $region27: #{_lambda_.1} parent=23 // pred_region
          %p134 = scmp.lt.s32.totalorder %s12, 1
          %s135 = scalar_select %p134, %s12, 1
          %s136 = smul.addr %s135, 32
          %s137 = smul.addr %s136, 8
          %s138 = scalar_lea.vmem %s0, %s137
        $region28: #{_lambda_.1} parent=23 // pred_fallthru
          _
      $region24: #{_lambda_.1} parent=5 // pred_fallthru
        _
      %p139 = scmp.le.s32.totalorder 1, %s12
      %p140 = scmp.lt.s32.totalorder %s12, 3
      %p141 = pnand %p139, %p140
      %p142 = pneg %p141
      // Predicated region
      $region29: #{_lambda_.1} parent=5 // pred_check
        _
      $region30: #{_lambda_.1} parent=5 // pred_check_branch
        %144 = sbr.rel (%p141) target = $region32
      $region31: #{_lambda_.1} parent=5 // pred_region
        %s145 = ssub.s32 %s12, 1
        %p146 = scmp.lt.s32.totalorder %s17, 1
        %s147 = scalar_select %p146, %s17, 1
        %s148 = smul.addr %s147, 32
        %s149 = smul.addr %s148, 8
        %s150 = scalar_lea.vmem %s0, %s149
        %p151 = pneg %p38
        %p152 = pneg %p35
        %p153 = pneg %p59
        %p154 = pneg %p56
        %p155 = pneg %p80
        %p156 = pneg %p77
        %p157 = pneg %p106
        %p158 = pneg %p103
        %s159 = sand.u32 %s93, 1
        %s160 = scalar_lea.sflag [#allocation6], %s159
        %s161 = sand.u32 %s93, 1
        %s162 = smul.addr %s161, 64
        %s163 = scalar_lea.vmem [#allocation5], %s162
        %p164 = scmp.lt.s32.totalorder %s17, 1
        %s165 = scalar_select %p164, %s17, 1
        %s166 = smul.addr %s165, 32
        %s167 = smul.addr %s166, 8
        %s168 = scalar_lea.vmem %s0, %s167
        %v169 = vld [vmem:[%s168] sm:$0xff]
        %v170 = vld [vmem:[%s168 + $0x8] sm:$0xff]
        %v171 = vld [vmem:[%s168 + $0x10] sm:$0xff]
        %v172 = vld [vmem:[%s168 + $0x18] sm:$0xff]
        %v173 = vld [vmem:[%s168 + $0x20] sm:$0xff]
        %v174 = vld [vmem:[%s168 + $0x28] sm:$0xff]
        %v175 = vld [vmem:[%s168 + $0x30] sm:$0xff]
        %v176 = vld [vmem:[%s168 + $0x38] sm:$0xff]
        %v177 = vld [vmem:[%s168 + $0x40] sm:$0xff]
        %v178 = vld [vmem:[%s168 + $0x48] sm:$0xff]
        %v179 = vld [vmem:[%s168 + $0x50] sm:$0xff]
        %v180 = vld [vmem:[%s168 + $0x58] sm:$0xff]
        %v181 = vld [vmem:[%s168 + $0x60] sm:$0xff]
        %v182 = vld [vmem:[%s168 + $0x68] sm:$0xff]
        %v183 = vld [vmem:[%s168 + $0x70] sm:$0xff]
        %v184 = vld [vmem:[%s168 + $0x78] sm:$0xff]
        %v185 = vld [vmem:[%s168 + $0x80] sm:$0xff]
        %v186 = vld [vmem:[%s168 + $0x88] sm:$0xff]
        %v187 = vld [vmem:[%s168 + $0x90] sm:$0xff]
        %v188 = vld [vmem:[%s168 + $0x98] sm:$0xff]
        %v189 = vld [vmem:[%s168 + $0xa0] sm:$0xff]
        %v190 = vld [vmem:[%s168 + $0xa8] sm:$0xff]
        %v191 = vld [vmem:[%s168 + $0xb0] sm:$0xff]
        %v192 = vld [vmem:[%s168 + $0xb8] sm:$0xff]
        %v193 = vld [vmem:[%s168 + $0xc0] sm:$0xff]
        %v194 = vld [vmem:[%s168 + $0xc8] sm:$0xff]
        %v195 = vld [vmem:[%s168 + $0xd0] sm:$0xff]
        %v196 = vld [vmem:[%s168 + $0xd8] sm:$0xff]
        %v197 = vld [vmem:[%s168 + $0xe0] sm:$0xff]
        %v198 = vld [vmem:[%s168 + $0xe8] sm:$0xff]
        %v199 = vld [vmem:[%s168 + $0xf0] sm:$0xff]
        %v200 = vld [vmem:[%s168 + $0xf8] sm:$0xff]
        %vm201 = vcmask 64512
        %202 = vst.msk [vmem:[#allocation2] sm:$0xff] %vm201, 0.0
        %203 = vst.msk [vmem:[#allocation2 + $0x8] sm:$0xff] %vm201, 0.0
        %vm204 = vcmask 58368
        %205 = vst.msk [vmem:[#allocation2 + $0x10] sm:$0x3] %vm204, 0.0
        %206 = vst.msk [vmem:[#allocation2 + $0x18] sm:$0xff] %vm201, 0.0
        %207 = vst.msk [vmem:[#allocation2 + $0x20] sm:$0xff] %vm201, 0.0
        %208 = vst.msk [vmem:[#allocation2 + $0x28] sm:$0x3] %vm204, 0.0
        %209 = vst.msk [vmem:[#allocation2 + $0x30] sm:$0xff] %vm201, 0.0
        %210 = vst.msk [vmem:[#allocation2 + $0x38] sm:$0xff] %vm201, 0.0
        %211 = vst.msk [vmem:[#allocation2 + $0x40] sm:$0x3] %vm204, 0.0
        %212 = vst.msk [vmem:[#allocation2 + $0x48] sm:$0xff] %vm201, 0.0
        %213 = vst.msk [vmem:[#allocation2 + $0x50] sm:$0xff] %vm201, 0.0
        %214 = vst.msk [vmem:[#allocation2 + $0x58] sm:$0x3] %vm204, 0.0
        %215 = vst.msk [vmem:[#allocation2 + $0x60] sm:$0xff] %vm201, 0.0
        %216 = vst.msk [vmem:[#allocation2 + $0x68] sm:$0xff] %vm201, 0.0
        %217 = vst.msk [vmem:[#allocation2 + $0x70] sm:$0x3] %vm204, 0.0
        %218 = vst.msk [vmem:[#allocation2 + $0x78] sm:$0xff] %vm201, 0.0
        %219 = vst.msk [vmem:[#allocation2 + $0x80] sm:$0xff] %vm201, 0.0
        %220 = vst.msk [vmem:[#allocation2 + $0x88] sm:$0x3] %vm204, 0.0
        %221 = vst.msk [vmem:[#allocation2 + $0x90] sm:$0xff] %vm201, 0.0
        %222 = vst.msk [vmem:[#allocation2 + $0x98] sm:$0xff] %vm201, 0.0
        %223 = vst.msk [vmem:[#allocation2 + $0xa0] sm:$0x3] %vm204, 0.0
        %224 = vst.msk [vmem:[#allocation2 + $0xa8] sm:$0xff] %vm201, 0.0
        %225 = vst.msk [vmem:[#allocation2 + $0xb0] sm:$0xff] %vm201, 0.0
        %226 = vst.msk [vmem:[#allocation2 + $0xb8] sm:$0x3] %vm204, 0.0
        %227 = vst.msk [vmem:[#allocation2 + $0xc0] sm:$0xff] %vm201, 0.0
        %228 = vst.msk [vmem:[#allocation2 + $0xc8] sm:$0xff] %vm201, 0.0
        %229 = vst.msk [vmem:[#allocation2 + $0xd0] sm:$0x3] %vm204, 0.0
        %230 = vst.msk [vmem:[#allocation2 + $0xd8] sm:$0xff] %vm201, 0.0
        %231 = vst.msk [vmem:[#allocation2 + $0xe0] sm:$0xff] %vm201, 0.0
        %232 = vst.msk [vmem:[#allocation2 + $0xe8] sm:$0x3] %vm204, 0.0
        %233 = vst.msk [vmem:[#allocation2 + $0xf0] sm:$0xff] %vm201, 0.0
        %234 = vst.msk [vmem:[#allocation2 + $0xf8] sm:$0xff] %vm201, 0.0
        %235 = vst.msk [vmem:[#allocation2 + $0x100] sm:$0x3] %vm204, 0.0
        %236 = vst.msk [vmem:[#allocation2 + $0x108] sm:$0xff] %vm201, 0.0
        %237 = vst.msk [vmem:[#allocation2 + $0x110] sm:$0xff] %vm201, 0.0
        %238 = vst.msk [vmem:[#allocation2 + $0x118] sm:$0x3] %vm204, 0.0
        %239 = vst.msk [vmem:[#allocation2 + $0x120] sm:$0xff] %vm201, 0.0
        %240 = vst.msk [vmem:[#allocation2 + $0x128] sm:$0xff] %vm201, 0.0
        %241 = vst.msk [vmem:[#allocation2 + $0x130] sm:$0x3] %vm204, 0.0
        %242 = vst.msk [vmem:[#allocation2 + $0x138] sm:$0xff] %vm201, 0.0
        %243 = vst.msk [vmem:[#allocation2 + $0x140] sm:$0xff] %vm201, 0.0
        %244 = vst.msk [vmem:[#allocation2 + $0x148] sm:$0x3] %vm204, 0.0
        %245 = vst.msk [vmem:[#allocation2 + $0x150] sm:$0xff] %vm201, 0.0
        %246 = vst.msk [vmem:[#allocation2 + $0x158] sm:$0xff] %vm201, 0.0
        %247 = vst.msk [vmem:[#allocation2 + $0x160] sm:$0x3] %vm204, 0.0
        %248 = vst.msk [vmem:[#allocation2 + $0x168] sm:$0xff] %vm201, 0.0
        %249 = vst.msk [vmem:[#allocation2 + $0x170] sm:$0xff] %vm201, 0.0
        %250 = vst.msk [vmem:[#allocation2 + $0x178] sm:$0x3] %vm204, 0.0
        %251 = vst.msk [vmem:[#allocation2 + $0x180] sm:$0xff] %vm201, 0.0
        %252 = vst.msk [vmem:[#allocation2 + $0x188] sm:$0xff] %vm201, 0.0
        %253 = vst.msk [vmem:[#allocation2 + $0x190] sm:$0x3] %vm204, 0.0
        %254 = vst.msk [vmem:[#allocation2 + $0x198] sm:$0xff] %vm201, 0.0
        %255 = vst.msk [vmem:[#allocation2 + $0x1a0] sm:$0xff] %vm201, 0.0
        %256 = vst.msk [vmem:[#allocation2 + $0x1a8] sm:$0x3] %vm204, 0.0
        %s257 = scalar_lea.vmem [#allocation2], 24
        %258 = vst.msk [vmem:[%s257 + $0x1] sm:$0xff] %vm201, %v169
        %259 = vst.msk [vmem:[%s257 + $0x9] sm:$0xff] %vm201, %v170
        %260 = vst.msk [vmem:[%s257 + $0x19] sm:$0xff] %vm201, %v171
        %261 = vst.msk [vmem:[%s257 + $0x21] sm:$0xff] %vm201, %v172
        %262 = vst.msk [vmem:[%s257 + $0x31] sm:$0xff] %vm201, %v173
        %263 = vst.msk [vmem:[%s257 + $0x39] sm:$0xff] %vm201, %v174
        %264 = vst.msk [vmem:[%s257 + $0x49] sm:$0xff] %vm201, %v175
        %265 = vst.msk [vmem:[%s257 + $0x51] sm:$0xff] %vm201, %v176
        %266 = vst.msk [vmem:[%s257 + $0x61] sm:$0xff] %vm201, %v177
        %267 = vst.msk [vmem:[%s257 + $0x69] sm:$0xff] %vm201, %v178
        %268 = vst.msk [vmem:[%s257 + $0x79] sm:$0xff] %vm201, %v179
        %269 = vst.msk [vmem:[%s257 + $0x81] sm:$0xff] %vm201, %v180
        %270 = vst.msk [vmem:[%s257 + $0x91] sm:$0xff] %vm201, %v181
        %271 = vst.msk [vmem:[%s257 + $0x99] sm:$0xff] %vm201, %v182
        %272 = vst.msk [vmem:[%s257 + $0xa9] sm:$0xff] %vm201, %v183
        %273 = vst.msk [vmem:[%s257 + $0xb1] sm:$0xff] %vm201, %v184
        %274 = vst.msk [vmem:[%s257 + $0xc1] sm:$0xff] %vm201, %v185
        %275 = vst.msk [vmem:[%s257 + $0xc9] sm:$0xff] %vm201, %v186
        %276 = vst.msk [vmem:[%s257 + $0xd9] sm:$0xff] %vm201, %v187
        %277 = vst.msk [vmem:[%s257 + $0xe1] sm:$0xff] %vm201, %v188
        %278 = vst.msk [vmem:[%s257 + $0xf1] sm:$0xff] %vm201, %v189
        %279 = vst.msk [vmem:[%s257 + $0xf9] sm:$0xff] %vm201, %v190
        %280 = vst.msk [vmem:[%s257 + $0x109] sm:$0xff] %vm201, %v191
        %281 = vst.msk [vmem:[%s257 + $0x111] sm:$0xff] %vm201, %v192
        %282 = vst.msk [vmem:[%s257 + $0x121] sm:$0xff] %vm201, %v193
        %283 = vst.msk [vmem:[%s257 + $0x129] sm:$0xff] %vm201, %v194
        %284 = vst.msk [vmem:[%s257 + $0x139] sm:$0xff] %vm201, %v195
        %285 = vst.msk [vmem:[%s257 + $0x141] sm:$0xff] %vm201, %v196
        %286 = vst.msk [vmem:[%s257 + $0x151] sm:$0xff] %vm201, %v197
        %287 = vst.msk [vmem:[%s257 + $0x159] sm:$0xff] %vm201, %v198
        %288 = vst.msk [vmem:[%s257 + $0x169] sm:$0xff] %vm201, %v199
        %289 = vst.msk [vmem:[%s257 + $0x171] sm:$0xff] %vm201, %v200
        %v290 = vld [vmem:[%s1] sm:$0xff]
        %v291 = vld [vmem:[%s1 + $0x10] sm:$0x1]
        %v292 = vld [vmem:[%s1 + $0x20] ss:$0 sm:$0xff]
        %v293 = vld [vmem:[#allocation2] sm:$0xff]
        %v294 = vld [vmem:[#allocation2 + $0x8] sm:$0xff]
        %v295 = vld [vmem:[#allocation2 + $0x18] sm:$0xff]
        %v296 = vld [vmem:[#allocation2 + $0x20] sm:$0xff]
        %v297 = vld [vmem:[#allocation2 + $0x30] sm:$0xff]
        %v298 = vld [vmem:[#allocation2 + $0x38] sm:$0xff]
        %v299 = vld [vmem:[#allocation2 + $0x48] sm:$0xff]
        %v300 = vld [vmem:[#allocation2 + $0x50] sm:$0xff]
        %v301 = vld [vmem:[#allocation2 + $0x60] sm:$0xff]
        %v302 = vld [vmem:[#allocation2 + $0x68] sm:$0xff]
        %v303 = vld [vmem:[#allocation2 + $0x78] sm:$0xff]
        %v304 = vld [vmem:[#allocation2 + $0x80] sm:$0xff]
        %v305 = vld [vmem:[#allocation2 + $0x90] sm:$0xff]
        %v306 = vld [vmem:[#allocation2 + $0x98] sm:$0xff]
        %v307 = vld [vmem:[#allocation2 + $0xa8] sm:$0xff]
        %v308 = vld [vmem:[#allocation2 + $0xb0] sm:$0xff]
        %v309 = vld [vmem:[#allocation2 + $0xc0] sm:$0xff]
        %v310 = vld [vmem:[#allocation2 + $0xc8] sm:$0xff]
        %v311 = vld [vmem:[#allocation2 + $0xd8] sm:$0xff]
        %v312 = vld [vmem:[#allocation2 + $0xe0] sm:$0xff]
        %v313 = vld [vmem:[#allocation2 + $0xf0] sm:$0xff]
        %v314 = vld [vmem:[#allocation2 + $0xf8] sm:$0xff]
        %v315 = vld [vmem:[#allocation2 + $0x108] sm:$0xff]
        %v316 = vld [vmem:[#allocation2 + $0x110] sm:$0xff]
        %v317 = vld [vmem:[#allocation2 + $0x120] sm:$0xff]
        %v318 = vld [vmem:[#allocation2 + $0x128] sm:$0xff]
        %v319 = vld [vmem:[#allocation2 + $0x138] sm:$0xff]
        %v320 = vld [vmem:[#allocation2 + $0x140] sm:$0xff]
        %v321 = vld [vmem:[#allocation2 + $0x150] sm:$0xff]
        %v322 = vld [vmem:[#allocation2 + $0x158] sm:$0xff]
        %v323 = vld [vmem:[#allocation2 + $0x168] sm:$0xff]
        %v324 = vld [vmem:[#allocation2 + $0x170] sm:$0xff]
        %v325 = vlaneseq
        %v326 = vshrl.u32 %v325, 7
        %v327 = vsub.s32 0, %v326
        %v328 = vrot.slane %v290, %v327
        %v329 = vmul.f32 %v293, %v328
        %v330 = vmul.f32 %v294, %v328
        %v331 = vmul.f32 %v295, %v328
        %v332 = vmul.f32 %v296, %v328
        %v333 = vmul.f32 %v297, %v328
        %v334 = vmul.f32 %v298, %v328
        %v335 = vmul.f32 %v299, %v328
        %v336 = vmul.f32 %v300, %v328
        %v337 = vmul.f32 %v301, %v328
        %v338 = vmul.f32 %v302, %v328
        %v339 = vmul.f32 %v303, %v328
        %v340 = vmul.f32 %v304, %v328
        %v341 = vmul.f32 %v305, %v328
        %v342 = vmul.f32 %v306, %v328
        %v343 = vmul.f32 %v307, %v328
        %v344 = vmul.f32 %v308, %v328
        %v345 = vmul.f32 %v309, %v328
        %v346 = vmul.f32 %v310, %v328
        %v347 = vmul.f32 %v311, %v328
        %v348 = vmul.f32 %v312, %v328
        %v349 = vmul.f32 %v313, %v328
        %v350 = vmul.f32 %v314, %v328
        %v351 = vmul.f32 %v315, %v328
        %v352 = vmul.f32 %v316, %v328
        %v353 = vmul.f32 %v317, %v328
        %v354 = vmul.f32 %v318, %v328
        %v355 = vmul.f32 %v319, %v328
        %v356 = vmul.f32 %v320, %v328
        %v357 = vmul.f32 %v321, %v328
        %v358 = vmul.f32 %v322, %v328
        %v359 = vmul.f32 %v323, %v328
        %v360 = vmul.f32 %v324, %v328
        %v361 = vadd.f32 %v329, 0.0
        %v362 = vadd.f32 %v330, 0.0
        %v363 = vadd.f32 %v331, 0.0
        %v364 = vadd.f32 %v332, 0.0
        %v365 = vadd.f32 %v333, 0.0
        %v366 = vadd.f32 %v334, 0.0
        %v367 = vadd.f32 %v335, 0.0
        %v368 = vadd.f32 %v336, 0.0
        %v369 = vadd.f32 %v337, 0.0
        %v370 = vadd.f32 %v338, 0.0
        %v371 = vadd.f32 %v339, 0.0
        %v372 = vadd.f32 %v340, 0.0
        %v373 = vadd.f32 %v341, 0.0
        %v374 = vadd.f32 %v342, 0.0
        %v375 = vadd.f32 %v343, 0.0
        %v376 = vadd.f32 %v344, 0.0
        %v377 = vadd.f32 %v345, 0.0
        %v378 = vadd.f32 %v346, 0.0
        %v379 = vadd.f32 %v347, 0.0
        %v380 = vadd.f32 %v348, 0.0
        %v381 = vadd.f32 %v349, 0.0
        %v382 = vadd.f32 %v350, 0.0
        %v383 = vadd.f32 %v351, 0.0
        %v384 = vadd.f32 %v352, 0.0
        %v385 = vadd.f32 %v353, 0.0
        %v386 = vadd.f32 %v354, 0.0
        %v387 = vadd.f32 %v355, 0.0
        %v388 = vadd.f32 %v356, 0.0
        %v389 = vadd.f32 %v357, 0.0
        %v390 = vadd.f32 %v358, 0.0
        %v391 = vadd.f32 %v359, 0.0
        %v392 = vadd.f32 %v360, 0.0
        %v393 = vld [vmem:[#allocation2 + $0x1] sm:$0xff]
        %v394 = vld [vmem:[#allocation2 + $0x9] sm:$0xff]
        %v395 = vld [vmem:[#allocation2 + $0x19] sm:$0xff]
        %v396 = vld [vmem:[#allocation2 + $0x21] sm:$0xff]
        %v397 = vld [vmem:[#allocation2 + $0x31] sm:$0xff]
        %v398 = vld [vmem:[#allocation2 + $0x39] sm:$0xff]
        %v399 = vld [vmem:[#allocation2 + $0x49] sm:$0xff]
        %v400 = vld [vmem:[#allocation2 + $0x51] sm:$0xff]
        %v401 = vld [vmem:[#allocation2 + $0x61] sm:$0xff]
        %v402 = vld [vmem:[#allocation2 + $0x69] sm:$0xff]
        %v403 = vld [vmem:[#allocation2 + $0x79] sm:$0xff]
        %v404 = vld [vmem:[#allocation2 + $0x81] sm:$0xff]
        %v405 = vld [vmem:[#allocation2 + $0x91] sm:$0xff]
        %v406 = vld [vmem:[#allocation2 + $0x99] sm:$0xff]
        %v407 = vld [vmem:[#allocation2 + $0xa9] sm:$0xff]
        %v408 = vld [vmem:[#allocation2 + $0xb1] sm:$0xff]
        %v409 = vld [vmem:[#allocation2 + $0xc1] sm:$0xff]
        %v410 = vld [vmem:[#allocation2 + $0xc9] sm:$0xff]
        %v411 = vld [vmem:[#allocation2 + $0xd9] sm:$0xff]
        %v412 = vld [vmem:[#allocation2 + $0xe1] sm:$0xff]
        %v413 = vld [vmem:[#allocation2 + $0xf1] sm:$0xff]
        %v414 = vld [vmem:[#allocation2 + $0xf9] sm:$0xff]
        %v415 = vld [vmem:[#allocation2 + $0x109] sm:$0xff]
        %v416 = vld [vmem:[#allocation2 + $0x111] sm:$0xff]
        %v417 = vld [vmem:[#allocation2 + $0x121] sm:$0xff]
        %v418 = vld [vmem:[#allocation2 + $0x129] sm:$0xff]
        %v419 = vld [vmem:[#allocation2 + $0x139] sm:$0xff]
        %v420 = vld [vmem:[#allocation2 + $0x141] sm:$0xff]
        %v421 = vld [vmem:[#allocation2 + $0x151] sm:$0xff]
        %v422 = vld [vmem:[#allocation2 + $0x159] sm:$0xff]
        %v423 = vld [vmem:[#allocation2 + $0x169] sm:$0xff]
        %v424 = vld [vmem:[#allocation2 + $0x171] sm:$0xff]
        %v425 = vlaneseq
        %v426 = vshrl.u32 %v425, 7
        %v427 = vsub.s32 1, %v426
        %v428 = vrot.slane %v290, %v427
        %v429 = vmul.f32 %v393, %v428
        %v430 = vmul.f32 %v394, %v428
        %v431 = vmul.f32 %v395, %v428
        %v432 = vmul.f32 %v396, %v428
        %v433 = vmul.f32 %v397, %v428
        %v434 = vmul.f32 %v398, %v428
        %v435 = vmul.f32 %v399, %v428
        %v436 = vmul.f32 %v400, %v428
        %v437 = vmul.f32 %v401, %v428
        %v438 = vmul.f32 %v402, %v428
        %v439 = vmul.f32 %v403, %v428
        %v440 = vmul.f32 %v404, %v428
        %v441 = vmul.f32 %v405, %v428
        %v442 = vmul.f32 %v406, %v428
        %v443 = vmul.f32 %v407, %v428
        %v444 = vmul.f32 %v408, %v428
        %v445 = vmul.f32 %v409, %v428
        %v446 = vmul.f32 %v410, %v428
        %v447 = vmul.f32 %v411, %v428
        %v448 = vmul.f32 %v412, %v428
        %v449 = vmul.f32 %v413, %v428
        %v450 = vmul.f32 %v414, %v428
        %v451 = vmul.f32 %v415, %v428
        %v452 = vmul.f32 %v416, %v428
        %v453 = vmul.f32 %v417, %v428
        %v454 = vmul.f32 %v418, %v428
        %v455 = vmul.f32 %v419, %v428
        %v456 = vmul.f32 %v420, %v428
        %v457 = vmul.f32 %v421, %v428
        %v458 = vmul.f32 %v422, %v428
        %v459 = vmul.f32 %v423, %v428
        %v460 = vmul.f32 %v424, %v428
        %v461 = vadd.f32 %v361, %v429
        %v462 = vadd.f32 %v362, %v430
        %v463 = vadd.f32 %v363, %v431
        %v464 = vadd.f32 %v364, %v432
        %v465 = vadd.f32 %v365, %v433
        %v466 = vadd.f32 %v366, %v434
        %v467 = vadd.f32 %v367, %v435
        %v468 = vadd.f32 %v368, %v436
        %v469 = vadd.f32 %v369, %v437
        %v470 = vadd.f32 %v370, %v438
        %v471 = vadd.f32 %v371, %v439
        %v472 = vadd.f32 %v372, %v440
        %v473 = vadd.f32 %v373, %v441
        %v474 = vadd.f32 %v374, %v442
        %v475 = vadd.f32 %v375, %v443
        %v476 = vadd.f32 %v376, %v444
        %v477 = vadd.f32 %v377, %v445
        %v478 = vadd.f32 %v378, %v446
        %v479 = vadd.f32 %v379, %v447
        %v480 = vadd.f32 %v380, %v448
        %v481 = vadd.f32 %v381, %v449
        %v482 = vadd.f32 %v382, %v450
        %v483 = vadd.f32 %v383, %v451
        %v484 = vadd.f32 %v384, %v452
        %v485 = vadd.f32 %v385, %v453
        %v486 = vadd.f32 %v386, %v454
        %v487 = vadd.f32 %v387, %v455
        %v488 = vadd.f32 %v388, %v456
        %v489 = vadd.f32 %v389, %v457
        %v490 = vadd.f32 %v390, %v458
        %v491 = vadd.f32 %v391, %v459
        %v492 = vadd.f32 %v392, %v460
        %v493 = vld [vmem:[#allocation2 + $0x2] sm:$0xff]
        %v494 = vld [vmem:[#allocation2 + $0xa] sm:$0xff]
        %v495 = vld [vmem:[#allocation2 + $0x1a] sm:$0xff]
        %v496 = vld [vmem:[#allocation2 + $0x22] sm:$0xff]
        %v497 = vld [vmem:[#allocation2 + $0x32] sm:$0xff]
        %v498 = vld [vmem:[#allocation2 + $0x3a] sm:$0xff]
        %v499 = vld [vmem:[#allocation2 + $0x4a] sm:$0xff]
        %v500 = vld [vmem:[#allocation2 + $0x52] sm:$0xff]
        %v501 = vld [vmem:[#allocation2 + $0x62] sm:$0xff]
        %v502 = vld [vmem:[#allocation2 + $0x6a] sm:$0xff]
        %v503 = vld [vmem:[#allocation2 + $0x7a] sm:$0xff]
        %v504 = vld [vmem:[#allocation2 + $0x82] sm:$0xff]
        %v505 = vld [vmem:[#allocation2 + $0x92] sm:$0xff]
        %v506 = vld [vmem:[#allocation2 + $0x9a] sm:$0xff]
        %v507 = vld [vmem:[#allocation2 + $0xaa] sm:$0xff]
        %v508 = vld [vmem:[#allocation2 + $0xb2] sm:$0xff]
        %v509 = vld [vmem:[#allocation2 + $0xc2] sm:$0xff]
        %v510 = vld [vmem:[#allocation2 + $0xca] sm:$0xff]
        %v511 = vld [vmem:[#allocation2 + $0xda] sm:$0xff]
        %v512 = vld [vmem:[#allocation2 + $0xe2] sm:$0xff]
        %v513 = vld [vmem:[#allocation2 + $0xf2] sm:$0xff]
        %v514 = vld [vmem:[#allocation2 + $0xfa] sm:$0xff]
        %v515 = vld [vmem:[#allocation2 + $0x10a] sm:$0xff]
        %v516 = vld [vmem:[#allocation2 + $0x112] sm:$0xff]
        %v517 = vld [vmem:[#allocation2 + $0x122] sm:$0xff]
        %v518 = vld [vmem:[#allocation2 + $0x12a] sm:$0xff]
        %v519 = vld [vmem:[#allocation2 + $0x13a] sm:$0xff]
        %v520 = vld [vmem:[#allocation2 + $0x142] sm:$0xff]
        %v521 = vld [vmem:[#allocation2 + $0x152] sm:$0xff]
        %v522 = vld [vmem:[#allocation2 + $0x15a] sm:$0xff]
        %v523 = vld [vmem:[#allocation2 + $0x16a] sm:$0xff]
        %v524 = vld [vmem:[#allocation2 + $0x172] sm:$0xff]
        %v525 = vlaneseq
        %v526 = vshrl.u32 %v525, 7
        %v527 = vsub.s32 2, %v526
        %v528 = vrot.slane %v290, %v527
        %v529 = vmul.f32 %v493, %v528
        %v530 = vmul.f32 %v494, %v528
        %v531 = vmul.f32 %v495, %v528
        %v532 = vmul.f32 %v496, %v528
        %v533 = vmul.f32 %v497, %v528
        %v534 = vmul.f32 %v498, %v528
        %v535 = vmul.f32 %v499, %v528
        %v536 = vmul.f32 %v500, %v528
        %v537 = vmul.f32 %v501, %v528
        %v538 = vmul.f32 %v502, %v528
        %v539 = vmul.f32 %v503, %v528
        %v540 = vmul.f32 %v504, %v528
        %v541 = vmul.f32 %v505, %v528
        %v542 = vmul.f32 %v506, %v528
        %v543 = vmul.f32 %v507, %v528
        %v544 = vmul.f32 %v508, %v528
        %v545 = vmul.f32 %v509, %v528
        %v546 = vmul.f32 %v510, %v528
        %v547 = vmul.f32 %v511, %v528
        %v548 = vmul.f32 %v512, %v528
        %v549 = vmul.f32 %v513, %v528
        %v550 = vmul.f32 %v514, %v528
        %v551 = vmul.f32 %v515, %v528
        %v552 = vmul.f32 %v516, %v528
        %v553 = vmul.f32 %v517, %v528
        %v554 = vmul.f32 %v518, %v528
        %v555 = vmul.f32 %v519, %v528
        %v556 = vmul.f32 %v520, %v528
        %v557 = vmul.f32 %v521, %v528
        %v558 = vmul.f32 %v522, %v528
        %v559 = vmul.f32 %v523, %v528
        %v560 = vmul.f32 %v524, %v528
        %v561 = vadd.f32 %v461, %v529
        %v562 = vadd.f32 %v462, %v530
        %v563 = vadd.f32 %v463, %v531
        %v564 = vadd.f32 %v464, %v532
        %v565 = vadd.f32 %v465, %v533
        %v566 = vadd.f32 %v466, %v534
        %v567 = vadd.f32 %v467, %v535
        %v568 = vadd.f32 %v468, %v536
        %v569 = vadd.f32 %v469, %v537
        %v570 = vadd.f32 %v470, %v538
        %v571 = vadd.f32 %v471, %v539
        %v572 = vadd.f32 %v472, %v540
        %v573 = vadd.f32 %v473, %v541
        %v574 = vadd.f32 %v474, %v542
        %v575 = vadd.f32 %v475, %v543
        %v576 = vadd.f32 %v476, %v544
        %v577 = vadd.f32 %v477, %v545
        %v578 = vadd.f32 %v478, %v546
        %v579 = vadd.f32 %v479, %v547
        %v580 = vadd.f32 %v480, %v548
        %v581 = vadd.f32 %v481, %v549
        %v582 = vadd.f32 %v482, %v550
        %v583 = vadd.f32 %v483, %v551
        %v584 = vadd.f32 %v484, %v552
        %v585 = vadd.f32 %v485, %v553
        %v586 = vadd.f32 %v486, %v554
        %v587 = vadd.f32 %v487, %v555
        %v588 = vadd.f32 %v488, %v556
        %v589 = vadd.f32 %v489, %v557
        %v590 = vadd.f32 %v490, %v558
        %v591 = vadd.f32 %v491, %v559
        %v592 = vadd.f32 %v492, %v560
        %v593 = vld [vmem:[%s257] sm:$0xff]
        %v594 = vld [vmem:[%s257 + $0x8] sm:$0xff]
        %v595 = vld [vmem:[%s257 + $0x18] sm:$0xff]
        %v596 = vld [vmem:[%s257 + $0x20] sm:$0xff]
        %v597 = vld [vmem:[%s257 + $0x30] sm:$0xff]
        %v598 = vld [vmem:[%s257 + $0x38] sm:$0xff]
        %v599 = vld [vmem:[%s257 + $0x48] sm:$0xff]
        %v600 = vld [vmem:[%s257 + $0x50] sm:$0xff]
        %v601 = vld [vmem:[%s257 + $0x60] sm:$0xff]
        %v602 = vld [vmem:[%s257 + $0x68] sm:$0xff]
        %v603 = vld [vmem:[%s257 + $0x78] sm:$0xff]
        %v604 = vld [vmem:[%s257 + $0x80] sm:$0xff]
        %v605 = vld [vmem:[%s257 + $0x90] sm:$0xff]
        %v606 = vld [vmem:[%s257 + $0x98] sm:$0xff]
        %v607 = vld [vmem:[%s257 + $0xa8] sm:$0xff]
        %v608 = vld [vmem:[%s257 + $0xb0] sm:$0xff]
        %v609 = vld [vmem:[%s257 + $0xc0] sm:$0xff]
        %v610 = vld [vmem:[%s257 + $0xc8] sm:$0xff]
        %v611 = vld [vmem:[%s257 + $0xd8] sm:$0xff]
        %v612 = vld [vmem:[%s257 + $0xe0] sm:$0xff]
        %v613 = vld [vmem:[%s257 + $0xf0] sm:$0xff]
        %v614 = vld [vmem:[%s257 + $0xf8] sm:$0xff]
        %v615 = vld [vmem:[%s257 + $0x108] sm:$0xff]
        %v616 = vld [vmem:[%s257 + $0x110] sm:$0xff]
        %v617 = vld [vmem:[%s257 + $0x120] sm:$0xff]
        %v618 = vld [vmem:[%s257 + $0x128] sm:$0xff]
        %v619 = vld [vmem:[%s257 + $0x138] sm:$0xff]
        %v620 = vld [vmem:[%s257 + $0x140] sm:$0xff]
        %v621 = vld [vmem:[%s257 + $0x150] sm:$0xff]
        %v622 = vld [vmem:[%s257 + $0x158] sm:$0xff]
        %v623 = vld [vmem:[%s257 + $0x168] sm:$0xff]
        %v624 = vld [vmem:[%s257 + $0x170] sm:$0xff]
        %v625 = vlaneseq
        %v626 = vshrl.u32 %v625, 7
        %v627 = vsub.s32 3, %v626
        %v628 = vrot.slane %v290, %v627
        %v629 = vmul.f32 %v593, %v628
        %v630 = vmul.f32 %v594, %v628
        %v631 = vmul.f32 %v595, %v628
        %v632 = vmul.f32 %v596, %v628
        %v633 = vmul.f32 %v597, %v628
        %v634 = vmul.f32 %v598, %v628
        %v635 = vmul.f32 %v599, %v628
        %v636 = vmul.f32 %v600, %v628
        %v637 = vmul.f32 %v601, %v628
        %v638 = vmul.f32 %v602, %v628
        %v639 = vmul.f32 %v603, %v628
        %v640 = vmul.f32 %v604, %v628
        %v641 = vmul.f32 %v605, %v628
        %v642 = vmul.f32 %v606, %v628
        %v643 = vmul.f32 %v607, %v628
        %v644 = vmul.f32 %v608, %v628
        %v645 = vmul.f32 %v609, %v628
        %v646 = vmul.f32 %v610, %v628
        %v647 = vmul.f32 %v611, %v628
        %v648 = vmul.f32 %v612, %v628
        %v649 = vmul.f32 %v613, %v628
        %v650 = vmul.f32 %v614, %v628
        %v651 = vmul.f32 %v615, %v628
        %v652 = vmul.f32 %v616, %v628
        %v653 = vmul.f32 %v617, %v628
        %v654 = vmul.f32 %v618, %v628
        %v655 = vmul.f32 %v619, %v628
        %v656 = vmul.f32 %v620, %v628
        %v657 = vmul.f32 %v621, %v628
        %v658 = vmul.f32 %v622, %v628
        %v659 = vmul.f32 %v623, %v628
        %v660 = vmul.f32 %v624, %v628
        %v661 = vadd.f32 %v561, %v629
        %v662 = vadd.f32 %v562, %v630
        %v663 = vadd.f32 %v563, %v631
        %v664 = vadd.f32 %v564, %v632
        %v665 = vadd.f32 %v565, %v633
        %v666 = vadd.f32 %v566, %v634
        %v667 = vadd.f32 %v567, %v635
        %v668 = vadd.f32 %v568, %v636
        %v669 = vadd.f32 %v569, %v637
        %v670 = vadd.f32 %v570, %v638
        %v671 = vadd.f32 %v571, %v639
        %v672 = vadd.f32 %v572, %v640
        %v673 = vadd.f32 %v573, %v641
        %v674 = vadd.f32 %v574, %v642
        %v675 = vadd.f32 %v575, %v643
        %v676 = vadd.f32 %v576, %v644
        %v677 = vadd.f32 %v577, %v645
        %v678 = vadd.f32 %v578, %v646
        %v679 = vadd.f32 %v579, %v647
        %v680 = vadd.f32 %v580, %v648
        %v681 = vadd.f32 %v581, %v649
        %v682 = vadd.f32 %v582, %v650
        %v683 = vadd.f32 %v583, %v651
        %v684 = vadd.f32 %v584, %v652
        %v685 = vadd.f32 %v585, %v653
        %v686 = vadd.f32 %v586, %v654
        %v687 = vadd.f32 %v587, %v655
        %v688 = vadd.f32 %v588, %v656
        %v689 = vadd.f32 %v589, %v657
        %v690 = vadd.f32 %v590, %v658
        %v691 = vadd.f32 %v591, %v659
        %v692 = vadd.f32 %v592, %v660
        %v693 = vld [vmem:[%s257 + $0x1] sm:$0xff]
        %v694 = vld [vmem:[%s257 + $0x9] sm:$0xff]
        %v695 = vld [vmem:[%s257 + $0x19] sm:$0xff]
        %v696 = vld [vmem:[%s257 + $0x21] sm:$0xff]
        %v697 = vld [vmem:[%s257 + $0x31] sm:$0xff]
        %v698 = vld [vmem:[%s257 + $0x39] sm:$0xff]
        %v699 = vld [vmem:[%s257 + $0x49] sm:$0xff]
        %v700 = vld [vmem:[%s257 + $0x51] sm:$0xff]
        %v701 = vld [vmem:[%s257 + $0x61] sm:$0xff]
        %v702 = vld [vmem:[%s257 + $0x69] sm:$0xff]
        %v703 = vld [vmem:[%s257 + $0x79] sm:$0xff]
        %v704 = vld [vmem:[%s257 + $0x81] sm:$0xff]
        %v705 = vld [vmem:[%s257 + $0x91] sm:$0xff]
        %v706 = vld [vmem:[%s257 + $0x99] sm:$0xff]
        %v707 = vld [vmem:[%s257 + $0xa9] sm:$0xff]
        %v708 = vld [vmem:[%s257 + $0xb1] sm:$0xff]
        %v709 = vld [vmem:[%s257 + $0xc1] sm:$0xff]
        %v710 = vld [vmem:[%s257 + $0xc9] sm:$0xff]
        %v711 = vld [vmem:[%s257 + $0xd9] sm:$0xff]
        %v712 = vld [vmem:[%s257 + $0xe1] sm:$0xff]
        %v713 = vld [vmem:[%s257 + $0xf1] sm:$0xff]
        %v714 = vld [vmem:[%s257 + $0xf9] sm:$0xff]
        %v715 = vld [vmem:[%s257 + $0x109] sm:$0xff]
        %v716 = vld [vmem:[%s257 + $0x111] sm:$0xff]
        %v717 = vld [vmem:[%s257 + $0x121] sm:$0xff]
        %v718 = vld [vmem:[%s257 + $0x129] sm:$0xff]
        %v719 = vld [vmem:[%s257 + $0x139] sm:$0xff]
        %v720 = vld [vmem:[%s257 + $0x141] sm:$0xff]
        %v721 = vld [vmem:[%s257 + $0x151] sm:$0xff]
        %v722 = vld [vmem:[%s257 + $0x159] sm:$0xff]
        %v723 = vld [vmem:[%s257 + $0x169] sm:$0xff]
        %v724 = vld [vmem:[%s257 + $0x171] sm:$0xff]
        %v725 = vlaneseq
        %v726 = vshrl.u32 %v725, 7
        %v727 = vsub.s32 4, %v726
        %v728 = vrot.slane %v290, %v727
        %v729 = vmul.f32 %v693, %v728
        %v730 = vmul.f32 %v694, %v728
        %v731 = vmul.f32 %v695, %v728
        %v732 = vmul.f32 %v696, %v728
        %v733 = vmul.f32 %v697, %v728
        %v734 = vmul.f32 %v698, %v728
        %v735 = vmul.f32 %v699, %v728
        %v736 = vmul.f32 %v700, %v728
        %v737 = vmul.f32 %v701, %v728
        %v738 = vmul.f32 %v702, %v728
        %v739 = vmul.f32 %v703, %v728
        %v740 = vmul.f32 %v704, %v728
        %v741 = vmul.f32 %v705, %v728
        %v742 = vmul.f32 %v706, %v728
        %v743 = vmul.f32 %v707, %v728
        %v744 = vmul.f32 %v708, %v728
        %v745 = vmul.f32 %v709, %v728
        %v746 = vmul.f32 %v710, %v728
        %v747 = vmul.f32 %v711, %v728
        %v748 = vmul.f32 %v712, %v728
        %v749 = vmul.f32 %v713, %v728
        %v750 = vmul.f32 %v714, %v728
        %v751 = vmul.f32 %v715, %v728
        %v752 = vmul.f32 %v716, %v728
        %v753 = vmul.f32 %v717, %v728
        %v754 = vmul.f32 %v718, %v728
        %v755 = vmul.f32 %v719, %v728
        %v756 = vmul.f32 %v720, %v728
        %v757 = vmul.f32 %v721, %v728
        %v758 = vmul.f32 %v722, %v728
        %v759 = vmul.f32 %v723, %v728
        %v760 = vmul.f32 %v724, %v728
        %v761 = vadd.f32 %v661, %v729
        %v762 = vadd.f32 %v662, %v730
        %v763 = vadd.f32 %v663, %v731
        %v764 = vadd.f32 %v664, %v732
        %v765 = vadd.f32 %v665, %v733
        %v766 = vadd.f32 %v666, %v734
        %v767 = vadd.f32 %v667, %v735
        %v768 = vadd.f32 %v668, %v736
        %v769 = vadd.f32 %v669, %v737
        %v770 = vadd.f32 %v670, %v738
        %v771 = vadd.f32 %v671, %v739
        %v772 = vadd.f32 %v672, %v740
        %v773 = vadd.f32 %v673, %v741
        %v774 = vadd.f32 %v674, %v742
        %v775 = vadd.f32 %v675, %v743
        %v776 = vadd.f32 %v676, %v744
        %v777 = vadd.f32 %v677, %v745
        %v778 = vadd.f32 %v678, %v746
        %v779 = vadd.f32 %v679, %v747
        %v780 = vadd.f32 %v680, %v748
        %v781 = vadd.f32 %v681, %v749
        %v782 = vadd.f32 %v682, %v750
        %v783 = vadd.f32 %v683, %v751
        %v784 = vadd.f32 %v684, %v752
        %v785 = vadd.f32 %v685, %v753
        %v786 = vadd.f32 %v686, %v754
        %v787 = vadd.f32 %v687, %v755
        %v788 = vadd.f32 %v688, %v756
        %v789 = vadd.f32 %v689, %v757
        %v790 = vadd.f32 %v690, %v758
        %v791 = vadd.f32 %v691, %v759
        %v792 = vadd.f32 %v692, %v760
        %v793 = vld [vmem:[%s257 + $0x2] sm:$0xff]
        %v794 = vld [vmem:[%s257 + $0xa] sm:$0xff]
        %v795 = vld [vmem:[%s257 + $0x1a] sm:$0xff]
        %v796 = vld [vmem:[%s257 + $0x22] sm:$0xff]
        %v797 = vld [vmem:[%s257 + $0x32] sm:$0xff]
        %v798 = vld [vmem:[%s257 + $0x3a] sm:$0xff]
        %v799 = vld [vmem:[%s257 + $0x4a] sm:$0xff]
        %v800 = vld [vmem:[%s257 + $0x52] sm:$0xff]
        %v801 = vld [vmem:[%s257 + $0x62] sm:$0xff]
        %v802 = vld [vmem:[%s257 + $0x6a] sm:$0xff]
        %v803 = vld [vmem:[%s257 + $0x7a] sm:$0xff]
        %v804 = vld [vmem:[%s257 + $0x82] sm:$0xff]
        %v805 = vld [vmem:[%s257 + $0x92] sm:$0xff]
        %v806 = vld [vmem:[%s257 + $0x9a] sm:$0xff]
        %v807 = vld [vmem:[%s257 + $0xaa] sm:$0xff]
        %v808 = vld [vmem:[%s257 + $0xb2] sm:$0xff]
        %v809 = vld [vmem:[%s257 + $0xc2] sm:$0xff]
        %v810 = vld [vmem:[%s257 + $0xca] sm:$0xff]
        %v811 = vld [vmem:[%s257 + $0xda] sm:$0xff]
        %v812 = vld [vmem:[%s257 + $0xe2] sm:$0xff]
        %v813 = vld [vmem:[%s257 + $0xf2] sm:$0xff]
        %v814 = vld [vmem:[%s257 + $0xfa] sm:$0xff]
        %v815 = vld [vmem:[%s257 + $0x10a] sm:$0xff]
        %v816 = vld [vmem:[%s257 + $0x112] sm:$0xff]
        %v817 = vld [vmem:[%s257 + $0x122] sm:$0xff]
        %v818 = vld [vmem:[%s257 + $0x12a] sm:$0xff]
        %v819 = vld [vmem:[%s257 + $0x13a] sm:$0xff]
        %v820 = vld [vmem:[%s257 + $0x142] sm:$0xff]
        %v821 = vld [vmem:[%s257 + $0x152] sm:$0xff]
        %v822 = vld [vmem:[%s257 + $0x15a] sm:$0xff]
        %v823 = vld [vmem:[%s257 + $0x16a] sm:$0xff]
        %v824 = vld [vmem:[%s257 + $0x172] sm:$0xff]
        %v825 = vlaneseq
        %v826 = vshrl.u32 %v825, 7
        %v827 = vsub.s32 5, %v826
        %v828 = vrot.slane %v290, %v827
        %v829 = vmul.f32 %v793, %v828
        %v830 = vmul.f32 %v794, %v828
        %v831 = vmul.f32 %v795, %v828
        %v832 = vmul.f32 %v796, %v828
        %v833 = vmul.f32 %v797, %v828
        %v834 = vmul.f32 %v798, %v828
        %v835 = vmul.f32 %v799, %v828
        %v836 = vmul.f32 %v800, %v828
        %v837 = vmul.f32 %v801, %v828
        %v838 = vmul.f32 %v802, %v828
        %v839 = vmul.f32 %v803, %v828
        %v840 = vmul.f32 %v804, %v828
        %v841 = vmul.f32 %v805, %v828
        %v842 = vmul.f32 %v806, %v828
        %v843 = vmul.f32 %v807, %v828
        %v844 = vmul.f32 %v808, %v828
        %v845 = vmul.f32 %v809, %v828
        %v846 = vmul.f32 %v810, %v828
        %v847 = vmul.f32 %v811, %v828
        %v848 = vmul.f32 %v812, %v828
        %v849 = vmul.f32 %v813, %v828
        %v850 = vmul.f32 %v814, %v828
        %v851 = vmul.f32 %v815, %v828
        %v852 = vmul.f32 %v816, %v828
        %v853 = vmul.f32 %v817, %v828
        %v854 = vmul.f32 %v818, %v828
        %v855 = vmul.f32 %v819, %v828
        %v856 = vmul.f32 %v820, %v828
        %v857 = vmul.f32 %v821, %v828
        %v858 = vmul.f32 %v822, %v828
        %v859 = vmul.f32 %v823, %v828
        %v860 = vmul.f32 %v824, %v828
        %v861 = vadd.f32 %v761, %v829
        %v862 = vadd.f32 %v762, %v830
        %v863 = vadd.f32 %v763, %v831
        %v864 = vadd.f32 %v764, %v832
        %v865 = vadd.f32 %v765, %v833
        %v866 = vadd.f32 %v766, %v834
        %v867 = vadd.f32 %v767, %v835
        %v868 = vadd.f32 %v768, %v836
        %v869 = vadd.f32 %v769, %v837
        %v870 = vadd.f32 %v770, %v838
        %v871 = vadd.f32 %v771, %v839
        %v872 = vadd.f32 %v772, %v840
        %v873 = vadd.f32 %v773, %v841
        %v874 = vadd.f32 %v774, %v842
        %v875 = vadd.f32 %v775, %v843
        %v876 = vadd.f32 %v776, %v844
        %v877 = vadd.f32 %v777, %v845
        %v878 = vadd.f32 %v778, %v846
        %v879 = vadd.f32 %v779, %v847
        %v880 = vadd.f32 %v780, %v848
        %v881 = vadd.f32 %v781, %v849
        %v882 = vadd.f32 %v782, %v850
        %v883 = vadd.f32 %v783, %v851
        %v884 = vadd.f32 %v784, %v852
        %v885 = vadd.f32 %v785, %v853
        %v886 = vadd.f32 %v786, %v854
        %v887 = vadd.f32 %v787, %v855
        %v888 = vadd.f32 %v788, %v856
        %v889 = vadd.f32 %v789, %v857
        %v890 = vadd.f32 %v790, %v858
        %v891 = vadd.f32 %v791, %v859
        %v892 = vadd.f32 %v792, %v860
        %s893 = scalar_lea.vmem [#allocation2], 48
        %v894 = vld [vmem:[%s893] sm:$0xff]
        %v895 = vld [vmem:[%s893 + $0x8] sm:$0xff]
        %v896 = vld [vmem:[%s893 + $0x18] sm:$0xff]
        %v897 = vld [vmem:[%s893 + $0x20] sm:$0xff]
        %v898 = vld [vmem:[%s893 + $0x30] sm:$0xff]
        %v899 = vld [vmem:[%s893 + $0x38] sm:$0xff]
        %v900 = vld [vmem:[%s893 + $0x48] sm:$0xff]
        %v901 = vld [vmem:[%s893 + $0x50] sm:$0xff]
        %v902 = vld [vmem:[%s893 + $0x60] sm:$0xff]
        %v903 = vld [vmem:[%s893 + $0x68] sm:$0xff]
        %v904 = vld [vmem:[%s893 + $0x78] sm:$0xff]
        %v905 = vld [vmem:[%s893 + $0x80] sm:$0xff]
        %v906 = vld [vmem:[%s893 + $0x90] sm:$0xff]
        %v907 = vld [vmem:[%s893 + $0x98] sm:$0xff]
        %v908 = vld [vmem:[%s893 + $0xa8] sm:$0xff]
        %v909 = vld [vmem:[%s893 + $0xb0] sm:$0xff]
        %v910 = vld [vmem:[%s893 + $0xc0] sm:$0xff]
        %v911 = vld [vmem:[%s893 + $0xc8] sm:$0xff]
        %v912 = vld [vmem:[%s893 + $0xd8] sm:$0xff]
        %v913 = vld [vmem:[%s893 + $0xe0] sm:$0xff]
        %v914 = vld [vmem:[%s893 + $0xf0] sm:$0xff]
        %v915 = vld [vmem:[%s893 + $0xf8] sm:$0xff]
        %v916 = vld [vmem:[%s893 + $0x108] sm:$0xff]
        %v917 = vld [vmem:[%s893 + $0x110] sm:$0xff]
        %v918 = vld [vmem:[%s893 + $0x120] sm:$0xff]
        %v919 = vld [vmem:[%s893 + $0x128] sm:$0xff]
        %v920 = vld [vmem:[%s893 + $0x138] sm:$0xff]
        %v921 = vld [vmem:[%s893 + $0x140] sm:$0xff]
        %v922 = vld [vmem:[%s893 + $0x150] sm:$0xff]
        %v923 = vld [vmem:[%s893 + $0x158] sm:$0xff]
        %v924 = vld [vmem:[%s893 + $0x168] sm:$0xff]
        %v925 = vld [vmem:[%s893 + $0x170] sm:$0xff]
        %v926 = vlaneseq
        %v927 = vshrl.u32 %v926, 7
        %v928 = vsub.s32 6, %v927
        %v929 = vrot.slane %v290, %v928
        %v930 = vmul.f32 %v894, %v929
        %v931 = vmul.f32 %v895, %v929
        %v932 = vmul.f32 %v896, %v929
        %v933 = vmul.f32 %v897, %v929
        %v934 = vmul.f32 %v898, %v929
        %v935 = vmul.f32 %v899, %v929
        %v936 = vmul.f32 %v900, %v929
        %v937 = vmul.f32 %v901, %v929
        %v938 = vmul.f32 %v902, %v929
        %v939 = vmul.f32 %v903, %v929
        %v940 = vmul.f32 %v904, %v929
        %v941 = vmul.f32 %v905, %v929
        %v942 = vmul.f32 %v906, %v929
        %v943 = vmul.f32 %v907, %v929
        %v944 = vmul.f32 %v908, %v929
        %v945 = vmul.f32 %v909, %v929
        %v946 = vmul.f32 %v910, %v929
        %v947 = vmul.f32 %v911, %v929
        %v948 = vmul.f32 %v912, %v929
        %v949 = vmul.f32 %v913, %v929
        %v950 = vmul.f32 %v914, %v929
        %v951 = vmul.f32 %v915, %v929
        %v952 = vmul.f32 %v916, %v929
        %v953 = vmul.f32 %v917, %v929
        %v954 = vmul.f32 %v918, %v929
        %v955 = vmul.f32 %v919, %v929
        %v956 = vmul.f32 %v920, %v929
        %v957 = vmul.f32 %v921, %v929
        %v958 = vmul.f32 %v922, %v929
        %v959 = vmul.f32 %v923, %v929
        %v960 = vmul.f32 %v924, %v929
        %v961 = vmul.f32 %v925, %v929
        %v962 = vadd.f32 %v861, %v930
        %v963 = vadd.f32 %v862, %v931
        %v964 = vadd.f32 %v863, %v932
        %v965 = vadd.f32 %v864, %v933
        %v966 = vadd.f32 %v865, %v934
        %v967 = vadd.f32 %v866, %v935
        %v968 = vadd.f32 %v867, %v936
        %v969 = vadd.f32 %v868, %v937
        %v970 = vadd.f32 %v869, %v938
        %v971 = vadd.f32 %v870, %v939
        %v972 = vadd.f32 %v871, %v940
        %v973 = vadd.f32 %v872, %v941
        %v974 = vadd.f32 %v873, %v942
        %v975 = vadd.f32 %v874, %v943
        %v976 = vadd.f32 %v875, %v944
        %v977 = vadd.f32 %v876, %v945
        %v978 = vadd.f32 %v877, %v946
        %v979 = vadd.f32 %v878, %v947
        %v980 = vadd.f32 %v879, %v948
        %v981 = vadd.f32 %v880, %v949
        %v982 = vadd.f32 %v881, %v950
        %v983 = vadd.f32 %v882, %v951
        %v984 = vadd.f32 %v883, %v952
        %v985 = vadd.f32 %v884, %v953
        %v986 = vadd.f32 %v885, %v954
        %v987 = vadd.f32 %v886, %v955
        %v988 = vadd.f32 %v887, %v956
        %v989 = vadd.f32 %v888, %v957
        %v990 = vadd.f32 %v889, %v958
        %v991 = vadd.f32 %v890, %v959
        %v992 = vadd.f32 %v891, %v960
        %v993 = vadd.f32 %v892, %v961
        %v994 = vld [vmem:[%s893 + $0x1] sm:$0xff]
        %v995 = vld [vmem:[%s893 + $0x9] sm:$0xff]
        %v996 = vld [vmem:[%s893 + $0x19] sm:$0xff]
        %v997 = vld [vmem:[%s893 + $0x21] sm:$0xff]
        %v998 = vld [vmem:[%s893 + $0x31] sm:$0xff]
        %v999 = vld [vmem:[%s893 + $0x39] sm:$0xff]
        %v1000 = vld [vmem:[%s893 + $0x49] sm:$0xff]
        %v1001 = vld [vmem:[%s893 + $0x51] sm:$0xff]
        %v1002 = vld [vmem:[%s893 + $0x61] sm:$0xff]
        %v1003 = vld [vmem:[%s893 + $0x69] sm:$0xff]
        %v1004 = vld [vmem:[%s893 + $0x79] sm:$0xff]
        %v1005 = vld [vmem:[%s893 + $0x81] sm:$0xff]
        %v1006 = vld [vmem:[%s893 + $0x91] sm:$0xff]
        %v1007 = vld [vmem:[%s893 + $0x99] sm:$0xff]
        %v1008 = vld [vmem:[%s893 + $0xa9] sm:$0xff]
        %v1009 = vld [vmem:[%s893 + $0xb1] sm:$0xff]
        %v1010 = vld [vmem:[%s893 + $0xc1] sm:$0xff]
        %v1011 = vld [vmem:[%s893 + $0xc9] sm:$0xff]
        %v1012 = vld [vmem:[%s893 + $0xd9] sm:$0xff]
        %v1013 = vld [vmem:[%s893 + $0xe1] sm:$0xff]
        %v1014 = vld [vmem:[%s893 + $0xf1] sm:$0xff]
        %v1015 = vld [vmem:[%s893 + $0xf9] sm:$0xff]
        %v1016 = vld [vmem:[%s893 + $0x109] sm:$0xff]
        %v1017 = vld [vmem:[%s893 + $0x111] sm:$0xff]
        %v1018 = vld [vmem:[%s893 + $0x121] sm:$0xff]
        %v1019 = vld [vmem:[%s893 + $0x129] sm:$0xff]
        %v1020 = vld [vmem:[%s893 + $0x139] sm:$0xff]
        %v1021 = vld [vmem:[%s893 + $0x141] sm:$0xff]
        %v1022 = vld [vmem:[%s893 + $0x151] sm:$0xff]
        %v1023 = vld [vmem:[%s893 + $0x159] sm:$0xff]
        %v1024 = vld [vmem:[%s893 + $0x169] sm:$0xff]
        %v1025 = vld [vmem:[%s893 + $0x171] sm:$0xff]
        %v1026 = vlaneseq
        %v1027 = vshrl.u32 %v1026, 7
        %v1028 = vsub.s32 7, %v1027
        %v1029 = vrot.slane %v290, %v1028
        %v1030 = vmul.f32 %v994, %v1029
        %v1031 = vmul.f32 %v995, %v1029
        %v1032 = vmul.f32 %v996, %v1029
        %v1033 = vmul.f32 %v997, %v1029
        %v1034 = vmul.f32 %v998, %v1029
        %v1035 = vmul.f32 %v999, %v1029
        %v1036 = vmul.f32 %v1000, %v1029
        %v1037 = vmul.f32 %v1001, %v1029
        %v1038 = vmul.f32 %v1002, %v1029
        %v1039 = vmul.f32 %v1003, %v1029
        %v1040 = vmul.f32 %v1004, %v1029
        %v1041 = vmul.f32 %v1005, %v1029
        %v1042 = vmul.f32 %v1006, %v1029
        %v1043 = vmul.f32 %v1007, %v1029
        %v1044 = vmul.f32 %v1008, %v1029
        %v1045 = vmul.f32 %v1009, %v1029
        %v1046 = vmul.f32 %v1010, %v1029
        %v1047 = vmul.f32 %v1011, %v1029
        %v1048 = vmul.f32 %v1012, %v1029
        %v1049 = vmul.f32 %v1013, %v1029
        %v1050 = vmul.f32 %v1014, %v1029
        %v1051 = vmul.f32 %v1015, %v1029
        %v1052 = vmul.f32 %v1016, %v1029
        %v1053 = vmul.f32 %v1017, %v1029
        %v1054 = vmul.f32 %v1018, %v1029
        %v1055 = vmul.f32 %v1019, %v1029
        %v1056 = vmul.f32 %v1020, %v1029
        %v1057 = vmul.f32 %v1021, %v1029
        %v1058 = vmul.f32 %v1022, %v1029
        %v1059 = vmul.f32 %v1023, %v1029
        %v1060 = vmul.f32 %v1024, %v1029
        %v1061 = vmul.f32 %v1025, %v1029
        %v1062 = vadd.f32 %v962, %v1030
        %v1063 = vadd.f32 %v963, %v1031
        %v1064 = vadd.f32 %v964, %v1032
        %v1065 = vadd.f32 %v965, %v1033
        %v1066 = vadd.f32 %v966, %v1034
        %v1067 = vadd.f32 %v967, %v1035
        %v1068 = vadd.f32 %v968, %v1036
        %v1069 = vadd.f32 %v969, %v1037
        %v1070 = vadd.f32 %v970, %v1038
        %v1071 = vadd.f32 %v971, %v1039
        %v1072 = vadd.f32 %v972, %v1040
        %v1073 = vadd.f32 %v973, %v1041
        %v1074 = vadd.f32 %v974, %v1042
        %v1075 = vadd.f32 %v975, %v1043
        %v1076 = vadd.f32 %v976, %v1044
        %v1077 = vadd.f32 %v977, %v1045
        %v1078 = vadd.f32 %v978, %v1046
        %v1079 = vadd.f32 %v979, %v1047
        %v1080 = vadd.f32 %v980, %v1048
        %v1081 = vadd.f32 %v981, %v1049
        %v1082 = vadd.f32 %v982, %v1050
        %v1083 = vadd.f32 %v983, %v1051
        %v1084 = vadd.f32 %v984, %v1052
        %v1085 = vadd.f32 %v985, %v1053
        %v1086 = vadd.f32 %v986, %v1054
        %v1087 = vadd.f32 %v987, %v1055
        %v1088 = vadd.f32 %v988, %v1056
        %v1089 = vadd.f32 %v989, %v1057
        %v1090 = vadd.f32 %v990, %v1058
        %v1091 = vadd.f32 %v991, %v1059
        %v1092 = vadd.f32 %v992, %v1060
        %v1093 = vadd.f32 %v993, %v1061
        %v1094 = vld [vmem:[%s893 + $0x2] sm:$0xff]
        %v1095 = vld [vmem:[%s893 + $0xa] sm:$0xff]
        %v1096 = vld [vmem:[%s893 + $0x1a] sm:$0xff]
        %v1097 = vld [vmem:[%s893 + $0x22] sm:$0xff]
        %v1098 = vld [vmem:[%s893 + $0x32] sm:$0xff]
        %v1099 = vld [vmem:[%s893 + $0x3a] sm:$0xff]
        %v1100 = vld [vmem:[%s893 + $0x4a] sm:$0xff]
        %v1101 = vld [vmem:[%s893 + $0x52] sm:$0xff]
        %v1102 = vld [vmem:[%s893 + $0x62] sm:$0xff]
        %v1103 = vld [vmem:[%s893 + $0x6a] sm:$0xff]
        %v1104 = vld [vmem:[%s893 + $0x7a] sm:$0xff]
        %v1105 = vld [vmem:[%s893 + $0x82] sm:$0xff]
        %v1106 = vld [vmem:[%s893 + $0x92] sm:$0xff]
        %v1107 = vld [vmem:[%s893 + $0x9a] sm:$0xff]
        %v1108 = vld [vmem:[%s893 + $0xaa] sm:$0xff]
        %v1109 = vld [vmem:[%s893 + $0xb2] sm:$0xff]
        %v1110 = vld [vmem:[%s893 + $0xc2] sm:$0xff]
        %v1111 = vld [vmem:[%s893 + $0xca] sm:$0xff]
        %v1112 = vld [vmem:[%s893 + $0xda] sm:$0xff]
        %v1113 = vld [vmem:[%s893 + $0xe2] sm:$0xff]
        %v1114 = vld [vmem:[%s893 + $0xf2] sm:$0xff]
        %v1115 = vld [vmem:[%s893 + $0xfa] sm:$0xff]
        %v1116 = vld [vmem:[%s893 + $0x10a] sm:$0xff]
        %v1117 = vld [vmem:[%s893 + $0x112] sm:$0xff]
        %v1118 = vld [vmem:[%s893 + $0x122] sm:$0xff]
        %v1119 = vld [vmem:[%s893 + $0x12a] sm:$0xff]
        %v1120 = vld [vmem:[%s893 + $0x13a] sm:$0xff]
        %v1121 = vld [vmem:[%s893 + $0x142] sm:$0xff]
        %v1122 = vld [vmem:[%s893 + $0x152] sm:$0xff]
        %v1123 = vld [vmem:[%s893 + $0x15a] sm:$0xff]
        %v1124 = vld [vmem:[%s893 + $0x16a] sm:$0xff]
        %v1125 = vld [vmem:[%s893 + $0x172] sm:$0xff]
        %v1126 = vlaneseq
        %v1127 = vshrl.u32 %v1126, 7
        %v1128 = vsub.s32 0, %v1127
        %v1129 = vrot.slane %v291, %v1128
        %v1130 = vmul.f32 %v1094, %v1129
        %v1131 = vmul.f32 %v1095, %v1129
        %v1132 = vmul.f32 %v1096, %v1129
        %v1133 = vmul.f32 %v1097, %v1129
        %v1134 = vmul.f32 %v1098, %v1129
        %v1135 = vmul.f32 %v1099, %v1129
        %v1136 = vmul.f32 %v1100, %v1129
        %v1137 = vmul.f32 %v1101, %v1129
        %v1138 = vmul.f32 %v1102, %v1129
        %v1139 = vmul.f32 %v1103, %v1129
        %v1140 = vmul.f32 %v1104, %v1129
        %v1141 = vmul.f32 %v1105, %v1129
        %v1142 = vmul.f32 %v1106, %v1129
        %v1143 = vmul.f32 %v1107, %v1129
        %v1144 = vmul.f32 %v1108, %v1129
        %v1145 = vmul.f32 %v1109, %v1129
        %v1146 = vmul.f32 %v1110, %v1129
        %v1147 = vmul.f32 %v1111, %v1129
        %v1148 = vmul.f32 %v1112, %v1129
        %v1149 = vmul.f32 %v1113, %v1129
        %v1150 = vmul.f32 %v1114, %v1129
        %v1151 = vmul.f32 %v1115, %v1129
        %v1152 = vmul.f32 %v1116, %v1129
        %v1153 = vmul.f32 %v1117, %v1129
        %v1154 = vmul.f32 %v1118, %v1129
        %v1155 = vmul.f32 %v1119, %v1129
        %v1156 = vmul.f32 %v1120, %v1129
        %v1157 = vmul.f32 %v1121, %v1129
        %v1158 = vmul.f32 %v1122, %v1129
        %v1159 = vmul.f32 %v1123, %v1129
        %v1160 = vmul.f32 %v1124, %v1129
        %v1161 = vmul.f32 %v1125, %v1129
        %v1162 = vadd.f32 %v1062, %v1130
        %v1163 = vadd.f32 %v1063, %v1131
        %v1164 = vadd.f32 %v1064, %v1132
        %v1165 = vadd.f32 %v1065, %v1133
        %v1166 = vadd.f32 %v1066, %v1134
        %v1167 = vadd.f32 %v1067, %v1135
        %v1168 = vadd.f32 %v1068, %v1136
        %v1169 = vadd.f32 %v1069, %v1137
        %v1170 = vadd.f32 %v1070, %v1138
        %v1171 = vadd.f32 %v1071, %v1139
        %v1172 = vadd.f32 %v1072, %v1140
        %v1173 = vadd.f32 %v1073, %v1141
        %v1174 = vadd.f32 %v1074, %v1142
        %v1175 = vadd.f32 %v1075, %v1143
        %v1176 = vadd.f32 %v1076, %v1144
        %v1177 = vadd.f32 %v1077, %v1145
        %v1178 = vadd.f32 %v1078, %v1146
        %v1179 = vadd.f32 %v1079, %v1147
        %v1180 = vadd.f32 %v1080, %v1148
        %v1181 = vadd.f32 %v1081, %v1149
        %v1182 = vadd.f32 %v1082, %v1150
        %v1183 = vadd.f32 %v1083, %v1151
        %v1184 = vadd.f32 %v1084, %v1152
        %v1185 = vadd.f32 %v1085, %v1153
        %v1186 = vadd.f32 %v1086, %v1154
        %v1187 = vadd.f32 %v1087, %v1155
        %v1188 = vadd.f32 %v1088, %v1156
        %v1189 = vadd.f32 %v1089, %v1157
        %v1190 = vadd.f32 %v1090, %v1158
        %v1191 = vadd.f32 %v1091, %v1159
        %v1192 = vadd.f32 %v1092, %v1160
        %v1193 = vadd.f32 %v1093, %v1161
        %v1194 = vadd.f32 %v1162, %v292
        %v1195 = vadd.f32 %v1163, %v292
        %v1196 = vadd.f32 %v1164, %v292
        %v1197 = vadd.f32 %v1165, %v292
        %v1198 = vadd.f32 %v1166, %v292
        %v1199 = vadd.f32 %v1167, %v292
        %v1200 = vadd.f32 %v1168, %v292
        %v1201 = vadd.f32 %v1169, %v292
        %v1202 = vadd.f32 %v1170, %v292
        %v1203 = vadd.f32 %v1171, %v292
        %v1204 = vadd.f32 %v1172, %v292
        %v1205 = vadd.f32 %v1173, %v292
        %v1206 = vadd.f32 %v1174, %v292
        %v1207 = vadd.f32 %v1175, %v292
        %v1208 = vadd.f32 %v1176, %v292
        %v1209 = vadd.f32 %v1177, %v292
        %v1210 = vadd.f32 %v1178, %v292
        %v1211 = vadd.f32 %v1179, %v292
        %v1212 = vadd.f32 %v1180, %v292
        %v1213 = vadd.f32 %v1181, %v292
        %v1214 = vadd.f32 %v1182, %v292
        %v1215 = vadd.f32 %v1183, %v292
        %v1216 = vadd.f32 %v1184, %v292
        %v1217 = vadd.f32 %v1185, %v292
        %v1218 = vadd.f32 %v1186, %v292
        %v1219 = vadd.f32 %v1187, %v292
        %v1220 = vadd.f32 %v1188, %v292
        %v1221 = vadd.f32 %v1189, %v292
        %v1222 = vadd.f32 %v1190, %v292
        %v1223 = vadd.f32 %v1191, %v292
        %v1224 = vadd.f32 %v1192, %v292
        %v1225 = vadd.f32 %v1193, %v292
        %v1226 = vxor.u32 %v1194, 2147483648
        %v1227 = vxor.u32 %v1195, 2147483648
        %v1228 = vxor.u32 %v1196, 2147483648
        %v1229 = vxor.u32 %v1197, 2147483648
        %v1230 = vxor.u32 %v1198, 2147483648
        %v1231 = vxor.u32 %v1199, 2147483648
        %v1232 = vxor.u32 %v1200, 2147483648
        %v1233 = vxor.u32 %v1201, 2147483648
        %v1234 = vxor.u32 %v1202, 2147483648
        %v1235 = vxor.u32 %v1203, 2147483648
        %v1236 = vxor.u32 %v1204, 2147483648
        %v1237 = vxor.u32 %v1205, 2147483648
        %v1238 = vxor.u32 %v1206, 2147483648
        %v1239 = vxor.u32 %v1207, 2147483648
        %v1240 = vxor.u32 %v1208, 2147483648
        %v1241 = vxor.u32 %v1209, 2147483648
        %v1242 = vxor.u32 %v1210, 2147483648
        %v1243 = vxor.u32 %v1211, 2147483648
        %v1244 = vxor.u32 %v1212, 2147483648
        %v1245 = vxor.u32 %v1213, 2147483648
        %v1246 = vxor.u32 %v1214, 2147483648
        %v1247 = vxor.u32 %v1215, 2147483648
        %v1248 = vxor.u32 %v1216, 2147483648
        %v1249 = vxor.u32 %v1217, 2147483648
        %v1250 = vxor.u32 %v1218, 2147483648
        %v1251 = vxor.u32 %v1219, 2147483648
        %v1252 = vxor.u32 %v1220, 2147483648
        %v1253 = vxor.u32 %v1221, 2147483648
        %v1254 = vxor.u32 %v1222, 2147483648
        %v1255 = vxor.u32 %v1223, 2147483648
        %v1256 = vxor.u32 %v1224, 2147483648
        %v1257 = vxor.u32 %v1225, 2147483648
        %v1258 = vmul.f32 %v1226, 1.442695
        %v1259 = vpow.pop %v1258
        %v1260 = vmul.f32 %v1227, 1.442695
        %v1261 = vpow.pop %v1260
        %v1262 = vmul.f32 %v1228, 1.442695
        %v1263 = vpow.pop %v1262
        %v1264 = vmul.f32 %v1229, 1.442695
        %v1265 = vpow.pop %v1264
        %v1266 = vmul.f32 %v1230, 1.442695
        %v1267 = vpow.pop %v1266
        %v1268 = vmul.f32 %v1231, 1.442695
        %v1269 = vpow.pop %v1268
        %v1270 = vmul.f32 %v1232, 1.442695
        %v1271 = vpow.pop %v1270
        %v1272 = vmul.f32 %v1233, 1.442695
        %v1273 = vpow.pop %v1272
        %v1274 = vmul.f32 %v1234, 1.442695
        %v1275 = vpow.pop %v1274
        %v1276 = vmul.f32 %v1235, 1.442695
        %v1277 = vpow.pop %v1276
        %v1278 = vmul.f32 %v1236, 1.442695
        %v1279 = vpow.pop %v1278
        %v1280 = vmul.f32 %v1237, 1.442695
        %v1281 = vpow.pop %v1280
        %v1282 = vmul.f32 %v1238, 1.442695
        %v1283 = vpow.pop %v1282
        %v1284 = vmul.f32 %v1239, 1.442695
        %v1285 = vpow.pop %v1284
        %v1286 = vmul.f32 %v1240, 1.442695
        %v1287 = vpow.pop %v1286
        %v1288 = vmul.f32 %v1241, 1.442695
        %v1289 = vpow.pop %v1288
        %v1290 = vmul.f32 %v1242, 1.442695
        %v1291 = vpow.pop %v1290
        %v1292 = vmul.f32 %v1243, 1.442695
        %v1293 = vpow.pop %v1292
        %v1294 = vmul.f32 %v1244, 1.442695
        %v1295 = vpow.pop %v1294
        %v1296 = vmul.f32 %v1245, 1.442695
        %v1297 = vpow.pop %v1296
        %v1298 = vmul.f32 %v1246, 1.442695
        %v1299 = vpow.pop %v1298
        %v1300 = vmul.f32 %v1247, 1.442695
        %v1301 = vpow.pop %v1300
        %v1302 = vmul.f32 %v1248, 1.442695
        %v1303 = vpow.pop %v1302
        %v1304 = vmul.f32 %v1249, 1.442695
        %v1305 = vpow.pop %v1304
        %v1306 = vmul.f32 %v1250, 1.442695
        %v1307 = vpow.pop %v1306
        %v1308 = vmul.f32 %v1251, 1.442695
        %v1309 = vpow.pop %v1308
        %v1310 = vmul.f32 %v1252, 1.442695
        %v1311 = vpow.pop %v1310
        %v1312 = vmul.f32 %v1253, 1.442695
        %v1313 = vpow.pop %v1312
        %v1314 = vmul.f32 %v1254, 1.442695
        %v1315 = vpow.pop %v1314
        %v1316 = vmul.f32 %v1255, 1.442695
        %v1317 = vpow.pop %v1316
        %v1318 = vmul.f32 %v1256, 1.442695
        %v1319 = vpow.pop %v1318
        %v1320 = vmul.f32 %v1257, 1.442695
        %v1321 = vpow.pop %v1320
        %v1322 = vadd.f32 %v1259, 1.0
        %v1323 = vadd.f32 %v1261, 1.0
        %v1324 = vadd.f32 %v1263, 1.0
        %v1325 = vadd.f32 %v1265, 1.0
        %v1326 = vadd.f32 %v1267, 1.0
        %v1327 = vadd.f32 %v1269, 1.0
        %v1328 = vadd.f32 %v1271, 1.0
        %v1329 = vadd.f32 %v1273, 1.0
        %v1330 = vadd.f32 %v1275, 1.0
        %v1331 = vadd.f32 %v1277, 1.0
        %v1332 = vadd.f32 %v1279, 1.0
        %v1333 = vadd.f32 %v1281, 1.0
        %v1334 = vadd.f32 %v1283, 1.0
        %v1335 = vadd.f32 %v1285, 1.0
        %v1336 = vadd.f32 %v1287, 1.0
        %v1337 = vadd.f32 %v1289, 1.0
        %v1338 = vadd.f32 %v1291, 1.0
        %v1339 = vadd.f32 %v1293, 1.0
        %v1340 = vadd.f32 %v1295, 1.0
        %v1341 = vadd.f32 %v1297, 1.0
        %v1342 = vadd.f32 %v1299, 1.0
        %v1343 = vadd.f32 %v1301, 1.0
        %v1344 = vadd.f32 %v1303, 1.0
        %v1345 = vadd.f32 %v1305, 1.0
        %v1346 = vadd.f32 %v1307, 1.0
        %v1347 = vadd.f32 %v1309, 1.0
        %v1348 = vadd.f32 %v1311, 1.0
        %v1349 = vadd.f32 %v1313, 1.0
        %v1350 = vadd.f32 %v1315, 1.0
        %v1351 = vadd.f32 %v1317, 1.0
        %v1352 = vadd.f32 %v1319, 1.0
        %v1353 = vadd.f32 %v1321, 1.0
        %v1354 = vrcp.pop %v1322
        %v1355 = vmul.f32 1.0, %v1354
        %v1356 = vrcp.pop %v1323
        %v1357 = vmul.f32 1.0, %v1356
        %v1358 = vrcp.pop %v1324
        %v1359 = vmul.f32 1.0, %v1358
        %v1360 = vrcp.pop %v1325
        %v1361 = vmul.f32 1.0, %v1360
        %v1362 = vrcp.pop %v1326
        %v1363 = vmul.f32 1.0, %v1362
        %v1364 = vrcp.pop %v1327
        %v1365 = vmul.f32 1.0, %v1364
        %v1366 = vrcp.pop %v1328
        %v1367 = vmul.f32 1.0, %v1366
        %v1368 = vrcp.pop %v1329
        %v1369 = vmul.f32 1.0, %v1368
        %v1370 = vrcp.pop %v1330
        %v1371 = vmul.f32 1.0, %v1370
        %v1372 = vrcp.pop %v1331
        %v1373 = vmul.f32 1.0, %v1372
        %v1374 = vrcp.pop %v1332
        %v1375 = vmul.f32 1.0, %v1374
        %v1376 = vrcp.pop %v1333
        %v1377 = vmul.f32 1.0, %v1376
        %v1378 = vrcp.pop %v1334
        %v1379 = vmul.f32 1.0, %v1378
        %v1380 = vrcp.pop %v1335
        %v1381 = vmul.f32 1.0, %v1380
        %v1382 = vrcp.pop %v1336
        %v1383 = vmul.f32 1.0, %v1382
        %v1384 = vrcp.pop %v1337
        %v1385 = vmul.f32 1.0, %v1384
        %v1386 = vrcp.pop %v1338
        %v1387 = vmul.f32 1.0, %v1386
        %v1388 = vrcp.pop %v1339
        %v1389 = vmul.f32 1.0, %v1388
        %v1390 = vrcp.pop %v1340
        %v1391 = vmul.f32 1.0, %v1390
        %v1392 = vrcp.pop %v1341
        %v1393 = vmul.f32 1.0, %v1392
        %v1394 = vrcp.pop %v1342
        %v1395 = vmul.f32 1.0, %v1394
        %v1396 = vrcp.pop %v1343
        %v1397 = vmul.f32 1.0, %v1396
        %v1398 = vrcp.pop %v1344
        %v1399 = vmul.f32 1.0, %v1398
        %v1400 = vrcp.pop %v1345
        %v1401 = vmul.f32 1.0, %v1400
        %v1402 = vrcp.pop %v1346
        %v1403 = vmul.f32 1.0, %v1402
        %v1404 = vrcp.pop %v1347
        %v1405 = vmul.f32 1.0, %v1404
        %v1406 = vrcp.pop %v1348
        %v1407 = vmul.f32 1.0, %v1406
        %v1408 = vrcp.pop %v1349
        %v1409 = vmul.f32 1.0, %v1408
        %v1410 = vrcp.pop %v1350
        %v1411 = vmul.f32 1.0, %v1410
        %v1412 = vrcp.pop %v1351
        %v1413 = vmul.f32 1.0, %v1412
        %v1414 = vrcp.pop %v1352
        %v1415 = vmul.f32 1.0, %v1414
        %v1416 = vrcp.pop %v1353
        %v1417 = vmul.f32 1.0, %v1416
        %v1418 = vmul.f32 %v1194, %v1355
        %v1419 = vmul.f32 %v1195, %v1357
        %v1420 = vmul.f32 %v1196, %v1359
        %v1421 = vmul.f32 %v1197, %v1361
        %v1422 = vmul.f32 %v1198, %v1363
        %v1423 = vmul.f32 %v1199, %v1365
        %v1424 = vmul.f32 %v1200, %v1367
        %v1425 = vmul.f32 %v1201, %v1369
        %v1426 = vmul.f32 %v1202, %v1371
        %v1427 = vmul.f32 %v1203, %v1373
        %v1428 = vmul.f32 %v1204, %v1375
        %v1429 = vmul.f32 %v1205, %v1377
        %v1430 = vmul.f32 %v1206, %v1379
        %v1431 = vmul.f32 %v1207, %v1381
        %v1432 = vmul.f32 %v1208, %v1383
        %v1433 = vmul.f32 %v1209, %v1385
        %v1434 = vmul.f32 %v1210, %v1387
        %v1435 = vmul.f32 %v1211, %v1389
        %v1436 = vmul.f32 %v1212, %v1391
        %v1437 = vmul.f32 %v1213, %v1393
        %v1438 = vmul.f32 %v1214, %v1395
        %v1439 = vmul.f32 %v1215, %v1397
        %v1440 = vmul.f32 %v1216, %v1399
        %v1441 = vmul.f32 %v1217, %v1401
        %v1442 = vmul.f32 %v1218, %v1403
        %v1443 = vmul.f32 %v1219, %v1405
        %v1444 = vmul.f32 %v1220, %v1407
        %v1445 = vmul.f32 %v1221, %v1409
        %v1446 = vmul.f32 %v1222, %v1411
        %v1447 = vmul.f32 %v1223, %v1413
        %v1448 = vmul.f32 %v1224, %v1415
        %v1449 = vmul.f32 %v1225, %v1417
        %v1450 = vsel %vm201, %v1418, 0.0
        %v1451 = vsel %vm201, %v1419, 0.0
        %v1452 = vadd.f32 %v1450, %v1451
        %v1453 = vsel %vm201, %v1420, 0.0
        %v1454 = vadd.f32 %v1452, %v1453
        %v1455 = vsel %vm201, %v1421, 0.0
        %v1456 = vadd.f32 %v1454, %v1455
        %v1457 = vsel %vm201, %v1422, 0.0
        %v1458 = vadd.f32 %v1456, %v1457
        %v1459 = vsel %vm201, %v1423, 0.0
        %v1460 = vadd.f32 %v1458, %v1459
        %v1461 = vsel %vm201, %v1424, 0.0
        %v1462 = vadd.f32 %v1460, %v1461
        %v1463 = vsel %vm201, %v1425, 0.0
        %v1464 = vadd.f32 %v1462, %v1463
        %v1465 = vsel %vm201, %v1426, 0.0
        %v1466 = vadd.f32 %v1464, %v1465
        %v1467 = vsel %vm201, %v1427, 0.0
        %v1468 = vadd.f32 %v1466, %v1467
        %v1469 = vsel %vm201, %v1428, 0.0
        %v1470 = vadd.f32 %v1468, %v1469
        %v1471 = vsel %vm201, %v1429, 0.0
        %v1472 = vadd.f32 %v1470, %v1471
        %v1473 = vsel %vm201, %v1430, 0.0
        %v1474 = vadd.f32 %v1472, %v1473
        %v1475 = vsel %vm201, %v1431, 0.0
        %v1476 = vadd.f32 %v1474, %v1475
        %v1477 = vsel %vm201, %v1432, 0.0
        %v1478 = vadd.f32 %v1476, %v1477
        %v1479 = vsel %vm201, %v1433, 0.0
        %v1480 = vadd.f32 %v1478, %v1479
        %v1481 = vsel %vm201, %v1434, 0.0
        %v1482 = vadd.f32 %v1480, %v1481
        %v1483 = vsel %vm201, %v1435, 0.0
        %v1484 = vadd.f32 %v1482, %v1483
        %v1485 = vsel %vm201, %v1436, 0.0
        %v1486 = vadd.f32 %v1484, %v1485
        %v1487 = vsel %vm201, %v1437, 0.0
        %v1488 = vadd.f32 %v1486, %v1487
        %v1489 = vsel %vm201, %v1438, 0.0
        %v1490 = vadd.f32 %v1488, %v1489
        %v1491 = vsel %vm201, %v1439, 0.0
        %v1492 = vadd.f32 %v1490, %v1491
        %v1493 = vsel %vm201, %v1440, 0.0
        %v1494 = vadd.f32 %v1492, %v1493
        %v1495 = vsel %vm201, %v1441, 0.0
        %v1496 = vadd.f32 %v1494, %v1495
        %v1497 = vsel %vm201, %v1442, 0.0
        %v1498 = vadd.f32 %v1496, %v1497
        %v1499 = vsel %vm201, %v1443, 0.0
        %v1500 = vadd.f32 %v1498, %v1499
        %v1501 = vsel %vm201, %v1444, 0.0
        %v1502 = vadd.f32 %v1500, %v1501
        %v1503 = vsel %vm201, %v1445, 0.0
        %v1504 = vadd.f32 %v1502, %v1503
        %v1505 = vsel %vm201, %v1446, 0.0
        %v1506 = vadd.f32 %v1504, %v1505
        %v1507 = vsel %vm201, %v1447, 0.0
        %v1508 = vadd.f32 %v1506, %v1507
        %v1509 = vsel %vm201, %v1448, 0.0
        %v1510 = vadd.f32 %v1508, %v1509
        %v1511 = vsel %vm201, %v1449, 0.0
        %v1512 = vadd.f32 %v1510, %v1511
        %v1513 = vrot.slane %v1512, 4
        %v1514 = vadd.f32 %v1512, %v1513
        %v1515 = vrot.slane %v1514, 2
        %v1516 = vadd.f32 %v1514, %v1515
        %v1517 = vrot.slane %v1516, 1
        %v1518 = vadd.f32 %v1516, %v1517
        %v1519 = vmul.f32 %v1518, 0.00390625
        %v1520 = vld [vmem:[%s1 + $0x30] sm:$0xff]
        %v1521 = vld [vmem:[%s1 + $0x40] ss:$0 sm:$0xff]
        %v1522 = vld [vmem:[%s1 + $0x50] sm:$0x3]
        %v1523 = vld [vmem:[%s1 + $0x60] ss:$0 sm:$0xff]
        %v1525 = vsel %vm201, %v1519, 0
        %1527 = vmatprep.subr.mxu0 0.0
        %1528 = vmatpush1.msra.mxu0 0.0
        %1529 = vmatprep.subr.mxu0 0.0
        %1530 = vmatpush1.msra.mxu0 0.0
        %1531 = vmatprep.subr.mxu0 0.0
        %1532 = vmatpush1.msra.mxu0 0.0
        %1533 = vmatprep.subr.mxu0 0.0
        %1534 = vmatpush1.msra.mxu0 0.0
        %1535 = vmatprep.subr.mxu0 0.0
        %1536 = vmatpush1.msra.mxu0 0.0
        %1537 = vmatprep.subr.mxu0 0.0
        %1538 = vmatpush1.msra.mxu0 0.0
        %1539 = vmatprep.subr.mxu0 0.0
        %1540 = vmatpush1.msra.mxu0 0.0
        %1541 = vmatprep.subr.mxu0 0.0
        %1542 = vmatpush1.msra.mxu0 0.0
        %1543 = vmatprep.subr.mxu0 0.0
        %1544 = vmatpush1.msra.mxu0 0.0
        %1545 = vmatprep.subr.mxu0 0.0
        %1546 = vmatpush1.msra.mxu0 0.0
        %1547 = vmatprep.subr.mxu0 0.0
        %1548 = vmatpush1.msra.mxu0 0.0
        %1549 = vmatprep.subr.mxu0 0.0
        %1550 = vmatpush1.msra.mxu0 0.0
        %1551 = vmatprep.subr.mxu0 0.0
        %1552 = vmatpush1.msra.mxu0 0.0
        %1553 = vmatprep.subr.mxu0 0.0
        %1554 = vmatpush1.msra.mxu0 0.0
        %1555 = vmatprep.subr.mxu0 0.0
        %1556 = vmatpush1.msra.mxu0 0.0
        %1557 = vmatprep.subr.mxu0 0.0
        %1558 = vmatpush1.msra.mxu0 %v1520
        %1559 = vmatprep.subr.mxu0 0.0
        %1560 = vmatpush2.msra.mxu0 0.0
        %1561 = vmatprep.subr.mxu0 0.0
        %1562 = vmatpush2.msra.mxu0 0.0
        %1563 = vmatprep.subr.mxu0 0.0
        %1564 = vmatpush2.msra.mxu0 0.0
        %1565 = vmatprep.subr.mxu0 0.0
        %1566 = vmatpush2.msra.mxu0 0.0
        %1567 = vmatprep.subr.mxu0 0.0
        %1568 = vmatpush2.msra.mxu0 0.0
        %1569 = vmatprep.subr.mxu0 0.0
        %1570 = vmatpush2.msra.mxu0 0.0
        %1571 = vmatprep.subr.mxu0 0.0
        %1572 = vmatpush2.msra.mxu0 0.0
        %1573 = vmatprep.subr.mxu0 0.0
        %1574 = vmatpush2.msra.mxu0 0.0
        %1575 = vmatprep.subr.mxu0 0.0
        %1576 = vmatpush2.msra.mxu0 0.0
        %1577 = vmatprep.subr.mxu0 0.0
        %1578 = vmatpush2.msra.mxu0 0.0
        %1579 = vmatprep.subr.mxu0 0.0
        %1580 = vmatpush2.msra.mxu0 0.0
        %1581 = vmatprep.subr.mxu0 0.0
        %1582 = vmatpush2.msra.mxu0 0.0
        %1583 = vmatprep.subr.mxu0 0.0
        %1584 = vmatpush2.msra.mxu0 0.0
        %1585 = vmatprep.subr.mxu0 0.0
        %1586 = vmatpush2.msra.mxu0 0.0
        %1587 = vmatprep.subr.mxu0 0.0
        %1588 = vmatpush2.msra.mxu0 0.0
        %1589 = vmatprep.subr.mxu0 0.0
        %1590 = vmatpush2.msra.mxu0 0.0
        %1591 = vmatprep.mubr.f32.mxu0 0.0
        %1592 = vmatmul.mubr.f32.gmra.mxu0 %v1525
        %v1593 = vpop.f32.mrf.mxu0
        %v1594 = vadd.f32 %v1521, %v1593
        %v1595 = vpop.f32.mrf.mxu0
        %1596 = vdwg.mxu0
        %v1597 = vxor.u32 %v1594, 2147483648
        %v1598 = vmul.f32 %v1597, 1.442695
        %v1599 = vpow.pop %v1598
        %v1600 = vadd.f32 %v1599, 1.0
        %v1601 = vrcp.pop %v1600
        %v1602 = vmul.f32 1.0, %v1601
        %v1603 = vmul.f32 %v1594, %v1602
        %vm1604 = vcmask 15360
        %v1606 = vsel %vm1604, %v1603, 0
        %vm1608 = vcmask 1041408
        %v1610 = vsel %vm1608, %v1522, 0
        %1612 = vmatprep.subr.mxu0 0.0
        %1613 = vmatpush1.msra.mxu0 0.0
        %1614 = vmatprep.subr.mxu0 0.0
        %1615 = vmatpush1.msra.mxu0 0.0
        %1616 = vmatprep.subr.mxu0 0.0
        %1617 = vmatpush1.msra.mxu0 0.0
        %1618 = vmatprep.subr.mxu0 0.0
        %1619 = vmatpush1.msra.mxu0 0.0
        %1620 = vmatprep.subr.mxu0 0.0
        %1621 = vmatpush1.msra.mxu0 0.0
        %1622 = vmatprep.subr.mxu0 0.0
        %1623 = vmatpush1.msra.mxu0 0.0
        %1624 = vmatprep.subr.mxu0 0.0
        %1625 = vmatpush1.msra.mxu0 0.0
        %1626 = vmatprep.subr.mxu0 0.0
        %1627 = vmatpush1.msra.mxu0 0.0
        %1628 = vmatprep.subr.mxu0 0.0
        %1629 = vmatpush1.msra.mxu0 0.0
        %1630 = vmatprep.subr.mxu0 0.0
        %1631 = vmatpush1.msra.mxu0 0.0
        %1632 = vmatprep.subr.mxu0 0.0
        %1633 = vmatpush1.msra.mxu0 0.0
        %1634 = vmatprep.subr.mxu0 0.0
        %1635 = vmatpush1.msra.mxu0 0.0
        %1636 = vmatprep.subr.mxu0 0.0
        %1637 = vmatpush1.msra.mxu0 0.0
        %1638 = vmatprep.subr.mxu0 0.0
        %1639 = vmatpush1.msra.mxu0 0.0
        %1640 = vmatprep.subr.mxu0 0.0
        %1641 = vmatpush1.msra.mxu0 0.0
        %1642 = vmatprep.subr.mxu0 0.0
        %1643 = vmatpush1.msra.mxu0 %v1610
        %1644 = vmatprep.subr.mxu0 0.0
        %1645 = vmatpush2.msra.mxu0 0.0
        %1646 = vmatprep.subr.mxu0 0.0
        %1647 = vmatpush2.msra.mxu0 0.0
        %1648 = vmatprep.subr.mxu0 0.0
        %1649 = vmatpush2.msra.mxu0 0.0
        %1650 = vmatprep.subr.mxu0 0.0
        %1651 = vmatpush2.msra.mxu0 0.0
        %1652 = vmatprep.subr.mxu0 0.0
        %1653 = vmatpush2.msra.mxu0 0.0
        %1654 = vmatprep.subr.mxu0 0.0
        %1655 = vmatpush2.msra.mxu0 0.0
        %1656 = vmatprep.subr.mxu0 0.0
        %1657 = vmatpush2.msra.mxu0 0.0
        %1658 = vmatprep.subr.mxu0 0.0
        %1659 = vmatpush2.msra.mxu0 0.0
        %1660 = vmatprep.subr.mxu0 0.0
        %1661 = vmatpush2.msra.mxu0 0.0
        %1662 = vmatprep.subr.mxu0 0.0
        %1663 = vmatpush2.msra.mxu0 0.0
        %1664 = vmatprep.subr.mxu0 0.0
        %1665 = vmatpush2.msra.mxu0 0.0
        %1666 = vmatprep.subr.mxu0 0.0
        %1667 = vmatpush2.msra.mxu0 0.0
        %1668 = vmatprep.subr.mxu0 0.0
        %1669 = vmatpush2.msra.mxu0 0.0
        %1670 = vmatprep.subr.mxu0 0.0
        %1671 = vmatpush2.msra.mxu0 0.0
        %1672 = vmatprep.subr.mxu0 0.0
        %1673 = vmatpush2.msra.mxu0 0.0
        %1674 = vmatprep.subr.mxu0 0.0
        %1675 = vmatpush2.msra.mxu0 0.0
        %1676 = vmatprep.mubr.f32.mxu0 0.0
        %1677 = vmatmul.mubr.f32.gmra.mxu0 %v1606
        %v1678 = vpop.f32.mrf.mxu0
        %v1679 = vadd.f32 %v1523, %v1678
        %v1680 = vpop.f32.mrf.mxu0
        %1681 = vdwg.mxu0
        %v1682 = vxor.u32 %v1679, 2147483648
        %v1683 = vmul.f32 %v1682, 1.442695
        %v1684 = vpow.pop %v1683
        %v1685 = vadd.f32 %v1684, 1.0
        %v1686 = vrcp.pop %v1685
        %v1687 = vmul.f32 1.0, %v1686
        %v1688 = vld [vmem:[%s1 + $0x70] sm:$0xff]
        %v1689 = vld [vmem:[%s1 + $0x80] ss:$0 sm:$0xff]
        %v1690 = vlaneseq
        %v1691 = vshrl.u32 %v1690, 7
        %v1692 = vsub.s32 0, %v1691
        %v1693 = vrot.slane %v1687, %v1692
        %v1694 = vmul.f32 %v1418, %v1693
        %v1695 = vmul.f32 %v1419, %v1693
        %v1696 = vmul.f32 %v1420, %v1693
        %v1697 = vmul.f32 %v1421, %v1693
        %v1698 = vmul.f32 %v1422, %v1693
        %v1699 = vmul.f32 %v1423, %v1693
        %v1700 = vmul.f32 %v1424, %v1693
        %v1701 = vmul.f32 %v1425, %v1693
        %v1702 = vmul.f32 %v1426, %v1693
        %v1703 = vmul.f32 %v1427, %v1693
        %v1704 = vmul.f32 %v1428, %v1693
        %v1705 = vmul.f32 %v1429, %v1693
        %v1706 = vmul.f32 %v1430, %v1693
        %v1707 = vmul.f32 %v1431, %v1693
        %v1708 = vmul.f32 %v1432, %v1693
        %v1709 = vmul.f32 %v1433, %v1693
        %v1710 = vmul.f32 %v1434, %v1693
        %v1711 = vmul.f32 %v1435, %v1693
        %v1712 = vmul.f32 %v1436, %v1693
        %v1713 = vmul.f32 %v1437, %v1693
        %v1714 = vmul.f32 %v1438, %v1693
        %v1715 = vmul.f32 %v1439, %v1693
        %v1716 = vmul.f32 %v1440, %v1693
        %v1717 = vmul.f32 %v1441, %v1693
        %v1718 = vmul.f32 %v1442, %v1693
        %v1719 = vmul.f32 %v1443, %v1693
        %v1720 = vmul.f32 %v1444, %v1693
        %v1721 = vmul.f32 %v1445, %v1693
        %v1722 = vmul.f32 %v1446, %v1693
        %v1723 = vmul.f32 %v1447, %v1693
        %v1724 = vmul.f32 %v1448, %v1693
        %v1725 = vmul.f32 %v1449, %v1693
        %v1727 = vsel %vm201, %v1694, 0
        %v1730 = vsel %vm201, %v1695, 0
        %v1733 = vsel %vm201, %v1696, 0
        %v1736 = vsel %vm201, %v1697, 0
        %v1739 = vsel %vm201, %v1698, 0
        %v1742 = vsel %vm201, %v1699, 0
        %v1745 = vsel %vm201, %v1700, 0
        %v1748 = vsel %vm201, %v1701, 0
        %v1751 = vsel %vm201, %v1702, 0
        %v1754 = vsel %vm201, %v1703, 0
        %v1757 = vsel %vm201, %v1704, 0
        %v1760 = vsel %vm201, %v1705, 0
        %v1763 = vsel %vm201, %v1706, 0
        %v1766 = vsel %vm201, %v1707, 0
        %v1769 = vsel %vm201, %v1708, 0
        %v1772 = vsel %vm201, %v1709, 0
        %v1775 = vsel %vm201, %v1710, 0
        %v1778 = vsel %vm201, %v1711, 0
        %v1781 = vsel %vm201, %v1712, 0
        %v1784 = vsel %vm201, %v1713, 0
        %v1787 = vsel %vm201, %v1714, 0
        %v1790 = vsel %vm201, %v1715, 0
        %v1793 = vsel %vm201, %v1716, 0
        %v1796 = vsel %vm201, %v1717, 0
        %v1799 = vsel %vm201, %v1718, 0
        %v1802 = vsel %vm201, %v1719, 0
        %v1805 = vsel %vm201, %v1720, 0
        %v1808 = vsel %vm201, %v1721, 0
        %v1811 = vsel %vm201, %v1722, 0
        %v1814 = vsel %vm201, %v1723, 0
        %v1817 = vsel %vm201, %v1724, 0
        %v1820 = vsel %vm201, %v1725, 0
        %1822 = vmatprep.subr.mxu0 0.0
        %1823 = vmatpush1.msra.mxu0 0.0
        %1824 = vmatprep.subr.mxu0 0.0
        %1825 = vmatpush1.msra.mxu0 0.0
        %1826 = vmatprep.subr.mxu0 0.0
        %1827 = vmatpush1.msra.mxu0 0.0
        %1828 = vmatprep.subr.mxu0 0.0
        %1829 = vmatpush1.msra.mxu0 0.0
        %1830 = vmatprep.subr.mxu0 0.0
        %1831 = vmatpush1.msra.mxu0 0.0
        %1832 = vmatprep.subr.mxu0 0.0
        %1833 = vmatpush1.msra.mxu0 0.0
        %1834 = vmatprep.subr.mxu0 0.0
        %1835 = vmatpush1.msra.mxu0 0.0
        %1836 = vmatprep.subr.mxu0 0.0
        %1837 = vmatpush1.msra.mxu0 0.0
        %1838 = vmatprep.subr.mxu0 0.0
        %1839 = vmatpush1.msra.mxu0 0.0
        %1840 = vmatprep.subr.mxu0 0.0
        %1841 = vmatpush1.msra.mxu0 0.0
        %1842 = vmatprep.subr.mxu0 0.0
        %1843 = vmatpush1.msra.mxu0 0.0
        %1844 = vmatprep.subr.mxu0 0.0
        %1845 = vmatpush1.msra.mxu0 0.0
        %1846 = vmatprep.subr.mxu0 0.0
        %1847 = vmatpush1.msra.mxu0 0.0
        %1848 = vmatprep.subr.mxu0 0.0
        %1849 = vmatpush1.msra.mxu0 0.0
        %1850 = vmatprep.subr.mxu0 0.0
        %1851 = vmatpush1.msra.mxu0 0.0
        %1852 = vmatprep.subr.mxu0 0.0
        %1853 = vmatpush1.msra.mxu0 %v1688
        %1854 = vmatprep.subr.mxu0 0.0
        %1855 = vmatpush2.msra.mxu0 0.0
        %1856 = vmatprep.subr.mxu0 0.0
        %1857 = vmatpush2.msra.mxu0 0.0
        %1858 = vmatprep.subr.mxu0 0.0
        %1859 = vmatpush2.msra.mxu0 0.0
        %1860 = vmatprep.subr.mxu0 0.0
        %1861 = vmatpush2.msra.mxu0 0.0
        %1862 = vmatprep.subr.mxu0 0.0
        %1863 = vmatpush2.msra.mxu0 0.0
        %1864 = vmatprep.subr.mxu0 0.0
        %1865 = vmatpush2.msra.mxu0 0.0
        %1866 = vmatprep.subr.mxu0 0.0
        %1867 = vmatpush2.msra.mxu0 0.0
        %1868 = vmatprep.subr.mxu0 0.0
        %1869 = vmatpush2.msra.mxu0 0.0
        %1870 = vmatprep.subr.mxu0 0.0
        %1871 = vmatpush2.msra.mxu0 0.0
        %1872 = vmatprep.subr.mxu0 0.0
        %1873 = vmatpush2.msra.mxu0 0.0
        %1874 = vmatprep.subr.mxu0 0.0
        %1875 = vmatpush2.msra.mxu0 0.0
        %1876 = vmatprep.subr.mxu0 0.0
        %1877 = vmatpush2.msra.mxu0 0.0
        %1878 = vmatprep.subr.mxu0 0.0
        %1879 = vmatpush2.msra.mxu0 0.0
        %1880 = vmatprep.subr.mxu0 0.0
        %1881 = vmatpush2.msra.mxu0 0.0
        %1882 = vmatprep.subr.mxu0 0.0
        %1883 = vmatpush2.msra.mxu0 0.0
        %1884 = vmatprep.subr.mxu0 0.0
        %1885 = vmatpush2.msra.mxu0 0.0
        %1886 = vmatprep.mubr.f32.mxu0 0.0
        %1887 = vmatmul.mubr.f32.gmra.mxu0 %v1727
        %v1888 = vpop.f32.mrf.mxu0
        %v1889 = vadd.f32 %v1689, %v1888
        %v1890 = vpop.f32.mrf.mxu0
        %1891 = vmatprep.mubr.f32.mxu0 0.0
        %1892 = vmatmul.mubr.f32.gmra.mxu0 %v1730
        %v1893 = vpop.f32.mrf.mxu0
        %v1894 = vadd.f32 %v1689, %v1893
        %v1895 = vpop.f32.mrf.mxu0
        %1896 = vmatprep.mubr.f32.mxu0 0.0
        %1897 = vmatmul.mubr.f32.gmra.mxu0 %v1733
        %v1898 = vpop.f32.mrf.mxu0
        %v1899 = vadd.f32 %v1689, %v1898
        %v1900 = vpop.f32.mrf.mxu0
        %1901 = vmatprep.mubr.f32.mxu0 0.0
        %1902 = vmatmul.mubr.f32.gmra.mxu0 %v1736
        %v1903 = vpop.f32.mrf.mxu0
        %v1904 = vadd.f32 %v1689, %v1903
        %v1905 = vpop.f32.mrf.mxu0
        %1906 = vmatprep.mubr.f32.mxu0 0.0
        %1907 = vmatmul.mubr.f32.gmra.mxu0 %v1739
        %v1908 = vpop.f32.mrf.mxu0
        %v1909 = vadd.f32 %v1689, %v1908
        %v1910 = vpop.f32.mrf.mxu0
        %1911 = vmatprep.mubr.f32.mxu0 0.0
        %1912 = vmatmul.mubr.f32.gmra.mxu0 %v1742
        %v1913 = vpop.f32.mrf.mxu0
        %v1914 = vadd.f32 %v1689, %v1913
        %v1915 = vpop.f32.mrf.mxu0
        %1916 = vmatprep.mubr.f32.mxu0 0.0
        %1917 = vmatmul.mubr.f32.gmra.mxu0 %v1745
        %v1918 = vpop.f32.mrf.mxu0
        %v1919 = vadd.f32 %v1689, %v1918
        %v1920 = vpop.f32.mrf.mxu0
        %1921 = vmatprep.mubr.f32.mxu0 0.0
        %1922 = vmatmul.mubr.f32.gmra.mxu0 %v1748
        %v1923 = vpop.f32.mrf.mxu0
        %v1924 = vadd.f32 %v1689, %v1923
        %v1925 = vpop.f32.mrf.mxu0
        %1926 = vmatprep.mubr.f32.mxu0 0.0
        %1927 = vmatmul.mubr.f32.gmra.mxu0 %v1751
        %v1928 = vpop.f32.mrf.mxu0
        %v1929 = vadd.f32 %v1689, %v1928
        %v1930 = vpop.f32.mrf.mxu0
        %1931 = vmatprep.mubr.f32.mxu0 0.0
        %1932 = vmatmul.mubr.f32.gmra.mxu0 %v1754
        %v1933 = vpop.f32.mrf.mxu0
        %v1934 = vadd.f32 %v1689, %v1933
        %v1935 = vpop.f32.mrf.mxu0
        %1936 = vmatprep.mubr.f32.mxu0 0.0
        %1937 = vmatmul.mubr.f32.gmra.mxu0 %v1757
        %v1938 = vpop.f32.mrf.mxu0
        %v1939 = vadd.f32 %v1689, %v1938
        %v1940 = vpop.f32.mrf.mxu0
        %1941 = vmatprep.mubr.f32.mxu0 0.0
        %1942 = vmatmul.mubr.f32.gmra.mxu0 %v1760
        %v1943 = vpop.f32.mrf.mxu0
        %v1944 = vadd.f32 %v1689, %v1943
        %v1945 = vpop.f32.mrf.mxu0
        %1946 = vmatprep.mubr.f32.mxu0 0.0
        %1947 = vmatmul.mubr.f32.gmra.mxu0 %v1763
        %v1948 = vpop.f32.mrf.mxu0
        %v1949 = vadd.f32 %v1689, %v1948
        %v1950 = vpop.f32.mrf.mxu0
        %1951 = vmatprep.mubr.f32.mxu0 0.0
        %1952 = vmatmul.mubr.f32.gmra.mxu0 %v1766
        %v1953 = vpop.f32.mrf.mxu0
        %v1954 = vadd.f32 %v1689, %v1953
        %v1955 = vpop.f32.mrf.mxu0
        %1956 = vmatprep.mubr.f32.mxu0 0.0
        %1957 = vmatmul.mubr.f32.gmra.mxu0 %v1769
        %v1958 = vpop.f32.mrf.mxu0
        %v1959 = vadd.f32 %v1689, %v1958
        %v1960 = vpop.f32.mrf.mxu0
        %1961 = vmatprep.mubr.f32.mxu0 0.0
        %1962 = vmatmul.mubr.f32.gmra.mxu0 %v1772
        %v1963 = vpop.f32.mrf.mxu0
        %v1964 = vadd.f32 %v1689, %v1963
        %v1965 = vpop.f32.mrf.mxu0
        %1966 = vmatprep.mubr.f32.mxu0 0.0
        %1967 = vmatmul.mubr.f32.gmra.mxu0 %v1775
        %v1968 = vpop.f32.mrf.mxu0
        %v1969 = vadd.f32 %v1689, %v1968
        %v1970 = vpop.f32.mrf.mxu0
        %1971 = vmatprep.mubr.f32.mxu0 0.0
        %1972 = vmatmul.mubr.f32.gmra.mxu0 %v1778
        %v1973 = vpop.f32.mrf.mxu0
        %v1974 = vadd.f32 %v1689, %v1973
        %v1975 = vpop.f32.mrf.mxu0
        %1976 = vmatprep.mubr.f32.mxu0 0.0
        %1977 = vmatmul.mubr.f32.gmra.mxu0 %v1781
        %v1978 = vpop.f32.mrf.mxu0
        %v1979 = vadd.f32 %v1689, %v1978
        %v1980 = vpop.f32.mrf.mxu0
        %1981 = vmatprep.mubr.f32.mxu0 0.0
        %1982 = vmatmul.mubr.f32.gmra.mxu0 %v1784
        %v1983 = vpop.f32.mrf.mxu0
        %v1984 = vadd.f32 %v1689, %v1983
        %v1985 = vpop.f32.mrf.mxu0
        %1986 = vmatprep.mubr.f32.mxu0 0.0
        %1987 = vmatmul.mubr.f32.gmra.mxu0 %v1787
        %v1988 = vpop.f32.mrf.mxu0
        %v1989 = vadd.f32 %v1689, %v1988
        %v1990 = vpop.f32.mrf.mxu0
        %1991 = vmatprep.mubr.f32.mxu0 0.0
        %1992 = vmatmul.mubr.f32.gmra.mxu0 %v1790
        %v1993 = vpop.f32.mrf.mxu0
        %v1994 = vadd.f32 %v1689, %v1993
        %v1995 = vpop.f32.mrf.mxu0
        %1996 = vmatprep.mubr.f32.mxu0 0.0
        %1997 = vmatmul.mubr.f32.gmra.mxu0 %v1793
        %v1998 = vpop.f32.mrf.mxu0
        %v1999 = vadd.f32 %v1689, %v1998
        %v2000 = vpop.f32.mrf.mxu0
        %2001 = vmatprep.mubr.f32.mxu0 0.0
        %2002 = vmatmul.mubr.f32.gmra.mxu0 %v1796
        %v2003 = vpop.f32.mrf.mxu0
        %v2004 = vadd.f32 %v1689, %v2003
        %v2005 = vpop.f32.mrf.mxu0
        %2006 = vmatprep.mubr.f32.mxu0 0.0
        %2007 = vmatmul.mubr.f32.gmra.mxu0 %v1799
        %v2008 = vpop.f32.mrf.mxu0
        %v2009 = vadd.f32 %v1689, %v2008
        %v2010 = vpop.f32.mrf.mxu0
        %2011 = vmatprep.mubr.f32.mxu0 0.0
        %2012 = vmatmul.mubr.f32.gmra.mxu0 %v1802
        %v2013 = vpop.f32.mrf.mxu0
        %v2014 = vadd.f32 %v1689, %v2013
        %v2015 = vpop.f32.mrf.mxu0
        %2016 = vmatprep.mubr.f32.mxu0 0.0
        %2017 = vmatmul.mubr.f32.gmra.mxu0 %v1805
        %v2018 = vpop.f32.mrf.mxu0
        %v2019 = vadd.f32 %v1689, %v2018
        %v2020 = vpop.f32.mrf.mxu0
        %2021 = vmatprep.mubr.f32.mxu0 0.0
        %2022 = vmatmul.mubr.f32.gmra.mxu0 %v1808
        %v2023 = vpop.f32.mrf.mxu0
        %v2024 = vadd.f32 %v1689, %v2023
        %v2025 = vpop.f32.mrf.mxu0
        %2026 = vmatprep.mubr.f32.mxu0 0.0
        %2027 = vmatmul.mubr.f32.gmra.mxu0 %v1811
        %v2028 = vpop.f32.mrf.mxu0
        %v2029 = vadd.f32 %v1689, %v2028
        %v2030 = vpop.f32.mrf.mxu0
        %2031 = vmatprep.mubr.f32.mxu0 0.0
        %2032 = vmatmul.mubr.f32.gmra.mxu0 %v1814
        %v2033 = vpop.f32.mrf.mxu0
        %v2034 = vadd.f32 %v1689, %v2033
        %v2035 = vpop.f32.mrf.mxu0
        %2036 = vmatprep.mubr.f32.mxu0 0.0
        %2037 = vmatmul.mubr.f32.gmra.mxu0 %v1817
        %v2038 = vpop.f32.mrf.mxu0
        %v2039 = vadd.f32 %v1689, %v2038
        %v2040 = vpop.f32.mrf.mxu0
        %2041 = vmatprep.mubr.f32.mxu0 0.0
        %2042 = vmatmul.mubr.f32.gmra.mxu0 %v1820
        %v2043 = vpop.f32.mrf.mxu0
        %v2044 = vadd.f32 %v1689, %v2043
        %v2045 = vpop.f32.mrf.mxu0
        %2046 = vdwg.mxu0
        %v2047 = vld [vmem:[%s1 + $0x90] sm:$0xff]
        %v2048 = vld [vmem:[%s1 + $0xa0] sm:$0xff]
        %v2049 = vld [vmem:[%s1 + $0xb0] ss:$0 sm:$0xff]
        %vm2050 = vcmask 130048
        %v2052 = vsel %vm2050, %v1889, 0
        %v2055 = vsel %vm2050, %v1894, 0
        %v2058 = vsel %vm2050, %v1899, 0
        %v2061 = vsel %vm2050, %v1904, 0
        %v2064 = vsel %vm2050, %v1909, 0
        %v2067 = vsel %vm2050, %v1914, 0
        %v2070 = vsel %vm2050, %v1919, 0
        %v2073 = vsel %vm2050, %v1924, 0
        %v2076 = vsel %vm2050, %v1929, 0
        %v2079 = vsel %vm2050, %v1934, 0
        %v2082 = vsel %vm2050, %v1939, 0
        %v2085 = vsel %vm2050, %v1944, 0
        %v2088 = vsel %vm2050, %v1949, 0
        %v2091 = vsel %vm2050, %v1954, 0
        %v2094 = vsel %vm2050, %v1959, 0
        %v2097 = vsel %vm2050, %v1964, 0
        %v2100 = vsel %vm2050, %v1969, 0
        %v2103 = vsel %vm2050, %v1974, 0
        %v2106 = vsel %vm2050, %v1979, 0
        %v2109 = vsel %vm2050, %v1984, 0
        %v2112 = vsel %vm2050, %v1989, 0
        %v2115 = vsel %vm2050, %v1994, 0
        %v2118 = vsel %vm2050, %v1999, 0
        %v2121 = vsel %vm2050, %v2004, 0
        %v2124 = vsel %vm2050, %v2009, 0
        %v2127 = vsel %vm2050, %v2014, 0
        %v2130 = vsel %vm2050, %v2019, 0
        %v2133 = vsel %vm2050, %v2024, 0
        %v2136 = vsel %vm2050, %v2029, 0
        %v2139 = vsel %vm2050, %v2034, 0
        %v2142 = vsel %vm2050, %v2039, 0
        %v2145 = vsel %vm2050, %v2044, 0
        %2147 = vmatprep.subr.mxu0 0.0
        %2148 = vmatpush1.msra.mxu0 0.0
        %2149 = vmatprep.subr.mxu0 0.0
        %2150 = vmatpush1.msra.mxu0 0.0
        %2151 = vmatprep.subr.mxu0 0.0
        %2152 = vmatpush1.msra.mxu0 0.0
        %2153 = vmatprep.subr.mxu0 0.0
        %2154 = vmatpush1.msra.mxu0 0.0
        %2155 = vmatprep.subr.mxu0 0.0
        %2156 = vmatpush1.msra.mxu0 0.0
        %2157 = vmatprep.subr.mxu0 0.0
        %2158 = vmatpush1.msra.mxu0 0.0
        %2159 = vmatprep.subr.mxu0 0.0
        %2160 = vmatpush1.msra.mxu0 0.0
        %2161 = vmatprep.subr.mxu0 0.0
        %2162 = vmatpush1.msra.mxu0 0.0
        %2163 = vmatprep.subr.mxu0 0.0
        %2164 = vmatpush1.msra.mxu0 0.0
        %2165 = vmatprep.subr.mxu0 0.0
        %2166 = vmatpush1.msra.mxu0 0.0
        %2167 = vmatprep.subr.mxu0 0.0
        %2168 = vmatpush1.msra.mxu0 0.0
        %2169 = vmatprep.subr.mxu0 0.0
        %2170 = vmatpush1.msra.mxu0 0.0
        %2171 = vmatprep.subr.mxu0 0.0
        %2172 = vmatpush1.msra.mxu0 0.0
        %2173 = vmatprep.subr.mxu0 0.0
        %2174 = vmatpush1.msra.mxu0 0.0
        %2175 = vmatprep.subr.mxu0 0.0
        %2176 = vmatpush1.msra.mxu0 %v2048
        %2177 = vmatprep.subr.mxu0 0.0
        %2178 = vmatpush1.msra.mxu0 %v2047
        %2179 = vmatprep.subr.mxu0 0.0
        %2180 = vmatpush2.msra.mxu0 0.0
        %2181 = vmatprep.subr.mxu0 0.0
        %2182 = vmatpush2.msra.mxu0 0.0
        %2183 = vmatprep.subr.mxu0 0.0
        %2184 = vmatpush2.msra.mxu0 0.0
        %2185 = vmatprep.subr.mxu0 0.0
        %2186 = vmatpush2.msra.mxu0 0.0
        %2187 = vmatprep.subr.mxu0 0.0
        %2188 = vmatpush2.msra.mxu0 0.0
        %2189 = vmatprep.subr.mxu0 0.0
        %2190 = vmatpush2.msra.mxu0 0.0
        %2191 = vmatprep.subr.mxu0 0.0
        %2192 = vmatpush2.msra.mxu0 0.0
        %2193 = vmatprep.subr.mxu0 0.0
        %2194 = vmatpush2.msra.mxu0 0.0
        %2195 = vmatprep.subr.mxu0 0.0
        %2196 = vmatpush2.msra.mxu0 0.0
        %2197 = vmatprep.subr.mxu0 0.0
        %2198 = vmatpush2.msra.mxu0 0.0
        %2199 = vmatprep.subr.mxu0 0.0
        %2200 = vmatpush2.msra.mxu0 0.0
        %2201 = vmatprep.subr.mxu0 0.0
        %2202 = vmatpush2.msra.mxu0 0.0
        %2203 = vmatprep.subr.mxu0 0.0
        %2204 = vmatpush2.msra.mxu0 0.0
        %2205 = vmatprep.subr.mxu0 0.0
        %2206 = vmatpush2.msra.mxu0 0.0
        %2207 = vmatprep.subr.mxu0 0.0
        %2208 = vmatpush2.msra.mxu0 0.0
        %2209 = vmatprep.subr.mxu0 0.0
        %2210 = vmatpush2.msra.mxu0 0.0
        %2211 = vmatprep.mubr.f32.mxu0 0.0
        %2212 = vmatmul.mubr.f32.gmra.mxu0 %v2052
        %v2213 = vpop.f32.mrf.mxu0
        %v2214 = vadd.f32 %v2049, %v2213
        %v2215 = vpop.f32.mrf.mxu0
        %2216 = vmatprep.mubr.f32.mxu0 0.0
        %2217 = vmatmul.mubr.f32.gmra.mxu0 %v2055
        %v2218 = vpop.f32.mrf.mxu0
        %v2219 = vadd.f32 %v2049, %v2218
        %v2220 = vpop.f32.mrf.mxu0
        %2221 = vmatprep.mubr.f32.mxu0 0.0
        %2222 = vmatmul.mubr.f32.gmra.mxu0 %v2058
        %v2223 = vpop.f32.mrf.mxu0
        %v2224 = vadd.f32 %v2049, %v2223
        %v2225 = vpop.f32.mrf.mxu0
        %2226 = vmatprep.mubr.f32.mxu0 0.0
        %2227 = vmatmul.mubr.f32.gmra.mxu0 %v2061
        %v2228 = vpop.f32.mrf.mxu0
        %v2229 = vadd.f32 %v2049, %v2228
        %v2230 = vpop.f32.mrf.mxu0
        %2231 = vmatprep.mubr.f32.mxu0 0.0
        %2232 = vmatmul.mubr.f32.gmra.mxu0 %v2064
        %v2233 = vpop.f32.mrf.mxu0
        %v2234 = vadd.f32 %v2049, %v2233
        %v2235 = vpop.f32.mrf.mxu0
        %2236 = vmatprep.mubr.f32.mxu0 0.0
        %2237 = vmatmul.mubr.f32.gmra.mxu0 %v2067
        %v2238 = vpop.f32.mrf.mxu0
        %v2239 = vadd.f32 %v2049, %v2238
        %v2240 = vpop.f32.mrf.mxu0
        %2241 = vmatprep.mubr.f32.mxu0 0.0
        %2242 = vmatmul.mubr.f32.gmra.mxu0 %v2070
        %v2243 = vpop.f32.mrf.mxu0
        %v2244 = vadd.f32 %v2049, %v2243
        %v2245 = vpop.f32.mrf.mxu0
        %2246 = vmatprep.mubr.f32.mxu0 0.0
        %2247 = vmatmul.mubr.f32.gmra.mxu0 %v2073
        %v2248 = vpop.f32.mrf.mxu0
        %v2249 = vadd.f32 %v2049, %v2248
        %v2250 = vpop.f32.mrf.mxu0
        %2251 = vmatprep.mubr.f32.mxu0 0.0
        %2252 = vmatmul.mubr.f32.gmra.mxu0 %v2076
        %v2253 = vpop.f32.mrf.mxu0
        %v2254 = vadd.f32 %v2049, %v2253
        %v2255 = vpop.f32.mrf.mxu0
        %2256 = vmatprep.mubr.f32.mxu0 0.0
        %2257 = vmatmul.mubr.f32.gmra.mxu0 %v2079
        %v2258 = vpop.f32.mrf.mxu0
        %v2259 = vadd.f32 %v2049, %v2258
        %v2260 = vpop.f32.mrf.mxu0
        %2261 = vmatprep.mubr.f32.mxu0 0.0
        %2262 = vmatmul.mubr.f32.gmra.mxu0 %v2082
        %v2263 = vpop.f32.mrf.mxu0
        %v2264 = vadd.f32 %v2049, %v2263
        %v2265 = vpop.f32.mrf.mxu0
        %2266 = vmatprep.mubr.f32.mxu0 0.0
        %2267 = vmatmul.mubr.f32.gmra.mxu0 %v2085
        %v2268 = vpop.f32.mrf.mxu0
        %v2269 = vadd.f32 %v2049, %v2268
        %v2270 = vpop.f32.mrf.mxu0
        %2271 = vmatprep.mubr.f32.mxu0 0.0
        %2272 = vmatmul.mubr.f32.gmra.mxu0 %v2088
        %v2273 = vpop.f32.mrf.mxu0
        %v2274 = vadd.f32 %v2049, %v2273
        %v2275 = vpop.f32.mrf.mxu0
        %2276 = vmatprep.mubr.f32.mxu0 0.0
        %2277 = vmatmul.mubr.f32.gmra.mxu0 %v2091
        %v2278 = vpop.f32.mrf.mxu0
        %v2279 = vadd.f32 %v2049, %v2278
        %v2280 = vpop.f32.mrf.mxu0
        %2281 = vmatprep.mubr.f32.mxu0 0.0
        %2282 = vmatmul.mubr.f32.gmra.mxu0 %v2094
        %v2283 = vpop.f32.mrf.mxu0
        %v2284 = vadd.f32 %v2049, %v2283
        %v2285 = vpop.f32.mrf.mxu0
        %2286 = vmatprep.mubr.f32.mxu0 0.0
        %2287 = vmatmul.mubr.f32.gmra.mxu0 %v2097
        %v2288 = vpop.f32.mrf.mxu0
        %v2289 = vadd.f32 %v2049, %v2288
        %v2290 = vpop.f32.mrf.mxu0
        %2291 = vmatprep.mubr.f32.mxu0 0.0
        %2292 = vmatmul.mubr.f32.gmra.mxu0 %v2100
        %v2293 = vpop.f32.mrf.mxu0
        %v2294 = vadd.f32 %v2049, %v2293
        %v2295 = vpop.f32.mrf.mxu0
        %2296 = vmatprep.mubr.f32.mxu0 0.0
        %2297 = vmatmul.mubr.f32.gmra.mxu0 %v2103
        %v2298 = vpop.f32.mrf.mxu0
        %v2299 = vadd.f32 %v2049, %v2298
        %v2300 = vpop.f32.mrf.mxu0
        %2301 = vmatprep.mubr.f32.mxu0 0.0
        %2302 = vmatmul.mubr.f32.gmra.mxu0 %v2106
        %v2303 = vpop.f32.mrf.mxu0
        %v2304 = vadd.f32 %v2049, %v2303
        %v2305 = vpop.f32.mrf.mxu0
        %2306 = vmatprep.mubr.f32.mxu0 0.0
        %2307 = vmatmul.mubr.f32.gmra.mxu0 %v2109
        %v2308 = vpop.f32.mrf.mxu0
        %v2309 = vadd.f32 %v2049, %v2308
        %v2310 = vpop.f32.mrf.mxu0
        %2311 = vmatprep.mubr.f32.mxu0 0.0
        %2312 = vmatmul.mubr.f32.gmra.mxu0 %v2112
        %v2313 = vpop.f32.mrf.mxu0
        %v2314 = vadd.f32 %v2049, %v2313
        %v2315 = vpop.f32.mrf.mxu0
        %2316 = vmatprep.mubr.f32.mxu0 0.0
        %2317 = vmatmul.mubr.f32.gmra.mxu0 %v2115
        %v2318 = vpop.f32.mrf.mxu0
        %v2319 = vadd.f32 %v2049, %v2318
        %v2320 = vpop.f32.mrf.mxu0
        %2321 = vmatprep.mubr.f32.mxu0 0.0
        %2322 = vmatmul.mubr.f32.gmra.mxu0 %v2118
        %v2323 = vpop.f32.mrf.mxu0
        %v2324 = vadd.f32 %v2049, %v2323
        %v2325 = vpop.f32.mrf.mxu0
        %2326 = vmatprep.mubr.f32.mxu0 0.0
        %2327 = vmatmul.mubr.f32.gmra.mxu0 %v2121
        %v2328 = vpop.f32.mrf.mxu0
        %v2329 = vadd.f32 %v2049, %v2328
        %v2330 = vpop.f32.mrf.mxu0
        %2331 = vmatprep.mubr.f32.mxu0 0.0
        %2332 = vmatmul.mubr.f32.gmra.mxu0 %v2124
        %v2333 = vpop.f32.mrf.mxu0
        %v2334 = vadd.f32 %v2049, %v2333
        %v2335 = vpop.f32.mrf.mxu0
        %2336 = vmatprep.mubr.f32.mxu0 0.0
        %2337 = vmatmul.mubr.f32.gmra.mxu0 %v2127
        %v2338 = vpop.f32.mrf.mxu0
        %v2339 = vadd.f32 %v2049, %v2338
        %v2340 = vpop.f32.mrf.mxu0
        %2341 = vmatprep.mubr.f32.mxu0 0.0
        %2342 = vmatmul.mubr.f32.gmra.mxu0 %v2130
        %v2343 = vpop.f32.mrf.mxu0
        %v2344 = vadd.f32 %v2049, %v2343
        %v2345 = vpop.f32.mrf.mxu0
        %2346 = vmatprep.mubr.f32.mxu0 0.0
        %2347 = vmatmul.mubr.f32.gmra.mxu0 %v2133
        %v2348 = vpop.f32.mrf.mxu0
        %v2349 = vadd.f32 %v2049, %v2348
        %v2350 = vpop.f32.mrf.mxu0
        %2351 = vmatprep.mubr.f32.mxu0 0.0
        %2352 = vmatmul.mubr.f32.gmra.mxu0 %v2136
        %v2353 = vpop.f32.mrf.mxu0
        %v2354 = vadd.f32 %v2049, %v2353
        %v2355 = vpop.f32.mrf.mxu0
        %2356 = vmatprep.mubr.f32.mxu0 0.0
        %2357 = vmatmul.mubr.f32.gmra.mxu0 %v2139
        %v2358 = vpop.f32.mrf.mxu0
        %v2359 = vadd.f32 %v2049, %v2358
        %v2360 = vpop.f32.mrf.mxu0
        %2361 = vmatprep.mubr.f32.mxu0 0.0
        %2362 = vmatmul.mubr.f32.gmra.mxu0 %v2142
        %v2363 = vpop.f32.mrf.mxu0
        %v2364 = vadd.f32 %v2049, %v2363
        %v2365 = vpop.f32.mrf.mxu0
        %2366 = vmatprep.mubr.f32.mxu0 0.0
        %2367 = vmatmul.mubr.f32.gmra.mxu0 %v2145
        %v2368 = vpop.f32.mrf.mxu0
        %v2369 = vadd.f32 %v2049, %v2368
        %v2370 = vpop.f32.mrf.mxu0
        %2371 = vdwg.mxu0
        %v2372 = vxor.u32 %v2214, 2147483648
        %v2373 = vxor.u32 %v2219, 2147483648
        %v2374 = vxor.u32 %v2224, 2147483648
        %v2375 = vxor.u32 %v2229, 2147483648
        %v2376 = vxor.u32 %v2234, 2147483648
        %v2377 = vxor.u32 %v2239, 2147483648
        %v2378 = vxor.u32 %v2244, 2147483648
        %v2379 = vxor.u32 %v2249, 2147483648
        %v2380 = vxor.u32 %v2254, 2147483648
        %v2381 = vxor.u32 %v2259, 2147483648
        %v2382 = vxor.u32 %v2264, 2147483648
        %v2383 = vxor.u32 %v2269, 2147483648
        %v2384 = vxor.u32 %v2274, 2147483648
        %v2385 = vxor.u32 %v2279, 2147483648
        %v2386 = vxor.u32 %v2284, 2147483648
        %v2387 = vxor.u32 %v2289, 2147483648
        %v2388 = vxor.u32 %v2294, 2147483648
        %v2389 = vxor.u32 %v2299, 2147483648
        %v2390 = vxor.u32 %v2304, 2147483648
        %v2391 = vxor.u32 %v2309, 2147483648
        %v2392 = vxor.u32 %v2314, 2147483648
        %v2393 = vxor.u32 %v2319, 2147483648
        %v2394 = vxor.u32 %v2324, 2147483648
        %v2395 = vxor.u32 %v2329, 2147483648
        %v2396 = vxor.u32 %v2334, 2147483648
        %v2397 = vxor.u32 %v2339, 2147483648
        %v2398 = vxor.u32 %v2344, 2147483648
        %v2399 = vxor.u32 %v2349, 2147483648
        %v2400 = vxor.u32 %v2354, 2147483648
        %v2401 = vxor.u32 %v2359, 2147483648
        %v2402 = vxor.u32 %v2364, 2147483648
        %v2403 = vxor.u32 %v2369, 2147483648
        %v2404 = vmul.f32 %v2372, 1.442695
        %v2405 = vpow.pop %v2404
        %v2406 = vmul.f32 %v2373, 1.442695
        %v2407 = vpow.pop %v2406
        %v2408 = vmul.f32 %v2374, 1.442695
        %v2409 = vpow.pop %v2408
        %v2410 = vmul.f32 %v2375, 1.442695
        %v2411 = vpow.pop %v2410
        %v2412 = vmul.f32 %v2376, 1.442695
        %v2413 = vpow.pop %v2412
        %v2414 = vmul.f32 %v2377, 1.442695
        %v2415 = vpow.pop %v2414
        %v2416 = vmul.f32 %v2378, 1.442695
        %v2417 = vpow.pop %v2416
        %v2418 = vmul.f32 %v2379, 1.442695
        %v2419 = vpow.pop %v2418
        %v2420 = vmul.f32 %v2380, 1.442695
        %v2421 = vpow.pop %v2420
        %v2422 = vmul.f32 %v2381, 1.442695
        %v2423 = vpow.pop %v2422
        %v2424 = vmul.f32 %v2382, 1.442695
        %v2425 = vpow.pop %v2424
        %v2426 = vmul.f32 %v2383, 1.442695
        %v2427 = vpow.pop %v2426
        %v2428 = vmul.f32 %v2384, 1.442695
        %v2429 = vpow.pop %v2428
        %v2430 = vmul.f32 %v2385, 1.442695
        %v2431 = vpow.pop %v2430
        %v2432 = vmul.f32 %v2386, 1.442695
        %v2433 = vpow.pop %v2432
        %v2434 = vmul.f32 %v2387, 1.442695
        %v2435 = vpow.pop %v2434
        %v2436 = vmul.f32 %v2388, 1.442695
        %v2437 = vpow.pop %v2436
        %v2438 = vmul.f32 %v2389, 1.442695
        %v2439 = vpow.pop %v2438
        %v2440 = vmul.f32 %v2390, 1.442695
        %v2441 = vpow.pop %v2440
        %v2442 = vmul.f32 %v2391, 1.442695
        %v2443 = vpow.pop %v2442
        %v2444 = vmul.f32 %v2392, 1.442695
        %v2445 = vpow.pop %v2444
        %v2446 = vmul.f32 %v2393, 1.442695
        %v2447 = vpow.pop %v2446
        %v2448 = vmul.f32 %v2394, 1.442695
        %v2449 = vpow.pop %v2448
        %v2450 = vmul.f32 %v2395, 1.442695
        %v2451 = vpow.pop %v2450
        %v2452 = vmul.f32 %v2396, 1.442695
        %v2453 = vpow.pop %v2452
        %v2454 = vmul.f32 %v2397, 1.442695
        %v2455 = vpow.pop %v2454
        %v2456 = vmul.f32 %v2398, 1.442695
        %v2457 = vpow.pop %v2456
        %v2458 = vmul.f32 %v2399, 1.442695
        %v2459 = vpow.pop %v2458
        %v2460 = vmul.f32 %v2400, 1.442695
        %v2461 = vpow.pop %v2460
        %v2462 = vmul.f32 %v2401, 1.442695
        %v2463 = vpow.pop %v2462
        %v2464 = vmul.f32 %v2402, 1.442695
        %v2465 = vpow.pop %v2464
        %v2466 = vmul.f32 %v2403, 1.442695
        %v2467 = vpow.pop %v2466
        %v2468 = vadd.f32 %v2405, 1.0
        %v2469 = vadd.f32 %v2407, 1.0
        %v2470 = vadd.f32 %v2409, 1.0
        %v2471 = vadd.f32 %v2411, 1.0
        %v2472 = vadd.f32 %v2413, 1.0
        %v2473 = vadd.f32 %v2415, 1.0
        %v2474 = vadd.f32 %v2417, 1.0
        %v2475 = vadd.f32 %v2419, 1.0
        %v2476 = vadd.f32 %v2421, 1.0
        %v2477 = vadd.f32 %v2423, 1.0
        %v2478 = vadd.f32 %v2425, 1.0
        %v2479 = vadd.f32 %v2427, 1.0
        %v2480 = vadd.f32 %v2429, 1.0
        %v2481 = vadd.f32 %v2431, 1.0
        %v2482 = vadd.f32 %v2433, 1.0
        %v2483 = vadd.f32 %v2435, 1.0
        %v2484 = vadd.f32 %v2437, 1.0
        %v2485 = vadd.f32 %v2439, 1.0
        %v2486 = vadd.f32 %v2441, 1.0
        %v2487 = vadd.f32 %v2443, 1.0
        %v2488 = vadd.f32 %v2445, 1.0
        %v2489 = vadd.f32 %v2447, 1.0
        %v2490 = vadd.f32 %v2449, 1.0
        %v2491 = vadd.f32 %v2451, 1.0
        %v2492 = vadd.f32 %v2453, 1.0
        %v2493 = vadd.f32 %v2455, 1.0
        %v2494 = vadd.f32 %v2457, 1.0
        %v2495 = vadd.f32 %v2459, 1.0
        %v2496 = vadd.f32 %v2461, 1.0
        %v2497 = vadd.f32 %v2463, 1.0
        %v2498 = vadd.f32 %v2465, 1.0
        %v2499 = vadd.f32 %v2467, 1.0
        %v2500 = vrcp.pop %v2468
        %v2501 = vmul.f32 1.0, %v2500
        %v2502 = vrcp.pop %v2469
        %v2503 = vmul.f32 1.0, %v2502
        %v2504 = vrcp.pop %v2470
        %v2505 = vmul.f32 1.0, %v2504
        %v2506 = vrcp.pop %v2471
        %v2507 = vmul.f32 1.0, %v2506
        %v2508 = vrcp.pop %v2472
        %v2509 = vmul.f32 1.0, %v2508
        %v2510 = vrcp.pop %v2473
        %v2511 = vmul.f32 1.0, %v2510
        %v2512 = vrcp.pop %v2474
        %v2513 = vmul.f32 1.0, %v2512
        %v2514 = vrcp.pop %v2475
        %v2515 = vmul.f32 1.0, %v2514
        %v2516 = vrcp.pop %v2476
        %v2517 = vmul.f32 1.0, %v2516
        %v2518 = vrcp.pop %v2477
        %v2519 = vmul.f32 1.0, %v2518
        %v2520 = vrcp.pop %v2478
        %v2521 = vmul.f32 1.0, %v2520
        %v2522 = vrcp.pop %v2479
        %v2523 = vmul.f32 1.0, %v2522
        %v2524 = vrcp.pop %v2480
        %v2525 = vmul.f32 1.0, %v2524
        %v2526 = vrcp.pop %v2481
        %v2527 = vmul.f32 1.0, %v2526
        %v2528 = vrcp.pop %v2482
        %v2529 = vmul.f32 1.0, %v2528
        %v2530 = vrcp.pop %v2483
        %v2531 = vmul.f32 1.0, %v2530
        %v2532 = vrcp.pop %v2484
        %v2533 = vmul.f32 1.0, %v2532
        %v2534 = vrcp.pop %v2485
        %v2535 = vmul.f32 1.0, %v2534
        %v2536 = vrcp.pop %v2486
        %v2537 = vmul.f32 1.0, %v2536
        %v2538 = vrcp.pop %v2487
        %v2539 = vmul.f32 1.0, %v2538
        %v2540 = vrcp.pop %v2488
        %v2541 = vmul.f32 1.0, %v2540
        %v2542 = vrcp.pop %v2489
        %v2543 = vmul.f32 1.0, %v2542
        %v2544 = vrcp.pop %v2490
        %v2545 = vmul.f32 1.0, %v2544
        %v2546 = vrcp.pop %v2491
        %v2547 = vmul.f32 1.0, %v2546
        %v2548 = vrcp.pop %v2492
        %v2549 = vmul.f32 1.0, %v2548
        %v2550 = vrcp.pop %v2493
        %v2551 = vmul.f32 1.0, %v2550
        %v2552 = vrcp.pop %v2494
        %v2553 = vmul.f32 1.0, %v2552
        %v2554 = vrcp.pop %v2495
        %v2555 = vmul.f32 1.0, %v2554
        %v2556 = vrcp.pop %v2496
        %v2557 = vmul.f32 1.0, %v2556
        %v2558 = vrcp.pop %v2497
        %v2559 = vmul.f32 1.0, %v2558
        %v2560 = vrcp.pop %v2498
        %v2561 = vmul.f32 1.0, %v2560
        %v2562 = vrcp.pop %v2499
        %v2563 = vmul.f32 1.0, %v2562
        %v2564 = vmul.f32 %v2214, %v2501
        %v2565 = vmul.f32 %v2219, %v2503
        %v2566 = vmul.f32 %v2224, %v2505
        %v2567 = vmul.f32 %v2229, %v2507
        %v2568 = vmul.f32 %v2234, %v2509
        %v2569 = vmul.f32 %v2239, %v2511
        %v2570 = vmul.f32 %v2244, %v2513
        %v2571 = vmul.f32 %v2249, %v2515
        %v2572 = vmul.f32 %v2254, %v2517
        %v2573 = vmul.f32 %v2259, %v2519
        %v2574 = vmul.f32 %v2264, %v2521
        %v2575 = vmul.f32 %v2269, %v2523
        %v2576 = vmul.f32 %v2274, %v2525
        %v2577 = vmul.f32 %v2279, %v2527
        %v2578 = vmul.f32 %v2284, %v2529
        %v2579 = vmul.f32 %v2289, %v2531
        %v2580 = vmul.f32 %v2294, %v2533
        %v2581 = vmul.f32 %v2299, %v2535
        %v2582 = vmul.f32 %v2304, %v2537
        %v2583 = vmul.f32 %v2309, %v2539
        %v2584 = vmul.f32 %v2314, %v2541
        %v2585 = vmul.f32 %v2319, %v2543
        %v2586 = vmul.f32 %v2324, %v2545
        %v2587 = vmul.f32 %v2329, %v2547
        %v2588 = vmul.f32 %v2334, %v2549
        %v2589 = vmul.f32 %v2339, %v2551
        %v2590 = vmul.f32 %v2344, %v2553
        %v2591 = vmul.f32 %v2349, %v2555
        %v2592 = vmul.f32 %v2354, %v2557
        %v2593 = vmul.f32 %v2359, %v2559
        %v2594 = vmul.f32 %v2364, %v2561
        %v2595 = vmul.f32 %v2369, %v2563
        %v2596 = vld [vmem:[%s2] sm:$0xff]
        %v2597 = vld [vmem:[%s2 + $0x8] sm:$0xff]
        %v2598 = vld [vmem:[%s2 + $0x10] sm:$0xff]
        %v2599 = vld [vmem:[%s2 + $0x18] sm:$0xff]
        %v2600 = vld [vmem:[%s2 + $0x20] sm:$0xff]
        %v2601 = vld [vmem:[%s2 + $0x28] sm:$0xff]
        %v2602 = vld [vmem:[%s2 + $0x30] sm:$0xff]
        %v2603 = vld [vmem:[%s2 + $0x38] sm:$0xff]
        %v2604 = vld [vmem:[%s2 + $0x40] sm:$0xff]
        %v2605 = vld [vmem:[%s2 + $0x48] sm:$0xff]
        %v2606 = vld [vmem:[%s2 + $0x50] sm:$0xff]
        %v2607 = vld [vmem:[%s2 + $0x58] sm:$0xff]
        %v2608 = vld [vmem:[%s2 + $0x60] sm:$0xff]
        %v2609 = vld [vmem:[%s2 + $0x68] sm:$0xff]
        %v2610 = vld [vmem:[%s2 + $0x70] sm:$0xff]
        %v2611 = vld [vmem:[%s2 + $0x78] sm:$0xff]
        %v2612 = vld [vmem:[%s2 + $0x80] sm:$0xff]
        %v2613 = vld [vmem:[%s2 + $0x88] sm:$0xff]
        %v2614 = vld [vmem:[%s2 + $0x90] sm:$0xff]
        %v2615 = vld [vmem:[%s2 + $0x98] sm:$0xff]
        %v2616 = vld [vmem:[%s2 + $0xa0] sm:$0xff]
        %v2617 = vld [vmem:[%s2 + $0xa8] sm:$0xff]
        %v2618 = vld [vmem:[%s2 + $0xb0] sm:$0xff]
        %v2619 = vld [vmem:[%s2 + $0xb8] sm:$0xff]
        %v2620 = vld [vmem:[%s2 + $0xc0] sm:$0xff]
        %v2621 = vld [vmem:[%s2 + $0xc8] sm:$0xff]
        %v2622 = vld [vmem:[%s2 + $0xd0] sm:$0xff]
        %v2623 = vld [vmem:[%s2 + $0xd8] sm:$0xff]
        %v2624 = vld [vmem:[%s2 + $0xe0] sm:$0xff]
        %v2625 = vld [vmem:[%s2 + $0xe8] sm:$0xff]
        %v2626 = vld [vmem:[%s2 + $0xf0] sm:$0xff]
        %v2627 = vld [vmem:[%s2 + $0xf8] sm:$0xff]
        %v2628 = vld [vmem:[%s2 + $0x100] sm:$0xff]
        %v2629 = vld [vmem:[%s2 + $0x108] sm:$0xff]
        %v2630 = vld [vmem:[%s2 + $0x110] sm:$0xff]
        %v2631 = vld [vmem:[%s2 + $0x118] sm:$0xff]
        %v2632 = vld [vmem:[%s2 + $0x120] sm:$0xff]
        %v2633 = vld [vmem:[%s2 + $0x128] sm:$0xff]
        %v2634 = vld [vmem:[%s2 + $0x130] sm:$0xff]
        %v2635 = vld [vmem:[%s2 + $0x138] sm:$0xff]
        %v2636 = vld [vmem:[%s2 + $0x140] sm:$0xff]
        %v2637 = vld [vmem:[%s2 + $0x148] sm:$0xff]
        %v2638 = vld [vmem:[%s2 + $0x150] sm:$0xff]
        %v2639 = vld [vmem:[%s2 + $0x158] sm:$0xff]
        %v2640 = vld [vmem:[%s2 + $0x160] sm:$0xff]
        %v2641 = vld [vmem:[%s2 + $0x168] sm:$0xff]
        %v2642 = vld [vmem:[%s2 + $0x170] sm:$0xff]
        %v2643 = vld [vmem:[%s2 + $0x178] sm:$0xff]
        %v2644 = vld [vmem:[%s2 + $0x180] sm:$0xff]
        %v2645 = vld [vmem:[%s2 + $0x188] sm:$0xff]
        %v2646 = vld [vmem:[%s2 + $0x190] sm:$0xff]
        %v2647 = vld [vmem:[%s2 + $0x198] sm:$0xff]
        %v2648 = vld [vmem:[%s2 + $0x1a0] sm:$0xff]
        %v2649 = vld [vmem:[%s2 + $0x1a8] sm:$0xff]
        %v2650 = vld [vmem:[%s2 + $0x1b0] sm:$0xff]
        %v2651 = vld [vmem:[%s2 + $0x1b8] sm:$0xff]
        %v2652 = vld [vmem:[%s2 + $0x1c0] sm:$0xff]
        %v2653 = vld [vmem:[%s2 + $0x1c8] sm:$0xff]
        %v2654 = vld [vmem:[%s2 + $0x1d0] sm:$0xff]
        %v2655 = vld [vmem:[%s2 + $0x1d8] sm:$0xff]
        %v2656 = vld [vmem:[%s2 + $0x1e0] sm:$0xff]
        %v2657 = vld [vmem:[%s2 + $0x1e8] sm:$0xff]
        %v2658 = vld [vmem:[%s2 + $0x1f0] sm:$0xff]
        %v2659 = vld [vmem:[%s2 + $0x1f8] sm:$0xff]
        %v2660 = vld [vmem:[%s2 + $0x200] sm:$0xff]
        %v2661 = vld [vmem:[%s2 + $0x208] sm:$0xff]
        %v2662 = vld [vmem:[%s2 + $0x210] sm:$0xff]
        %v2663 = vld [vmem:[%s2 + $0x218] sm:$0xff]
        %v2664 = vld [vmem:[%s2 + $0x220] sm:$0xff]
        %v2665 = vld [vmem:[%s2 + $0x228] sm:$0xff]
        %v2666 = vld [vmem:[%s2 + $0x230] sm:$0xff]
        %v2667 = vld [vmem:[%s2 + $0x238] sm:$0xff]
        %v2668 = vld [vmem:[%s2 + $0x240] sm:$0xff]
        %v2669 = vld [vmem:[%s2 + $0x248] sm:$0xff]
        %v2670 = vld [vmem:[%s2 + $0x250] sm:$0xff]
        %v2671 = vld [vmem:[%s2 + $0x258] sm:$0xff]
        %v2672 = vld [vmem:[%s2 + $0x260] sm:$0xff]
        %v2673 = vld [vmem:[%s2 + $0x268] sm:$0xff]
        %v2674 = vld [vmem:[%s2 + $0x270] sm:$0xff]
        %v2675 = vld [vmem:[%s2 + $0x278] sm:$0xff]
        %v2676 = vld [vmem:[%s2 + $0x280] sm:$0xff]
        %v2677 = vld [vmem:[%s2 + $0x288] sm:$0xff]
        %v2678 = vld [vmem:[%s2 + $0x290] sm:$0xff]
        %v2679 = vld [vmem:[%s2 + $0x298] sm:$0xff]
        %v2680 = vld [vmem:[%s2 + $0x2a0] sm:$0xff]
        %v2681 = vld [vmem:[%s2 + $0x2a8] sm:$0xff]
        %v2682 = vld [vmem:[%s2 + $0x2b0] sm:$0xff]
        %v2683 = vld [vmem:[%s2 + $0x2b8] sm:$0xff]
        %v2684 = vld [vmem:[%s2 + $0x2c0] sm:$0xff]
        %v2685 = vld [vmem:[%s2 + $0x2c8] sm:$0xff]
        %v2686 = vld [vmem:[%s2 + $0x2d0] sm:$0xff]
        %v2687 = vld [vmem:[%s2 + $0x2d8] sm:$0xff]
        %v2688 = vld [vmem:[%s2 + $0x2e0] sm:$0xff]
        %v2689 = vld [vmem:[%s2 + $0x2e8] sm:$0xff]
        %v2690 = vld [vmem:[%s2 + $0x2f0] sm:$0xff]
        %v2691 = vld [vmem:[%s2 + $0x2f8] sm:$0xff]
        %v2692 = vld [vmem:[%s2 + $0x300] sm:$0xff]
        %v2693 = vld [vmem:[%s2 + $0x308] sm:$0xff]
        %v2694 = vld [vmem:[%s2 + $0x310] sm:$0xff]
        %v2695 = vld [vmem:[%s2 + $0x318] sm:$0xff]
        %v2696 = vld [vmem:[%s2 + $0x320] sm:$0xff]
        %v2697 = vld [vmem:[%s2 + $0x328] sm:$0xff]
        %v2698 = vld [vmem:[%s2 + $0x330] sm:$0xff]
        %v2699 = vld [vmem:[%s2 + $0x338] sm:$0xff]
        %v2700 = vld [vmem:[%s2 + $0x340] sm:$0xff]
        %v2701 = vld [vmem:[%s2 + $0x348] sm:$0xff]
        %v2702 = vld [vmem:[%s2 + $0x350] sm:$0xff]
        %v2703 = vld [vmem:[%s2 + $0x358] sm:$0xff]
        %v2704 = vld [vmem:[%s2 + $0x360] sm:$0xff]
        %v2705 = vld [vmem:[%s2 + $0x368] sm:$0xff]
        %v2706 = vld [vmem:[%s2 + $0x370] sm:$0xff]
        %v2707 = vld [vmem:[%s2 + $0x378] sm:$0xff]
        %v2708 = vld [vmem:[%s2 + $0x380] sm:$0xff]
        %v2709 = vld [vmem:[%s2 + $0x388] sm:$0xff]
        %v2710 = vld [vmem:[%s2 + $0x390] sm:$0xff]
        %v2711 = vld [vmem:[%s2 + $0x398] sm:$0xff]
        %v2712 = vld [vmem:[%s2 + $0x3a0] sm:$0xff]
        %v2713 = vld [vmem:[%s2 + $0x3a8] sm:$0xff]
        %v2714 = vld [vmem:[%s2 + $0x3b0] sm:$0xff]
        %v2715 = vld [vmem:[%s2 + $0x3b8] sm:$0xff]
        %v2716 = vld [vmem:[%s2 + $0x3c0] sm:$0xff]
        %v2717 = vld [vmem:[%s2 + $0x3c8] sm:$0xff]
        %v2718 = vld [vmem:[%s2 + $0x3d0] sm:$0xff]
        %v2719 = vld [vmem:[%s2 + $0x3d8] sm:$0xff]
        %v2720 = vld [vmem:[%s2 + $0x3e0] sm:$0xff]
        %v2721 = vld [vmem:[%s2 + $0x3e8] sm:$0xff]
        %v2722 = vld [vmem:[%s2 + $0x3f0] sm:$0xff]
        %v2723 = vld [vmem:[%s2 + $0x3f8] sm:$0xff]
        %v2724 = vld [vmem:[%s2 + $0x400] sm:$0xff]
        %v2725 = vld [vmem:[%s2 + $0x408] sm:$0xff]
        %v2726 = vld [vmem:[%s2 + $0x410] sm:$0xff]
        %v2727 = vld [vmem:[%s2 + $0x418] sm:$0xff]
        %v2728 = vld [vmem:[%s2 + $0x420] sm:$0xff]
        %v2729 = vld [vmem:[%s2 + $0x428] sm:$0xff]
        %v2730 = vld [vmem:[%s2 + $0x430] sm:$0xff]
        %v2731 = vld [vmem:[%s2 + $0x438] sm:$0xff]
        %v2732 = vld [vmem:[%s2 + $0x440] sm:$0xff]
        %v2733 = vld [vmem:[%s2 + $0x448] sm:$0xff]
        %v2734 = vld [vmem:[%s2 + $0x450] sm:$0xff]
        %v2735 = vld [vmem:[%s2 + $0x458] sm:$0xff]
        %v2736 = vld [vmem:[%s2 + $0x460] sm:$0xff]
        %v2737 = vld [vmem:[%s2 + $0x468] sm:$0xff]
        %v2738 = vld [vmem:[%s2 + $0x470] sm:$0xff]
        %v2739 = vld [vmem:[%s2 + $0x478] sm:$0xff]
        %v2740 = vld [vmem:[%s2 + $0x480] sm:$0xff]
        %v2741 = vld [vmem:[%s2 + $0x488] sm:$0xff]
        %v2742 = vld [vmem:[%s2 + $0x490] sm:$0xff]
        %v2743 = vld [vmem:[%s2 + $0x498] sm:$0xff]
        %v2744 = vld [vmem:[%s2 + $0x4a0] sm:$0xff]
        %v2745 = vld [vmem:[%s2 + $0x4a8] sm:$0xff]
        %v2746 = vld [vmem:[%s2 + $0x4b0] sm:$0xff]
        %v2747 = vld [vmem:[%s2 + $0x4b8] sm:$0xff]
        %v2748 = vld [vmem:[%s2 + $0x4c0] sm:$0xff]
        %v2749 = vld [vmem:[%s2 + $0x4c8] sm:$0xff]
        %v2750 = vld [vmem:[%s2 + $0x4d0] sm:$0xff]
        %v2751 = vld [vmem:[%s2 + $0x4d8] sm:$0xff]
        %v2752 = vld [vmem:[%s2 + $0x4e0] sm:$0xff]
        %v2753 = vld [vmem:[%s2 + $0x4e8] sm:$0xff]
        %v2754 = vld [vmem:[%s2 + $0x4f0] sm:$0xff]
        %v2755 = vld [vmem:[%s2 + $0x4f8] sm:$0xff]
        %2756 = vmatprep.subr.mxu0 0.0
        %2757 = vmatpush1.msra.mxu0 %v2579
        %2758 = vmatprep.subr.mxu0 0.0
        %2759 = vmatpush1.msra.mxu0 %v2578
        %2760 = vmatprep.subr.mxu0 0.0
        %2761 = vmatpush1.msra.mxu0 %v2577
        %2762 = vmatprep.subr.mxu0 0.0
        %2763 = vmatpush1.msra.mxu0 %v2576
        %2764 = vmatprep.subr.mxu0 0.0
        %2765 = vmatpush1.msra.mxu0 %v2575
        %2766 = vmatprep.subr.mxu0 0.0
        %2767 = vmatpush1.msra.mxu0 %v2574
        %2768 = vmatprep.subr.mxu0 0.0
        %2769 = vmatpush1.msra.mxu0 %v2573
        %2770 = vmatprep.subr.mxu0 0.0
        %2771 = vmatpush1.msra.mxu0 %v2572
        %2772 = vmatprep.subr.mxu0 0.0
        %2773 = vmatpush1.msra.mxu0 %v2571
        %2774 = vmatprep.subr.mxu0 0.0
        %2775 = vmatpush1.msra.mxu0 %v2570
        %2776 = vmatprep.subr.mxu0 0.0
        %2777 = vmatpush1.msra.mxu0 %v2569
        %2778 = vmatprep.subr.mxu0 0.0
        %2779 = vmatpush1.msra.mxu0 %v2568
        %2780 = vmatprep.subr.mxu0 0.0
        %2781 = vmatpush1.msra.mxu0 %v2567
        %2782 = vmatprep.subr.mxu0 0.0
        %2783 = vmatpush1.msra.mxu0 %v2566
        %2784 = vmatprep.subr.mxu0 0.0
        %2785 = vmatpush1.msra.mxu0 %v2565
        %2786 = vmatprep.subr.mxu0 0.0
        %2787 = vmatpush1.msra.mxu0 %v2564
        %2788 = vmatprep.subr.mxu0 0.0
        %2789 = vmatpush2.msra.mxu0 %v2595
        %2790 = vmatprep.subr.mxu0 0.0
        %2791 = vmatpush2.msra.mxu0 %v2594
        %2792 = vmatprep.subr.mxu0 0.0
        %2793 = vmatpush2.msra.mxu0 %v2593
        %2794 = vmatprep.subr.mxu0 0.0
        %2795 = vmatpush2.msra.mxu0 %v2592
        %2796 = vmatprep.subr.mxu0 0.0
        %2797 = vmatpush2.msra.mxu0 %v2591
        %2798 = vmatprep.subr.mxu0 0.0
        %2799 = vmatpush2.msra.mxu0 %v2590
        %2800 = vmatprep.subr.mxu0 0.0
        %2801 = vmatpush2.msra.mxu0 %v2589
        %2802 = vmatprep.subr.mxu0 0.0
        %2803 = vmatpush2.msra.mxu0 %v2588
        %2804 = vmatprep.subr.mxu0 0.0
        %2805 = vmatpush2.msra.mxu0 %v2587
        %2806 = vmatprep.subr.mxu0 0.0
        %2807 = vmatpush2.msra.mxu0 %v2586
        %2808 = vmatprep.subr.mxu0 0.0
        %2809 = vmatpush2.msra.mxu0 %v2585
        %2810 = vmatprep.subr.mxu0 0.0
        %2811 = vmatpush2.msra.mxu0 %v2584
        %2812 = vmatprep.subr.mxu0 0.0
        %2813 = vmatpush2.msra.mxu0 %v2583
        %2814 = vmatprep.subr.mxu0 0.0
        %2815 = vmatpush2.msra.mxu0 %v2582
        %2816 = vmatprep.subr.mxu0 0.0
        %2817 = vmatpush2.msra.mxu0 %v2581
        %2818 = vmatprep.subr.mxu0 0.0
        %2819 = vmatpush2.msra.mxu0 %v2580
        %2820 = vmatprep.mubr.f32.mxu0 %v2597
        %2821 = vmatmul.mubr.f32.gmra.mxu0 %v2596
        %v2822 = vpop.f32.mrf.mxu0
        %v2823 = vadd.f32 0.0, %v2822
        %v2824 = vpop.f32.mrf.mxu0
        %2825 = vmatprep.mubr.f32.mxu0 %v2599
        %2826 = vmatmul.mubr.f32.gmra.mxu0 %v2598
        %v2827 = vpop.f32.mrf.mxu0
        %v2828 = vadd.f32 0.0, %v2827
        %v2829 = vpop.f32.mrf.mxu0
        %2830 = vmatprep.mubr.f32.mxu0 %v2601
        %2831 = vmatmul.mubr.f32.gmra.mxu0 %v2600
        %v2832 = vpop.f32.mrf.mxu0
        %v2833 = vadd.f32 0.0, %v2832
        %v2834 = vpop.f32.mrf.mxu0
        %2835 = vmatprep.mubr.f32.mxu0 %v2603
        %2836 = vmatmul.mubr.f32.gmra.mxu0 %v2602
        %v2837 = vpop.f32.mrf.mxu0
        %v2838 = vadd.f32 0.0, %v2837
        %v2839 = vpop.f32.mrf.mxu0
        %2840 = vmatprep.mubr.f32.mxu0 %v2605
        %2841 = vmatmul.mubr.f32.gmra.mxu0 %v2604
        %v2842 = vpop.f32.mrf.mxu0
        %v2843 = vadd.f32 0.0, %v2842
        %v2844 = vpop.f32.mrf.mxu0
        %2845 = vmatprep.mubr.f32.mxu0 %v2607
        %2846 = vmatmul.mubr.f32.gmra.mxu0 %v2606
        %v2847 = vpop.f32.mrf.mxu0
        %v2848 = vadd.f32 0.0, %v2847
        %v2849 = vpop.f32.mrf.mxu0
        %2850 = vmatprep.mubr.f32.mxu0 %v2609
        %2851 = vmatmul.mubr.f32.gmra.mxu0 %v2608
        %v2852 = vpop.f32.mrf.mxu0
        %v2853 = vadd.f32 0.0, %v2852
        %v2854 = vpop.f32.mrf.mxu0
        %2855 = vmatprep.mubr.f32.mxu0 %v2611
        %2856 = vmatmul.mubr.f32.gmra.mxu0 %v2610
        %v2857 = vpop.f32.mrf.mxu0
        %v2858 = vadd.f32 0.0, %v2857
        %v2859 = vpop.f32.mrf.mxu0
        %2860 = vmatprep.mubr.f32.mxu0 %v2613
        %2861 = vmatmul.mubr.f32.gmra.mxu0 %v2612
        %v2862 = vpop.f32.mrf.mxu0
        %v2863 = vadd.f32 0.0, %v2862
        %v2864 = vpop.f32.mrf.mxu0
        %2865 = vmatprep.mubr.f32.mxu0 %v2615
        %2866 = vmatmul.mubr.f32.gmra.mxu0 %v2614
        %v2867 = vpop.f32.mrf.mxu0
        %v2868 = vadd.f32 0.0, %v2867
        %v2869 = vpop.f32.mrf.mxu0
        %2870 = vmatprep.mubr.f32.mxu0 %v2617
        %2871 = vmatmul.mubr.f32.gmra.mxu0 %v2616
        %v2872 = vpop.f32.mrf.mxu0
        %v2873 = vadd.f32 0.0, %v2872
        %v2874 = vpop.f32.mrf.mxu0
        %2875 = vmatprep.mubr.f32.mxu0 %v2619
        %2876 = vmatmul.mubr.f32.gmra.mxu0 %v2618
        %v2877 = vpop.f32.mrf.mxu0
        %v2878 = vadd.f32 0.0, %v2877
        %v2879 = vpop.f32.mrf.mxu0
        %2880 = vmatprep.mubr.f32.mxu0 %v2621
        %2881 = vmatmul.mubr.f32.gmra.mxu0 %v2620
        %v2882 = vpop.f32.mrf.mxu0
        %v2883 = vadd.f32 0.0, %v2882
        %v2884 = vpop.f32.mrf.mxu0
        %2885 = vmatprep.mubr.f32.mxu0 %v2623
        %2886 = vmatmul.mubr.f32.gmra.mxu0 %v2622
        %v2887 = vpop.f32.mrf.mxu0
        %v2888 = vadd.f32 0.0, %v2887
        %v2889 = vpop.f32.mrf.mxu0
        %2890 = vmatprep.mubr.f32.mxu0 %v2625
        %2891 = vmatmul.mubr.f32.gmra.mxu0 %v2624
        %v2892 = vpop.f32.mrf.mxu0
        %v2893 = vadd.f32 0.0, %v2892
        %v2894 = vpop.f32.mrf.mxu0
        %2895 = vmatprep.mubr.f32.mxu0 %v2627
        %2896 = vmatmul.mubr.f32.gmra.mxu0 %v2626
        %v2897 = vpop.f32.mrf.mxu0
        %v2898 = vadd.f32 0.0, %v2897
        %v2899 = vpop.f32.mrf.mxu0
        %2900 = vmatprep.mubr.f32.mxu0 %v2629
        %2901 = vmatmul.mubr.f32.gmra.mxu0 %v2628
        %v2902 = vpop.f32.mrf.mxu0
        %v2903 = vadd.f32 0.0, %v2902
        %v2904 = vpop.f32.mrf.mxu0
        %2905 = vmatprep.mubr.f32.mxu0 %v2631
        %2906 = vmatmul.mubr.f32.gmra.mxu0 %v2630
        %v2907 = vpop.f32.mrf.mxu0
        %v2908 = vadd.f32 0.0, %v2907
        %v2909 = vpop.f32.mrf.mxu0
        %2910 = vmatprep.mubr.f32.mxu0 %v2633
        %2911 = vmatmul.mubr.f32.gmra.mxu0 %v2632
        %v2912 = vpop.f32.mrf.mxu0
        %v2913 = vadd.f32 0.0, %v2912
        %v2914 = vpop.f32.mrf.mxu0
        %2915 = vmatprep.mubr.f32.mxu0 %v2635
        %2916 = vmatmul.mubr.f32.gmra.mxu0 %v2634
        %v2917 = vpop.f32.mrf.mxu0
        %v2918 = vadd.f32 0.0, %v2917
        %v2919 = vpop.f32.mrf.mxu0
        %2920 = vmatprep.mubr.f32.mxu0 %v2637
        %2921 = vmatmul.mubr.f32.gmra.mxu0 %v2636
        %v2922 = vpop.f32.mrf.mxu0
        %v2923 = vadd.f32 0.0, %v2922
        %v2924 = vpop.f32.mrf.mxu0
        %2925 = vmatprep.mubr.f32.mxu0 %v2639
        %2926 = vmatmul.mubr.f32.gmra.mxu0 %v2638
        %v2927 = vpop.f32.mrf.mxu0
        %v2928 = vadd.f32 0.0, %v2927
        %v2929 = vpop.f32.mrf.mxu0
        %2930 = vmatprep.mubr.f32.mxu0 %v2641
        %2931 = vmatmul.mubr.f32.gmra.mxu0 %v2640
        %v2932 = vpop.f32.mrf.mxu0
        %v2933 = vadd.f32 0.0, %v2932
        %v2934 = vpop.f32.mrf.mxu0
        %2935 = vmatprep.mubr.f32.mxu0 %v2643
        %2936 = vmatmul.mubr.f32.gmra.mxu0 %v2642
        %v2937 = vpop.f32.mrf.mxu0
        %v2938 = vadd.f32 0.0, %v2937
        %v2939 = vpop.f32.mrf.mxu0
        %2940 = vmatprep.mubr.f32.mxu0 %v2645
        %2941 = vmatmul.mubr.f32.gmra.mxu0 %v2644
        %v2942 = vpop.f32.mrf.mxu0
        %v2943 = vadd.f32 0.0, %v2942
        %v2944 = vpop.f32.mrf.mxu0
        %2945 = vmatprep.mubr.f32.mxu0 %v2647
        %2946 = vmatmul.mubr.f32.gmra.mxu0 %v2646
        %v2947 = vpop.f32.mrf.mxu0
        %v2948 = vadd.f32 0.0, %v2947
        %v2949 = vpop.f32.mrf.mxu0
        %2950 = vmatprep.mubr.f32.mxu0 %v2649
        %2951 = vmatmul.mubr.f32.gmra.mxu0 %v2648
        %v2952 = vpop.f32.mrf.mxu0
        %v2953 = vadd.f32 0.0, %v2952
        %v2954 = vpop.f32.mrf.mxu0
        %2955 = vmatprep.mubr.f32.mxu0 %v2651
        %2956 = vmatmul.mubr.f32.gmra.mxu0 %v2650
        %v2957 = vpop.f32.mrf.mxu0
        %v2958 = vadd.f32 0.0, %v2957
        %v2959 = vpop.f32.mrf.mxu0
        %2960 = vmatprep.mubr.f32.mxu0 %v2653
        %2961 = vmatmul.mubr.f32.gmra.mxu0 %v2652
        %v2962 = vpop.f32.mrf.mxu0
        %v2963 = vadd.f32 0.0, %v2962
        %v2964 = vpop.f32.mrf.mxu0
        %2965 = vmatprep.mubr.f32.mxu0 %v2655
        %2966 = vmatmul.mubr.f32.gmra.mxu0 %v2654
        %v2967 = vpop.f32.mrf.mxu0
        %v2968 = vadd.f32 0.0, %v2967
        %v2969 = vpop.f32.mrf.mxu0
        %2970 = vmatprep.mubr.f32.mxu0 %v2657
        %2971 = vmatmul.mubr.f32.gmra.mxu0 %v2656
        %v2972 = vpop.f32.mrf.mxu0
        %v2973 = vadd.f32 0.0, %v2972
        %v2974 = vpop.f32.mrf.mxu0
        %2975 = vmatprep.mubr.f32.mxu0 %v2659
        %2976 = vmatmul.mubr.f32.gmra.mxu0 %v2658
        %v2977 = vpop.f32.mrf.mxu0
        %v2978 = vadd.f32 0.0, %v2977
        %v2979 = vpop.f32.mrf.mxu0
        %2980 = vmatprep.mubr.f32.mxu0 %v2661
        %2981 = vmatmul.mubr.f32.gmra.mxu0 %v2660
        %v2982 = vpop.f32.mrf.mxu0
        %v2983 = vadd.f32 0.0, %v2982
        %v2984 = vpop.f32.mrf.mxu0
        %2985 = vmatprep.mubr.f32.mxu0 %v2663
        %2986 = vmatmul.mubr.f32.gmra.mxu0 %v2662
        %v2987 = vpop.f32.mrf.mxu0
        %v2988 = vadd.f32 0.0, %v2987
        %v2989 = vpop.f32.mrf.mxu0
        %2990 = vmatprep.mubr.f32.mxu0 %v2665
        %2991 = vmatmul.mubr.f32.gmra.mxu0 %v2664
        %v2992 = vpop.f32.mrf.mxu0
        %v2993 = vadd.f32 0.0, %v2992
        %v2994 = vpop.f32.mrf.mxu0
        %2995 = vmatprep.mubr.f32.mxu0 %v2667
        %2996 = vmatmul.mubr.f32.gmra.mxu0 %v2666
        %v2997 = vpop.f32.mrf.mxu0
        %v2998 = vadd.f32 0.0, %v2997
        %v2999 = vpop.f32.mrf.mxu0
        %3000 = vmatprep.mubr.f32.mxu0 %v2669
        %3001 = vmatmul.mubr.f32.gmra.mxu0 %v2668
        %v3002 = vpop.f32.mrf.mxu0
        %v3003 = vadd.f32 0.0, %v3002
        %v3004 = vpop.f32.mrf.mxu0
        %3005 = vmatprep.mubr.f32.mxu0 %v2671
        %3006 = vmatmul.mubr.f32.gmra.mxu0 %v2670
        %v3007 = vpop.f32.mrf.mxu0
        %v3008 = vadd.f32 0.0, %v3007
        %v3009 = vpop.f32.mrf.mxu0
        %3010 = vmatprep.mubr.f32.mxu0 %v2673
        %3011 = vmatmul.mubr.f32.gmra.mxu0 %v2672
        %v3012 = vpop.f32.mrf.mxu0
        %v3013 = vadd.f32 0.0, %v3012
        %v3014 = vpop.f32.mrf.mxu0
        %3015 = vmatprep.mubr.f32.mxu0 %v2675
        %3016 = vmatmul.mubr.f32.gmra.mxu0 %v2674
        %v3017 = vpop.f32.mrf.mxu0
        %v3018 = vadd.f32 0.0, %v3017
        %v3019 = vpop.f32.mrf.mxu0
        %3020 = vmatprep.mubr.f32.mxu0 %v2677
        %3021 = vmatmul.mubr.f32.gmra.mxu0 %v2676
        %v3022 = vpop.f32.mrf.mxu0
        %v3023 = vadd.f32 0.0, %v3022
        %v3024 = vpop.f32.mrf.mxu0
        %3025 = vmatprep.mubr.f32.mxu0 %v2679
        %3026 = vmatmul.mubr.f32.gmra.mxu0 %v2678
        %v3027 = vpop.f32.mrf.mxu0
        %v3028 = vadd.f32 0.0, %v3027
        %v3029 = vpop.f32.mrf.mxu0
        %3030 = vmatprep.mubr.f32.mxu0 %v2681
        %3031 = vmatmul.mubr.f32.gmra.mxu0 %v2680
        %v3032 = vpop.f32.mrf.mxu0
        %v3033 = vadd.f32 0.0, %v3032
        %v3034 = vpop.f32.mrf.mxu0
        %3035 = vmatprep.mubr.f32.mxu0 %v2683
        %3036 = vmatmul.mubr.f32.gmra.mxu0 %v2682
        %v3037 = vpop.f32.mrf.mxu0
        %v3038 = vadd.f32 0.0, %v3037
        %v3039 = vpop.f32.mrf.mxu0
        %3040 = vmatprep.mubr.f32.mxu0 %v2685
        %3041 = vmatmul.mubr.f32.gmra.mxu0 %v2684
        %v3042 = vpop.f32.mrf.mxu0
        %v3043 = vadd.f32 0.0, %v3042
        %v3044 = vpop.f32.mrf.mxu0
        %3045 = vmatprep.mubr.f32.mxu0 %v2687
        %3046 = vmatmul.mubr.f32.gmra.mxu0 %v2686
        %v3047 = vpop.f32.mrf.mxu0
        %v3048 = vadd.f32 0.0, %v3047
        %v3049 = vpop.f32.mrf.mxu0
        %3050 = vmatprep.mubr.f32.mxu0 %v2689
        %3051 = vmatmul.mubr.f32.gmra.mxu0 %v2688
        %v3052 = vpop.f32.mrf.mxu0
        %v3053 = vadd.f32 0.0, %v3052
        %v3054 = vpop.f32.mrf.mxu0
        %3055 = vmatprep.mubr.f32.mxu0 %v2691
        %3056 = vmatmul.mubr.f32.gmra.mxu0 %v2690
        %v3057 = vpop.f32.mrf.mxu0
        %v3058 = vadd.f32 0.0, %v3057
        %v3059 = vpop.f32.mrf.mxu0
        %3060 = vmatprep.mubr.f32.mxu0 %v2693
        %3061 = vmatmul.mubr.f32.gmra.mxu0 %v2692
        %v3062 = vpop.f32.mrf.mxu0
        %v3063 = vadd.f32 0.0, %v3062
        %v3064 = vpop.f32.mrf.mxu0
        %3065 = vmatprep.mubr.f32.mxu0 %v2695
        %3066 = vmatmul.mubr.f32.gmra.mxu0 %v2694
        %v3067 = vpop.f32.mrf.mxu0
        %v3068 = vadd.f32 0.0, %v3067
        %v3069 = vpop.f32.mrf.mxu0
        %3070 = vmatprep.mubr.f32.mxu0 %v2697
        %3071 = vmatmul.mubr.f32.gmra.mxu0 %v2696
        %v3072 = vpop.f32.mrf.mxu0
        %v3073 = vadd.f32 0.0, %v3072
        %v3074 = vpop.f32.mrf.mxu0
        %3075 = vmatprep.mubr.f32.mxu0 %v2699
        %3076 = vmatmul.mubr.f32.gmra.mxu0 %v2698
        %v3077 = vpop.f32.mrf.mxu0
        %v3078 = vadd.f32 0.0, %v3077
        %v3079 = vpop.f32.mrf.mxu0
        %3080 = vmatprep.mubr.f32.mxu0 %v2701
        %3081 = vmatmul.mubr.f32.gmra.mxu0 %v2700
        %v3082 = vpop.f32.mrf.mxu0
        %v3083 = vadd.f32 0.0, %v3082
        %v3084 = vpop.f32.mrf.mxu0
        %3085 = vmatprep.mubr.f32.mxu0 %v2703
        %3086 = vmatmul.mubr.f32.gmra.mxu0 %v2702
        %v3087 = vpop.f32.mrf.mxu0
        %v3088 = vadd.f32 0.0, %v3087
        %v3089 = vpop.f32.mrf.mxu0
        %3090 = vmatprep.mubr.f32.mxu0 %v2705
        %3091 = vmatmul.mubr.f32.gmra.mxu0 %v2704
        %v3092 = vpop.f32.mrf.mxu0
        %v3093 = vadd.f32 0.0, %v3092
        %v3094 = vpop.f32.mrf.mxu0
        %3095 = vmatprep.mubr.f32.mxu0 %v2707
        %3096 = vmatmul.mubr.f32.gmra.mxu0 %v2706
        %v3097 = vpop.f32.mrf.mxu0
        %v3098 = vadd.f32 0.0, %v3097
        %v3099 = vpop.f32.mrf.mxu0
        %3100 = vmatprep.mubr.f32.mxu0 %v2709
        %3101 = vmatmul.mubr.f32.gmra.mxu0 %v2708
        %v3102 = vpop.f32.mrf.mxu0
        %v3103 = vadd.f32 0.0, %v3102
        %v3104 = vpop.f32.mrf.mxu0
        %3105 = vmatprep.mubr.f32.mxu0 %v2711
        %3106 = vmatmul.mubr.f32.gmra.mxu0 %v2710
        %v3107 = vpop.f32.mrf.mxu0
        %v3108 = vadd.f32 0.0, %v3107
        %v3109 = vpop.f32.mrf.mxu0
        %3110 = vmatprep.mubr.f32.mxu0 %v2713
        %3111 = vmatmul.mubr.f32.gmra.mxu0 %v2712
        %v3112 = vpop.f32.mrf.mxu0
        %v3113 = vadd.f32 0.0, %v3112
        %v3114 = vpop.f32.mrf.mxu0
        %3115 = vmatprep.mubr.f32.mxu0 %v2715
        %3116 = vmatmul.mubr.f32.gmra.mxu0 %v2714
        %v3117 = vpop.f32.mrf.mxu0
        %v3118 = vadd.f32 0.0, %v3117
        %v3119 = vpop.f32.mrf.mxu0
        %3120 = vmatprep.mubr.f32.mxu0 %v2717
        %3121 = vmatmul.mubr.f32.gmra.mxu0 %v2716
        %v3122 = vpop.f32.mrf.mxu0
        %v3123 = vadd.f32 0.0, %v3122
        %v3124 = vpop.f32.mrf.mxu0
        %3125 = vmatprep.mubr.f32.mxu0 %v2719
        %3126 = vmatmul.mubr.f32.gmra.mxu0 %v2718
        %v3127 = vpop.f32.mrf.mxu0
        %v3128 = vadd.f32 0.0, %v3127
        %v3129 = vpop.f32.mrf.mxu0
        %3130 = vmatprep.mubr.f32.mxu0 %v2721
        %3131 = vmatmul.mubr.f32.gmra.mxu0 %v2720
        %v3132 = vpop.f32.mrf.mxu0
        %v3133 = vadd.f32 0.0, %v3132
        %v3134 = vpop.f32.mrf.mxu0
        %3135 = vmatprep.mubr.f32.mxu0 %v2723
        %3136 = vmatmul.mubr.f32.gmra.mxu0 %v2722
        %v3137 = vpop.f32.mrf.mxu0
        %v3138 = vadd.f32 0.0, %v3137
        %v3139 = vpop.f32.mrf.mxu0
        %3140 = vmatprep.mubr.f32.mxu0 %v2725
        %3141 = vmatmul.mubr.f32.gmra.mxu0 %v2724
        %v3142 = vpop.f32.mrf.mxu0
        %v3143 = vadd.f32 0.0, %v3142
        %v3144 = vpop.f32.mrf.mxu0
        %3145 = vmatprep.mubr.f32.mxu0 %v2727
        %3146 = vmatmul.mubr.f32.gmra.mxu0 %v2726
        %v3147 = vpop.f32.mrf.mxu0
        %v3148 = vadd.f32 0.0, %v3147
        %v3149 = vpop.f32.mrf.mxu0
        %3150 = vmatprep.mubr.f32.mxu0 %v2729
        %3151 = vmatmul.mubr.f32.gmra.mxu0 %v2728
        %v3152 = vpop.f32.mrf.mxu0
        %v3153 = vadd.f32 0.0, %v3152
        %v3154 = vpop.f32.mrf.mxu0
        %3155 = vmatprep.mubr.f32.mxu0 %v2731
        %3156 = vmatmul.mubr.f32.gmra.mxu0 %v2730
        %v3157 = vpop.f32.mrf.mxu0
        %v3158 = vadd.f32 0.0, %v3157
        %v3159 = vpop.f32.mrf.mxu0
        %3160 = vmatprep.mubr.f32.mxu0 %v2733
        %3161 = vmatmul.mubr.f32.gmra.mxu0 %v2732
        %v3162 = vpop.f32.mrf.mxu0
        %v3163 = vadd.f32 0.0, %v3162
        %v3164 = vpop.f32.mrf.mxu0
        %3165 = vmatprep.mubr.f32.mxu0 %v2735
        %3166 = vmatmul.mubr.f32.gmra.mxu0 %v2734
        %v3167 = vpop.f32.mrf.mxu0
        %v3168 = vadd.f32 0.0, %v3167
        %v3169 = vpop.f32.mrf.mxu0
        %3170 = vmatprep.mubr.f32.mxu0 %v2737
        %3171 = vmatmul.mubr.f32.gmra.mxu0 %v2736
        %v3172 = vpop.f32.mrf.mxu0
        %v3173 = vadd.f32 0.0, %v3172
        %v3174 = vpop.f32.mrf.mxu0
        %3175 = vmatprep.mubr.f32.mxu0 %v2739
        %3176 = vmatmul.mubr.f32.gmra.mxu0 %v2738
        %v3177 = vpop.f32.mrf.mxu0
        %v3178 = vadd.f32 0.0, %v3177
        %v3179 = vpop.f32.mrf.mxu0
        %3180 = vmatprep.mubr.f32.mxu0 %v2741
        %3181 = vmatmul.mubr.f32.gmra.mxu0 %v2740
        %v3182 = vpop.f32.mrf.mxu0
        %v3183 = vadd.f32 0.0, %v3182
        %v3184 = vpop.f32.mrf.mxu0
        %3185 = vmatprep.mubr.f32.mxu0 %v2743
        %3186 = vmatmul.mubr.f32.gmra.mxu0 %v2742
        %v3187 = vpop.f32.mrf.mxu0
        %v3188 = vadd.f32 0.0, %v3187
        %v3189 = vpop.f32.mrf.mxu0
        %3190 = vmatprep.mubr.f32.mxu0 %v2745
        %3191 = vmatmul.mubr.f32.gmra.mxu0 %v2744
        %v3192 = vpop.f32.mrf.mxu0
        %v3193 = vadd.f32 0.0, %v3192
        %v3194 = vpop.f32.mrf.mxu0
        %3195 = vmatprep.mubr.f32.mxu0 %v2747
        %3196 = vmatmul.mubr.f32.gmra.mxu0 %v2746
        %v3197 = vpop.f32.mrf.mxu0
        %v3198 = vadd.f32 0.0, %v3197
        %v3199 = vpop.f32.mrf.mxu0
        %3200 = vmatprep.mubr.f32.mxu0 %v2749
        %3201 = vmatmul.mubr.f32.gmra.mxu0 %v2748
        %v3202 = vpop.f32.mrf.mxu0
        %v3203 = vadd.f32 0.0, %v3202
        %v3204 = vpop.f32.mrf.mxu0
        %3205 = vmatprep.mubr.f32.mxu0 %v2751
        %3206 = vmatmul.mubr.f32.gmra.mxu0 %v2750
        %v3207 = vpop.f32.mrf.mxu0
        %v3208 = vadd.f32 0.0, %v3207
        %v3209 = vpop.f32.mrf.mxu0
        %3210 = vmatprep.mubr.f32.mxu0 %v2753
        %3211 = vmatmul.mubr.f32.gmra.mxu0 %v2752
        %v3212 = vpop.f32.mrf.mxu0
        %v3213 = vadd.f32 0.0, %v3212
        %v3214 = vpop.f32.mrf.mxu0
        %3215 = vmatprep.mubr.f32.mxu0 %v2755
        %3216 = vmatmul.mubr.f32.gmra.mxu0 %v2754
        %v3217 = vpop.f32.mrf.mxu0
        %v3218 = vadd.f32 0.0, %v3217
        %v3219 = vpop.f32.mrf.mxu0
        %3220 = vdwg.mxu0
        %vm3221 = vcmask 785408
        %3222 = vst.msk [vmem:[#allocation3] sm:$0xff] %vm3221, %v2823
        %3223 = vst.msk [vmem:[#allocation3 + $0x8] sm:$0xff] %vm3221, %v2828
        %3224 = vst.msk [vmem:[#allocation3 + $0x10] sm:$0xff] %vm3221, %v2833
        %3225 = vst.msk [vmem:[#allocation3 + $0x18] sm:$0xff] %vm3221, %v2838
        %3226 = vst.msk [vmem:[#allocation3 + $0x20] sm:$0xff] %vm3221, %v2843
        %3227 = vst.msk [vmem:[#allocation3 + $0x28] sm:$0xff] %vm3221, %v2848
        %3228 = vst.msk [vmem:[#allocation3 + $0x30] sm:$0xff] %vm3221, %v2853
        %3229 = vst.msk [vmem:[#allocation3 + $0x38] sm:$0xff] %vm3221, %v2858
        %3230 = vst.msk [vmem:[#allocation3 + $0x40] sm:$0xff] %vm3221, %v2863
        %3231 = vst.msk [vmem:[#allocation3 + $0x48] sm:$0xff] %vm3221, %v2868
        %3232 = vst.msk [vmem:[#allocation3 + $0x50] sm:$0xff] %vm3221, %v2873
        %3233 = vst.msk [vmem:[#allocation3 + $0x58] sm:$0xff] %vm3221, %v2878
        %3234 = vst.msk [vmem:[#allocation3 + $0x60] sm:$0xff] %vm3221, %v2883
        %3235 = vst.msk [vmem:[#allocation3 + $0x68] sm:$0xff] %vm3221, %v2888
        %3236 = vst.msk [vmem:[#allocation3 + $0x70] sm:$0xff] %vm3221, %v2893
        %3237 = vst.msk [vmem:[#allocation3 + $0x78] sm:$0xff] %vm3221, %v2898
        %3238 = vst.msk [vmem:[#allocation3 + $0x80] sm:$0xff] %vm3221, %v2903
        %3239 = vst.msk [vmem:[#allocation3 + $0x88] sm:$0xff] %vm3221, %v2908
        %3240 = vst.msk [vmem:[#allocation3 + $0x90] sm:$0xff] %vm3221, %v2913
        %3241 = vst.msk [vmem:[#allocation3 + $0x98] sm:$0xff] %vm3221, %v2918
        %3242 = vst.msk [vmem:[#allocation3 + $0xa0] sm:$0xff] %vm3221, %v2923
        %3243 = vst.msk [vmem:[#allocation3 + $0xa8] sm:$0xff] %vm3221, %v2928
        %3244 = vst.msk [vmem:[#allocation3 + $0xb0] sm:$0xff] %vm3221, %v2933
        %3245 = vst.msk [vmem:[#allocation3 + $0xb8] sm:$0xff] %vm3221, %v2938
        %3246 = vst.msk [vmem:[#allocation3 + $0xc0] sm:$0xff] %vm3221, %v2943
        %3247 = vst.msk [vmem:[#allocation3 + $0xc8] sm:$0xff] %vm3221, %v2948
        %3248 = vst.msk [vmem:[#allocation3 + $0xd0] sm:$0xff] %vm3221, %v2953
        %3249 = vst.msk [vmem:[#allocation3 + $0xd8] sm:$0xff] %vm3221, %v2958
        %3250 = vst.msk [vmem:[#allocation3 + $0xe0] sm:$0xff] %vm3221, %v2963
        %3251 = vst.msk [vmem:[#allocation3 + $0xe8] sm:$0xff] %vm3221, %v2968
        %3252 = vst.msk [vmem:[#allocation3 + $0xf0] sm:$0xff] %vm3221, %v2973
        %3253 = vst.msk [vmem:[#allocation3 + $0xf8] sm:$0xff] %vm3221, %v2978
        %3254 = vst.msk [vmem:[#allocation3 + $0x100] sm:$0xff] %vm3221, %v2983
        %3255 = vst.msk [vmem:[#allocation3 + $0x108] sm:$0xff] %vm3221, %v2988
        %3256 = vst.msk [vmem:[#allocation3 + $0x110] sm:$0xff] %vm3221, %v2993
        %3257 = vst.msk [vmem:[#allocation3 + $0x118] sm:$0xff] %vm3221, %v2998
        %3258 = vst.msk [vmem:[#allocation3 + $0x120] sm:$0xff] %vm3221, %v3003
        %3259 = vst.msk [vmem:[#allocation3 + $0x128] sm:$0xff] %vm3221, %v3008
        %3260 = vst.msk [vmem:[#allocation3 + $0x130] sm:$0xff] %vm3221, %v3013
        %3261 = vst.msk [vmem:[#allocation3 + $0x138] sm:$0xff] %vm3221, %v3018
        %3262 = vst.msk [vmem:[#allocation3 + $0x140] sm:$0xff] %vm3221, %v3023
        %3263 = vst.msk [vmem:[#allocation3 + $0x148] sm:$0xff] %vm3221, %v3028
        %3264 = vst.msk [vmem:[#allocation3 + $0x150] sm:$0xff] %vm3221, %v3033
        %3265 = vst.msk [vmem:[#allocation3 + $0x158] sm:$0xff] %vm3221, %v3038
        %3266 = vst.msk [vmem:[#allocation3 + $0x160] sm:$0xff] %vm3221, %v3043
        %3267 = vst.msk [vmem:[#allocation3 + $0x168] sm:$0xff] %vm3221, %v3048
        %3268 = vst.msk [vmem:[#allocation3 + $0x170] sm:$0xff] %vm3221, %v3053
        %3269 = vst.msk [vmem:[#allocation3 + $0x178] sm:$0xff] %vm3221, %v3058
        %3270 = vst.msk [vmem:[#allocation3 + $0x180] sm:$0xff] %vm3221, %v3063
        %3271 = vst.msk [vmem:[#allocation3 + $0x188] sm:$0xff] %vm3221, %v3068
        %3272 = vst.msk [vmem:[#allocation3 + $0x190] sm:$0xff] %vm3221, %v3073
        %3273 = vst.msk [vmem:[#allocation3 + $0x198] sm:$0xff] %vm3221, %v3078
        %3274 = vst.msk [vmem:[#allocation3 + $0x1a0] sm:$0xff] %vm3221, %v3083
        %3275 = vst.msk [vmem:[#allocation3 + $0x1a8] sm:$0xff] %vm3221, %v3088
        %3276 = vst.msk [vmem:[#allocation3 + $0x1b0] sm:$0xff] %vm3221, %v3093
        %3277 = vst.msk [vmem:[#allocation3 + $0x1b8] sm:$0xff] %vm3221, %v3098
        %3278 = vst.msk [vmem:[#allocation3 + $0x1c0] sm:$0xff] %vm3221, %v3103
        %3279 = vst.msk [vmem:[#allocation3 + $0x1c8] sm:$0xff] %vm3221, %v3108
        %3280 = vst.msk [vmem:[#allocation3 + $0x1d0] sm:$0xff] %vm3221, %v3113
        %3281 = vst.msk [vmem:[#allocation3 + $0x1d8] sm:$0xff] %vm3221, %v3118
        %3282 = vst.msk [vmem:[#allocation3 + $0x1e0] sm:$0xff] %vm3221, %v3123
        %3283 = vst.msk [vmem:[#allocation3 + $0x1e8] sm:$0xff] %vm3221, %v3128
        %3284 = vst.msk [vmem:[#allocation3 + $0x1f0] sm:$0xff] %vm3221, %v3133
        %3285 = vst.msk [vmem:[#allocation3 + $0x1f8] sm:$0xff] %vm3221, %v3138
        %3286 = vst.msk [vmem:[#allocation3 + $0x200] sm:$0xff] %vm3221, %v3143
        %3287 = vst.msk [vmem:[#allocation3 + $0x208] sm:$0xff] %vm3221, %v3148
        %3288 = vst.msk [vmem:[#allocation3 + $0x210] sm:$0xff] %vm3221, %v3153
        %3289 = vst.msk [vmem:[#allocation3 + $0x218] sm:$0xff] %vm3221, %v3158
        %3290 = vst.msk [vmem:[#allocation3 + $0x220] sm:$0xff] %vm3221, %v3163
        %3291 = vst.msk [vmem:[#allocation3 + $0x228] sm:$0xff] %vm3221, %v3168
        %3292 = vst.msk [vmem:[#allocation3 + $0x230] sm:$0xff] %vm3221, %v3173
        %3293 = vst.msk [vmem:[#allocation3 + $0x238] sm:$0xff] %vm3221, %v3178
        %3294 = vst.msk [vmem:[#allocation3 + $0x240] sm:$0xff] %vm3221, %v3183
        %3295 = vst.msk [vmem:[#allocation3 + $0x248] sm:$0xff] %vm3221, %v3188
        %3296 = vst.msk [vmem:[#allocation3 + $0x250] sm:$0xff] %vm3221, %v3193
        %3297 = vst.msk [vmem:[#allocation3 + $0x258] sm:$0xff] %vm3221, %v3198
        %3298 = vst.msk [vmem:[#allocation3 + $0x260] sm:$0xff] %vm3221, %v3203
        %3299 = vst.msk [vmem:[#allocation3 + $0x268] sm:$0xff] %vm3221, %v3208
        %3300 = vst.msk [vmem:[#allocation3 + $0x270] sm:$0xff] %vm3221, %v3213
        %3301 = vst.msk [vmem:[#allocation3 + $0x278] sm:$0xff] %vm3221, %v3218
        %v3302 = vld [vmem:[%s1 + $0xc0] sm:$0xff]
        %v3303 = vld [vmem:[%s1 + $0xd0] sm:$0xff]
        %v3304 = vld [vmem:[%s1 + $0xe0] sm:$0xff]
        %v3305 = vld [vmem:[%s1 + $0xf0] sm:$0x1]
        %v3306 = vld [vmem:[%s1 + $0x100] ss:$0 sm:$0xff]
        %v3307 = vld [vmem:[#allocation3] sm:$0xff]
        %v3308 = vld [vmem:[#allocation3 + $0x10] sm:$0xff]
        %v3309 = vld [vmem:[#allocation3 + $0x20] sm:$0xff]
        %v3310 = vld [vmem:[#allocation3 + $0x30] sm:$0xff]
        %v3311 = vld [vmem:[#allocation3 + $0x40] sm:$0xff]
        %v3312 = vld [vmem:[#allocation3 + $0x50] sm:$0xff]
        %v3313 = vld [vmem:[#allocation3 + $0x60] sm:$0xff]
        %v3314 = vld [vmem:[#allocation3 + $0x70] sm:$0xff]
        %v3315 = vlaneseq
        %v3316 = vshrl.u32 %v3315, 7
        %v3317 = vsub.s32 0, %v3316
        %v3318 = vrot.slane %v3302, %v3317
        %v3319 = vmul.f32 %v3307, %v3318
        %v3320 = vmul.f32 %v3308, %v3318
        %v3321 = vmul.f32 %v3309, %v3318
        %v3322 = vmul.f32 %v3310, %v3318
        %v3323 = vmul.f32 %v3311, %v3318
        %v3324 = vmul.f32 %v3312, %v3318
        %v3325 = vmul.f32 %v3313, %v3318
        %v3326 = vmul.f32 %v3314, %v3318
        %v3327 = vadd.f32 %v3319, 0.0
        %v3328 = vadd.f32 %v3320, 0.0
        %v3329 = vadd.f32 %v3321, 0.0
        %v3330 = vadd.f32 %v3322, 0.0
        %v3331 = vadd.f32 %v3323, 0.0
        %v3332 = vadd.f32 %v3324, 0.0
        %v3333 = vadd.f32 %v3325, 0.0
        %v3334 = vadd.f32 %v3326, 0.0
        %s3335 = scalar_lea.vmem [#allocation3], 160
        %v3336 = vld [vmem:[%s3335] sm:$0xff]
        %v3337 = vld [vmem:[%s3335 + $0x10] sm:$0xff]
        %v3338 = vld [vmem:[%s3335 + $0x20] sm:$0xff]
        %v3339 = vld [vmem:[%s3335 + $0x30] sm:$0xff]
        %v3340 = vld [vmem:[%s3335 + $0x40] sm:$0xff]
        %v3341 = vld [vmem:[%s3335 + $0x50] sm:$0xff]
        %v3342 = vld [vmem:[%s3335 + $0x60] sm:$0xff]
        %v3343 = vld [vmem:[%s3335 + $0x70] sm:$0xff]
        %v3344 = vlaneseq
        %v3345 = vshrl.u32 %v3344, 7
        %v3346 = vsub.s32 1, %v3345
        %v3347 = vrot.slane %v3302, %v3346
        %v3348 = vmul.f32 %v3336, %v3347
        %v3349 = vmul.f32 %v3337, %v3347
        %v3350 = vmul.f32 %v3338, %v3347
        %v3351 = vmul.f32 %v3339, %v3347
        %v3352 = vmul.f32 %v3340, %v3347
        %v3353 = vmul.f32 %v3341, %v3347
        %v3354 = vmul.f32 %v3342, %v3347
        %v3355 = vmul.f32 %v3343, %v3347
        %v3356 = vadd.f32 %v3327, %v3348
        %v3357 = vadd.f32 %v3328, %v3349
        %v3358 = vadd.f32 %v3329, %v3350
        %v3359 = vadd.f32 %v3330, %v3351
        %v3360 = vadd.f32 %v3331, %v3352
        %v3361 = vadd.f32 %v3332, %v3353
        %v3362 = vadd.f32 %v3333, %v3354
        %v3363 = vadd.f32 %v3334, %v3355
        %v3364 = vld [vmem:[#allocation3 + $0x1] sm:$0xff]
        %v3365 = vld [vmem:[#allocation3 + $0x11] sm:$0xff]
        %v3366 = vld [vmem:[#allocation3 + $0x21] sm:$0xff]
        %v3367 = vld [vmem:[#allocation3 + $0x31] sm:$0xff]
        %v3368 = vld [vmem:[#allocation3 + $0x41] sm:$0xff]
        %v3369 = vld [vmem:[#allocation3 + $0x51] sm:$0xff]
        %v3370 = vld [vmem:[#allocation3 + $0x61] sm:$0xff]
        %v3371 = vld [vmem:[#allocation3 + $0x71] sm:$0xff]
        %v3372 = vlaneseq
        %v3373 = vshrl.u32 %v3372, 7
        %v3374 = vsub.s32 2, %v3373
        %v3375 = vrot.slane %v3302, %v3374
        %v3376 = vmul.f32 %v3364, %v3375
        %v3377 = vmul.f32 %v3365, %v3375
        %v3378 = vmul.f32 %v3366, %v3375
        %v3379 = vmul.f32 %v3367, %v3375
        %v3380 = vmul.f32 %v3368, %v3375
        %v3381 = vmul.f32 %v3369, %v3375
        %v3382 = vmul.f32 %v3370, %v3375
        %v3383 = vmul.f32 %v3371, %v3375
        %v3384 = vadd.f32 %v3356, %v3376
        %v3385 = vadd.f32 %v3357, %v3377
        %v3386 = vadd.f32 %v3358, %v3378
        %v3387 = vadd.f32 %v3359, %v3379
        %v3388 = vadd.f32 %v3360, %v3380
        %v3389 = vadd.f32 %v3361, %v3381
        %v3390 = vadd.f32 %v3362, %v3382
        %v3391 = vadd.f32 %v3363, %v3383
        %v3392 = vld [vmem:[%s3335 + $0x1] sm:$0xff]
        %v3393 = vld [vmem:[%s3335 + $0x11] sm:$0xff]
        %v3394 = vld [vmem:[%s3335 + $0x21] sm:$0xff]
        %v3395 = vld [vmem:[%s3335 + $0x31] sm:$0xff]
        %v3396 = vld [vmem:[%s3335 + $0x41] sm:$0xff]
        %v3397 = vld [vmem:[%s3335 + $0x51] sm:$0xff]
        %v3398 = vld [vmem:[%s3335 + $0x61] sm:$0xff]
        %v3399 = vld [vmem:[%s3335 + $0x71] sm:$0xff]
        %v3400 = vlaneseq
        %v3401 = vshrl.u32 %v3400, 7
        %v3402 = vsub.s32 3, %v3401
        %v3403 = vrot.slane %v3302, %v3402
        %v3404 = vmul.f32 %v3392, %v3403
        %v3405 = vmul.f32 %v3393, %v3403
        %v3406 = vmul.f32 %v3394, %v3403
        %v3407 = vmul.f32 %v3395, %v3403
        %v3408 = vmul.f32 %v3396, %v3403
        %v3409 = vmul.f32 %v3397, %v3403
        %v3410 = vmul.f32 %v3398, %v3403
        %v3411 = vmul.f32 %v3399, %v3403
        %v3412 = vadd.f32 %v3384, %v3404
        %v3413 = vadd.f32 %v3385, %v3405
        %v3414 = vadd.f32 %v3386, %v3406
        %v3415 = vadd.f32 %v3387, %v3407
        %v3416 = vadd.f32 %v3388, %v3408
        %v3417 = vadd.f32 %v3389, %v3409
        %v3418 = vadd.f32 %v3390, %v3410
        %v3419 = vadd.f32 %v3391, %v3411
        %v3420 = vld [vmem:[#allocation3 + $0x2] sm:$0xff]
        %v3421 = vld [vmem:[#allocation3 + $0x12] sm:$0xff]
        %v3422 = vld [vmem:[#allocation3 + $0x22] sm:$0xff]
        %v3423 = vld [vmem:[#allocation3 + $0x32] sm:$0xff]
        %v3424 = vld [vmem:[#allocation3 + $0x42] sm:$0xff]
        %v3425 = vld [vmem:[#allocation3 + $0x52] sm:$0xff]
        %v3426 = vld [vmem:[#allocation3 + $0x62] sm:$0xff]
        %v3427 = vld [vmem:[#allocation3 + $0x72] sm:$0xff]
        %v3428 = vlaneseq
        %v3429 = vshrl.u32 %v3428, 7
        %v3430 = vsub.s32 4, %v3429
        %v3431 = vrot.slane %v3302, %v3430
        %v3432 = vmul.f32 %v3420, %v3431
        %v3433 = vmul.f32 %v3421, %v3431
        %v3434 = vmul.f32 %v3422, %v3431
        %v3435 = vmul.f32 %v3423, %v3431
        %v3436 = vmul.f32 %v3424, %v3431
        %v3437 = vmul.f32 %v3425, %v3431
        %v3438 = vmul.f32 %v3426, %v3431
        %v3439 = vmul.f32 %v3427, %v3431
        %v3440 = vadd.f32 %v3412, %v3432
        %v3441 = vadd.f32 %v3413, %v3433
        %v3442 = vadd.f32 %v3414, %v3434
        %v3443 = vadd.f32 %v3415, %v3435
        %v3444 = vadd.f32 %v3416, %v3436
        %v3445 = vadd.f32 %v3417, %v3437
        %v3446 = vadd.f32 %v3418, %v3438
        %v3447 = vadd.f32 %v3419, %v3439
        %s3448 = scalar_lea.vmem [#allocation3], 320
        %v3449 = vld [vmem:[%s3448] sm:$0xff]
        %v3450 = vld [vmem:[%s3448 + $0x10] sm:$0xff]
        %v3451 = vld [vmem:[%s3448 + $0x20] sm:$0xff]
        %v3452 = vld [vmem:[%s3448 + $0x30] sm:$0xff]
        %v3453 = vld [vmem:[%s3448 + $0x40] sm:$0xff]
        %v3454 = vld [vmem:[%s3448 + $0x50] sm:$0xff]
        %v3455 = vld [vmem:[%s3448 + $0x60] sm:$0xff]
        %v3456 = vld [vmem:[%s3448 + $0x70] sm:$0xff]
        %v3457 = vlaneseq
        %v3458 = vshrl.u32 %v3457, 7
        %v3459 = vsub.s32 5, %v3458
        %v3460 = vrot.slane %v3302, %v3459
        %v3461 = vmul.f32 %v3449, %v3460
        %v3462 = vmul.f32 %v3450, %v3460
        %v3463 = vmul.f32 %v3451, %v3460
        %v3464 = vmul.f32 %v3452, %v3460
        %v3465 = vmul.f32 %v3453, %v3460
        %v3466 = vmul.f32 %v3454, %v3460
        %v3467 = vmul.f32 %v3455, %v3460
        %v3468 = vmul.f32 %v3456, %v3460
        %v3469 = vadd.f32 %v3440, %v3461
        %v3470 = vadd.f32 %v3441, %v3462
        %v3471 = vadd.f32 %v3442, %v3463
        %v3472 = vadd.f32 %v3443, %v3464
        %v3473 = vadd.f32 %v3444, %v3465
        %v3474 = vadd.f32 %v3445, %v3466
        %v3475 = vadd.f32 %v3446, %v3467
        %v3476 = vadd.f32 %v3447, %v3468
        %s3477 = scalar_lea.vmem [#allocation3], 480
        %v3478 = vld [vmem:[%s3477] sm:$0xff]
        %v3479 = vld [vmem:[%s3477 + $0x10] sm:$0xff]
        %v3480 = vld [vmem:[%s3477 + $0x20] sm:$0xff]
        %v3481 = vld [vmem:[%s3477 + $0x30] sm:$0xff]
        %v3482 = vld [vmem:[%s3477 + $0x40] sm:$0xff]
        %v3483 = vld [vmem:[%s3477 + $0x50] sm:$0xff]
        %v3484 = vld [vmem:[%s3477 + $0x60] sm:$0xff]
        %v3485 = vld [vmem:[%s3477 + $0x70] sm:$0xff]
        %v3486 = vlaneseq
        %v3487 = vshrl.u32 %v3486, 7
        %v3488 = vsub.s32 6, %v3487
        %v3489 = vrot.slane %v3302, %v3488
        %v3490 = vmul.f32 %v3478, %v3489
        %v3491 = vmul.f32 %v3479, %v3489
        %v3492 = vmul.f32 %v3480, %v3489
        %v3493 = vmul.f32 %v3481, %v3489
        %v3494 = vmul.f32 %v3482, %v3489
        %v3495 = vmul.f32 %v3483, %v3489
        %v3496 = vmul.f32 %v3484, %v3489
        %v3497 = vmul.f32 %v3485, %v3489
        %v3498 = vadd.f32 %v3469, %v3490
        %v3499 = vadd.f32 %v3470, %v3491
        %v3500 = vadd.f32 %v3471, %v3492
        %v3501 = vadd.f32 %v3472, %v3493
        %v3502 = vadd.f32 %v3473, %v3494
        %v3503 = vadd.f32 %v3474, %v3495
        %v3504 = vadd.f32 %v3475, %v3496
        %v3505 = vadd.f32 %v3476, %v3497
        %v3506 = vld [vmem:[%s3448 + $0x1] sm:$0xff]
        %v3507 = vld [vmem:[%s3448 + $0x11] sm:$0xff]
        %v3508 = vld [vmem:[%s3448 + $0x21] sm:$0xff]
        %v3509 = vld [vmem:[%s3448 + $0x31] sm:$0xff]
        %v3510 = vld [vmem:[%s3448 + $0x41] sm:$0xff]
        %v3511 = vld [vmem:[%s3448 + $0x51] sm:$0xff]
        %v3512 = vld [vmem:[%s3448 + $0x61] sm:$0xff]
        %v3513 = vld [vmem:[%s3448 + $0x71] sm:$0xff]
        %v3514 = vlaneseq
        %v3515 = vshrl.u32 %v3514, 7
        %v3516 = vsub.s32 7, %v3515
        %v3517 = vrot.slane %v3302, %v3516
        %v3518 = vmul.f32 %v3506, %v3517
        %v3519 = vmul.f32 %v3507, %v3517
        %v3520 = vmul.f32 %v3508, %v3517
        %v3521 = vmul.f32 %v3509, %v3517
        %v3522 = vmul.f32 %v3510, %v3517
        %v3523 = vmul.f32 %v3511, %v3517
        %v3524 = vmul.f32 %v3512, %v3517
        %v3525 = vmul.f32 %v3513, %v3517
        %v3526 = vadd.f32 %v3498, %v3518
        %v3527 = vadd.f32 %v3499, %v3519
        %v3528 = vadd.f32 %v3500, %v3520
        %v3529 = vadd.f32 %v3501, %v3521
        %v3530 = vadd.f32 %v3502, %v3522
        %v3531 = vadd.f32 %v3503, %v3523
        %v3532 = vadd.f32 %v3504, %v3524
        %v3533 = vadd.f32 %v3505, %v3525
        %v3534 = vld [vmem:[%s3477 + $0x1] sm:$0xff]
        %v3535 = vld [vmem:[%s3477 + $0x11] sm:$0xff]
        %v3536 = vld [vmem:[%s3477 + $0x21] sm:$0xff]
        %v3537 = vld [vmem:[%s3477 + $0x31] sm:$0xff]
        %v3538 = vld [vmem:[%s3477 + $0x41] sm:$0xff]
        %v3539 = vld [vmem:[%s3477 + $0x51] sm:$0xff]
        %v3540 = vld [vmem:[%s3477 + $0x61] sm:$0xff]
        %v3541 = vld [vmem:[%s3477 + $0x71] sm:$0xff]
        %v3542 = vlaneseq
        %v3543 = vshrl.u32 %v3542, 7
        %v3544 = vsub.s32 0, %v3543
        %v3545 = vrot.slane %v3303, %v3544
        %v3546 = vmul.f32 %v3534, %v3545
        %v3547 = vmul.f32 %v3535, %v3545
        %v3548 = vmul.f32 %v3536, %v3545
        %v3549 = vmul.f32 %v3537, %v3545
        %v3550 = vmul.f32 %v3538, %v3545
        %v3551 = vmul.f32 %v3539, %v3545
        %v3552 = vmul.f32 %v3540, %v3545
        %v3553 = vmul.f32 %v3541, %v3545
        %v3554 = vadd.f32 %v3526, %v3546
        %v3555 = vadd.f32 %v3527, %v3547
        %v3556 = vadd.f32 %v3528, %v3548
        %v3557 = vadd.f32 %v3529, %v3549
        %v3558 = vadd.f32 %v3530, %v3550
        %v3559 = vadd.f32 %v3531, %v3551
        %v3560 = vadd.f32 %v3532, %v3552
        %v3561 = vadd.f32 %v3533, %v3553
        %v3562 = vld [vmem:[%s3448 + $0x2] sm:$0xff]
        %v3563 = vld [vmem:[%s3448 + $0x12] sm:$0xff]
        %v3564 = vld [vmem:[%s3448 + $0x22] sm:$0xff]
        %v3565 = vld [vmem:[%s3448 + $0x32] sm:$0xff]
        %v3566 = vld [vmem:[%s3448 + $0x42] sm:$0xff]
        %v3567 = vld [vmem:[%s3448 + $0x52] sm:$0xff]
        %v3568 = vld [vmem:[%s3448 + $0x62] sm:$0xff]
        %v3569 = vld [vmem:[%s3448 + $0x72] sm:$0xff]
        %v3570 = vlaneseq
        %v3571 = vshrl.u32 %v3570, 7
        %v3572 = vsub.s32 1, %v3571
        %v3573 = vrot.slane %v3303, %v3572
        %v3574 = vmul.f32 %v3562, %v3573
        %v3575 = vmul.f32 %v3563, %v3573
        %v3576 = vmul.f32 %v3564, %v3573
        %v3577 = vmul.f32 %v3565, %v3573
        %v3578 = vmul.f32 %v3566, %v3573
        %v3579 = vmul.f32 %v3567, %v3573
        %v3580 = vmul.f32 %v3568, %v3573
        %v3581 = vmul.f32 %v3569, %v3573
        %v3582 = vadd.f32 %v3554, %v3574
        %v3583 = vadd.f32 %v3555, %v3575
        %v3584 = vadd.f32 %v3556, %v3576
        %v3585 = vadd.f32 %v3557, %v3577
        %v3586 = vadd.f32 %v3558, %v3578
        %v3587 = vadd.f32 %v3559, %v3579
        %v3588 = vadd.f32 %v3560, %v3580
        %v3589 = vadd.f32 %v3561, %v3581
        %s3590 = scalar_lea.vmem [#allocation3], 16
        %v3591 = vld [vmem:[%s3590] sm:$0xff]
        %v3592 = vld [vmem:[%s3590 + $0x10] sm:$0xff]
        %v3593 = vld [vmem:[%s3590 + $0x20] sm:$0xff]
        %v3594 = vld [vmem:[%s3590 + $0x30] sm:$0xff]
        %v3595 = vld [vmem:[%s3590 + $0x40] sm:$0xff]
        %v3596 = vld [vmem:[%s3590 + $0x50] sm:$0xff]
        %v3597 = vld [vmem:[%s3590 + $0x60] sm:$0xff]
        %v3598 = vld [vmem:[%s3590 + $0x70] sm:$0xff]
        %v3599 = vlaneseq
        %v3600 = vshrl.u32 %v3599, 7
        %v3601 = vsub.s32 2, %v3600
        %v3602 = vrot.slane %v3303, %v3601
        %v3603 = vmul.f32 %v3591, %v3602
        %v3604 = vmul.f32 %v3592, %v3602
        %v3605 = vmul.f32 %v3593, %v3602
        %v3606 = vmul.f32 %v3594, %v3602
        %v3607 = vmul.f32 %v3595, %v3602
        %v3608 = vmul.f32 %v3596, %v3602
        %v3609 = vmul.f32 %v3597, %v3602
        %v3610 = vmul.f32 %v3598, %v3602
        %v3611 = vadd.f32 %v3582, %v3603
        %v3612 = vadd.f32 %v3583, %v3604
        %v3613 = vadd.f32 %v3584, %v3605
        %v3614 = vadd.f32 %v3585, %v3606
        %v3615 = vadd.f32 %v3586, %v3607
        %v3616 = vadd.f32 %v3587, %v3608
        %v3617 = vadd.f32 %v3588, %v3609
        %v3618 = vadd.f32 %v3589, %v3610
        %s3619 = scalar_lea.vmem [#allocation3], 176
        %v3620 = vld [vmem:[%s3619] sm:$0xff]
        %v3621 = vld [vmem:[%s3619 + $0x10] sm:$0xff]
        %v3622 = vld [vmem:[%s3619 + $0x20] sm:$0xff]
        %v3623 = vld [vmem:[%s3619 + $0x30] sm:$0xff]
        %v3624 = vld [vmem:[%s3619 + $0x40] sm:$0xff]
        %v3625 = vld [vmem:[%s3619 + $0x50] sm:$0xff]
        %v3626 = vld [vmem:[%s3619 + $0x60] sm:$0xff]
        %v3627 = vld [vmem:[%s3619 + $0x70] sm:$0xff]
        %v3628 = vlaneseq
        %v3629 = vshrl.u32 %v3628, 7
        %v3630 = vsub.s32 3, %v3629
        %v3631 = vrot.slane %v3303, %v3630
        %v3632 = vmul.f32 %v3620, %v3631
        %v3633 = vmul.f32 %v3621, %v3631
        %v3634 = vmul.f32 %v3622, %v3631
        %v3635 = vmul.f32 %v3623, %v3631
        %v3636 = vmul.f32 %v3624, %v3631
        %v3637 = vmul.f32 %v3625, %v3631
        %v3638 = vmul.f32 %v3626, %v3631
        %v3639 = vmul.f32 %v3627, %v3631
        %v3640 = vadd.f32 %v3611, %v3632
        %v3641 = vadd.f32 %v3612, %v3633
        %v3642 = vadd.f32 %v3613, %v3634
        %v3643 = vadd.f32 %v3614, %v3635
        %v3644 = vadd.f32 %v3615, %v3636
        %v3645 = vadd.f32 %v3616, %v3637
        %v3646 = vadd.f32 %v3617, %v3638
        %v3647 = vadd.f32 %v3618, %v3639
        %v3648 = vld [vmem:[%s3590 + $0x1] sm:$0xff]
        %v3649 = vld [vmem:[%s3590 + $0x11] sm:$0xff]
        %v3650 = vld [vmem:[%s3590 + $0x21] sm:$0xff]
        %v3651 = vld [vmem:[%s3590 + $0x31] sm:$0xff]
        %v3652 = vld [vmem:[%s3590 + $0x41] sm:$0xff]
        %v3653 = vld [vmem:[%s3590 + $0x51] sm:$0xff]
        %v3654 = vld [vmem:[%s3590 + $0x61] sm:$0xff]
        %v3655 = vld [vmem:[%s3590 + $0x71] sm:$0xff]
        %v3656 = vlaneseq
        %v3657 = vshrl.u32 %v3656, 7
        %v3658 = vsub.s32 4, %v3657
        %v3659 = vrot.slane %v3303, %v3658
        %v3660 = vmul.f32 %v3648, %v3659
        %v3661 = vmul.f32 %v3649, %v3659
        %v3662 = vmul.f32 %v3650, %v3659
        %v3663 = vmul.f32 %v3651, %v3659
        %v3664 = vmul.f32 %v3652, %v3659
        %v3665 = vmul.f32 %v3653, %v3659
        %v3666 = vmul.f32 %v3654, %v3659
        %v3667 = vmul.f32 %v3655, %v3659
        %v3668 = vadd.f32 %v3640, %v3660
        %v3669 = vadd.f32 %v3641, %v3661
        %v3670 = vadd.f32 %v3642, %v3662
        %v3671 = vadd.f32 %v3643, %v3663
        %v3672 = vadd.f32 %v3644, %v3664
        %v3673 = vadd.f32 %v3645, %v3665
        %v3674 = vadd.f32 %v3646, %v3666
        %v3675 = vadd.f32 %v3647, %v3667
        %v3676 = vld [vmem:[%s3619 + $0x1] sm:$0xff]
        %v3677 = vld [vmem:[%s3619 + $0x11] sm:$0xff]
        %v3678 = vld [vmem:[%s3619 + $0x21] sm:$0xff]
        %v3679 = vld [vmem:[%s3619 + $0x31] sm:$0xff]
        %v3680 = vld [vmem:[%s3619 + $0x41] sm:$0xff]
        %v3681 = vld [vmem:[%s3619 + $0x51] sm:$0xff]
        %v3682 = vld [vmem:[%s3619 + $0x61] sm:$0xff]
        %v3683 = vld [vmem:[%s3619 + $0x71] sm:$0xff]
        %v3684 = vlaneseq
        %v3685 = vshrl.u32 %v3684, 7
        %v3686 = vsub.s32 5, %v3685
        %v3687 = vrot.slane %v3303, %v3686
        %v3688 = vmul.f32 %v3676, %v3687
        %v3689 = vmul.f32 %v3677, %v3687
        %v3690 = vmul.f32 %v3678, %v3687
        %v3691 = vmul.f32 %v3679, %v3687
        %v3692 = vmul.f32 %v3680, %v3687
        %v3693 = vmul.f32 %v3681, %v3687
        %v3694 = vmul.f32 %v3682, %v3687
        %v3695 = vmul.f32 %v3683, %v3687
        %v3696 = vadd.f32 %v3668, %v3688
        %v3697 = vadd.f32 %v3669, %v3689
        %v3698 = vadd.f32 %v3670, %v3690
        %v3699 = vadd.f32 %v3671, %v3691
        %v3700 = vadd.f32 %v3672, %v3692
        %v3701 = vadd.f32 %v3673, %v3693
        %v3702 = vadd.f32 %v3674, %v3694
        %v3703 = vadd.f32 %v3675, %v3695
        %v3704 = vld [vmem:[%s3590 + $0x2] sm:$0xff]
        %v3705 = vld [vmem:[%s3590 + $0x12] sm:$0xff]
        %v3706 = vld [vmem:[%s3590 + $0x22] sm:$0xff]
        %v3707 = vld [vmem:[%s3590 + $0x32] sm:$0xff]
        %v3708 = vld [vmem:[%s3590 + $0x42] sm:$0xff]
        %v3709 = vld [vmem:[%s3590 + $0x52] sm:$0xff]
        %v3710 = vld [vmem:[%s3590 + $0x62] sm:$0xff]
        %v3711 = vld [vmem:[%s3590 + $0x72] sm:$0xff]
        %v3712 = vlaneseq
        %v3713 = vshrl.u32 %v3712, 7
        %v3714 = vsub.s32 6, %v3713
        %v3715 = vrot.slane %v3303, %v3714
        %v3716 = vmul.f32 %v3704, %v3715
        %v3717 = vmul.f32 %v3705, %v3715
        %v3718 = vmul.f32 %v3706, %v3715
        %v3719 = vmul.f32 %v3707, %v3715
        %v3720 = vmul.f32 %v3708, %v3715
        %v3721 = vmul.f32 %v3709, %v3715
        %v3722 = vmul.f32 %v3710, %v3715
        %v3723 = vmul.f32 %v3711, %v3715
        %v3724 = vadd.f32 %v3696, %v3716
        %v3725 = vadd.f32 %v3697, %v3717
        %v3726 = vadd.f32 %v3698, %v3718
        %v3727 = vadd.f32 %v3699, %v3719
        %v3728 = vadd.f32 %v3700, %v3720
        %v3729 = vadd.f32 %v3701, %v3721
        %v3730 = vadd.f32 %v3702, %v3722
        %v3731 = vadd.f32 %v3703, %v3723
        %s3732 = scalar_lea.vmem [#allocation3], 336
        %v3733 = vld [vmem:[%s3732] sm:$0xff]
        %v3734 = vld [vmem:[%s3732 + $0x10] sm:$0xff]
        %v3735 = vld [vmem:[%s3732 + $0x20] sm:$0xff]
        %v3736 = vld [vmem:[%s3732 + $0x30] sm:$0xff]
        %v3737 = vld [vmem:[%s3732 + $0x40] sm:$0xff]
        %v3738 = vld [vmem:[%s3732 + $0x50] sm:$0xff]
        %v3739 = vld [vmem:[%s3732 + $0x60] sm:$0xff]
        %v3740 = vld [vmem:[%s3732 + $0x70] sm:$0xff]
        %v3741 = vlaneseq
        %v3742 = vshrl.u32 %v3741, 7
        %v3743 = vsub.s32 7, %v3742
        %v3744 = vrot.slane %v3303, %v3743
        %v3745 = vmul.f32 %v3733, %v3744
        %v3746 = vmul.f32 %v3734, %v3744
        %v3747 = vmul.f32 %v3735, %v3744
        %v3748 = vmul.f32 %v3736, %v3744
        %v3749 = vmul.f32 %v3737, %v3744
        %v3750 = vmul.f32 %v3738, %v3744
        %v3751 = vmul.f32 %v3739, %v3744
        %v3752 = vmul.f32 %v3740, %v3744
        %v3753 = vadd.f32 %v3724, %v3745
        %v3754 = vadd.f32 %v3725, %v3746
        %v3755 = vadd.f32 %v3726, %v3747
        %v3756 = vadd.f32 %v3727, %v3748
        %v3757 = vadd.f32 %v3728, %v3749
        %v3758 = vadd.f32 %v3729, %v3750
        %v3759 = vadd.f32 %v3730, %v3751
        %v3760 = vadd.f32 %v3731, %v3752
        %s3761 = scalar_lea.vmem [#allocation3], 496
        %v3762 = vld [vmem:[%s3761] sm:$0xff]
        %v3763 = vld [vmem:[%s3761 + $0x10] sm:$0xff]
        %v3764 = vld [vmem:[%s3761 + $0x20] sm:$0xff]
        %v3765 = vld [vmem:[%s3761 + $0x30] sm:$0xff]
        %v3766 = vld [vmem:[%s3761 + $0x40] sm:$0xff]
        %v3767 = vld [vmem:[%s3761 + $0x50] sm:$0xff]
        %v3768 = vld [vmem:[%s3761 + $0x60] sm:$0xff]
        %v3769 = vld [vmem:[%s3761 + $0x70] sm:$0xff]
        %v3770 = vlaneseq
        %v3771 = vshrl.u32 %v3770, 7
        %v3772 = vsub.s32 0, %v3771
        %v3773 = vrot.slane %v3304, %v3772
        %v3774 = vmul.f32 %v3762, %v3773
        %v3775 = vmul.f32 %v3763, %v3773
        %v3776 = vmul.f32 %v3764, %v3773
        %v3777 = vmul.f32 %v3765, %v3773
        %v3778 = vmul.f32 %v3766, %v3773
        %v3779 = vmul.f32 %v3767, %v3773
        %v3780 = vmul.f32 %v3768, %v3773
        %v3781 = vmul.f32 %v3769, %v3773
        %v3782 = vadd.f32 %v3753, %v3774
        %v3783 = vadd.f32 %v3754, %v3775
        %v3784 = vadd.f32 %v3755, %v3776
        %v3785 = vadd.f32 %v3756, %v3777
        %v3786 = vadd.f32 %v3757, %v3778
        %v3787 = vadd.f32 %v3758, %v3779
        %v3788 = vadd.f32 %v3759, %v3780
        %v3789 = vadd.f32 %v3760, %v3781
        %v3790 = vld [vmem:[%s3732 + $0x1] sm:$0xff]
        %v3791 = vld [vmem:[%s3732 + $0x11] sm:$0xff]
        %v3792 = vld [vmem:[%s3732 + $0x21] sm:$0xff]
        %v3793 = vld [vmem:[%s3732 + $0x31] sm:$0xff]
        %v3794 = vld [vmem:[%s3732 + $0x41] sm:$0xff]
        %v3795 = vld [vmem:[%s3732 + $0x51] sm:$0xff]
        %v3796 = vld [vmem:[%s3732 + $0x61] sm:$0xff]
        %v3797 = vld [vmem:[%s3732 + $0x71] sm:$0xff]
        %v3798 = vlaneseq
        %v3799 = vshrl.u32 %v3798, 7
        %v3800 = vsub.s32 1, %v3799
        %v3801 = vrot.slane %v3304, %v3800
        %v3802 = vmul.f32 %v3790, %v3801
        %v3803 = vmul.f32 %v3791, %v3801
        %v3804 = vmul.f32 %v3792, %v3801
        %v3805 = vmul.f32 %v3793, %v3801
        %v3806 = vmul.f32 %v3794, %v3801
        %v3807 = vmul.f32 %v3795, %v3801
        %v3808 = vmul.f32 %v3796, %v3801
        %v3809 = vmul.f32 %v3797, %v3801
        %v3810 = vadd.f32 %v3782, %v3802
        %v3811 = vadd.f32 %v3783, %v3803
        %v3812 = vadd.f32 %v3784, %v3804
        %v3813 = vadd.f32 %v3785, %v3805
        %v3814 = vadd.f32 %v3786, %v3806
        %v3815 = vadd.f32 %v3787, %v3807
        %v3816 = vadd.f32 %v3788, %v3808
        %v3817 = vadd.f32 %v3789, %v3809
        %v3818 = vld [vmem:[%s3761 + $0x1] sm:$0xff]
        %v3819 = vld [vmem:[%s3761 + $0x11] sm:$0xff]
        %v3820 = vld [vmem:[%s3761 + $0x21] sm:$0xff]
        %v3821 = vld [vmem:[%s3761 + $0x31] sm:$0xff]
        %v3822 = vld [vmem:[%s3761 + $0x41] sm:$0xff]
        %v3823 = vld [vmem:[%s3761 + $0x51] sm:$0xff]
        %v3824 = vld [vmem:[%s3761 + $0x61] sm:$0xff]
        %v3825 = vld [vmem:[%s3761 + $0x71] sm:$0xff]
        %v3826 = vlaneseq
        %v3827 = vshrl.u32 %v3826, 7
        %v3828 = vsub.s32 2, %v3827
        %v3829 = vrot.slane %v3304, %v3828
        %v3830 = vmul.f32 %v3818, %v3829
        %v3831 = vmul.f32 %v3819, %v3829
        %v3832 = vmul.f32 %v3820, %v3829
        %v3833 = vmul.f32 %v3821, %v3829
        %v3834 = vmul.f32 %v3822, %v3829
        %v3835 = vmul.f32 %v3823, %v3829
        %v3836 = vmul.f32 %v3824, %v3829
        %v3837 = vmul.f32 %v3825, %v3829
        %v3838 = vadd.f32 %v3810, %v3830
        %v3839 = vadd.f32 %v3811, %v3831
        %v3840 = vadd.f32 %v3812, %v3832
        %v3841 = vadd.f32 %v3813, %v3833
        %v3842 = vadd.f32 %v3814, %v3834
        %v3843 = vadd.f32 %v3815, %v3835
        %v3844 = vadd.f32 %v3816, %v3836
        %v3845 = vadd.f32 %v3817, %v3837
        %v3846 = vld [vmem:[%s3732 + $0x2] sm:$0xff]
        %v3847 = vld [vmem:[%s3732 + $0x12] sm:$0xff]
        %v3848 = vld [vmem:[%s3732 + $0x22] sm:$0xff]
        %v3849 = vld [vmem:[%s3732 + $0x32] sm:$0xff]
        %v3850 = vld [vmem:[%s3732 + $0x42] sm:$0xff]
        %v3851 = vld [vmem:[%s3732 + $0x52] sm:$0xff]
        %v3852 = vld [vmem:[%s3732 + $0x62] sm:$0xff]
        %v3853 = vld [vmem:[%s3732 + $0x72] sm:$0xff]
        %v3854 = vlaneseq
        %v3855 = vshrl.u32 %v3854, 7
        %v3856 = vsub.s32 3, %v3855
        %v3857 = vrot.slane %v3304, %v3856
        %v3858 = vmul.f32 %v3846, %v3857
        %v3859 = vmul.f32 %v3847, %v3857
        %v3860 = vmul.f32 %v3848, %v3857
        %v3861 = vmul.f32 %v3849, %v3857
        %v3862 = vmul.f32 %v3850, %v3857
        %v3863 = vmul.f32 %v3851, %v3857
        %v3864 = vmul.f32 %v3852, %v3857
        %v3865 = vmul.f32 %v3853, %v3857
        %v3866 = vadd.f32 %v3838, %v3858
        %v3867 = vadd.f32 %v3839, %v3859
        %v3868 = vadd.f32 %v3840, %v3860
        %v3869 = vadd.f32 %v3841, %v3861
        %v3870 = vadd.f32 %v3842, %v3862
        %v3871 = vadd.f32 %v3843, %v3863
        %v3872 = vadd.f32 %v3844, %v3864
        %v3873 = vadd.f32 %v3845, %v3865
        %s3874 = scalar_lea.vmem [#allocation3], 32
        %v3875 = vld [vmem:[%s3874] sm:$0xff]
        %v3876 = vld [vmem:[%s3874 + $0x10] sm:$0xff]
        %v3877 = vld [vmem:[%s3874 + $0x20] sm:$0xff]
        %v3878 = vld [vmem:[%s3874 + $0x30] sm:$0xff]
        %v3879 = vld [vmem:[%s3874 + $0x40] sm:$0xff]
        %v3880 = vld [vmem:[%s3874 + $0x50] sm:$0xff]
        %v3881 = vld [vmem:[%s3874 + $0x60] sm:$0xff]
        %v3882 = vld [vmem:[%s3874 + $0x70] sm:$0xff]
        %v3883 = vlaneseq
        %v3884 = vshrl.u32 %v3883, 7
        %v3885 = vsub.s32 4, %v3884
        %v3886 = vrot.slane %v3304, %v3885
        %v3887 = vmul.f32 %v3875, %v3886
        %v3888 = vmul.f32 %v3876, %v3886
        %v3889 = vmul.f32 %v3877, %v3886
        %v3890 = vmul.f32 %v3878, %v3886
        %v3891 = vmul.f32 %v3879, %v3886
        %v3892 = vmul.f32 %v3880, %v3886
        %v3893 = vmul.f32 %v3881, %v3886
        %v3894 = vmul.f32 %v3882, %v3886
        %v3895 = vadd.f32 %v3866, %v3887
        %v3896 = vadd.f32 %v3867, %v3888
        %v3897 = vadd.f32 %v3868, %v3889
        %v3898 = vadd.f32 %v3869, %v3890
        %v3899 = vadd.f32 %v3870, %v3891
        %v3900 = vadd.f32 %v3871, %v3892
        %v3901 = vadd.f32 %v3872, %v3893
        %v3902 = vadd.f32 %v3873, %v3894
        %s3903 = scalar_lea.vmem [#allocation3], 192
        %v3904 = vld [vmem:[%s3903] sm:$0xff]
        %v3905 = vld [vmem:[%s3903 + $0x10] sm:$0xff]
        %v3906 = vld [vmem:[%s3903 + $0x20] sm:$0xff]
        %v3907 = vld [vmem:[%s3903 + $0x30] sm:$0xff]
        %v3908 = vld [vmem:[%s3903 + $0x40] sm:$0xff]
        %v3909 = vld [vmem:[%s3903 + $0x50] sm:$0xff]
        %v3910 = vld [vmem:[%s3903 + $0x60] sm:$0xff]
        %v3911 = vld [vmem:[%s3903 + $0x70] sm:$0xff]
        %v3912 = vlaneseq
        %v3913 = vshrl.u32 %v3912, 7
        %v3914 = vsub.s32 5, %v3913
        %v3915 = vrot.slane %v3304, %v3914
        %v3916 = vmul.f32 %v3904, %v3915
        %v3917 = vmul.f32 %v3905, %v3915
        %v3918 = vmul.f32 %v3906, %v3915
        %v3919 = vmul.f32 %v3907, %v3915
        %v3920 = vmul.f32 %v3908, %v3915
        %v3921 = vmul.f32 %v3909, %v3915
        %v3922 = vmul.f32 %v3910, %v3915
        %v3923 = vmul.f32 %v3911, %v3915
        %v3924 = vadd.f32 %v3895, %v3916
        %v3925 = vadd.f32 %v3896, %v3917
        %v3926 = vadd.f32 %v3897, %v3918
        %v3927 = vadd.f32 %v3898, %v3919
        %v3928 = vadd.f32 %v3899, %v3920
        %v3929 = vadd.f32 %v3900, %v3921
        %v3930 = vadd.f32 %v3901, %v3922
        %v3931 = vadd.f32 %v3902, %v3923
        %v3932 = vld [vmem:[%s3874 + $0x1] sm:$0xff]
        %v3933 = vld [vmem:[%s3874 + $0x11] sm:$0xff]
        %v3934 = vld [vmem:[%s3874 + $0x21] sm:$0xff]
        %v3935 = vld [vmem:[%s3874 + $0x31] sm:$0xff]
        %v3936 = vld [vmem:[%s3874 + $0x41] sm:$0xff]
        %v3937 = vld [vmem:[%s3874 + $0x51] sm:$0xff]
        %v3938 = vld [vmem:[%s3874 + $0x61] sm:$0xff]
        %v3939 = vld [vmem:[%s3874 + $0x71] sm:$0xff]
        %v3940 = vlaneseq
        %v3941 = vshrl.u32 %v3940, 7
        %v3942 = vsub.s32 6, %v3941
        %v3943 = vrot.slane %v3304, %v3942
        %v3944 = vmul.f32 %v3932, %v3943
        %v3945 = vmul.f32 %v3933, %v3943
        %v3946 = vmul.f32 %v3934, %v3943
        %v3947 = vmul.f32 %v3935, %v3943
        %v3948 = vmul.f32 %v3936, %v3943
        %v3949 = vmul.f32 %v3937, %v3943
        %v3950 = vmul.f32 %v3938, %v3943
        %v3951 = vmul.f32 %v3939, %v3943
        %v3952 = vadd.f32 %v3924, %v3944
        %v3953 = vadd.f32 %v3925, %v3945
        %v3954 = vadd.f32 %v3926, %v3946
        %v3955 = vadd.f32 %v3927, %v3947
        %v3956 = vadd.f32 %v3928, %v3948
        %v3957 = vadd.f32 %v3929, %v3949
        %v3958 = vadd.f32 %v3930, %v3950
        %v3959 = vadd.f32 %v3931, %v3951
        %v3960 = vld [vmem:[%s3903 + $0x1] sm:$0xff]
        %v3961 = vld [vmem:[%s3903 + $0x11] sm:$0xff]
        %v3962 = vld [vmem:[%s3903 + $0x21] sm:$0xff]
        %v3963 = vld [vmem:[%s3903 + $0x31] sm:$0xff]
        %v3964 = vld [vmem:[%s3903 + $0x41] sm:$0xff]
        %v3965 = vld [vmem:[%s3903 + $0x51] sm:$0xff]
        %v3966 = vld [vmem:[%s3903 + $0x61] sm:$0xff]
        %v3967 = vld [vmem:[%s3903 + $0x71] sm:$0xff]
        %v3968 = vlaneseq
        %v3969 = vshrl.u32 %v3968, 7
        %v3970 = vsub.s32 7, %v3969
        %v3971 = vrot.slane %v3304, %v3970
        %v3972 = vmul.f32 %v3960, %v3971
        %v3973 = vmul.f32 %v3961, %v3971
        %v3974 = vmul.f32 %v3962, %v3971
        %v3975 = vmul.f32 %v3963, %v3971
        %v3976 = vmul.f32 %v3964, %v3971
        %v3977 = vmul.f32 %v3965, %v3971
        %v3978 = vmul.f32 %v3966, %v3971
        %v3979 = vmul.f32 %v3967, %v3971
        %v3980 = vadd.f32 %v3952, %v3972
        %v3981 = vadd.f32 %v3953, %v3973
        %v3982 = vadd.f32 %v3954, %v3974
        %v3983 = vadd.f32 %v3955, %v3975
        %v3984 = vadd.f32 %v3956, %v3976
        %v3985 = vadd.f32 %v3957, %v3977
        %v3986 = vadd.f32 %v3958, %v3978
        %v3987 = vadd.f32 %v3959, %v3979
        %v3988 = vld [vmem:[%s3874 + $0x2] sm:$0xff]
        %v3989 = vld [vmem:[%s3874 + $0x12] sm:$0xff]
        %v3990 = vld [vmem:[%s3874 + $0x22] sm:$0xff]
        %v3991 = vld [vmem:[%s3874 + $0x32] sm:$0xff]
        %v3992 = vld [vmem:[%s3874 + $0x42] sm:$0xff]
        %v3993 = vld [vmem:[%s3874 + $0x52] sm:$0xff]
        %v3994 = vld [vmem:[%s3874 + $0x62] sm:$0xff]
        %v3995 = vld [vmem:[%s3874 + $0x72] sm:$0xff]
        %v3996 = vlaneseq
        %v3997 = vshrl.u32 %v3996, 7
        %v3998 = vsub.s32 0, %v3997
        %v3999 = vrot.slane %v3305, %v3998
        %v4000 = vmul.f32 %v3988, %v3999
        %v4001 = vmul.f32 %v3989, %v3999
        %v4002 = vmul.f32 %v3990, %v3999
        %v4003 = vmul.f32 %v3991, %v3999
        %v4004 = vmul.f32 %v3992, %v3999
        %v4005 = vmul.f32 %v3993, %v3999
        %v4006 = vmul.f32 %v3994, %v3999
        %v4007 = vmul.f32 %v3995, %v3999
        %v4008 = vadd.f32 %v3980, %v4000
        %v4009 = vadd.f32 %v3981, %v4001
        %v4010 = vadd.f32 %v3982, %v4002
        %v4011 = vadd.f32 %v3983, %v4003
        %v4012 = vadd.f32 %v3984, %v4004
        %v4013 = vadd.f32 %v3985, %v4005
        %v4014 = vadd.f32 %v3986, %v4006
        %v4015 = vadd.f32 %v3987, %v4007
        %v4016 = vadd.f32 %v4008, %v3306
        %v4017 = vadd.f32 %v4009, %v3306
        %v4018 = vadd.f32 %v4010, %v3306
        %v4019 = vadd.f32 %v4011, %v3306
        %v4020 = vadd.f32 %v4012, %v3306
        %v4021 = vadd.f32 %v4013, %v3306
        %v4022 = vadd.f32 %v4014, %v3306
        %v4023 = vadd.f32 %v4015, %v3306
        %v4024 = vxor.u32 %v4016, 2147483648
        %v4025 = vxor.u32 %v4017, 2147483648
        %v4026 = vxor.u32 %v4018, 2147483648
        %v4027 = vxor.u32 %v4019, 2147483648
        %v4028 = vxor.u32 %v4020, 2147483648
        %v4029 = vxor.u32 %v4021, 2147483648
        %v4030 = vxor.u32 %v4022, 2147483648
        %v4031 = vxor.u32 %v4023, 2147483648
        %v4032 = vmul.f32 %v4024, 1.442695
        %v4033 = vpow.pop %v4032
        %v4034 = vmul.f32 %v4025, 1.442695
        %v4035 = vpow.pop %v4034
        %v4036 = vmul.f32 %v4026, 1.442695
        %v4037 = vpow.pop %v4036
        %v4038 = vmul.f32 %v4027, 1.442695
        %v4039 = vpow.pop %v4038
        %v4040 = vmul.f32 %v4028, 1.442695
        %v4041 = vpow.pop %v4040
        %v4042 = vmul.f32 %v4029, 1.442695
        %v4043 = vpow.pop %v4042
        %v4044 = vmul.f32 %v4030, 1.442695
        %v4045 = vpow.pop %v4044
        %v4046 = vmul.f32 %v4031, 1.442695
        %v4047 = vpow.pop %v4046
        %v4048 = vadd.f32 %v4033, 1.0
        %v4049 = vadd.f32 %v4035, 1.0
        %v4050 = vadd.f32 %v4037, 1.0
        %v4051 = vadd.f32 %v4039, 1.0
        %v4052 = vadd.f32 %v4041, 1.0
        %v4053 = vadd.f32 %v4043, 1.0
        %v4054 = vadd.f32 %v4045, 1.0
        %v4055 = vadd.f32 %v4047, 1.0
        %v4056 = vrcp.pop %v4048
        %v4057 = vmul.f32 1.0, %v4056
        %v4058 = vrcp.pop %v4049
        %v4059 = vmul.f32 1.0, %v4058
        %v4060 = vrcp.pop %v4050
        %v4061 = vmul.f32 1.0, %v4060
        %v4062 = vrcp.pop %v4051
        %v4063 = vmul.f32 1.0, %v4062
        %v4064 = vrcp.pop %v4052
        %v4065 = vmul.f32 1.0, %v4064
        %v4066 = vrcp.pop %v4053
        %v4067 = vmul.f32 1.0, %v4066
        %v4068 = vrcp.pop %v4054
        %v4069 = vmul.f32 1.0, %v4068
        %v4070 = vrcp.pop %v4055
        %v4071 = vmul.f32 1.0, %v4070
        %v4072 = vmul.f32 %v4016, %v4057
        %v4073 = vmul.f32 %v4017, %v4059
        %v4074 = vmul.f32 %v4018, %v4061
        %v4075 = vmul.f32 %v4019, %v4063
        %v4076 = vmul.f32 %v4020, %v4065
        %v4077 = vmul.f32 %v4021, %v4067
        %v4078 = vmul.f32 %v4022, %v4069
        %v4079 = vmul.f32 %v4023, %v4071
        %v4080 = vsel %vm3221, %v4072, 0.0
        %v4081 = vsel %vm3221, %v4073, 0.0
        %v4082 = vadd.f32 %v4080, %v4081
        %v4083 = vsel %vm3221, %v4074, 0.0
        %v4084 = vadd.f32 %v4082, %v4083
        %v4085 = vsel %vm3221, %v4075, 0.0
        %v4086 = vadd.f32 %v4084, %v4085
        %v4087 = vsel %vm3221, %v4076, 0.0
        %v4088 = vadd.f32 %v4086, %v4087
        %v4089 = vsel %vm3221, %v4077, 0.0
        %v4090 = vadd.f32 %v4088, %v4089
        %v4091 = vsel %vm3221, %v4078, 0.0
        %v4092 = vadd.f32 %v4090, %v4091
        %v4093 = vsel %vm3221, %v4079, 0.0
        %v4094 = vadd.f32 %v4092, %v4093
        %v4095 = vrot.slane %v4094, 4
        %v4096 = vadd.f32 %v4094, %v4095
        %v4097 = vrot.slane %v4096, 2
        %v4098 = vadd.f32 %v4096, %v4097
        %v4099 = vrot.slane %v4098, 1
        %v4100 = vadd.f32 %v4098, %v4099
        %v4101 = vmul.f32 %v4100, 0.015625
        %v4102 = vld [vmem:[%s1 + $0x110] sm:$0xff]
        %v4103 = vld [vmem:[%s1 + $0x120] sm:$0xff]
        %v4104 = vld [vmem:[%s1 + $0x130] sm:$0xff]
        %v4105 = vld [vmem:[%s1 + $0x140] sm:$0xff]
        %v4106 = vld [vmem:[%s1 + $0x150] sm:$0xff]
        %v4107 = vld [vmem:[%s1 + $0x160] sm:$0xff]
        %v4108 = vld [vmem:[%s1 + $0x170] sm:$0xff]
        %v4109 = vld [vmem:[%s1 + $0x180] sm:$0xff]
        %v4110 = vld [vmem:[%s1 + $0x190] sm:$0xff]
        %v4111 = vld [vmem:[%s1 + $0x1a0] sm:$0xff]
        %v4112 = vld [vmem:[%s1 + $0x1b0] sm:$0xff]
        %v4113 = vld [vmem:[%s1 + $0x1c0] sm:$0xff]
        %v4114 = vld [vmem:[%s1 + $0x1d0] ss:$0 sm:$0xff]
        %v4115 = vld [vmem:[%s1 + $0x1e0] sm:$0xf]
        %v4116 = vld [vmem:[%s1 + $0x1f0] ss:$0 sm:$0xff]
        %v4118 = vsel %vm3221, %v4101, 0
        %4120 = vmatprep.subr.mxu0 0.0
        %4121 = vmatpush1.msra.mxu0 0.0
        %4122 = vmatprep.subr.mxu0 0.0
        %4123 = vmatpush1.msra.mxu0 0.0
        %4124 = vmatprep.subr.mxu0 0.0
        %4125 = vmatpush1.msra.mxu0 0.0
        %4126 = vmatprep.subr.mxu0 0.0
        %4127 = vmatpush1.msra.mxu0 0.0
        %4128 = vmatprep.subr.mxu0 0.0
        %4129 = vmatpush1.msra.mxu0 %v4113
        %4130 = vmatprep.subr.mxu0 0.0
        %4131 = vmatpush1.msra.mxu0 %v4112
        %4132 = vmatprep.subr.mxu0 0.0
        %4133 = vmatpush1.msra.mxu0 %v4111
        %4134 = vmatprep.subr.mxu0 0.0
        %4135 = vmatpush1.msra.mxu0 %v4110
        %4136 = vmatprep.subr.mxu0 0.0
        %4137 = vmatpush1.msra.mxu0 %v4109
        %4138 = vmatprep.subr.mxu0 0.0
        %4139 = vmatpush1.msra.mxu0 %v4108
        %4140 = vmatprep.subr.mxu0 0.0
        %4141 = vmatpush1.msra.mxu0 %v4107
        %4142 = vmatprep.subr.mxu0 0.0
        %4143 = vmatpush1.msra.mxu0 %v4106
        %4144 = vmatprep.subr.mxu0 0.0
        %4145 = vmatpush1.msra.mxu0 %v4105
        %4146 = vmatprep.subr.mxu0 0.0
        %4147 = vmatpush1.msra.mxu0 %v4104
        %4148 = vmatprep.subr.mxu0 0.0
        %4149 = vmatpush1.msra.mxu0 %v4103
        %4150 = vmatprep.subr.mxu0 0.0
        %4151 = vmatpush1.msra.mxu0 %v4102
        %4152 = vmatprep.subr.mxu0 0.0
        %4153 = vmatpush2.msra.mxu0 0.0
        %4154 = vmatprep.subr.mxu0 0.0
        %4155 = vmatpush2.msra.mxu0 0.0
        %4156 = vmatprep.subr.mxu0 0.0
        %4157 = vmatpush2.msra.mxu0 0.0
        %4158 = vmatprep.subr.mxu0 0.0
        %4159 = vmatpush2.msra.mxu0 0.0
        %4160 = vmatprep.subr.mxu0 0.0
        %4161 = vmatpush2.msra.mxu0 0.0
        %4162 = vmatprep.subr.mxu0 0.0
        %4163 = vmatpush2.msra.mxu0 0.0
        %4164 = vmatprep.subr.mxu0 0.0
        %4165 = vmatpush2.msra.mxu0 0.0
        %4166 = vmatprep.subr.mxu0 0.0
        %4167 = vmatpush2.msra.mxu0 0.0
        %4168 = vmatprep.subr.mxu0 0.0
        %4169 = vmatpush2.msra.mxu0 0.0
        %4170 = vmatprep.subr.mxu0 0.0
        %4171 = vmatpush2.msra.mxu0 0.0
        %4172 = vmatprep.subr.mxu0 0.0
        %4173 = vmatpush2.msra.mxu0 0.0
        %4174 = vmatprep.subr.mxu0 0.0
        %4175 = vmatpush2.msra.mxu0 0.0
        %4176 = vmatprep.subr.mxu0 0.0
        %4177 = vmatpush2.msra.mxu0 0.0
        %4178 = vmatprep.subr.mxu0 0.0
        %4179 = vmatpush2.msra.mxu0 0.0
        %4180 = vmatprep.subr.mxu0 0.0
        %4181 = vmatpush2.msra.mxu0 0.0
        %4182 = vmatprep.subr.mxu0 0.0
        %4183 = vmatpush2.msra.mxu0 0.0
        %4184 = vmatprep.mubr.f32.mxu0 0.0
        %4185 = vmatmul.mubr.f32.gmra.mxu0 %v4118
        %v4186 = vpop.f32.mrf.mxu0
        %v4187 = vadd.f32 %v4114, %v4186
        %v4188 = vpop.f32.mrf.mxu0
        %4189 = vdwg.mxu0
        %v4190 = vxor.u32 %v4187, 2147483648
        %v4191 = vmul.f32 %v4190, 1.442695
        %v4192 = vpow.pop %v4191
        %v4193 = vadd.f32 %v4192, 1.0
        %v4194 = vrcp.pop %v4193
        %v4195 = vmul.f32 1.0, %v4194
        %v4196 = vmul.f32 %v4187, %v4195
        %vm4197 = vcmask 31744
        %v4199 = vsel %vm4197, %v4196, 0
        %vm4201 = vcmask 1043456
        %v4203 = vsel %vm4201, %v4115, 0
        %4205 = vmatprep.subr.mxu0 0.0
        %4206 = vmatpush1.msra.mxu0 0.0
        %4207 = vmatprep.subr.mxu0 0.0
        %4208 = vmatpush1.msra.mxu0 0.0
        %4209 = vmatprep.subr.mxu0 0.0
        %4210 = vmatpush1.msra.mxu0 0.0
        %4211 = vmatprep.subr.mxu0 0.0
        %4212 = vmatpush1.msra.mxu0 0.0
        %4213 = vmatprep.subr.mxu0 0.0
        %4214 = vmatpush1.msra.mxu0 0.0
        %4215 = vmatprep.subr.mxu0 0.0
        %4216 = vmatpush1.msra.mxu0 0.0
        %4217 = vmatprep.subr.mxu0 0.0
        %4218 = vmatpush1.msra.mxu0 0.0
        %4219 = vmatprep.subr.mxu0 0.0
        %4220 = vmatpush1.msra.mxu0 0.0
        %4221 = vmatprep.subr.mxu0 0.0
        %4222 = vmatpush1.msra.mxu0 0.0
        %4223 = vmatprep.subr.mxu0 0.0
        %4224 = vmatpush1.msra.mxu0 0.0
        %4225 = vmatprep.subr.mxu0 0.0
        %4226 = vmatpush1.msra.mxu0 0.0
        %4227 = vmatprep.subr.mxu0 0.0
        %4228 = vmatpush1.msra.mxu0 0.0
        %4229 = vmatprep.subr.mxu0 0.0
        %4230 = vmatpush1.msra.mxu0 0.0
        %4231 = vmatprep.subr.mxu0 0.0
        %4232 = vmatpush1.msra.mxu0 0.0
        %4233 = vmatprep.subr.mxu0 0.0
        %4234 = vmatpush1.msra.mxu0 0.0
        %4235 = vmatprep.subr.mxu0 0.0
        %4236 = vmatpush1.msra.mxu0 %v4203
        %4237 = vmatprep.subr.mxu0 0.0
        %4238 = vmatpush2.msra.mxu0 0.0
        %4239 = vmatprep.subr.mxu0 0.0
        %4240 = vmatpush2.msra.mxu0 0.0
        %4241 = vmatprep.subr.mxu0 0.0
        %4242 = vmatpush2.msra.mxu0 0.0
        %4243 = vmatprep.subr.mxu0 0.0
        %4244 = vmatpush2.msra.mxu0 0.0
        %4245 = vmatprep.subr.mxu0 0.0
        %4246 = vmatpush2.msra.mxu0 0.0
        %4247 = vmatprep.subr.mxu0 0.0
        %4248 = vmatpush2.msra.mxu0 0.0
        %4249 = vmatprep.subr.mxu0 0.0
        %4250 = vmatpush2.msra.mxu0 0.0
        %4251 = vmatprep.subr.mxu0 0.0
        %4252 = vmatpush2.msra.mxu0 0.0
        %4253 = vmatprep.subr.mxu0 0.0
        %4254 = vmatpush2.msra.mxu0 0.0
        %4255 = vmatprep.subr.mxu0 0.0
        %4256 = vmatpush2.msra.mxu0 0.0
        %4257 = vmatprep.subr.mxu0 0.0
        %4258 = vmatpush2.msra.mxu0 0.0
        %4259 = vmatprep.subr.mxu0 0.0
        %4260 = vmatpush2.msra.mxu0 0.0
        %4261 = vmatprep.subr.mxu0 0.0
        %4262 = vmatpush2.msra.mxu0 0.0
        %4263 = vmatprep.subr.mxu0 0.0
        %4264 = vmatpush2.msra.mxu0 0.0
        %4265 = vmatprep.subr.mxu0 0.0
        %4266 = vmatpush2.msra.mxu0 0.0
        %4267 = vmatprep.subr.mxu0 0.0
        %4268 = vmatpush2.msra.mxu0 0.0
        %4269 = vmatprep.mubr.f32.mxu0 0.0
        %4270 = vmatmul.mubr.f32.gmra.mxu0 %v4199
        %v4271 = vpop.f32.mrf.mxu0
        %v4272 = vadd.f32 %v4116, %v4271
        %v4273 = vpop.f32.mrf.mxu0
        %4274 = vdwg.mxu0
        %v4275 = vxor.u32 %v4272, 2147483648
        %v4276 = vmul.f32 %v4275, 1.442695
        %v4277 = vpow.pop %v4276
        %v4278 = vadd.f32 %v4277, 1.0
        %v4279 = vrcp.pop %v4278
        %v4280 = vmul.f32 1.0, %v4279
        %v4281 = vld [vmem:[%s1 + $0x200] sm:$0xff]
        %v4282 = vld [vmem:[%s1 + $0x210] sm:$0xff]
        %v4283 = vld [vmem:[%s1 + $0x220] sm:$0xff]
        %v4284 = vld [vmem:[%s1 + $0x230] sm:$0xff]
        %v4285 = vld [vmem:[%s1 + $0x240] sm:$0xff]
        %v4286 = vld [vmem:[%s1 + $0x250] sm:$0xff]
        %v4287 = vld [vmem:[%s1 + $0x260] sm:$0xff]
        %v4288 = vld [vmem:[%s1 + $0x270] sm:$0xff]
        %v4289 = vld [vmem:[%s1 + $0x280] sm:$0xff]
        %v4290 = vld [vmem:[%s1 + $0x290] sm:$0xff]
        %v4291 = vld [vmem:[%s1 + $0x2a0] sm:$0xff]
        %v4292 = vld [vmem:[%s1 + $0x2b0] sm:$0xff]
        %v4293 = vld [vmem:[%s1 + $0x2c0] ss:$0 sm:$0xff]
        %v4294 = vlaneseq
        %v4295 = vshrl.u32 %v4294, 7
        %v4296 = vsub.s32 0, %v4295
        %v4297 = vrot.slane %v4280, %v4296
        %v4298 = vmul.f32 %v4072, %v4297
        %v4299 = vmul.f32 %v4073, %v4297
        %v4300 = vmul.f32 %v4074, %v4297
        %v4301 = vmul.f32 %v4075, %v4297
        %v4302 = vmul.f32 %v4076, %v4297
        %v4303 = vmul.f32 %v4077, %v4297
        %v4304 = vmul.f32 %v4078, %v4297
        %v4305 = vmul.f32 %v4079, %v4297
        %v4307 = vsel %vm3221, %v4298, 0
        %v4310 = vsel %vm3221, %v4299, 0
        %v4313 = vsel %vm3221, %v4300, 0
        %v4316 = vsel %vm3221, %v4301, 0
        %v4319 = vsel %vm3221, %v4302, 0
        %v4322 = vsel %vm3221, %v4303, 0
        %v4325 = vsel %vm3221, %v4304, 0
        %v4328 = vsel %vm3221, %v4305, 0
        %4330 = vmatprep.subr.mxu0 0.0
        %4331 = vmatpush1.msra.mxu0 0.0
        %4332 = vmatprep.subr.mxu0 0.0
        %4333 = vmatpush1.msra.mxu0 0.0
        %4334 = vmatprep.subr.mxu0 0.0
        %4335 = vmatpush1.msra.mxu0 0.0
        %4336 = vmatprep.subr.mxu0 0.0
        %4337 = vmatpush1.msra.mxu0 0.0
        %4338 = vmatprep.subr.mxu0 0.0
        %4339 = vmatpush1.msra.mxu0 %v4292
        %4340 = vmatprep.subr.mxu0 0.0
        %4341 = vmatpush1.msra.mxu0 %v4291
        %4342 = vmatprep.subr.mxu0 0.0
        %4343 = vmatpush1.msra.mxu0 %v4290
        %4344 = vmatprep.subr.mxu0 0.0
        %4345 = vmatpush1.msra.mxu0 %v4289
        %4346 = vmatprep.subr.mxu0 0.0
        %4347 = vmatpush1.msra.mxu0 %v4288
        %4348 = vmatprep.subr.mxu0 0.0
        %4349 = vmatpush1.msra.mxu0 %v4287
        %4350 = vmatprep.subr.mxu0 0.0
        %4351 = vmatpush1.msra.mxu0 %v4286
        %4352 = vmatprep.subr.mxu0 0.0
        %4353 = vmatpush1.msra.mxu0 %v4285
        %4354 = vmatprep.subr.mxu0 0.0
        %4355 = vmatpush1.msra.mxu0 %v4284
        %4356 = vmatprep.subr.mxu0 0.0
        %4357 = vmatpush1.msra.mxu0 %v4283
        %4358 = vmatprep.subr.mxu0 0.0
        %4359 = vmatpush1.msra.mxu0 %v4282
        %4360 = vmatprep.subr.mxu0 0.0
        %4361 = vmatpush1.msra.mxu0 %v4281
        %4362 = vmatprep.subr.mxu0 0.0
        %4363 = vmatpush2.msra.mxu0 0.0
        %4364 = vmatprep.subr.mxu0 0.0
        %4365 = vmatpush2.msra.mxu0 0.0
        %4366 = vmatprep.subr.mxu0 0.0
        %4367 = vmatpush2.msra.mxu0 0.0
        %4368 = vmatprep.subr.mxu0 0.0
        %4369 = vmatpush2.msra.mxu0 0.0
        %4370 = vmatprep.subr.mxu0 0.0
        %4371 = vmatpush2.msra.mxu0 0.0
        %4372 = vmatprep.subr.mxu0 0.0
        %4373 = vmatpush2.msra.mxu0 0.0
        %4374 = vmatprep.subr.mxu0 0.0
        %4375 = vmatpush2.msra.mxu0 0.0
        %4376 = vmatprep.subr.mxu0 0.0
        %4377 = vmatpush2.msra.mxu0 0.0
        %4378 = vmatprep.subr.mxu0 0.0
        %4379 = vmatpush2.msra.mxu0 0.0
        %4380 = vmatprep.subr.mxu0 0.0
        %4381 = vmatpush2.msra.mxu0 0.0
        %4382 = vmatprep.subr.mxu0 0.0
        %4383 = vmatpush2.msra.mxu0 0.0
        %4384 = vmatprep.subr.mxu0 0.0
        %4385 = vmatpush2.msra.mxu0 0.0
        %4386 = vmatprep.subr.mxu0 0.0
        %4387 = vmatpush2.msra.mxu0 0.0
        %4388 = vmatprep.subr.mxu0 0.0
        %4389 = vmatpush2.msra.mxu0 0.0
        %4390 = vmatprep.subr.mxu0 0.0
        %4391 = vmatpush2.msra.mxu0 0.0
        %4392 = vmatprep.subr.mxu0 0.0
        %4393 = vmatpush2.msra.mxu0 0.0
        %4394 = vmatprep.mubr.f32.mxu0 0.0
        %4395 = vmatmul.mubr.f32.gmra.mxu0 %v4307
        %v4396 = vpop.f32.mrf.mxu0
        %v4397 = vadd.f32 %v4293, %v4396
        %v4398 = vpop.f32.mrf.mxu0
        %4399 = vmatprep.mubr.f32.mxu0 0.0
        %4400 = vmatmul.mubr.f32.gmra.mxu0 %v4310
        %v4401 = vpop.f32.mrf.mxu0
        %v4402 = vadd.f32 %v4293, %v4401
        %v4403 = vpop.f32.mrf.mxu0
        %4404 = vmatprep.mubr.f32.mxu0 0.0
        %4405 = vmatmul.mubr.f32.gmra.mxu0 %v4313
        %v4406 = vpop.f32.mrf.mxu0
        %v4407 = vadd.f32 %v4293, %v4406
        %v4408 = vpop.f32.mrf.mxu0
        %4409 = vmatprep.mubr.f32.mxu0 0.0
        %4410 = vmatmul.mubr.f32.gmra.mxu0 %v4316
        %v4411 = vpop.f32.mrf.mxu0
        %v4412 = vadd.f32 %v4293, %v4411
        %v4413 = vpop.f32.mrf.mxu0
        %4414 = vmatprep.mubr.f32.mxu0 0.0
        %4415 = vmatmul.mubr.f32.gmra.mxu0 %v4319
        %v4416 = vpop.f32.mrf.mxu0
        %v4417 = vadd.f32 %v4293, %v4416
        %v4418 = vpop.f32.mrf.mxu0
        %4419 = vmatprep.mubr.f32.mxu0 0.0
        %4420 = vmatmul.mubr.f32.gmra.mxu0 %v4322
        %v4421 = vpop.f32.mrf.mxu0
        %v4422 = vadd.f32 %v4293, %v4421
        %v4423 = vpop.f32.mrf.mxu0
        %4424 = vmatprep.mubr.f32.mxu0 0.0
        %4425 = vmatmul.mubr.f32.gmra.mxu0 %v4325
        %v4426 = vpop.f32.mrf.mxu0
        %v4427 = vadd.f32 %v4293, %v4426
        %v4428 = vpop.f32.mrf.mxu0
        %4429 = vmatprep.mubr.f32.mxu0 0.0
        %4430 = vmatmul.mubr.f32.gmra.mxu0 %v4328
        %v4431 = vpop.f32.mrf.mxu0
        %v4432 = vadd.f32 %v4293, %v4431
        %v4433 = vpop.f32.mrf.mxu0
        %4434 = vdwg.mxu0
        %v4435 = vld [vmem:[%s1 + $0x2d0] sm:$0xff]
        %v4436 = vld [vmem:[%s1 + $0x2d8] sm:$0xff]
        %v4437 = vld [vmem:[%s1 + $0x2e0] sm:$0xff]
        %v4438 = vld [vmem:[%s1 + $0x2e8] sm:$0xff]
        %v4439 = vld [vmem:[%s1 + $0x2f0] sm:$0xff]
        %v4440 = vld [vmem:[%s1 + $0x2f8] sm:$0xff]
        %s4441 = scalar_lea.vmem %s1, 768
        %v4442 = vld [vmem:[%s4441] ss:$8 sm:$0x3]
        %v4444 = vlaneseq
        %v4445 = vshrl.u32 %v4444, 7
        %v4446 = vsub.s32 0, %v4445
        %v4447 = vrot.slane %v4442, %v4446
        %v4448 = vlaneseq
        %v4449 = vshrl.u32 %v4448, 7
        %v4450 = vsub.s32 1, %v4449
        %v4451 = vrot.slane %v4442, %v4450
        %vm4454 = vcmask 195584
        %v4456 = vsel %vm4454, %v4397, 0
        %v4459 = vsel %vm4454, %v4402, 0
        %v4462 = vsel %vm4454, %v4407, 0
        %v4465 = vsel %vm4454, %v4412, 0
        %v4468 = vsel %vm4454, %v4417, 0
        %v4471 = vsel %vm4454, %v4422, 0
        %v4474 = vsel %vm4454, %v4427, 0
        %v4477 = vsel %vm4454, %v4432, 0
        %4479 = vmatprep.subr.mxu0 0.0
        %4480 = vmatpush1.msra.mxu0 0.0
        %4481 = vmatprep.subr.mxu0 0.0
        %4482 = vmatpush1.msra.mxu0 0.0
        %4483 = vmatprep.subr.mxu0 0.0
        %4484 = vmatpush1.msra.mxu0 0.0
        %4485 = vmatprep.subr.mxu0 0.0
        %4486 = vmatpush1.msra.mxu0 0.0
        %4487 = vmatprep.subr.mxu0 0.0
        %4488 = vmatpush1.msra.mxu0 0.0
        %4489 = vmatprep.subr.mxu0 0.0
        %4490 = vmatpush1.msra.mxu0 0.0
        %4491 = vmatprep.subr.mxu0 0.0
        %4492 = vmatpush1.msra.mxu0 0.0
        %4493 = vmatprep.subr.mxu0 0.0
        %4494 = vmatpush1.msra.mxu0 0.0
        %4495 = vmatprep.subr.mxu0 0.0
        %4496 = vmatpush1.msra.mxu0 0.0
        %4497 = vmatprep.subr.mxu0 0.0
        %4498 = vmatpush1.msra.mxu0 0.0
        %4499 = vmatprep.subr.mxu0 0.0
        %4500 = vmatpush1.msra.mxu0 0.0
        %4501 = vmatprep.subr.mxu0 0.0
        %4502 = vmatpush1.msra.mxu0 0.0
        %4503 = vmatprep.subr.mxu0 0.0
        %4504 = vmatpush1.msra.mxu0 0.0
        %4505 = vmatprep.subr.mxu0 %v4440
        %4506 = vmatpush1.msra.mxu0 %v4439
        %4507 = vmatprep.subr.mxu0 %v4438
        %4508 = vmatpush1.msra.mxu0 %v4437
        %4509 = vmatprep.subr.mxu0 %v4436
        %4510 = vmatpush1.msra.mxu0 %v4435
        %4511 = vmatprep.subr.mxu0 0.0
        %4512 = vmatpush2.msra.mxu0 0.0
        %4513 = vmatprep.subr.mxu0 0.0
        %4514 = vmatpush2.msra.mxu0 0.0
        %4515 = vmatprep.subr.mxu0 0.0
        %4516 = vmatpush2.msra.mxu0 0.0
        %4517 = vmatprep.subr.mxu0 0.0
        %4518 = vmatpush2.msra.mxu0 0.0
        %4519 = vmatprep.subr.mxu0 0.0
        %4520 = vmatpush2.msra.mxu0 0.0
        %4521 = vmatprep.subr.mxu0 0.0
        %4522 = vmatpush2.msra.mxu0 0.0
        %4523 = vmatprep.subr.mxu0 0.0
        %4524 = vmatpush2.msra.mxu0 0.0
        %4525 = vmatprep.subr.mxu0 0.0
        %4526 = vmatpush2.msra.mxu0 0.0
        %4527 = vmatprep.subr.mxu0 0.0
        %4528 = vmatpush2.msra.mxu0 0.0
        %4529 = vmatprep.subr.mxu0 0.0
        %4530 = vmatpush2.msra.mxu0 0.0
        %4531 = vmatprep.subr.mxu0 0.0
        %4532 = vmatpush2.msra.mxu0 0.0
        %4533 = vmatprep.subr.mxu0 0.0
        %4534 = vmatpush2.msra.mxu0 0.0
        %4535 = vmatprep.subr.mxu0 0.0
        %4536 = vmatpush2.msra.mxu0 0.0
        %4537 = vmatprep.subr.mxu0 0.0
        %4538 = vmatpush2.msra.mxu0 0.0
        %4539 = vmatprep.subr.mxu0 0.0
        %4540 = vmatpush2.msra.mxu0 0.0
        %4541 = vmatprep.subr.mxu0 0.0
        %4542 = vmatpush2.msra.mxu0 0.0
        %4543 = vmatprep.mubr.f32.mxu0 0.0
        %4544 = vmatmul.mubr.f32.gmra.mxu0 %v4456
        %v4545 = vpop.f32.mrf.mxu0
        %v4546 = vadd.f32 %v4447, %v4545
        %v4547 = vpop.f32.mrf.mxu0
        %v4548 = vadd.f32 %v4451, %v4547
        %4549 = vmatprep.mubr.f32.mxu0 0.0
        %4550 = vmatmul.mubr.f32.gmra.mxu0 %v4459
        %v4551 = vpop.f32.mrf.mxu0
        %v4552 = vadd.f32 %v4447, %v4551
        %v4553 = vpop.f32.mrf.mxu0
        %v4554 = vadd.f32 %v4451, %v4553
        %4555 = vmatprep.mubr.f32.mxu0 0.0
        %4556 = vmatmul.mubr.f32.gmra.mxu0 %v4462
        %v4557 = vpop.f32.mrf.mxu0
        %v4558 = vadd.f32 %v4447, %v4557
        %v4559 = vpop.f32.mrf.mxu0
        %v4560 = vadd.f32 %v4451, %v4559
        %4561 = vmatprep.mubr.f32.mxu0 0.0
        %4562 = vmatmul.mubr.f32.gmra.mxu0 %v4465
        %v4563 = vpop.f32.mrf.mxu0
        %v4564 = vadd.f32 %v4447, %v4563
        %v4565 = vpop.f32.mrf.mxu0
        %v4566 = vadd.f32 %v4451, %v4565
        %4567 = vmatprep.mubr.f32.mxu0 0.0
        %4568 = vmatmul.mubr.f32.gmra.mxu0 %v4468
        %v4569 = vpop.f32.mrf.mxu0
        %v4570 = vadd.f32 %v4447, %v4569
        %v4571 = vpop.f32.mrf.mxu0
        %v4572 = vadd.f32 %v4451, %v4571
        %4573 = vmatprep.mubr.f32.mxu0 0.0
        %4574 = vmatmul.mubr.f32.gmra.mxu0 %v4471
        %v4575 = vpop.f32.mrf.mxu0
        %v4576 = vadd.f32 %v4447, %v4575
        %v4577 = vpop.f32.mrf.mxu0
        %v4578 = vadd.f32 %v4451, %v4577
        %4579 = vmatprep.mubr.f32.mxu0 0.0
        %4580 = vmatmul.mubr.f32.gmra.mxu0 %v4474
        %v4581 = vpop.f32.mrf.mxu0
        %v4582 = vadd.f32 %v4447, %v4581
        %v4583 = vpop.f32.mrf.mxu0
        %v4584 = vadd.f32 %v4451, %v4583
        %4585 = vmatprep.mubr.f32.mxu0 0.0
        %4586 = vmatmul.mubr.f32.gmra.mxu0 %v4477
        %v4587 = vpop.f32.mrf.mxu0
        %v4588 = vadd.f32 %v4447, %v4587
        %v4589 = vpop.f32.mrf.mxu0
        %v4590 = vadd.f32 %v4451, %v4589
        %4591 = vdwg.mxu0
        %v4592 = vxor.u32 %v4546, 2147483648
        %v4593 = vxor.u32 %v4548, 2147483648
        %v4594 = vxor.u32 %v4552, 2147483648
        %v4595 = vxor.u32 %v4554, 2147483648
        %v4596 = vxor.u32 %v4558, 2147483648
        %v4597 = vxor.u32 %v4560, 2147483648
        %v4598 = vxor.u32 %v4564, 2147483648
        %v4599 = vxor.u32 %v4566, 2147483648
        %v4600 = vxor.u32 %v4570, 2147483648
        %v4601 = vxor.u32 %v4572, 2147483648
        %v4602 = vxor.u32 %v4576, 2147483648
        %v4603 = vxor.u32 %v4578, 2147483648
        %v4604 = vxor.u32 %v4582, 2147483648
        %v4605 = vxor.u32 %v4584, 2147483648
        %v4606 = vxor.u32 %v4588, 2147483648
        %v4607 = vxor.u32 %v4590, 2147483648
        %v4608 = vmul.f32 %v4592, 1.442695
        %v4609 = vpow.pop %v4608
        %v4610 = vmul.f32 %v4593, 1.442695
        %v4611 = vpow.pop %v4610
        %v4612 = vmul.f32 %v4594, 1.442695
        %v4613 = vpow.pop %v4612
        %v4614 = vmul.f32 %v4595, 1.442695
        %v4615 = vpow.pop %v4614
        %v4616 = vmul.f32 %v4596, 1.442695
        %v4617 = vpow.pop %v4616
        %v4618 = vmul.f32 %v4597, 1.442695
        %v4619 = vpow.pop %v4618
        %v4620 = vmul.f32 %v4598, 1.442695
        %v4621 = vpow.pop %v4620
        %v4622 = vmul.f32 %v4599, 1.442695
        %v4623 = vpow.pop %v4622
        %v4624 = vmul.f32 %v4600, 1.442695
        %v4625 = vpow.pop %v4624
        %v4626 = vmul.f32 %v4601, 1.442695
        %v4627 = vpow.pop %v4626
        %v4628 = vmul.f32 %v4602, 1.442695
        %v4629 = vpow.pop %v4628
        %v4630 = vmul.f32 %v4603, 1.442695
        %v4631 = vpow.pop %v4630
        %v4632 = vmul.f32 %v4604, 1.442695
        %v4633 = vpow.pop %v4632
        %v4634 = vmul.f32 %v4605, 1.442695
        %v4635 = vpow.pop %v4634
        %v4636 = vmul.f32 %v4606, 1.442695
        %v4637 = vpow.pop %v4636
        %v4638 = vmul.f32 %v4607, 1.442695
        %v4639 = vpow.pop %v4638
        %v4640 = vadd.f32 %v4609, 1.0
        %v4641 = vadd.f32 %v4611, 1.0
        %v4642 = vadd.f32 %v4613, 1.0
        %v4643 = vadd.f32 %v4615, 1.0
        %v4644 = vadd.f32 %v4617, 1.0
        %v4645 = vadd.f32 %v4619, 1.0
        %v4646 = vadd.f32 %v4621, 1.0
        %v4647 = vadd.f32 %v4623, 1.0
        %v4648 = vadd.f32 %v4625, 1.0
        %v4649 = vadd.f32 %v4627, 1.0
        %v4650 = vadd.f32 %v4629, 1.0
        %v4651 = vadd.f32 %v4631, 1.0
        %v4652 = vadd.f32 %v4633, 1.0
        %v4653 = vadd.f32 %v4635, 1.0
        %v4654 = vadd.f32 %v4637, 1.0
        %v4655 = vadd.f32 %v4639, 1.0
        %v4656 = vrcp.pop %v4640
        %v4657 = vmul.f32 1.0, %v4656
        %v4658 = vrcp.pop %v4641
        %v4659 = vmul.f32 1.0, %v4658
        %v4660 = vrcp.pop %v4642
        %v4661 = vmul.f32 1.0, %v4660
        %v4662 = vrcp.pop %v4643
        %v4663 = vmul.f32 1.0, %v4662
        %v4664 = vrcp.pop %v4644
        %v4665 = vmul.f32 1.0, %v4664
        %v4666 = vrcp.pop %v4645
        %v4667 = vmul.f32 1.0, %v4666
        %v4668 = vrcp.pop %v4646
        %v4669 = vmul.f32 1.0, %v4668
        %v4670 = vrcp.pop %v4647
        %v4671 = vmul.f32 1.0, %v4670
        %v4672 = vrcp.pop %v4648
        %v4673 = vmul.f32 1.0, %v4672
        %v4674 = vrcp.pop %v4649
        %v4675 = vmul.f32 1.0, %v4674
        %v4676 = vrcp.pop %v4650
        %v4677 = vmul.f32 1.0, %v4676
        %v4678 = vrcp.pop %v4651
        %v4679 = vmul.f32 1.0, %v4678
        %v4680 = vrcp.pop %v4652
        %v4681 = vmul.f32 1.0, %v4680
        %v4682 = vrcp.pop %v4653
        %v4683 = vmul.f32 1.0, %v4682
        %v4684 = vrcp.pop %v4654
        %v4685 = vmul.f32 1.0, %v4684
        %v4686 = vrcp.pop %v4655
        %v4687 = vmul.f32 1.0, %v4686
        %v4688 = vmul.f32 %v4546, %v4657
        %v4689 = vmul.f32 %v4548, %v4659
        %v4690 = vmul.f32 %v4552, %v4661
        %v4691 = vmul.f32 %v4554, %v4663
        %v4692 = vmul.f32 %v4558, %v4665
        %v4693 = vmul.f32 %v4560, %v4667
        %v4694 = vmul.f32 %v4564, %v4669
        %v4695 = vmul.f32 %v4566, %v4671
        %v4696 = vmul.f32 %v4570, %v4673
        %v4697 = vmul.f32 %v4572, %v4675
        %v4698 = vmul.f32 %v4576, %v4677
        %v4699 = vmul.f32 %v4578, %v4679
        %v4700 = vmul.f32 %v4582, %v4681
        %v4701 = vmul.f32 %v4584, %v4683
        %v4702 = vmul.f32 %v4588, %v4685
        %v4703 = vmul.f32 %v4590, %v4687
        %4704 = vst [vmem:[#allocation4] sm:$0xff] 0.0
        %4705 = vst.msk [vmem:[#allocation4 + $0x8] sm:$0xff] %vm2050, 0.0
        %4706 = vst [vmem:[#allocation4 + $0x10] sm:$0xf] 0.0
        %vm4707 = vcmask 125952
        %4708 = vst.msk [vmem:[#allocation4 + $0x18] sm:$0xf] %vm4707, 0.0
        %4709 = vst [vmem:[#allocation4 + $0x20] sm:$0xff] 0.0
        %4710 = vst.msk [vmem:[#allocation4 + $0x28] sm:$0xff] %vm2050, 0.0
        %4711 = vst [vmem:[#allocation4 + $0x30] sm:$0xf] 0.0
        %4712 = vst.msk [vmem:[#allocation4 + $0x38] sm:$0xf] %vm4707, 0.0
        %4713 = vst [vmem:[#allocation4 + $0x40] sm:$0xff] 0.0
        %4714 = vst.msk [vmem:[#allocation4 + $0x48] sm:$0xff] %vm2050, 0.0
        %4715 = vst [vmem:[#allocation4 + $0x50] sm:$0xf] 0.0
        %4716 = vst.msk [vmem:[#allocation4 + $0x58] sm:$0xf] %vm4707, 0.0
        %4717 = vst [vmem:[#allocation4 + $0x60] sm:$0xff] 0.0
        %4718 = vst.msk [vmem:[#allocation4 + $0x68] sm:$0xff] %vm2050, 0.0
        %4719 = vst [vmem:[#allocation4 + $0x70] sm:$0xf] 0.0
        %4720 = vst.msk [vmem:[#allocation4 + $0x78] sm:$0xf] %vm4707, 0.0
        %4721 = vst [vmem:[#allocation4 + $0x80] sm:$0xff] 0.0
        %4722 = vst.msk [vmem:[#allocation4 + $0x88] sm:$0xff] %vm2050, 0.0
        %4723 = vst [vmem:[#allocation4 + $0x90] sm:$0xf] 0.0
        %4724 = vst.msk [vmem:[#allocation4 + $0x98] sm:$0xf] %vm4707, 0.0
        %4725 = vst [vmem:[#allocation4 + $0xa0] sm:$0xff] 0.0
        %4726 = vst.msk [vmem:[#allocation4 + $0xa8] sm:$0xff] %vm2050, 0.0
        %4727 = vst [vmem:[#allocation4 + $0xb0] sm:$0xf] 0.0
        %4728 = vst.msk [vmem:[#allocation4 + $0xb8] sm:$0xf] %vm4707, 0.0
        %4729 = vst [vmem:[#allocation4 + $0xc0] sm:$0xff] 0.0
        %4730 = vst.msk [vmem:[#allocation4 + $0xc8] sm:$0xff] %vm2050, 0.0
        %4731 = vst [vmem:[#allocation4 + $0xd0] sm:$0xf] 0.0
        %4732 = vst.msk [vmem:[#allocation4 + $0xd8] sm:$0xf] %vm4707, 0.0
        %4733 = vst [vmem:[#allocation4 + $0xe0] sm:$0xff] 0.0
        %4734 = vst.msk [vmem:[#allocation4 + $0xe8] sm:$0xff] %vm2050, 0.0
        %4735 = vst [vmem:[#allocation4 + $0xf0] sm:$0xf] 0.0
        %4736 = vst.msk [vmem:[#allocation4 + $0xf8] sm:$0xf] %vm4707, 0.0
        %4737 = vst [vmem:[#allocation4 + $0x100] sm:$0xff] 0.0
        %4738 = vst.msk [vmem:[#allocation4 + $0x108] sm:$0xff] %vm2050, 0.0
        %4739 = vst [vmem:[#allocation4 + $0x110] sm:$0xf] 0.0
        %4740 = vst.msk [vmem:[#allocation4 + $0x118] sm:$0xf] %vm4707, 0.0
        %4741 = vst [vmem:[#allocation4 + $0x120] sm:$0xff] 0.0
        %4742 = vst.msk [vmem:[#allocation4 + $0x128] sm:$0xff] %vm2050, 0.0
        %4743 = vst [vmem:[#allocation4 + $0x130] sm:$0xf] 0.0
        %4744 = vst.msk [vmem:[#allocation4 + $0x138] sm:$0xf] %vm4707, 0.0
        %4745 = vst [vmem:[#allocation4 + $0x140] sm:$0xff] 0.0
        %4746 = vst.msk [vmem:[#allocation4 + $0x148] sm:$0xff] %vm2050, 0.0
        %4747 = vst [vmem:[#allocation4 + $0x150] sm:$0xf] 0.0
        %4748 = vst.msk [vmem:[#allocation4 + $0x158] sm:$0xf] %vm4707, 0.0
        %4749 = vst [vmem:[#allocation4 + $0x160] sm:$0xff] 0.0
        %4750 = vst.msk [vmem:[#allocation4 + $0x168] sm:$0xff] %vm2050, 0.0
        %4751 = vst [vmem:[#allocation4 + $0x170] sm:$0xf] 0.0
        %4752 = vst.msk [vmem:[#allocation4 + $0x178] sm:$0xf] %vm4707, 0.0
        %v4769 = vrot.slane %v4688, 6
        %v4770 = vrot.slane %v4689, 6
        %v4771 = vrot.slane %v4690, 6
        %v4772 = vrot.slane %v4691, 6
        %v4773 = vrot.slane %v4692, 6
        %v4774 = vrot.slane %v4693, 6
        %v4775 = vrot.slane %v4694, 6
        %v4776 = vrot.slane %v4695, 6
        %v4777 = vrot.slane %v4696, 6
        %v4778 = vrot.slane %v4697, 6
        %v4779 = vrot.slane %v4698, 6
        %v4780 = vrot.slane %v4699, 6
        %v4781 = vrot.slane %v4700, 6
        %v4782 = vrot.slane %v4701, 6
        %v4783 = vrot.slane %v4702, 6
        %v4784 = vrot.slane %v4703, 6
        %s4801 = scalar_lea.vmem [#allocation4], 64
        %4802 = vst [vmem:[%s4801] sm:$0xfc] %v4769
        %vm4803 = vcmask 130050
        %4804 = vst.msk [vmem:[%s4801 + $0x8] sm:$0xfc] %vm4803, %v4770
        %4805 = vst [vmem:[%s4801 + $0x10] sm:$0x3] %v4769
        %vm4806 = vcmask 123904
        %4807 = vst.msk [vmem:[%s4801 + $0x18] sm:$0x3] %vm4806, %v4770
        %4808 = vst [vmem:[%s4801 + $0x20] sm:$0xfc] %v4771
        %4809 = vst.msk [vmem:[%s4801 + $0x28] sm:$0xfc] %vm4803, %v4772
        %4810 = vst [vmem:[%s4801 + $0x30] sm:$0x3] %v4771
        %4811 = vst.msk [vmem:[%s4801 + $0x38] sm:$0x3] %vm4806, %v4772
        %4812 = vst [vmem:[%s4801 + $0x40] sm:$0xfc] %v4773
        %4813 = vst.msk [vmem:[%s4801 + $0x48] sm:$0xfc] %vm4803, %v4774
        %4814 = vst [vmem:[%s4801 + $0x50] sm:$0x3] %v4773
        %4815 = vst.msk [vmem:[%s4801 + $0x58] sm:$0x3] %vm4806, %v4774
        %4816 = vst [vmem:[%s4801 + $0x60] sm:$0xfc] %v4775
        %4817 = vst.msk [vmem:[%s4801 + $0x68] sm:$0xfc] %vm4803, %v4776
        %4818 = vst [vmem:[%s4801 + $0x70] sm:$0x3] %v4775
        %4819 = vst.msk [vmem:[%s4801 + $0x78] sm:$0x3] %vm4806, %v4776
        %4820 = vst [vmem:[%s4801 + $0x80] sm:$0xfc] %v4777
        %4821 = vst.msk [vmem:[%s4801 + $0x88] sm:$0xfc] %vm4803, %v4778
        %4822 = vst [vmem:[%s4801 + $0x90] sm:$0x3] %v4777
        %4823 = vst.msk [vmem:[%s4801 + $0x98] sm:$0x3] %vm4806, %v4778
        %4824 = vst [vmem:[%s4801 + $0xa0] sm:$0xfc] %v4779
        %4825 = vst.msk [vmem:[%s4801 + $0xa8] sm:$0xfc] %vm4803, %v4780
        %4826 = vst [vmem:[%s4801 + $0xb0] sm:$0x3] %v4779
        %4827 = vst.msk [vmem:[%s4801 + $0xb8] sm:$0x3] %vm4806, %v4780
        %4828 = vst [vmem:[%s4801 + $0xc0] sm:$0xfc] %v4781
        %4829 = vst.msk [vmem:[%s4801 + $0xc8] sm:$0xfc] %vm4803, %v4782
        %4830 = vst [vmem:[%s4801 + $0xd0] sm:$0x3] %v4781
        %4831 = vst.msk [vmem:[%s4801 + $0xd8] sm:$0x3] %vm4806, %v4782
        %4832 = vst [vmem:[%s4801 + $0xe0] sm:$0xfc] %v4783
        %4833 = vst.msk [vmem:[%s4801 + $0xe8] sm:$0xfc] %vm4803, %v4784
        %4834 = vst [vmem:[%s4801 + $0xf0] sm:$0x3] %v4783
        %4835 = vst.msk [vmem:[%s4801 + $0xf8] sm:$0x3] %vm4806, %v4784
        %v4836 = vld [vmem:[%s1 + $0x310] sm:$0xff]
        %v4837 = vld [vmem:[%s1 + $0x318] sm:$0xff]
        %v4838 = vld [vmem:[%s1 + $0x320] sm:$0xff]
        %v4839 = vld [vmem:[%s1 + $0x328] sm:$0xff]
        %v4840 = vld [vmem:[%s1 + $0x330] sm:$0xff]
        %v4841 = vld [vmem:[%s1 + $0x338] sm:$0xff]
        %v4842 = vld [vmem:[%s1 + $0x340] sm:$0x1]
        %v4843 = vld [vmem:[%s1 + $0x348] sm:$0x1]
        %s4844 = scalar_lea.vmem %s1, 848
        %v4845 = vld [vmem:[%s4844] ss:$8 sm:$0x3]
        %v4846 = vld [vmem:[#allocation4] sm:$0xff]
        %v4847 = vld [vmem:[#allocation4 + $0x8] sm:$0xff]
        %v4848 = vld [vmem:[#allocation4 + $0x20] sm:$0xff]
        %v4849 = vld [vmem:[#allocation4 + $0x28] sm:$0xff]
        %v4850 = vld [vmem:[#allocation4 + $0x40] sm:$0xff]
        %v4851 = vld [vmem:[#allocation4 + $0x48] sm:$0xff]
        %v4852 = vld [vmem:[#allocation4 + $0x60] sm:$0xff]
        %v4853 = vld [vmem:[#allocation4 + $0x68] sm:$0xff]
        %v4854 = vld [vmem:[#allocation4 + $0x80] sm:$0xff]
        %v4855 = vld [vmem:[#allocation4 + $0x88] sm:$0xff]
        %v4856 = vld [vmem:[#allocation4 + $0xa0] sm:$0xff]
        %v4857 = vld [vmem:[#allocation4 + $0xa8] sm:$0xff]
        %v4858 = vld [vmem:[#allocation4 + $0xc0] sm:$0xff]
        %v4859 = vld [vmem:[#allocation4 + $0xc8] sm:$0xff]
        %v4860 = vld [vmem:[#allocation4 + $0xe0] sm:$0xff]
        %v4861 = vld [vmem:[#allocation4 + $0xe8] sm:$0xff]
        %v4862 = vlaneseq
        %v4863 = vshrl.u32 %v4862, 7
        %v4864 = vsub.s32 0, %v4863
        %v4865 = vrot.slane %v4836, %v4864
        %v4866 = vlaneseq
        %v4867 = vshrl.u32 %v4866, 7
        %v4868 = vsub.s32 0, %v4867
        %v4869 = vrot.slane %v4837, %v4868
        %v4870 = vmul.f32 %v4846, %v4865
        %v4871 = vmul.f32 %v4847, %v4869
        %v4872 = vmul.f32 %v4848, %v4865
        %v4873 = vmul.f32 %v4849, %v4869
        %v4874 = vmul.f32 %v4850, %v4865
        %v4875 = vmul.f32 %v4851, %v4869
        %v4876 = vmul.f32 %v4852, %v4865
        %v4877 = vmul.f32 %v4853, %v4869
        %v4878 = vmul.f32 %v4854, %v4865
        %v4879 = vmul.f32 %v4855, %v4869
        %v4880 = vmul.f32 %v4856, %v4865
        %v4881 = vmul.f32 %v4857, %v4869
        %v4882 = vmul.f32 %v4858, %v4865
        %v4883 = vmul.f32 %v4859, %v4869
        %v4884 = vmul.f32 %v4860, %v4865
        %v4885 = vmul.f32 %v4861, %v4869
        %v4886 = vadd.f32 %v4870, 0.0
        %v4887 = vadd.f32 %v4871, 0.0
        %v4888 = vadd.f32 %v4872, 0.0
        %v4889 = vadd.f32 %v4873, 0.0
        %v4890 = vadd.f32 %v4874, 0.0
        %v4891 = vadd.f32 %v4875, 0.0
        %v4892 = vadd.f32 %v4876, 0.0
        %v4893 = vadd.f32 %v4877, 0.0
        %v4894 = vadd.f32 %v4878, 0.0
        %v4895 = vadd.f32 %v4879, 0.0
        %v4896 = vadd.f32 %v4880, 0.0
        %v4897 = vadd.f32 %v4881, 0.0
        %v4898 = vadd.f32 %v4882, 0.0
        %v4899 = vadd.f32 %v4883, 0.0
        %v4900 = vadd.f32 %v4884, 0.0
        %v4901 = vadd.f32 %v4885, 0.0
        %v4902 = vld [vmem:[#allocation4] sm:$0xfe]
        %v4903 = vld [vmem:[#allocation4 + $0x8] sm:$0xfe]
        %v4904 = vld [vmem:[#allocation4 + $0x10] sm:$0x1]
        %v4905 = vld [vmem:[#allocation4 + $0x18] sm:$0x1]
        %v4906 = vld [vmem:[#allocation4 + $0x20] sm:$0xfe]
        %v4907 = vld [vmem:[#allocation4 + $0x28] sm:$0xfe]
        %v4908 = vld [vmem:[#allocation4 + $0x30] sm:$0x1]
        %v4909 = vld [vmem:[#allocation4 + $0x38] sm:$0x1]
        %v4910 = vld [vmem:[#allocation4 + $0x40] sm:$0xfe]
        %v4911 = vld [vmem:[#allocation4 + $0x48] sm:$0xfe]
        %v4912 = vld [vmem:[#allocation4 + $0x50] sm:$0x1]
        %v4913 = vld [vmem:[#allocation4 + $0x58] sm:$0x1]
        %v4914 = vld [vmem:[#allocation4 + $0x60] sm:$0xfe]
        %v4915 = vld [vmem:[#allocation4 + $0x68] sm:$0xfe]
        %v4916 = vld [vmem:[#allocation4 + $0x70] sm:$0x1]
        %v4917 = vld [vmem:[#allocation4 + $0x78] sm:$0x1]
        %v4918 = vld [vmem:[#allocation4 + $0x80] sm:$0xfe]
        %v4919 = vld [vmem:[#allocation4 + $0x88] sm:$0xfe]
        %v4920 = vld [vmem:[#allocation4 + $0x90] sm:$0x1]
        %v4921 = vld [vmem:[#allocation4 + $0x98] sm:$0x1]
        %v4922 = vld [vmem:[#allocation4 + $0xa0] sm:$0xfe]
        %v4923 = vld [vmem:[#allocation4 + $0xa8] sm:$0xfe]
        %v4924 = vld [vmem:[#allocation4 + $0xb0] sm:$0x1]
        %v4925 = vld [vmem:[#allocation4 + $0xb8] sm:$0x1]
        %v4926 = vld [vmem:[#allocation4 + $0xc0] sm:$0xfe]
        %v4927 = vld [vmem:[#allocation4 + $0xc8] sm:$0xfe]
        %v4928 = vld [vmem:[#allocation4 + $0xd0] sm:$0x1]
        %v4929 = vld [vmem:[#allocation4 + $0xd8] sm:$0x1]
        %v4930 = vld [vmem:[#allocation4 + $0xe0] sm:$0xfe]
        %v4931 = vld [vmem:[#allocation4 + $0xe8] sm:$0xfe]
        %v4932 = vld [vmem:[#allocation4 + $0xf0] sm:$0x1]
        %v4933 = vld [vmem:[#allocation4 + $0xf8] sm:$0x1]
        %v4934 = vlaneseq
        %v4935 = vshrl.u32 %v4934, 7
        %v4936 = vsub.s32 1, %v4935
        %v4937 = vrot.slane %v4836, %v4936
        %v4938 = vlaneseq
        %v4939 = vshrl.u32 %v4938, 7
        %v4940 = vsub.s32 1, %v4939
        %v4941 = vrot.slane %v4837, %v4940
        %v4942 = vmul.f32 %v4902, %v4937
        %v4943 = vmul.f32 %v4903, %v4941
        %v4944 = vmul.f32 %v4904, %v4937
        %v4945 = vmul.f32 %v4905, %v4941
        %v4946 = vmul.f32 %v4906, %v4937
        %v4947 = vmul.f32 %v4907, %v4941
        %v4948 = vmul.f32 %v4908, %v4937
        %v4949 = vmul.f32 %v4909, %v4941
        %v4950 = vmul.f32 %v4910, %v4937
        %v4951 = vmul.f32 %v4911, %v4941
        %v4952 = vmul.f32 %v4912, %v4937
        %v4953 = vmul.f32 %v4913, %v4941
        %v4954 = vmul.f32 %v4914, %v4937
        %v4955 = vmul.f32 %v4915, %v4941
        %v4956 = vmul.f32 %v4916, %v4937
        %v4957 = vmul.f32 %v4917, %v4941
        %v4958 = vmul.f32 %v4918, %v4937
        %v4959 = vmul.f32 %v4919, %v4941
        %v4960 = vmul.f32 %v4920, %v4937
        %v4961 = vmul.f32 %v4921, %v4941
        %v4962 = vmul.f32 %v4922, %v4937
        %v4963 = vmul.f32 %v4923, %v4941
        %v4964 = vmul.f32 %v4924, %v4937
        %v4965 = vmul.f32 %v4925, %v4941
        %v4966 = vmul.f32 %v4926, %v4937
        %v4967 = vmul.f32 %v4927, %v4941
        %v4968 = vmul.f32 %v4928, %v4937
        %v4969 = vmul.f32 %v4929, %v4941
        %v4970 = vmul.f32 %v4930, %v4937
        %v4971 = vmul.f32 %v4931, %v4941
        %v4972 = vmul.f32 %v4932, %v4937
        %v4973 = vmul.f32 %v4933, %v4941
        %vm5006 = vcmask 1046528
        %v5007 = vrot.slane %v4942, 1
        %v5008 = vrot.slane %v4944, 1
        %v5009 = vsel %vm5006, %v5007, %v5008
        %v5010 = vrot.slane %v4943, 1
        %v5011 = vrot.slane %v4945, 1
        %v5012 = vsel %vm5006, %v5010, %v5011
        %v5013 = vrot.slane %v4946, 1
        %v5014 = vrot.slane %v4948, 1
        %v5015 = vsel %vm5006, %v5013, %v5014
        %v5016 = vrot.slane %v4947, 1
        %v5017 = vrot.slane %v4949, 1
        %v5018 = vsel %vm5006, %v5016, %v5017
        %v5019 = vrot.slane %v4950, 1
        %v5020 = vrot.slane %v4952, 1
        %v5021 = vsel %vm5006, %v5019, %v5020
        %v5022 = vrot.slane %v4951, 1
        %v5023 = vrot.slane %v4953, 1
        %v5024 = vsel %vm5006, %v5022, %v5023
        %v5025 = vrot.slane %v4954, 1
        %v5026 = vrot.slane %v4956, 1
        %v5027 = vsel %vm5006, %v5025, %v5026
        %v5028 = vrot.slane %v4955, 1
        %v5029 = vrot.slane %v4957, 1
        %v5030 = vsel %vm5006, %v5028, %v5029
        %v5031 = vrot.slane %v4958, 1
        %v5032 = vrot.slane %v4960, 1
        %v5033 = vsel %vm5006, %v5031, %v5032
        %v5034 = vrot.slane %v4959, 1
        %v5035 = vrot.slane %v4961, 1
        %v5036 = vsel %vm5006, %v5034, %v5035
        %v5037 = vrot.slane %v4962, 1
        %v5038 = vrot.slane %v4964, 1
        %v5039 = vsel %vm5006, %v5037, %v5038
        %v5040 = vrot.slane %v4963, 1
        %v5041 = vrot.slane %v4965, 1
        %v5042 = vsel %vm5006, %v5040, %v5041
        %v5043 = vrot.slane %v4966, 1
        %v5044 = vrot.slane %v4968, 1
        %v5045 = vsel %vm5006, %v5043, %v5044
        %v5046 = vrot.slane %v4967, 1
        %v5047 = vrot.slane %v4969, 1
        %v5048 = vsel %vm5006, %v5046, %v5047
        %v5049 = vrot.slane %v4970, 1
        %v5050 = vrot.slane %v4972, 1
        %v5051 = vsel %vm5006, %v5049, %v5050
        %v5052 = vrot.slane %v4971, 1
        %v5053 = vrot.slane %v4973, 1
        %v5054 = vsel %vm5006, %v5052, %v5053
        %v5071 = vadd.f32 %v4886, %v5009
        %v5072 = vadd.f32 %v4887, %v5012
        %v5073 = vadd.f32 %v4888, %v5015
        %v5074 = vadd.f32 %v4889, %v5018
        %v5075 = vadd.f32 %v4890, %v5021
        %v5076 = vadd.f32 %v4891, %v5024
        %v5077 = vadd.f32 %v4892, %v5027
        %v5078 = vadd.f32 %v4893, %v5030
        %v5079 = vadd.f32 %v4894, %v5033
        %v5080 = vadd.f32 %v4895, %v5036
        %v5081 = vadd.f32 %v4896, %v5039
        %v5082 = vadd.f32 %v4897, %v5042
        %v5083 = vadd.f32 %v4898, %v5045
        %v5084 = vadd.f32 %v4899, %v5048
        %v5085 = vadd.f32 %v4900, %v5051
        %v5086 = vadd.f32 %v4901, %v5054
        %v5087 = vld [vmem:[#allocation4] sm:$0xfc]
        %v5088 = vld [vmem:[#allocation4 + $0x8] sm:$0xfc]
        %v5089 = vld [vmem:[#allocation4 + $0x10] sm:$0x3]
        %v5090 = vld [vmem:[#allocation4 + $0x18] sm:$0x3]
        %v5091 = vld [vmem:[#allocation4 + $0x20] sm:$0xfc]
        %v5092 = vld [vmem:[#allocation4 + $0x28] sm:$0xfc]
        %v5093 = vld [vmem:[#allocation4 + $0x30] sm:$0x3]
        %v5094 = vld [vmem:[#allocation4 + $0x38] sm:$0x3]
        %v5095 = vld [vmem:[#allocation4 + $0x40] sm:$0xfc]
        %v5096 = vld [vmem:[#allocation4 + $0x48] sm:$0xfc]
        %v5097 = vld [vmem:[#allocation4 + $0x50] sm:$0x3]
        %v5098 = vld [vmem:[#allocation4 + $0x58] sm:$0x3]
        %v5099 = vld [vmem:[#allocation4 + $0x60] sm:$0xfc]
        %v5100 = vld [vmem:[#allocation4 + $0x68] sm:$0xfc]
        %v5101 = vld [vmem:[#allocation4 + $0x70] sm:$0x3]
        %v5102 = vld [vmem:[#allocation4 + $0x78] sm:$0x3]
        %v5103 = vld [vmem:[#allocation4 + $0x80] sm:$0xfc]
        %v5104 = vld [vmem:[#allocation4 + $0x88] sm:$0xfc]
        %v5105 = vld [vmem:[#allocation4 + $0x90] sm:$0x3]
        %v5106 = vld [vmem:[#allocation4 + $0x98] sm:$0x3]
        %v5107 = vld [vmem:[#allocation4 + $0xa0] sm:$0xfc]
        %v5108 = vld [vmem:[#allocation4 + $0xa8] sm:$0xfc]
        %v5109 = vld [vmem:[#allocation4 + $0xb0] sm:$0x3]
        %v5110 = vld [vmem:[#allocation4 + $0xb8] sm:$0x3]
        %v5111 = vld [vmem:[#allocation4 + $0xc0] sm:$0xfc]
        %v5112 = vld [vmem:[#allocation4 + $0xc8] sm:$0xfc]
        %v5113 = vld [vmem:[#allocation4 + $0xd0] sm:$0x3]
        %v5114 = vld [vmem:[#allocation4 + $0xd8] sm:$0x3]
        %v5115 = vld [vmem:[#allocation4 + $0xe0] sm:$0xfc]
        %v5116 = vld [vmem:[#allocation4 + $0xe8] sm:$0xfc]
        %v5117 = vld [vmem:[#allocation4 + $0xf0] sm:$0x3]
        %v5118 = vld [vmem:[#allocation4 + $0xf8] sm:$0x3]
        %v5119 = vlaneseq
        %v5120 = vshrl.u32 %v5119, 7
        %v5121 = vsub.s32 2, %v5120
        %v5122 = vrot.slane %v4836, %v5121
        %v5123 = vlaneseq
        %v5124 = vshrl.u32 %v5123, 7
        %v5125 = vsub.s32 2, %v5124
        %v5126 = vrot.slane %v4837, %v5125
        %v5127 = vmul.f32 %v5087, %v5122
        %v5128 = vmul.f32 %v5088, %v5126
        %v5129 = vmul.f32 %v5089, %v5122
        %v5130 = vmul.f32 %v5090, %v5126
        %v5131 = vmul.f32 %v5091, %v5122
        %v5132 = vmul.f32 %v5092, %v5126
        %v5133 = vmul.f32 %v5093, %v5122
        %v5134 = vmul.f32 %v5094, %v5126
        %v5135 = vmul.f32 %v5095, %v5122
        %v5136 = vmul.f32 %v5096, %v5126
        %v5137 = vmul.f32 %v5097, %v5122
        %v5138 = vmul.f32 %v5098, %v5126
        %v5139 = vmul.f32 %v5099, %v5122
        %v5140 = vmul.f32 %v5100, %v5126
        %v5141 = vmul.f32 %v5101, %v5122
        %v5142 = vmul.f32 %v5102, %v5126
        %v5143 = vmul.f32 %v5103, %v5122
        %v5144 = vmul.f32 %v5104, %v5126
        %v5145 = vmul.f32 %v5105, %v5122
        %v5146 = vmul.f32 %v5106, %v5126
        %v5147 = vmul.f32 %v5107, %v5122
        %v5148 = vmul.f32 %v5108, %v5126
        %v5149 = vmul.f32 %v5109, %v5122
        %v5150 = vmul.f32 %v5110, %v5126
        %v5151 = vmul.f32 %v5111, %v5122
        %v5152 = vmul.f32 %v5112, %v5126
        %v5153 = vmul.f32 %v5113, %v5122
        %v5154 = vmul.f32 %v5114, %v5126
        %v5155 = vmul.f32 %v5115, %v5122
        %v5156 = vmul.f32 %v5116, %v5126
        %v5157 = vmul.f32 %v5117, %v5122
        %v5158 = vmul.f32 %v5118, %v5126
        %vm5191 = vcmask 1045504
        %v5192 = vrot.slane %v5127, 2
        %v5193 = vrot.slane %v5129, 2
        %v5194 = vsel %vm5191, %v5192, %v5193
        %v5195 = vrot.slane %v5128, 2
        %v5196 = vrot.slane %v5130, 2
        %v5197 = vsel %vm5191, %v5195, %v5196
        %v5198 = vrot.slane %v5131, 2
        %v5199 = vrot.slane %v5133, 2
        %v5200 = vsel %vm5191, %v5198, %v5199
        %v5201 = vrot.slane %v5132, 2
        %v5202 = vrot.slane %v5134, 2
        %v5203 = vsel %vm5191, %v5201, %v5202
        %v5204 = vrot.slane %v5135, 2
        %v5205 = vrot.slane %v5137, 2
        %v5206 = vsel %vm5191, %v5204, %v5205
        %v5207 = vrot.slane %v5136, 2
        %v5208 = vrot.slane %v5138, 2
        %v5209 = vsel %vm5191, %v5207, %v5208
        %v5210 = vrot.slane %v5139, 2
        %v5211 = vrot.slane %v5141, 2
        %v5212 = vsel %vm5191, %v5210, %v5211
        %v5213 = vrot.slane %v5140, 2
        %v5214 = vrot.slane %v5142, 2
        %v5215 = vsel %vm5191, %v5213, %v5214
        %v5216 = vrot.slane %v5143, 2
        %v5217 = vrot.slane %v5145, 2
        %v5218 = vsel %vm5191, %v5216, %v5217
        %v5219 = vrot.slane %v5144, 2
        %v5220 = vrot.slane %v5146, 2
        %v5221 = vsel %vm5191, %v5219, %v5220
        %v5222 = vrot.slane %v5147, 2
        %v5223 = vrot.slane %v5149, 2
        %v5224 = vsel %vm5191, %v5222, %v5223
        %v5225 = vrot.slane %v5148, 2
        %v5226 = vrot.slane %v5150, 2
        %v5227 = vsel %vm5191, %v5225, %v5226
        %v5228 = vrot.slane %v5151, 2
        %v5229 = vrot.slane %v5153, 2
        %v5230 = vsel %vm5191, %v5228, %v5229
        %v5231 = vrot.slane %v5152, 2
        %v5232 = vrot.slane %v5154, 2
        %v5233 = vsel %vm5191, %v5231, %v5232
        %v5234 = vrot.slane %v5155, 2
        %v5235 = vrot.slane %v5157, 2
        %v5236 = vsel %vm5191, %v5234, %v5235
        %v5237 = vrot.slane %v5156, 2
        %v5238 = vrot.slane %v5158, 2
        %v5239 = vsel %vm5191, %v5237, %v5238
        %v5256 = vadd.f32 %v5071, %v5194
        %v5257 = vadd.f32 %v5072, %v5197
        %v5258 = vadd.f32 %v5073, %v5200
        %v5259 = vadd.f32 %v5074, %v5203
        %v5260 = vadd.f32 %v5075, %v5206
        %v5261 = vadd.f32 %v5076, %v5209
        %v5262 = vadd.f32 %v5077, %v5212
        %v5263 = vadd.f32 %v5078, %v5215
        %v5264 = vadd.f32 %v5079, %v5218
        %v5265 = vadd.f32 %v5080, %v5221
        %v5266 = vadd.f32 %v5081, %v5224
        %v5267 = vadd.f32 %v5082, %v5227
        %v5268 = vadd.f32 %v5083, %v5230
        %v5269 = vadd.f32 %v5084, %v5233
        %v5270 = vadd.f32 %v5085, %v5236
        %v5271 = vadd.f32 %v5086, %v5239
        %v5272 = vld [vmem:[#allocation4] sm:$0xf8]
        %v5273 = vld [vmem:[#allocation4 + $0x8] sm:$0xf8]
        %v5274 = vld [vmem:[#allocation4 + $0x10] sm:$0x7]
        %v5275 = vld [vmem:[#allocation4 + $0x18] sm:$0x7]
        %v5276 = vld [vmem:[#allocation4 + $0x20] sm:$0xf8]
        %v5277 = vld [vmem:[#allocation4 + $0x28] sm:$0xf8]
        %v5278 = vld [vmem:[#allocation4 + $0x30] sm:$0x7]
        %v5279 = vld [vmem:[#allocation4 + $0x38] sm:$0x7]
        %v5280 = vld [vmem:[#allocation4 + $0x40] sm:$0xf8]
        %v5281 = vld [vmem:[#allocation4 + $0x48] sm:$0xf8]
        %v5282 = vld [vmem:[#allocation4 + $0x50] sm:$0x7]
        %v5283 = vld [vmem:[#allocation4 + $0x58] sm:$0x7]
        %v5284 = vld [vmem:[#allocation4 + $0x60] sm:$0xf8]
        %v5285 = vld [vmem:[#allocation4 + $0x68] sm:$0xf8]
        %v5286 = vld [vmem:[#allocation4 + $0x70] sm:$0x7]
        %v5287 = vld [vmem:[#allocation4 + $0x78] sm:$0x7]
        %v5288 = vld [vmem:[#allocation4 + $0x80] sm:$0xf8]
        %v5289 = vld [vmem:[#allocation4 + $0x88] sm:$0xf8]
        %v5290 = vld [vmem:[#allocation4 + $0x90] sm:$0x7]
        %v5291 = vld [vmem:[#allocation4 + $0x98] sm:$0x7]
        %v5292 = vld [vmem:[#allocation4 + $0xa0] sm:$0xf8]
        %v5293 = vld [vmem:[#allocation4 + $0xa8] sm:$0xf8]
        %v5294 = vld [vmem:[#allocation4 + $0xb0] sm:$0x7]
        %v5295 = vld [vmem:[#allocation4 + $0xb8] sm:$0x7]
        %v5296 = vld [vmem:[#allocation4 + $0xc0] sm:$0xf8]
        %v5297 = vld [vmem:[#allocation4 + $0xc8] sm:$0xf8]
        %v5298 = vld [vmem:[#allocation4 + $0xd0] sm:$0x7]
        %v5299 = vld [vmem:[#allocation4 + $0xd8] sm:$0x7]
        %v5300 = vld [vmem:[#allocation4 + $0xe0] sm:$0xf8]
        %v5301 = vld [vmem:[#allocation4 + $0xe8] sm:$0xf8]
        %v5302 = vld [vmem:[#allocation4 + $0xf0] sm:$0x7]
        %v5303 = vld [vmem:[#allocation4 + $0xf8] sm:$0x7]
        %v5304 = vlaneseq
        %v5305 = vshrl.u32 %v5304, 7
        %v5306 = vsub.s32 3, %v5305
        %v5307 = vrot.slane %v4836, %v5306
        %v5308 = vlaneseq
        %v5309 = vshrl.u32 %v5308, 7
        %v5310 = vsub.s32 3, %v5309
        %v5311 = vrot.slane %v4837, %v5310
        %v5312 = vmul.f32 %v5272, %v5307
        %v5313 = vmul.f32 %v5273, %v5311
        %v5314 = vmul.f32 %v5274, %v5307
        %v5315 = vmul.f32 %v5275, %v5311
        %v5316 = vmul.f32 %v5276, %v5307
        %v5317 = vmul.f32 %v5277, %v5311
        %v5318 = vmul.f32 %v5278, %v5307
        %v5319 = vmul.f32 %v5279, %v5311
        %v5320 = vmul.f32 %v5280, %v5307
        %v5321 = vmul.f32 %v5281, %v5311
        %v5322 = vmul.f32 %v5282, %v5307
        %v5323 = vmul.f32 %v5283, %v5311
        %v5324 = vmul.f32 %v5284, %v5307
        %v5325 = vmul.f32 %v5285, %v5311
        %v5326 = vmul.f32 %v5286, %v5307
        %v5327 = vmul.f32 %v5287, %v5311
        %v5328 = vmul.f32 %v5288, %v5307
        %v5329 = vmul.f32 %v5289, %v5311
        %v5330 = vmul.f32 %v5290, %v5307
        %v5331 = vmul.f32 %v5291, %v5311
        %v5332 = vmul.f32 %v5292, %v5307
        %v5333 = vmul.f32 %v5293, %v5311
        %v5334 = vmul.f32 %v5294, %v5307
        %v5335 = vmul.f32 %v5295, %v5311
        %v5336 = vmul.f32 %v5296, %v5307
        %v5337 = vmul.f32 %v5297, %v5311
        %v5338 = vmul.f32 %v5298, %v5307
        %v5339 = vmul.f32 %v5299, %v5311
        %v5340 = vmul.f32 %v5300, %v5307
        %v5341 = vmul.f32 %v5301, %v5311
        %v5342 = vmul.f32 %v5302, %v5307
        %v5343 = vmul.f32 %v5303, %v5311
        %vm5376 = vcmask 1044480
        %v5377 = vrot.slane %v5312, 3
        %v5378 = vrot.slane %v5314, 3
        %v5379 = vsel %vm5376, %v5377, %v5378
        %v5380 = vrot.slane %v5313, 3
        %v5381 = vrot.slane %v5315, 3
        %v5382 = vsel %vm5376, %v5380, %v5381
        %v5383 = vrot.slane %v5316, 3
        %v5384 = vrot.slane %v5318, 3
        %v5385 = vsel %vm5376, %v5383, %v5384
        %v5386 = vrot.slane %v5317, 3
        %v5387 = vrot.slane %v5319, 3
        %v5388 = vsel %vm5376, %v5386, %v5387
        %v5389 = vrot.slane %v5320, 3
        %v5390 = vrot.slane %v5322, 3
        %v5391 = vsel %vm5376, %v5389, %v5390
        %v5392 = vrot.slane %v5321, 3
        %v5393 = vrot.slane %v5323, 3
        %v5394 = vsel %vm5376, %v5392, %v5393
        %v5395 = vrot.slane %v5324, 3
        %v5396 = vrot.slane %v5326, 3
        %v5397 = vsel %vm5376, %v5395, %v5396
        %v5398 = vrot.slane %v5325, 3
        %v5399 = vrot.slane %v5327, 3
        %v5400 = vsel %vm5376, %v5398, %v5399
        %v5401 = vrot.slane %v5328, 3
        %v5402 = vrot.slane %v5330, 3
        %v5403 = vsel %vm5376, %v5401, %v5402
        %v5404 = vrot.slane %v5329, 3
        %v5405 = vrot.slane %v5331, 3
        %v5406 = vsel %vm5376, %v5404, %v5405
        %v5407 = vrot.slane %v5332, 3
        %v5408 = vrot.slane %v5334, 3
        %v5409 = vsel %vm5376, %v5407, %v5408
        %v5410 = vrot.slane %v5333, 3
        %v5411 = vrot.slane %v5335, 3
        %v5412 = vsel %vm5376, %v5410, %v5411
        %v5413 = vrot.slane %v5336, 3
        %v5414 = vrot.slane %v5338, 3
        %v5415 = vsel %vm5376, %v5413, %v5414
        %v5416 = vrot.slane %v5337, 3
        %v5417 = vrot.slane %v5339, 3
        %v5418 = vsel %vm5376, %v5416, %v5417
        %v5419 = vrot.slane %v5340, 3
        %v5420 = vrot.slane %v5342, 3
        %v5421 = vsel %vm5376, %v5419, %v5420
        %v5422 = vrot.slane %v5341, 3
        %v5423 = vrot.slane %v5343, 3
        %v5424 = vsel %vm5376, %v5422, %v5423
        %v5441 = vadd.f32 %v5256, %v5379
        %v5442 = vadd.f32 %v5257, %v5382
        %v5443 = vadd.f32 %v5258, %v5385
        %v5444 = vadd.f32 %v5259, %v5388
        %v5445 = vadd.f32 %v5260, %v5391
        %v5446 = vadd.f32 %v5261, %v5394
        %v5447 = vadd.f32 %v5262, %v5397
        %v5448 = vadd.f32 %v5263, %v5400
        %v5449 = vadd.f32 %v5264, %v5403
        %v5450 = vadd.f32 %v5265, %v5406
        %v5451 = vadd.f32 %v5266, %v5409
        %v5452 = vadd.f32 %v5267, %v5412
        %v5453 = vadd.f32 %v5268, %v5415
        %v5454 = vadd.f32 %v5269, %v5418
        %v5455 = vadd.f32 %v5270, %v5421
        %v5456 = vadd.f32 %v5271, %v5424
        %v5457 = vld [vmem:[#allocation4] sm:$0xf0]
        %v5458 = vld [vmem:[#allocation4 + $0x8] sm:$0xf0]
        %v5459 = vld [vmem:[#allocation4 + $0x10] sm:$0xf]
        %v5460 = vld [vmem:[#allocation4 + $0x18] sm:$0xf]
        %v5461 = vld [vmem:[#allocation4 + $0x20] sm:$0xf0]
        %v5462 = vld [vmem:[#allocation4 + $0x28] sm:$0xf0]
        %v5463 = vld [vmem:[#allocation4 + $0x30] sm:$0xf]
        %v5464 = vld [vmem:[#allocation4 + $0x38] sm:$0xf]
        %v5465 = vld [vmem:[#allocation4 + $0x40] sm:$0xf0]
        %v5466 = vld [vmem:[#allocation4 + $0x48] sm:$0xf0]
        %v5467 = vld [vmem:[#allocation4 + $0x50] sm:$0xf]
        %v5468 = vld [vmem:[#allocation4 + $0x58] sm:$0xf]
        %v5469 = vld [vmem:[#allocation4 + $0x60] sm:$0xf0]
        %v5470 = vld [vmem:[#allocation4 + $0x68] sm:$0xf0]
        %v5471 = vld [vmem:[#allocation4 + $0x70] sm:$0xf]
        %v5472 = vld [vmem:[#allocation4 + $0x78] sm:$0xf]
        %v5473 = vld [vmem:[#allocation4 + $0x80] sm:$0xf0]
        %v5474 = vld [vmem:[#allocation4 + $0x88] sm:$0xf0]
        %v5475 = vld [vmem:[#allocation4 + $0x90] sm:$0xf]
        %v5476 = vld [vmem:[#allocation4 + $0x98] sm:$0xf]
        %v5477 = vld [vmem:[#allocation4 + $0xa0] sm:$0xf0]
        %v5478 = vld [vmem:[#allocation4 + $0xa8] sm:$0xf0]
        %v5479 = vld [vmem:[#allocation4 + $0xb0] sm:$0xf]
        %v5480 = vld [vmem:[#allocation4 + $0xb8] sm:$0xf]
        %v5481 = vld [vmem:[#allocation4 + $0xc0] sm:$0xf0]
        %v5482 = vld [vmem:[#allocation4 + $0xc8] sm:$0xf0]
        %v5483 = vld [vmem:[#allocation4 + $0xd0] sm:$0xf]
        %v5484 = vld [vmem:[#allocation4 + $0xd8] sm:$0xf]
        %v5485 = vld [vmem:[#allocation4 + $0xe0] sm:$0xf0]
        %v5486 = vld [vmem:[#allocation4 + $0xe8] sm:$0xf0]
        %v5487 = vld [vmem:[#allocation4 + $0xf0] sm:$0xf]
        %v5488 = vld [vmem:[#allocation4 + $0xf8] sm:$0xf]
        %v5489 = vlaneseq
        %v5490 = vshrl.u32 %v5489, 7
        %v5491 = vsub.s32 4, %v5490
        %v5492 = vrot.slane %v4836, %v5491
        %v5493 = vlaneseq
        %v5494 = vshrl.u32 %v5493, 7
        %v5495 = vsub.s32 4, %v5494
        %v5496 = vrot.slane %v4837, %v5495
        %v5497 = vmul.f32 %v5457, %v5492
        %v5498 = vmul.f32 %v5458, %v5496
        %v5499 = vmul.f32 %v5459, %v5492
        %v5500 = vmul.f32 %v5460, %v5496
        %v5501 = vmul.f32 %v5461, %v5492
        %v5502 = vmul.f32 %v5462, %v5496
        %v5503 = vmul.f32 %v5463, %v5492
        %v5504 = vmul.f32 %v5464, %v5496
        %v5505 = vmul.f32 %v5465, %v5492
        %v5506 = vmul.f32 %v5466, %v5496
        %v5507 = vmul.f32 %v5467, %v5492
        %v5508 = vmul.f32 %v5468, %v5496
        %v5509 = vmul.f32 %v5469, %v5492
        %v5510 = vmul.f32 %v5470, %v5496
        %v5511 = vmul.f32 %v5471, %v5492
        %v5512 = vmul.f32 %v5472, %v5496
        %v5513 = vmul.f32 %v5473, %v5492
        %v5514 = vmul.f32 %v5474, %v5496
        %v5515 = vmul.f32 %v5475, %v5492
        %v5516 = vmul.f32 %v5476, %v5496
        %v5517 = vmul.f32 %v5477, %v5492
        %v5518 = vmul.f32 %v5478, %v5496
        %v5519 = vmul.f32 %v5479, %v5492
        %v5520 = vmul.f32 %v5480, %v5496
        %v5521 = vmul.f32 %v5481, %v5492
        %v5522 = vmul.f32 %v5482, %v5496
        %v5523 = vmul.f32 %v5483, %v5492
        %v5524 = vmul.f32 %v5484, %v5496
        %v5525 = vmul.f32 %v5485, %v5492
        %v5526 = vmul.f32 %v5486, %v5496
        %v5527 = vmul.f32 %v5487, %v5492
        %v5528 = vmul.f32 %v5488, %v5496
        %v5561 = vrot.slane %v5497, 4
        %v5562 = vrot.slane %v5499, 4
        %v5563 = vsel %vm4201, %v5561, %v5562
        %v5564 = vrot.slane %v5498, 4
        %v5565 = vrot.slane %v5500, 4
        %v5566 = vsel %vm4201, %v5564, %v5565
        %v5567 = vrot.slane %v5501, 4
        %v5568 = vrot.slane %v5503, 4
        %v5569 = vsel %vm4201, %v5567, %v5568
        %v5570 = vrot.slane %v5502, 4
        %v5571 = vrot.slane %v5504, 4
        %v5572 = vsel %vm4201, %v5570, %v5571
        %v5573 = vrot.slane %v5505, 4
        %v5574 = vrot.slane %v5507, 4
        %v5575 = vsel %vm4201, %v5573, %v5574
        %v5576 = vrot.slane %v5506, 4
        %v5577 = vrot.slane %v5508, 4
        %v5578 = vsel %vm4201, %v5576, %v5577
        %v5579 = vrot.slane %v5509, 4
        %v5580 = vrot.slane %v5511, 4
        %v5581 = vsel %vm4201, %v5579, %v5580
        %v5582 = vrot.slane %v5510, 4
        %v5583 = vrot.slane %v5512, 4
        %v5584 = vsel %vm4201, %v5582, %v5583
        %v5585 = vrot.slane %v5513, 4
        %v5586 = vrot.slane %v5515, 4
        %v5587 = vsel %vm4201, %v5585, %v5586
        %v5588 = vrot.slane %v5514, 4
        %v5589 = vrot.slane %v5516, 4
        %v5590 = vsel %vm4201, %v5588, %v5589
        %v5591 = vrot.slane %v5517, 4
        %v5592 = vrot.slane %v5519, 4
        %v5593 = vsel %vm4201, %v5591, %v5592
        %v5594 = vrot.slane %v5518, 4
        %v5595 = vrot.slane %v5520, 4
        %v5596 = vsel %vm4201, %v5594, %v5595
        %v5597 = vrot.slane %v5521, 4
        %v5598 = vrot.slane %v5523, 4
        %v5599 = vsel %vm4201, %v5597, %v5598
        %v5600 = vrot.slane %v5522, 4
        %v5601 = vrot.slane %v5524, 4
        %v5602 = vsel %vm4201, %v5600, %v5601
        %v5603 = vrot.slane %v5525, 4
        %v5604 = vrot.slane %v5527, 4
        %v5605 = vsel %vm4201, %v5603, %v5604
        %v5606 = vrot.slane %v5526, 4
        %v5607 = vrot.slane %v5528, 4
        %v5608 = vsel %vm4201, %v5606, %v5607
        %v5625 = vadd.f32 %v5441, %v5563
        %v5626 = vadd.f32 %v5442, %v5566
        %v5627 = vadd.f32 %v5443, %v5569
        %v5628 = vadd.f32 %v5444, %v5572
        %v5629 = vadd.f32 %v5445, %v5575
        %v5630 = vadd.f32 %v5446, %v5578
        %v5631 = vadd.f32 %v5447, %v5581
        %v5632 = vadd.f32 %v5448, %v5584
        %v5633 = vadd.f32 %v5449, %v5587
        %v5634 = vadd.f32 %v5450, %v5590
        %v5635 = vadd.f32 %v5451, %v5593
        %v5636 = vadd.f32 %v5452, %v5596
        %v5637 = vadd.f32 %v5453, %v5599
        %v5638 = vadd.f32 %v5454, %v5602
        %v5639 = vadd.f32 %v5455, %v5605
        %v5640 = vadd.f32 %v5456, %v5608
        %s5641 = scalar_lea.vmem [#allocation4], 32
        %v5642 = vld [vmem:[%s5641] sm:$0xff]
        %v5643 = vld [vmem:[%s5641 + $0x8] sm:$0xff]
        %v5644 = vld [vmem:[%s5641 + $0x20] sm:$0xff]
        %v5645 = vld [vmem:[%s5641 + $0x28] sm:$0xff]
        %v5646 = vld [vmem:[%s5641 + $0x40] sm:$0xff]
        %v5647 = vld [vmem:[%s5641 + $0x48] sm:$0xff]
        %v5648 = vld [vmem:[%s5641 + $0x60] sm:$0xff]
        %v5649 = vld [vmem:[%s5641 + $0x68] sm:$0xff]
        %v5650 = vld [vmem:[%s5641 + $0x80] sm:$0xff]
        %v5651 = vld [vmem:[%s5641 + $0x88] sm:$0xff]
        %v5652 = vld [vmem:[%s5641 + $0xa0] sm:$0xff]
        %v5653 = vld [vmem:[%s5641 + $0xa8] sm:$0xff]
        %v5654 = vld [vmem:[%s5641 + $0xc0] sm:$0xff]
        %v5655 = vld [vmem:[%s5641 + $0xc8] sm:$0xff]
        %v5656 = vld [vmem:[%s5641 + $0xe0] sm:$0xff]
        %v5657 = vld [vmem:[%s5641 + $0xe8] sm:$0xff]
        %v5658 = vlaneseq
        %v5659 = vshrl.u32 %v5658, 7
        %v5660 = vsub.s32 5, %v5659
        %v5661 = vrot.slane %v4836, %v5660
        %v5662 = vlaneseq
        %v5663 = vshrl.u32 %v5662, 7
        %v5664 = vsub.s32 5, %v5663
        %v5665 = vrot.slane %v4837, %v5664
        %v5666 = vmul.f32 %v5642, %v5661
        %v5667 = vmul.f32 %v5643, %v5665
        %v5668 = vmul.f32 %v5644, %v5661
        %v5669 = vmul.f32 %v5645, %v5665
        %v5670 = vmul.f32 %v5646, %v5661
        %v5671 = vmul.f32 %v5647, %v5665
        %v5672 = vmul.f32 %v5648, %v5661
        %v5673 = vmul.f32 %v5649, %v5665
        %v5674 = vmul.f32 %v5650, %v5661
        %v5675 = vmul.f32 %v5651, %v5665
        %v5676 = vmul.f32 %v5652, %v5661
        %v5677 = vmul.f32 %v5653, %v5665
        %v5678 = vmul.f32 %v5654, %v5661
        %v5679 = vmul.f32 %v5655, %v5665
        %v5680 = vmul.f32 %v5656, %v5661
        %v5681 = vmul.f32 %v5657, %v5665
        %v5682 = vadd.f32 %v5625, %v5666
        %v5683 = vadd.f32 %v5626, %v5667
        %v5684 = vadd.f32 %v5627, %v5668
        %v5685 = vadd.f32 %v5628, %v5669
        %v5686 = vadd.f32 %v5629, %v5670
        %v5687 = vadd.f32 %v5630, %v5671
        %v5688 = vadd.f32 %v5631, %v5672
        %v5689 = vadd.f32 %v5632, %v5673
        %v5690 = vadd.f32 %v5633, %v5674
        %v5691 = vadd.f32 %v5634, %v5675
        %v5692 = vadd.f32 %v5635, %v5676
        %v5693 = vadd.f32 %v5636, %v5677
        %v5694 = vadd.f32 %v5637, %v5678
        %v5695 = vadd.f32 %v5638, %v5679
        %v5696 = vadd.f32 %v5639, %v5680
        %v5697 = vadd.f32 %v5640, %v5681
        %v5698 = vld [vmem:[%s5641] sm:$0xfe]
        %v5699 = vld [vmem:[%s5641 + $0x8] sm:$0xfe]
        %v5700 = vld [vmem:[%s5641 + $0x10] sm:$0x1]
        %v5701 = vld [vmem:[%s5641 + $0x18] sm:$0x1]
        %v5702 = vld [vmem:[%s5641 + $0x20] sm:$0xfe]
        %v5703 = vld [vmem:[%s5641 + $0x28] sm:$0xfe]
        %v5704 = vld [vmem:[%s5641 + $0x30] sm:$0x1]
        %v5705 = vld [vmem:[%s5641 + $0x38] sm:$0x1]
        %v5706 = vld [vmem:[%s5641 + $0x40] sm:$0xfe]
        %v5707 = vld [vmem:[%s5641 + $0x48] sm:$0xfe]
        %v5708 = vld [vmem:[%s5641 + $0x50] sm:$0x1]
        %v5709 = vld [vmem:[%s5641 + $0x58] sm:$0x1]
        %v5710 = vld [vmem:[%s5641 + $0x60] sm:$0xfe]
        %v5711 = vld [vmem:[%s5641 + $0x68] sm:$0xfe]
        %v5712 = vld [vmem:[%s5641 + $0x70] sm:$0x1]
        %v5713 = vld [vmem:[%s5641 + $0x78] sm:$0x1]
        %v5714 = vld [vmem:[%s5641 + $0x80] sm:$0xfe]
        %v5715 = vld [vmem:[%s5641 + $0x88] sm:$0xfe]
        %v5716 = vld [vmem:[%s5641 + $0x90] sm:$0x1]
        %v5717 = vld [vmem:[%s5641 + $0x98] sm:$0x1]
        %v5718 = vld [vmem:[%s5641 + $0xa0] sm:$0xfe]
        %v5719 = vld [vmem:[%s5641 + $0xa8] sm:$0xfe]
        %v5720 = vld [vmem:[%s5641 + $0xb0] sm:$0x1]
        %v5721 = vld [vmem:[%s5641 + $0xb8] sm:$0x1]
        %v5722 = vld [vmem:[%s5641 + $0xc0] sm:$0xfe]
        %v5723 = vld [vmem:[%s5641 + $0xc8] sm:$0xfe]
        %v5724 = vld [vmem:[%s5641 + $0xd0] sm:$0x1]
        %v5725 = vld [vmem:[%s5641 + $0xd8] sm:$0x1]
        %v5726 = vld [vmem:[%s5641 + $0xe0] sm:$0xfe]
        %v5727 = vld [vmem:[%s5641 + $0xe8] sm:$0xfe]
        %v5728 = vld [vmem:[%s5641 + $0xf0] sm:$0x1]
        %v5729 = vld [vmem:[%s5641 + $0xf8] sm:$0x1]
        %v5730 = vlaneseq
        %v5731 = vshrl.u32 %v5730, 7
        %v5732 = vsub.s32 6, %v5731
        %v5733 = vrot.slane %v4836, %v5732
        %v5734 = vlaneseq
        %v5735 = vshrl.u32 %v5734, 7
        %v5736 = vsub.s32 6, %v5735
        %v5737 = vrot.slane %v4837, %v5736
        %v5738 = vmul.f32 %v5698, %v5733
        %v5739 = vmul.f32 %v5699, %v5737
        %v5740 = vmul.f32 %v5700, %v5733
        %v5741 = vmul.f32 %v5701, %v5737
        %v5742 = vmul.f32 %v5702, %v5733
        %v5743 = vmul.f32 %v5703, %v5737
        %v5744 = vmul.f32 %v5704, %v5733
        %v5745 = vmul.f32 %v5705, %v5737
        %v5746 = vmul.f32 %v5706, %v5733
        %v5747 = vmul.f32 %v5707, %v5737
        %v5748 = vmul.f32 %v5708, %v5733
        %v5749 = vmul.f32 %v5709, %v5737
        %v5750 = vmul.f32 %v5710, %v5733
        %v5751 = vmul.f32 %v5711, %v5737
        %v5752 = vmul.f32 %v5712, %v5733
        %v5753 = vmul.f32 %v5713, %v5737
        %v5754 = vmul.f32 %v5714, %v5733
        %v5755 = vmul.f32 %v5715, %v5737
        %v5756 = vmul.f32 %v5716, %v5733
        %v5757 = vmul.f32 %v5717, %v5737
        %v5758 = vmul.f32 %v5718, %v5733
        %v5759 = vmul.f32 %v5719, %v5737
        %v5760 = vmul.f32 %v5720, %v5733
        %v5761 = vmul.f32 %v5721, %v5737
        %v5762 = vmul.f32 %v5722, %v5733
        %v5763 = vmul.f32 %v5723, %v5737
        %v5764 = vmul.f32 %v5724, %v5733
        %v5765 = vmul.f32 %v5725, %v5737
        %v5766 = vmul.f32 %v5726, %v5733
        %v5767 = vmul.f32 %v5727, %v5737
        %v5768 = vmul.f32 %v5728, %v5733
        %v5769 = vmul.f32 %v5729, %v5737
        %v5802 = vrot.slane %v5738, 1
        %v5803 = vrot.slane %v5740, 1
        %v5804 = vsel %vm5006, %v5802, %v5803
        %v5805 = vrot.slane %v5739, 1
        %v5806 = vrot.slane %v5741, 1
        %v5807 = vsel %vm5006, %v5805, %v5806
        %v5808 = vrot.slane %v5742, 1
        %v5809 = vrot.slane %v5744, 1
        %v5810 = vsel %vm5006, %v5808, %v5809
        %v5811 = vrot.slane %v5743, 1
        %v5812 = vrot.slane %v5745, 1
        %v5813 = vsel %vm5006, %v5811, %v5812
        %v5814 = vrot.slane %v5746, 1
        %v5815 = vrot.slane %v5748, 1
        %v5816 = vsel %vm5006, %v5814, %v5815
        %v5817 = vrot.slane %v5747, 1
        %v5818 = vrot.slane %v5749, 1
        %v5819 = vsel %vm5006, %v5817, %v5818
        %v5820 = vrot.slane %v5750, 1
        %v5821 = vrot.slane %v5752, 1
        %v5822 = vsel %vm5006, %v5820, %v5821
        %v5823 = vrot.slane %v5751, 1
        %v5824 = vrot.slane %v5753, 1
        %v5825 = vsel %vm5006, %v5823, %v5824
        %v5826 = vrot.slane %v5754, 1
        %v5827 = vrot.slane %v5756, 1
        %v5828 = vsel %vm5006, %v5826, %v5827
        %v5829 = vrot.slane %v5755, 1
        %v5830 = vrot.slane %v5757, 1
        %v5831 = vsel %vm5006, %v5829, %v5830
        %v5832 = vrot.slane %v5758, 1
        %v5833 = vrot.slane %v5760, 1
        %v5834 = vsel %vm5006, %v5832, %v5833
        %v5835 = vrot.slane %v5759, 1
        %v5836 = vrot.slane %v5761, 1
        %v5837 = vsel %vm5006, %v5835, %v5836
        %v5838 = vrot.slane %v5762, 1
        %v5839 = vrot.slane %v5764, 1
        %v5840 = vsel %vm5006, %v5838, %v5839
        %v5841 = vrot.slane %v5763, 1
        %v5842 = vrot.slane %v5765, 1
        %v5843 = vsel %vm5006, %v5841, %v5842
        %v5844 = vrot.slane %v5766, 1
        %v5845 = vrot.slane %v5768, 1
        %v5846 = vsel %vm5006, %v5844, %v5845
        %v5847 = vrot.slane %v5767, 1
        %v5848 = vrot.slane %v5769, 1
        %v5849 = vsel %vm5006, %v5847, %v5848
        %v5866 = vadd.f32 %v5682, %v5804
        %v5867 = vadd.f32 %v5683, %v5807
        %v5868 = vadd.f32 %v5684, %v5810
        %v5869 = vadd.f32 %v5685, %v5813
        %v5870 = vadd.f32 %v5686, %v5816
        %v5871 = vadd.f32 %v5687, %v5819
        %v5872 = vadd.f32 %v5688, %v5822
        %v5873 = vadd.f32 %v5689, %v5825
        %v5874 = vadd.f32 %v5690, %v5828
        %v5875 = vadd.f32 %v5691, %v5831
        %v5876 = vadd.f32 %v5692, %v5834
        %v5877 = vadd.f32 %v5693, %v5837
        %v5878 = vadd.f32 %v5694, %v5840
        %v5879 = vadd.f32 %v5695, %v5843
        %v5880 = vadd.f32 %v5696, %v5846
        %v5881 = vadd.f32 %v5697, %v5849
        %v5882 = vld [vmem:[%s5641] sm:$0xfc]
        %v5883 = vld [vmem:[%s5641 + $0x8] sm:$0xfc]
        %v5884 = vld [vmem:[%s5641 + $0x10] sm:$0x3]
        %v5885 = vld [vmem:[%s5641 + $0x18] sm:$0x3]
        %v5886 = vld [vmem:[%s5641 + $0x20] sm:$0xfc]
        %v5887 = vld [vmem:[%s5641 + $0x28] sm:$0xfc]
        %v5888 = vld [vmem:[%s5641 + $0x30] sm:$0x3]
        %v5889 = vld [vmem:[%s5641 + $0x38] sm:$0x3]
        %v5890 = vld [vmem:[%s5641 + $0x40] sm:$0xfc]
        %v5891 = vld [vmem:[%s5641 + $0x48] sm:$0xfc]
        %v5892 = vld [vmem:[%s5641 + $0x50] sm:$0x3]
        %v5893 = vld [vmem:[%s5641 + $0x58] sm:$0x3]
        %v5894 = vld [vmem:[%s5641 + $0x60] sm:$0xfc]
        %v5895 = vld [vmem:[%s5641 + $0x68] sm:$0xfc]
        %v5896 = vld [vmem:[%s5641 + $0x70] sm:$0x3]
        %v5897 = vld [vmem:[%s5641 + $0x78] sm:$0x3]
        %v5898 = vld [vmem:[%s5641 + $0x80] sm:$0xfc]
        %v5899 = vld [vmem:[%s5641 + $0x88] sm:$0xfc]
        %v5900 = vld [vmem:[%s5641 + $0x90] sm:$0x3]
        %v5901 = vld [vmem:[%s5641 + $0x98] sm:$0x3]
        %v5902 = vld [vmem:[%s5641 + $0xa0] sm:$0xfc]
        %v5903 = vld [vmem:[%s5641 + $0xa8] sm:$0xfc]
        %v5904 = vld [vmem:[%s5641 + $0xb0] sm:$0x3]
        %v5905 = vld [vmem:[%s5641 + $0xb8] sm:$0x3]
        %v5906 = vld [vmem:[%s5641 + $0xc0] sm:$0xfc]
        %v5907 = vld [vmem:[%s5641 + $0xc8] sm:$0xfc]
        %v5908 = vld [vmem:[%s5641 + $0xd0] sm:$0x3]
        %v5909 = vld [vmem:[%s5641 + $0xd8] sm:$0x3]
        %v5910 = vld [vmem:[%s5641 + $0xe0] sm:$0xfc]
        %v5911 = vld [vmem:[%s5641 + $0xe8] sm:$0xfc]
        %v5912 = vld [vmem:[%s5641 + $0xf0] sm:$0x3]
        %v5913 = vld [vmem:[%s5641 + $0xf8] sm:$0x3]
        %v5914 = vlaneseq
        %v5915 = vshrl.u32 %v5914, 7
        %v5916 = vsub.s32 7, %v5915
        %v5917 = vrot.slane %v4836, %v5916
        %v5918 = vlaneseq
        %v5919 = vshrl.u32 %v5918, 7
        %v5920 = vsub.s32 7, %v5919
        %v5921 = vrot.slane %v4837, %v5920
        %v5922 = vmul.f32 %v5882, %v5917
        %v5923 = vmul.f32 %v5883, %v5921
        %v5924 = vmul.f32 %v5884, %v5917
        %v5925 = vmul.f32 %v5885, %v5921
        %v5926 = vmul.f32 %v5886, %v5917
        %v5927 = vmul.f32 %v5887, %v5921
        %v5928 = vmul.f32 %v5888, %v5917
        %v5929 = vmul.f32 %v5889, %v5921
        %v5930 = vmul.f32 %v5890, %v5917
        %v5931 = vmul.f32 %v5891, %v5921
        %v5932 = vmul.f32 %v5892, %v5917
        %v5933 = vmul.f32 %v5893, %v5921
        %v5934 = vmul.f32 %v5894, %v5917
        %v5935 = vmul.f32 %v5895, %v5921
        %v5936 = vmul.f32 %v5896, %v5917
        %v5937 = vmul.f32 %v5897, %v5921
        %v5938 = vmul.f32 %v5898, %v5917
        %v5939 = vmul.f32 %v5899, %v5921
        %v5940 = vmul.f32 %v5900, %v5917
        %v5941 = vmul.f32 %v5901, %v5921
        %v5942 = vmul.f32 %v5902, %v5917
        %v5943 = vmul.f32 %v5903, %v5921
        %v5944 = vmul.f32 %v5904, %v5917
        %v5945 = vmul.f32 %v5905, %v5921
        %v5946 = vmul.f32 %v5906, %v5917
        %v5947 = vmul.f32 %v5907, %v5921
        %v5948 = vmul.f32 %v5908, %v5917
        %v5949 = vmul.f32 %v5909, %v5921
        %v5950 = vmul.f32 %v5910, %v5917
        %v5951 = vmul.f32 %v5911, %v5921
        %v5952 = vmul.f32 %v5912, %v5917
        %v5953 = vmul.f32 %v5913, %v5921
        %v5986 = vrot.slane %v5922, 2
        %v5987 = vrot.slane %v5924, 2
        %v5988 = vsel %vm5191, %v5986, %v5987
        %v5989 = vrot.slane %v5923, 2
        %v5990 = vrot.slane %v5925, 2
        %v5991 = vsel %vm5191, %v5989, %v5990
        %v5992 = vrot.slane %v5926, 2
        %v5993 = vrot.slane %v5928, 2
        %v5994 = vsel %vm5191, %v5992, %v5993
        %v5995 = vrot.slane %v5927, 2
        %v5996 = vrot.slane %v5929, 2
        %v5997 = vsel %vm5191, %v5995, %v5996
        %v5998 = vrot.slane %v5930, 2
        %v5999 = vrot.slane %v5932, 2
        %v6000 = vsel %vm5191, %v5998, %v5999
        %v6001 = vrot.slane %v5931, 2
        %v6002 = vrot.slane %v5933, 2
        %v6003 = vsel %vm5191, %v6001, %v6002
        %v6004 = vrot.slane %v5934, 2
        %v6005 = vrot.slane %v5936, 2
        %v6006 = vsel %vm5191, %v6004, %v6005
        %v6007 = vrot.slane %v5935, 2
        %v6008 = vrot.slane %v5937, 2
        %v6009 = vsel %vm5191, %v6007, %v6008
        %v6010 = vrot.slane %v5938, 2
        %v6011 = vrot.slane %v5940, 2
        %v6012 = vsel %vm5191, %v6010, %v6011
        %v6013 = vrot.slane %v5939, 2
        %v6014 = vrot.slane %v5941, 2
        %v6015 = vsel %vm5191, %v6013, %v6014
        %v6016 = vrot.slane %v5942, 2
        %v6017 = vrot.slane %v5944, 2
        %v6018 = vsel %vm5191, %v6016, %v6017
        %v6019 = vrot.slane %v5943, 2
        %v6020 = vrot.slane %v5945, 2
        %v6021 = vsel %vm5191, %v6019, %v6020
        %v6022 = vrot.slane %v5946, 2
        %v6023 = vrot.slane %v5948, 2
        %v6024 = vsel %vm5191, %v6022, %v6023
        %v6025 = vrot.slane %v5947, 2
        %v6026 = vrot.slane %v5949, 2
        %v6027 = vsel %vm5191, %v6025, %v6026
        %v6028 = vrot.slane %v5950, 2
        %v6029 = vrot.slane %v5952, 2
        %v6030 = vsel %vm5191, %v6028, %v6029
        %v6031 = vrot.slane %v5951, 2
        %v6032 = vrot.slane %v5953, 2
        %v6033 = vsel %vm5191, %v6031, %v6032
        %v6050 = vadd.f32 %v5866, %v5988
        %v6051 = vadd.f32 %v5867, %v5991
        %v6052 = vadd.f32 %v5868, %v5994
        %v6053 = vadd.f32 %v5869, %v5997
        %v6054 = vadd.f32 %v5870, %v6000
        %v6055 = vadd.f32 %v5871, %v6003
        %v6056 = vadd.f32 %v5872, %v6006
        %v6057 = vadd.f32 %v5873, %v6009
        %v6058 = vadd.f32 %v5874, %v6012
        %v6059 = vadd.f32 %v5875, %v6015
        %v6060 = vadd.f32 %v5876, %v6018
        %v6061 = vadd.f32 %v5877, %v6021
        %v6062 = vadd.f32 %v5878, %v6024
        %v6063 = vadd.f32 %v5879, %v6027
        %v6064 = vadd.f32 %v5880, %v6030
        %v6065 = vadd.f32 %v5881, %v6033
        %v6066 = vld [vmem:[%s5641] sm:$0xf8]
        %v6067 = vld [vmem:[%s5641 + $0x8] sm:$0xf8]
        %v6068 = vld [vmem:[%s5641 + $0x10] sm:$0x7]
        %v6069 = vld [vmem:[%s5641 + $0x18] sm:$0x7]
        %v6070 = vld [vmem:[%s5641 + $0x20] sm:$0xf8]
        %v6071 = vld [vmem:[%s5641 + $0x28] sm:$0xf8]
        %v6072 = vld [vmem:[%s5641 + $0x30] sm:$0x7]
        %v6073 = vld [vmem:[%s5641 + $0x38] sm:$0x7]
        %v6074 = vld [vmem:[%s5641 + $0x40] sm:$0xf8]
        %v6075 = vld [vmem:[%s5641 + $0x48] sm:$0xf8]
        %v6076 = vld [vmem:[%s5641 + $0x50] sm:$0x7]
        %v6077 = vld [vmem:[%s5641 + $0x58] sm:$0x7]
        %v6078 = vld [vmem:[%s5641 + $0x60] sm:$0xf8]
        %v6079 = vld [vmem:[%s5641 + $0x68] sm:$0xf8]
        %v6080 = vld [vmem:[%s5641 + $0x70] sm:$0x7]
        %v6081 = vld [vmem:[%s5641 + $0x78] sm:$0x7]
        %v6082 = vld [vmem:[%s5641 + $0x80] sm:$0xf8]
        %v6083 = vld [vmem:[%s5641 + $0x88] sm:$0xf8]
        %v6084 = vld [vmem:[%s5641 + $0x90] sm:$0x7]
        %v6085 = vld [vmem:[%s5641 + $0x98] sm:$0x7]
        %v6086 = vld [vmem:[%s5641 + $0xa0] sm:$0xf8]
        %v6087 = vld [vmem:[%s5641 + $0xa8] sm:$0xf8]
        %v6088 = vld [vmem:[%s5641 + $0xb0] sm:$0x7]
        %v6089 = vld [vmem:[%s5641 + $0xb8] sm:$0x7]
        %v6090 = vld [vmem:[%s5641 + $0xc0] sm:$0xf8]
        %v6091 = vld [vmem:[%s5641 + $0xc8] sm:$0xf8]
        %v6092 = vld [vmem:[%s5641 + $0xd0] sm:$0x7]
        %v6093 = vld [vmem:[%s5641 + $0xd8] sm:$0x7]
        %v6094 = vld [vmem:[%s5641 + $0xe0] sm:$0xf8]
        %v6095 = vld [vmem:[%s5641 + $0xe8] sm:$0xf8]
        %v6096 = vld [vmem:[%s5641 + $0xf0] sm:$0x7]
        %v6097 = vld [vmem:[%s5641 + $0xf8] sm:$0x7]
        %v6098 = vlaneseq
        %v6099 = vshrl.u32 %v6098, 7
        %v6100 = vsub.s32 0, %v6099
        %v6101 = vrot.slane %v4838, %v6100
        %v6102 = vlaneseq
        %v6103 = vshrl.u32 %v6102, 7
        %v6104 = vsub.s32 0, %v6103
        %v6105 = vrot.slane %v4839, %v6104
        %v6106 = vmul.f32 %v6066, %v6101
        %v6107 = vmul.f32 %v6067, %v6105
        %v6108 = vmul.f32 %v6068, %v6101
        %v6109 = vmul.f32 %v6069, %v6105
        %v6110 = vmul.f32 %v6070, %v6101
        %v6111 = vmul.f32 %v6071, %v6105
        %v6112 = vmul.f32 %v6072, %v6101
        %v6113 = vmul.f32 %v6073, %v6105
        %v6114 = vmul.f32 %v6074, %v6101
        %v6115 = vmul.f32 %v6075, %v6105
        %v6116 = vmul.f32 %v6076, %v6101
        %v6117 = vmul.f32 %v6077, %v6105
        %v6118 = vmul.f32 %v6078, %v6101
        %v6119 = vmul.f32 %v6079, %v6105
        %v6120 = vmul.f32 %v6080, %v6101
        %v6121 = vmul.f32 %v6081, %v6105
        %v6122 = vmul.f32 %v6082, %v6101
        %v6123 = vmul.f32 %v6083, %v6105
        %v6124 = vmul.f32 %v6084, %v6101
        %v6125 = vmul.f32 %v6085, %v6105
        %v6126 = vmul.f32 %v6086, %v6101
        %v6127 = vmul.f32 %v6087, %v6105
        %v6128 = vmul.f32 %v6088, %v6101
        %v6129 = vmul.f32 %v6089, %v6105
        %v6130 = vmul.f32 %v6090, %v6101
        %v6131 = vmul.f32 %v6091, %v6105
        %v6132 = vmul.f32 %v6092, %v6101
        %v6133 = vmul.f32 %v6093, %v6105
        %v6134 = vmul.f32 %v6094, %v6101
        %v6135 = vmul.f32 %v6095, %v6105
        %v6136 = vmul.f32 %v6096, %v6101
        %v6137 = vmul.f32 %v6097, %v6105
        %v6170 = vrot.slane %v6106, 3
        %v6171 = vrot.slane %v6108, 3
        %v6172 = vsel %vm5376, %v6170, %v6171
        %v6173 = vrot.slane %v6107, 3
        %v6174 = vrot.slane %v6109, 3
        %v6175 = vsel %vm5376, %v6173, %v6174
        %v6176 = vrot.slane %v6110, 3
        %v6177 = vrot.slane %v6112, 3
        %v6178 = vsel %vm5376, %v6176, %v6177
        %v6179 = vrot.slane %v6111, 3
        %v6180 = vrot.slane %v6113, 3
        %v6181 = vsel %vm5376, %v6179, %v6180
        %v6182 = vrot.slane %v6114, 3
        %v6183 = vrot.slane %v6116, 3
        %v6184 = vsel %vm5376, %v6182, %v6183
        %v6185 = vrot.slane %v6115, 3
        %v6186 = vrot.slane %v6117, 3
        %v6187 = vsel %vm5376, %v6185, %v6186
        %v6188 = vrot.slane %v6118, 3
        %v6189 = vrot.slane %v6120, 3
        %v6190 = vsel %vm5376, %v6188, %v6189
        %v6191 = vrot.slane %v6119, 3
        %v6192 = vrot.slane %v6121, 3
        %v6193 = vsel %vm5376, %v6191, %v6192
        %v6194 = vrot.slane %v6122, 3
        %v6195 = vrot.slane %v6124, 3
        %v6196 = vsel %vm5376, %v6194, %v6195
        %v6197 = vrot.slane %v6123, 3
        %v6198 = vrot.slane %v6125, 3
        %v6199 = vsel %vm5376, %v6197, %v6198
        %v6200 = vrot.slane %v6126, 3
        %v6201 = vrot.slane %v6128, 3
        %v6202 = vsel %vm5376, %v6200, %v6201
        %v6203 = vrot.slane %v6127, 3
        %v6204 = vrot.slane %v6129, 3
        %v6205 = vsel %vm5376, %v6203, %v6204
        %v6206 = vrot.slane %v6130, 3
        %v6207 = vrot.slane %v6132, 3
        %v6208 = vsel %vm5376, %v6206, %v6207
        %v6209 = vrot.slane %v6131, 3
        %v6210 = vrot.slane %v6133, 3
        %v6211 = vsel %vm5376, %v6209, %v6210
        %v6212 = vrot.slane %v6134, 3
        %v6213 = vrot.slane %v6136, 3
        %v6214 = vsel %vm5376, %v6212, %v6213
        %v6215 = vrot.slane %v6135, 3
        %v6216 = vrot.slane %v6137, 3
        %v6217 = vsel %vm5376, %v6215, %v6216
        %v6234 = vadd.f32 %v6050, %v6172
        %v6235 = vadd.f32 %v6051, %v6175
        %v6236 = vadd.f32 %v6052, %v6178
        %v6237 = vadd.f32 %v6053, %v6181
        %v6238 = vadd.f32 %v6054, %v6184
        %v6239 = vadd.f32 %v6055, %v6187
        %v6240 = vadd.f32 %v6056, %v6190
        %v6241 = vadd.f32 %v6057, %v6193
        %v6242 = vadd.f32 %v6058, %v6196
        %v6243 = vadd.f32 %v6059, %v6199
        %v6244 = vadd.f32 %v6060, %v6202
        %v6245 = vadd.f32 %v6061, %v6205
        %v6246 = vadd.f32 %v6062, %v6208
        %v6247 = vadd.f32 %v6063, %v6211
        %v6248 = vadd.f32 %v6064, %v6214
        %v6249 = vadd.f32 %v6065, %v6217
        %v6250 = vld [vmem:[%s5641] sm:$0xf0]
        %v6251 = vld [vmem:[%s5641 + $0x8] sm:$0xf0]
        %v6252 = vld [vmem:[%s5641 + $0x10] sm:$0xf]
        %v6253 = vld [vmem:[%s5641 + $0x18] sm:$0xf]
        %v6254 = vld [vmem:[%s5641 + $0x20] sm:$0xf0]
        %v6255 = vld [vmem:[%s5641 + $0x28] sm:$0xf0]
        %v6256 = vld [vmem:[%s5641 + $0x30] sm:$0xf]
        %v6257 = vld [vmem:[%s5641 + $0x38] sm:$0xf]
        %v6258 = vld [vmem:[%s5641 + $0x40] sm:$0xf0]
        %v6259 = vld [vmem:[%s5641 + $0x48] sm:$0xf0]
        %v6260 = vld [vmem:[%s5641 + $0x50] sm:$0xf]
        %v6261 = vld [vmem:[%s5641 + $0x58] sm:$0xf]
        %v6262 = vld [vmem:[%s5641 + $0x60] sm:$0xf0]
        %v6263 = vld [vmem:[%s5641 + $0x68] sm:$0xf0]
        %v6264 = vld [vmem:[%s5641 + $0x70] sm:$0xf]
        %v6265 = vld [vmem:[%s5641 + $0x78] sm:$0xf]
        %v6266 = vld [vmem:[%s5641 + $0x80] sm:$0xf0]
        %v6267 = vld [vmem:[%s5641 + $0x88] sm:$0xf0]
        %v6268 = vld [vmem:[%s5641 + $0x90] sm:$0xf]
        %v6269 = vld [vmem:[%s5641 + $0x98] sm:$0xf]
        %v6270 = vld [vmem:[%s5641 + $0xa0] sm:$0xf0]
        %v6271 = vld [vmem:[%s5641 + $0xa8] sm:$0xf0]
        %v6272 = vld [vmem:[%s5641 + $0xb0] sm:$0xf]
        %v6273 = vld [vmem:[%s5641 + $0xb8] sm:$0xf]
        %v6274 = vld [vmem:[%s5641 + $0xc0] sm:$0xf0]
        %v6275 = vld [vmem:[%s5641 + $0xc8] sm:$0xf0]
        %v6276 = vld [vmem:[%s5641 + $0xd0] sm:$0xf]
        %v6277 = vld [vmem:[%s5641 + $0xd8] sm:$0xf]
        %v6278 = vld [vmem:[%s5641 + $0xe0] sm:$0xf0]
        %v6279 = vld [vmem:[%s5641 + $0xe8] sm:$0xf0]
        %v6280 = vld [vmem:[%s5641 + $0xf0] sm:$0xf]
        %v6281 = vld [vmem:[%s5641 + $0xf8] sm:$0xf]
        %v6282 = vlaneseq
        %v6283 = vshrl.u32 %v6282, 7
        %v6284 = vsub.s32 1, %v6283
        %v6285 = vrot.slane %v4838, %v6284
        %v6286 = vlaneseq
        %v6287 = vshrl.u32 %v6286, 7
        %v6288 = vsub.s32 1, %v6287
        %v6289 = vrot.slane %v4839, %v6288
        %v6290 = vmul.f32 %v6250, %v6285
        %v6291 = vmul.f32 %v6251, %v6289
        %v6292 = vmul.f32 %v6252, %v6285
        %v6293 = vmul.f32 %v6253, %v6289
        %v6294 = vmul.f32 %v6254, %v6285
        %v6295 = vmul.f32 %v6255, %v6289
        %v6296 = vmul.f32 %v6256, %v6285
        %v6297 = vmul.f32 %v6257, %v6289
        %v6298 = vmul.f32 %v6258, %v6285
        %v6299 = vmul.f32 %v6259, %v6289
        %v6300 = vmul.f32 %v6260, %v6285
        %v6301 = vmul.f32 %v6261, %v6289
        %v6302 = vmul.f32 %v6262, %v6285
        %v6303 = vmul.f32 %v6263, %v6289
        %v6304 = vmul.f32 %v6264, %v6285
        %v6305 = vmul.f32 %v6265, %v6289
        %v6306 = vmul.f32 %v6266, %v6285
        %v6307 = vmul.f32 %v6267, %v6289
        %v6308 = vmul.f32 %v6268, %v6285
        %v6309 = vmul.f32 %v6269, %v6289
        %v6310 = vmul.f32 %v6270, %v6285
        %v6311 = vmul.f32 %v6271, %v6289
        %v6312 = vmul.f32 %v6272, %v6285
        %v6313 = vmul.f32 %v6273, %v6289
        %v6314 = vmul.f32 %v6274, %v6285
        %v6315 = vmul.f32 %v6275, %v6289
        %v6316 = vmul.f32 %v6276, %v6285
        %v6317 = vmul.f32 %v6277, %v6289
        %v6318 = vmul.f32 %v6278, %v6285
        %v6319 = vmul.f32 %v6279, %v6289
        %v6320 = vmul.f32 %v6280, %v6285
        %v6321 = vmul.f32 %v6281, %v6289
        %v6354 = vrot.slane %v6290, 4
        %v6355 = vrot.slane %v6292, 4
        %v6356 = vsel %vm4201, %v6354, %v6355
        %v6357 = vrot.slane %v6291, 4
        %v6358 = vrot.slane %v6293, 4
        %v6359 = vsel %vm4201, %v6357, %v6358
        %v6360 = vrot.slane %v6294, 4
        %v6361 = vrot.slane %v6296, 4
        %v6362 = vsel %vm4201, %v6360, %v6361
        %v6363 = vrot.slane %v6295, 4
        %v6364 = vrot.slane %v6297, 4
        %v6365 = vsel %vm4201, %v6363, %v6364
        %v6366 = vrot.slane %v6298, 4
        %v6367 = vrot.slane %v6300, 4
        %v6368 = vsel %vm4201, %v6366, %v6367
        %v6369 = vrot.slane %v6299, 4
        %v6370 = vrot.slane %v6301, 4
        %v6371 = vsel %vm4201, %v6369, %v6370
        %v6372 = vrot.slane %v6302, 4
        %v6373 = vrot.slane %v6304, 4
        %v6374 = vsel %vm4201, %v6372, %v6373
        %v6375 = vrot.slane %v6303, 4
        %v6376 = vrot.slane %v6305, 4
        %v6377 = vsel %vm4201, %v6375, %v6376
        %v6378 = vrot.slane %v6306, 4
        %v6379 = vrot.slane %v6308, 4
        %v6380 = vsel %vm4201, %v6378, %v6379
        %v6381 = vrot.slane %v6307, 4
        %v6382 = vrot.slane %v6309, 4
        %v6383 = vsel %vm4201, %v6381, %v6382
        %v6384 = vrot.slane %v6310, 4
        %v6385 = vrot.slane %v6312, 4
        %v6386 = vsel %vm4201, %v6384, %v6385
        %v6387 = vrot.slane %v6311, 4
        %v6388 = vrot.slane %v6313, 4
        %v6389 = vsel %vm4201, %v6387, %v6388
        %v6390 = vrot.slane %v6314, 4
        %v6391 = vrot.slane %v6316, 4
        %v6392 = vsel %vm4201, %v6390, %v6391
        %v6393 = vrot.slane %v6315, 4
        %v6394 = vrot.slane %v6317, 4
        %v6395 = vsel %vm4201, %v6393, %v6394
        %v6396 = vrot.slane %v6318, 4
        %v6397 = vrot.slane %v6320, 4
        %v6398 = vsel %vm4201, %v6396, %v6397
        %v6399 = vrot.slane %v6319, 4
        %v6400 = vrot.slane %v6321, 4
        %v6401 = vsel %vm4201, %v6399, %v6400
        %v6418 = vadd.f32 %v6234, %v6356
        %v6419 = vadd.f32 %v6235, %v6359
        %v6420 = vadd.f32 %v6236, %v6362
        %v6421 = vadd.f32 %v6237, %v6365
        %v6422 = vadd.f32 %v6238, %v6368
        %v6423 = vadd.f32 %v6239, %v6371
        %v6424 = vadd.f32 %v6240, %v6374
        %v6425 = vadd.f32 %v6241, %v6377
        %v6426 = vadd.f32 %v6242, %v6380
        %v6427 = vadd.f32 %v6243, %v6383
        %v6428 = vadd.f32 %v6244, %v6386
        %v6429 = vadd.f32 %v6245, %v6389
        %v6430 = vadd.f32 %v6246, %v6392
        %v6431 = vadd.f32 %v6247, %v6395
        %v6432 = vadd.f32 %v6248, %v6398
        %v6433 = vadd.f32 %v6249, %v6401
        %v6434 = vld [vmem:[%s4801] sm:$0xff]
        %v6435 = vld [vmem:[%s4801 + $0x8] sm:$0xff]
        %v6436 = vld [vmem:[%s4801 + $0x20] sm:$0xff]
        %v6437 = vld [vmem:[%s4801 + $0x28] sm:$0xff]
        %v6438 = vld [vmem:[%s4801 + $0x40] sm:$0xff]
        %v6439 = vld [vmem:[%s4801 + $0x48] sm:$0xff]
        %v6440 = vld [vmem:[%s4801 + $0x60] sm:$0xff]
        %v6441 = vld [vmem:[%s4801 + $0x68] sm:$0xff]
        %v6442 = vld [vmem:[%s4801 + $0x80] sm:$0xff]
        %v6443 = vld [vmem:[%s4801 + $0x88] sm:$0xff]
        %v6444 = vld [vmem:[%s4801 + $0xa0] sm:$0xff]
        %v6445 = vld [vmem:[%s4801 + $0xa8] sm:$0xff]
        %v6446 = vld [vmem:[%s4801 + $0xc0] sm:$0xff]
        %v6447 = vld [vmem:[%s4801 + $0xc8] sm:$0xff]
        %v6448 = vld [vmem:[%s4801 + $0xe0] sm:$0xff]
        %v6449 = vld [vmem:[%s4801 + $0xe8] sm:$0xff]
        %v6450 = vlaneseq
        %v6451 = vshrl.u32 %v6450, 7
        %v6452 = vsub.s32 2, %v6451
        %v6453 = vrot.slane %v4838, %v6452
        %v6454 = vlaneseq
        %v6455 = vshrl.u32 %v6454, 7
        %v6456 = vsub.s32 2, %v6455
        %v6457 = vrot.slane %v4839, %v6456
        %v6458 = vmul.f32 %v6434, %v6453
        %v6459 = vmul.f32 %v6435, %v6457
        %v6460 = vmul.f32 %v6436, %v6453
        %v6461 = vmul.f32 %v6437, %v6457
        %v6462 = vmul.f32 %v6438, %v6453
        %v6463 = vmul.f32 %v6439, %v6457
        %v6464 = vmul.f32 %v6440, %v6453
        %v6465 = vmul.f32 %v6441, %v6457
        %v6466 = vmul.f32 %v6442, %v6453
        %v6467 = vmul.f32 %v6443, %v6457
        %v6468 = vmul.f32 %v6444, %v6453
        %v6469 = vmul.f32 %v6445, %v6457
        %v6470 = vmul.f32 %v6446, %v6453
        %v6471 = vmul.f32 %v6447, %v6457
        %v6472 = vmul.f32 %v6448, %v6453
        %v6473 = vmul.f32 %v6449, %v6457
        %v6474 = vadd.f32 %v6418, %v6458
        %v6475 = vadd.f32 %v6419, %v6459
        %v6476 = vadd.f32 %v6420, %v6460
        %v6477 = vadd.f32 %v6421, %v6461
        %v6478 = vadd.f32 %v6422, %v6462
        %v6479 = vadd.f32 %v6423, %v6463
        %v6480 = vadd.f32 %v6424, %v6464
        %v6481 = vadd.f32 %v6425, %v6465
        %v6482 = vadd.f32 %v6426, %v6466
        %v6483 = vadd.f32 %v6427, %v6467
        %v6484 = vadd.f32 %v6428, %v6468
        %v6485 = vadd.f32 %v6429, %v6469
        %v6486 = vadd.f32 %v6430, %v6470
        %v6487 = vadd.f32 %v6431, %v6471
        %v6488 = vadd.f32 %v6432, %v6472
        %v6489 = vadd.f32 %v6433, %v6473
        %v6490 = vld [vmem:[%s4801] sm:$0xfe]
        %v6491 = vld [vmem:[%s4801 + $0x8] sm:$0xfe]
        %v6492 = vld [vmem:[%s4801 + $0x10] sm:$0x1]
        %v6493 = vld [vmem:[%s4801 + $0x18] sm:$0x1]
        %v6494 = vld [vmem:[%s4801 + $0x20] sm:$0xfe]
        %v6495 = vld [vmem:[%s4801 + $0x28] sm:$0xfe]
        %v6496 = vld [vmem:[%s4801 + $0x30] sm:$0x1]
        %v6497 = vld [vmem:[%s4801 + $0x38] sm:$0x1]
        %v6498 = vld [vmem:[%s4801 + $0x40] sm:$0xfe]
        %v6499 = vld [vmem:[%s4801 + $0x48] sm:$0xfe]
        %v6500 = vld [vmem:[%s4801 + $0x50] sm:$0x1]
        %v6501 = vld [vmem:[%s4801 + $0x58] sm:$0x1]
        %v6502 = vld [vmem:[%s4801 + $0x60] sm:$0xfe]
        %v6503 = vld [vmem:[%s4801 + $0x68] sm:$0xfe]
        %v6504 = vld [vmem:[%s4801 + $0x70] sm:$0x1]
        %v6505 = vld [vmem:[%s4801 + $0x78] sm:$0x1]
        %v6506 = vld [vmem:[%s4801 + $0x80] sm:$0xfe]
        %v6507 = vld [vmem:[%s4801 + $0x88] sm:$0xfe]
        %v6508 = vld [vmem:[%s4801 + $0x90] sm:$0x1]
        %v6509 = vld [vmem:[%s4801 + $0x98] sm:$0x1]
        %v6510 = vld [vmem:[%s4801 + $0xa0] sm:$0xfe]
        %v6511 = vld [vmem:[%s4801 + $0xa8] sm:$0xfe]
        %v6512 = vld [vmem:[%s4801 + $0xb0] sm:$0x1]
        %v6513 = vld [vmem:[%s4801 + $0xb8] sm:$0x1]
        %v6514 = vld [vmem:[%s4801 + $0xc0] sm:$0xfe]
        %v6515 = vld [vmem:[%s4801 + $0xc8] sm:$0xfe]
        %v6516 = vld [vmem:[%s4801 + $0xd0] sm:$0x1]
        %v6517 = vld [vmem:[%s4801 + $0xd8] sm:$0x1]
        %v6518 = vld [vmem:[%s4801 + $0xe0] sm:$0xfe]
        %v6519 = vld [vmem:[%s4801 + $0xe8] sm:$0xfe]
        %v6520 = vld [vmem:[%s4801 + $0xf0] sm:$0x1]
        %v6521 = vld [vmem:[%s4801 + $0xf8] sm:$0x1]
        %v6522 = vlaneseq
        %v6523 = vshrl.u32 %v6522, 7
        %v6524 = vsub.s32 3, %v6523
        %v6525 = vrot.slane %v4838, %v6524
        %v6526 = vlaneseq
        %v6527 = vshrl.u32 %v6526, 7
        %v6528 = vsub.s32 3, %v6527
        %v6529 = vrot.slane %v4839, %v6528
        %v6530 = vmul.f32 %v6490, %v6525
        %v6531 = vmul.f32 %v6491, %v6529
        %v6532 = vmul.f32 %v6492, %v6525
        %v6533 = vmul.f32 %v6493, %v6529
        %v6534 = vmul.f32 %v6494, %v6525
        %v6535 = vmul.f32 %v6495, %v6529
        %v6536 = vmul.f32 %v6496, %v6525
        %v6537 = vmul.f32 %v6497, %v6529
        %v6538 = vmul.f32 %v6498, %v6525
        %v6539 = vmul.f32 %v6499, %v6529
        %v6540 = vmul.f32 %v6500, %v6525
        %v6541 = vmul.f32 %v6501, %v6529
        %v6542 = vmul.f32 %v6502, %v6525
        %v6543 = vmul.f32 %v6503, %v6529
        %v6544 = vmul.f32 %v6504, %v6525
        %v6545 = vmul.f32 %v6505, %v6529
        %v6546 = vmul.f32 %v6506, %v6525
        %v6547 = vmul.f32 %v6507, %v6529
        %v6548 = vmul.f32 %v6508, %v6525
        %v6549 = vmul.f32 %v6509, %v6529
        %v6550 = vmul.f32 %v6510, %v6525
        %v6551 = vmul.f32 %v6511, %v6529
        %v6552 = vmul.f32 %v6512, %v6525
        %v6553 = vmul.f32 %v6513, %v6529
        %v6554 = vmul.f32 %v6514, %v6525
        %v6555 = vmul.f32 %v6515, %v6529
        %v6556 = vmul.f32 %v6516, %v6525
        %v6557 = vmul.f32 %v6517, %v6529
        %v6558 = vmul.f32 %v6518, %v6525
        %v6559 = vmul.f32 %v6519, %v6529
        %v6560 = vmul.f32 %v6520, %v6525
        %v6561 = vmul.f32 %v6521, %v6529
        %v6594 = vrot.slane %v6530, 1
        %v6595 = vrot.slane %v6532, 1
        %v6596 = vsel %vm5006, %v6594, %v6595
        %v6597 = vrot.slane %v6531, 1
        %v6598 = vrot.slane %v6533, 1
        %v6599 = vsel %vm5006, %v6597, %v6598
        %v6600 = vrot.slane %v6534, 1
        %v6601 = vrot.slane %v6536, 1
        %v6602 = vsel %vm5006, %v6600, %v6601
        %v6603 = vrot.slane %v6535, 1
        %v6604 = vrot.slane %v6537, 1
        %v6605 = vsel %vm5006, %v6603, %v6604
        %v6606 = vrot.slane %v6538, 1
        %v6607 = vrot.slane %v6540, 1
        %v6608 = vsel %vm5006, %v6606, %v6607
        %v6609 = vrot.slane %v6539, 1
        %v6610 = vrot.slane %v6541, 1
        %v6611 = vsel %vm5006, %v6609, %v6610
        %v6612 = vrot.slane %v6542, 1
        %v6613 = vrot.slane %v6544, 1
        %v6614 = vsel %vm5006, %v6612, %v6613
        %v6615 = vrot.slane %v6543, 1
        %v6616 = vrot.slane %v6545, 1
        %v6617 = vsel %vm5006, %v6615, %v6616
        %v6618 = vrot.slane %v6546, 1
        %v6619 = vrot.slane %v6548, 1
        %v6620 = vsel %vm5006, %v6618, %v6619
        %v6621 = vrot.slane %v6547, 1
        %v6622 = vrot.slane %v6549, 1
        %v6623 = vsel %vm5006, %v6621, %v6622
        %v6624 = vrot.slane %v6550, 1
        %v6625 = vrot.slane %v6552, 1
        %v6626 = vsel %vm5006, %v6624, %v6625
        %v6627 = vrot.slane %v6551, 1
        %v6628 = vrot.slane %v6553, 1
        %v6629 = vsel %vm5006, %v6627, %v6628
        %v6630 = vrot.slane %v6554, 1
        %v6631 = vrot.slane %v6556, 1
        %v6632 = vsel %vm5006, %v6630, %v6631
        %v6633 = vrot.slane %v6555, 1
        %v6634 = vrot.slane %v6557, 1
        %v6635 = vsel %vm5006, %v6633, %v6634
        %v6636 = vrot.slane %v6558, 1
        %v6637 = vrot.slane %v6560, 1
        %v6638 = vsel %vm5006, %v6636, %v6637
        %v6639 = vrot.slane %v6559, 1
        %v6640 = vrot.slane %v6561, 1
        %v6641 = vsel %vm5006, %v6639, %v6640
        %v6658 = vadd.f32 %v6474, %v6596
        %v6659 = vadd.f32 %v6475, %v6599
        %v6660 = vadd.f32 %v6476, %v6602
        %v6661 = vadd.f32 %v6477, %v6605
        %v6662 = vadd.f32 %v6478, %v6608
        %v6663 = vadd.f32 %v6479, %v6611
        %v6664 = vadd.f32 %v6480, %v6614
        %v6665 = vadd.f32 %v6481, %v6617
        %v6666 = vadd.f32 %v6482, %v6620
        %v6667 = vadd.f32 %v6483, %v6623
        %v6668 = vadd.f32 %v6484, %v6626
        %v6669 = vadd.f32 %v6485, %v6629
        %v6670 = vadd.f32 %v6486, %v6632
        %v6671 = vadd.f32 %v6487, %v6635
        %v6672 = vadd.f32 %v6488, %v6638
        %v6673 = vadd.f32 %v6489, %v6641
        %v6674 = vld [vmem:[%s4801] sm:$0xfc]
        %v6675 = vld [vmem:[%s4801 + $0x8] sm:$0xfc]
        %v6676 = vld [vmem:[%s4801 + $0x10] sm:$0x3]
        %v6677 = vld [vmem:[%s4801 + $0x18] sm:$0x3]
        %v6678 = vld [vmem:[%s4801 + $0x20] sm:$0xfc]
        %v6679 = vld [vmem:[%s4801 + $0x28] sm:$0xfc]
        %v6680 = vld [vmem:[%s4801 + $0x30] sm:$0x3]
        %v6681 = vld [vmem:[%s4801 + $0x38] sm:$0x3]
        %v6682 = vld [vmem:[%s4801 + $0x40] sm:$0xfc]
        %v6683 = vld [vmem:[%s4801 + $0x48] sm:$0xfc]
        %v6684 = vld [vmem:[%s4801 + $0x50] sm:$0x3]
        %v6685 = vld [vmem:[%s4801 + $0x58] sm:$0x3]
        %v6686 = vld [vmem:[%s4801 + $0x60] sm:$0xfc]
        %v6687 = vld [vmem:[%s4801 + $0x68] sm:$0xfc]
        %v6688 = vld [vmem:[%s4801 + $0x70] sm:$0x3]
        %v6689 = vld [vmem:[%s4801 + $0x78] sm:$0x3]
        %v6690 = vld [vmem:[%s4801 + $0x80] sm:$0xfc]
        %v6691 = vld [vmem:[%s4801 + $0x88] sm:$0xfc]
        %v6692 = vld [vmem:[%s4801 + $0x90] sm:$0x3]
        %v6693 = vld [vmem:[%s4801 + $0x98] sm:$0x3]
        %v6694 = vld [vmem:[%s4801 + $0xa0] sm:$0xfc]
        %v6695 = vld [vmem:[%s4801 + $0xa8] sm:$0xfc]
        %v6696 = vld [vmem:[%s4801 + $0xb0] sm:$0x3]
        %v6697 = vld [vmem:[%s4801 + $0xb8] sm:$0x3]
        %v6698 = vld [vmem:[%s4801 + $0xc0] sm:$0xfc]
        %v6699 = vld [vmem:[%s4801 + $0xc8] sm:$0xfc]
        %v6700 = vld [vmem:[%s4801 + $0xd0] sm:$0x3]
        %v6701 = vld [vmem:[%s4801 + $0xd8] sm:$0x3]
        %v6702 = vld [vmem:[%s4801 + $0xe0] sm:$0xfc]
        %v6703 = vld [vmem:[%s4801 + $0xe8] sm:$0xfc]
        %v6704 = vld [vmem:[%s4801 + $0xf0] sm:$0x3]
        %v6705 = vld [vmem:[%s4801 + $0xf8] sm:$0x3]
        %v6706 = vlaneseq
        %v6707 = vshrl.u32 %v6706, 7
        %v6708 = vsub.s32 4, %v6707
        %v6709 = vrot.slane %v4838, %v6708
        %v6710 = vlaneseq
        %v6711 = vshrl.u32 %v6710, 7
        %v6712 = vsub.s32 4, %v6711
        %v6713 = vrot.slane %v4839, %v6712
        %v6714 = vmul.f32 %v6674, %v6709
        %v6715 = vmul.f32 %v6675, %v6713
        %v6716 = vmul.f32 %v6676, %v6709
        %v6717 = vmul.f32 %v6677, %v6713
        %v6718 = vmul.f32 %v6678, %v6709
        %v6719 = vmul.f32 %v6679, %v6713
        %v6720 = vmul.f32 %v6680, %v6709
        %v6721 = vmul.f32 %v6681, %v6713
        %v6722 = vmul.f32 %v6682, %v6709
        %v6723 = vmul.f32 %v6683, %v6713
        %v6724 = vmul.f32 %v6684, %v6709
        %v6725 = vmul.f32 %v6685, %v6713
        %v6726 = vmul.f32 %v6686, %v6709
        %v6727 = vmul.f32 %v6687, %v6713
        %v6728 = vmul.f32 %v6688, %v6709
        %v6729 = vmul.f32 %v6689, %v6713
        %v6730 = vmul.f32 %v6690, %v6709
        %v6731 = vmul.f32 %v6691, %v6713
        %v6732 = vmul.f32 %v6692, %v6709
        %v6733 = vmul.f32 %v6693, %v6713
        %v6734 = vmul.f32 %v6694, %v6709
        %v6735 = vmul.f32 %v6695, %v6713
        %v6736 = vmul.f32 %v6696, %v6709
        %v6737 = vmul.f32 %v6697, %v6713
        %v6738 = vmul.f32 %v6698, %v6709
        %v6739 = vmul.f32 %v6699, %v6713
        %v6740 = vmul.f32 %v6700, %v6709
        %v6741 = vmul.f32 %v6701, %v6713
        %v6742 = vmul.f32 %v6702, %v6709
        %v6743 = vmul.f32 %v6703, %v6713
        %v6744 = vmul.f32 %v6704, %v6709
        %v6745 = vmul.f32 %v6705, %v6713
        %v6778 = vrot.slane %v6714, 2
        %v6779 = vrot.slane %v6716, 2
        %v6780 = vsel %vm5191, %v6778, %v6779
        %v6781 = vrot.slane %v6715, 2
        %v6782 = vrot.slane %v6717, 2
        %v6783 = vsel %vm5191, %v6781, %v6782
        %v6784 = vrot.slane %v6718, 2
        %v6785 = vrot.slane %v6720, 2
        %v6786 = vsel %vm5191, %v6784, %v6785
        %v6787 = vrot.slane %v6719, 2
        %v6788 = vrot.slane %v6721, 2
        %v6789 = vsel %vm5191, %v6787, %v6788
        %v6790 = vrot.slane %v6722, 2
        %v6791 = vrot.slane %v6724, 2
        %v6792 = vsel %vm5191, %v6790, %v6791
        %v6793 = vrot.slane %v6723, 2
        %v6794 = vrot.slane %v6725, 2
        %v6795 = vsel %vm5191, %v6793, %v6794
        %v6796 = vrot.slane %v6726, 2
        %v6797 = vrot.slane %v6728, 2
        %v6798 = vsel %vm5191, %v6796, %v6797
        %v6799 = vrot.slane %v6727, 2
        %v6800 = vrot.slane %v6729, 2
        %v6801 = vsel %vm5191, %v6799, %v6800
        %v6802 = vrot.slane %v6730, 2
        %v6803 = vrot.slane %v6732, 2
        %v6804 = vsel %vm5191, %v6802, %v6803
        %v6805 = vrot.slane %v6731, 2
        %v6806 = vrot.slane %v6733, 2
        %v6807 = vsel %vm5191, %v6805, %v6806
        %v6808 = vrot.slane %v6734, 2
        %v6809 = vrot.slane %v6736, 2
        %v6810 = vsel %vm5191, %v6808, %v6809
        %v6811 = vrot.slane %v6735, 2
        %v6812 = vrot.slane %v6737, 2
        %v6813 = vsel %vm5191, %v6811, %v6812
        %v6814 = vrot.slane %v6738, 2
        %v6815 = vrot.slane %v6740, 2
        %v6816 = vsel %vm5191, %v6814, %v6815
        %v6817 = vrot.slane %v6739, 2
        %v6818 = vrot.slane %v6741, 2
        %v6819 = vsel %vm5191, %v6817, %v6818
        %v6820 = vrot.slane %v6742, 2
        %v6821 = vrot.slane %v6744, 2
        %v6822 = vsel %vm5191, %v6820, %v6821
        %v6823 = vrot.slane %v6743, 2
        %v6824 = vrot.slane %v6745, 2
        %v6825 = vsel %vm5191, %v6823, %v6824
        %v6842 = vadd.f32 %v6658, %v6780
        %v6843 = vadd.f32 %v6659, %v6783
        %v6844 = vadd.f32 %v6660, %v6786
        %v6845 = vadd.f32 %v6661, %v6789
        %v6846 = vadd.f32 %v6662, %v6792
        %v6847 = vadd.f32 %v6663, %v6795
        %v6848 = vadd.f32 %v6664, %v6798
        %v6849 = vadd.f32 %v6665, %v6801
        %v6850 = vadd.f32 %v6666, %v6804
        %v6851 = vadd.f32 %v6667, %v6807
        %v6852 = vadd.f32 %v6668, %v6810
        %v6853 = vadd.f32 %v6669, %v6813
        %v6854 = vadd.f32 %v6670, %v6816
        %v6855 = vadd.f32 %v6671, %v6819
        %v6856 = vadd.f32 %v6672, %v6822
        %v6857 = vadd.f32 %v6673, %v6825
        %v6858 = vld [vmem:[%s4801] sm:$0xf8]
        %v6859 = vld [vmem:[%s4801 + $0x8] sm:$0xf8]
        %v6860 = vld [vmem:[%s4801 + $0x10] sm:$0x7]
        %v6861 = vld [vmem:[%s4801 + $0x18] sm:$0x7]
        %v6862 = vld [vmem:[%s4801 + $0x20] sm:$0xf8]
        %v6863 = vld [vmem:[%s4801 + $0x28] sm:$0xf8]
        %v6864 = vld [vmem:[%s4801 + $0x30] sm:$0x7]
        %v6865 = vld [vmem:[%s4801 + $0x38] sm:$0x7]
        %v6866 = vld [vmem:[%s4801 + $0x40] sm:$0xf8]
        %v6867 = vld [vmem:[%s4801 + $0x48] sm:$0xf8]
        %v6868 = vld [vmem:[%s4801 + $0x50] sm:$0x7]
        %v6869 = vld [vmem:[%s4801 + $0x58] sm:$0x7]
        %v6870 = vld [vmem:[%s4801 + $0x60] sm:$0xf8]
        %v6871 = vld [vmem:[%s4801 + $0x68] sm:$0xf8]
        %v6872 = vld [vmem:[%s4801 + $0x70] sm:$0x7]
        %v6873 = vld [vmem:[%s4801 + $0x78] sm:$0x7]
        %v6874 = vld [vmem:[%s4801 + $0x80] sm:$0xf8]
        %v6875 = vld [vmem:[%s4801 + $0x88] sm:$0xf8]
        %v6876 = vld [vmem:[%s4801 + $0x90] sm:$0x7]
        %v6877 = vld [vmem:[%s4801 + $0x98] sm:$0x7]
        %v6878 = vld [vmem:[%s4801 + $0xa0] sm:$0xf8]
        %v6879 = vld [vmem:[%s4801 + $0xa8] sm:$0xf8]
        %v6880 = vld [vmem:[%s4801 + $0xb0] sm:$0x7]
        %v6881 = vld [vmem:[%s4801 + $0xb8] sm:$0x7]
        %v6882 = vld [vmem:[%s4801 + $0xc0] sm:$0xf8]
        %v6883 = vld [vmem:[%s4801 + $0xc8] sm:$0xf8]
        %v6884 = vld [vmem:[%s4801 + $0xd0] sm:$0x7]
        %v6885 = vld [vmem:[%s4801 + $0xd8] sm:$0x7]
        %v6886 = vld [vmem:[%s4801 + $0xe0] sm:$0xf8]
        %v6887 = vld [vmem:[%s4801 + $0xe8] sm:$0xf8]
        %v6888 = vld [vmem:[%s4801 + $0xf0] sm:$0x7]
        %v6889 = vld [vmem:[%s4801 + $0xf8] sm:$0x7]
        %v6890 = vlaneseq
        %v6891 = vshrl.u32 %v6890, 7
        %v6892 = vsub.s32 5, %v6891
        %v6893 = vrot.slane %v4838, %v6892
        %v6894 = vlaneseq
        %v6895 = vshrl.u32 %v6894, 7
        %v6896 = vsub.s32 5, %v6895
        %v6897 = vrot.slane %v4839, %v6896
        %v6898 = vmul.f32 %v6858, %v6893
        %v6899 = vmul.f32 %v6859, %v6897
        %v6900 = vmul.f32 %v6860, %v6893
        %v6901 = vmul.f32 %v6861, %v6897
        %v6902 = vmul.f32 %v6862, %v6893
        %v6903 = vmul.f32 %v6863, %v6897
        %v6904 = vmul.f32 %v6864, %v6893
        %v6905 = vmul.f32 %v6865, %v6897
        %v6906 = vmul.f32 %v6866, %v6893
        %v6907 = vmul.f32 %v6867, %v6897
        %v6908 = vmul.f32 %v6868, %v6893
        %v6909 = vmul.f32 %v6869, %v6897
        %v6910 = vmul.f32 %v6870, %v6893
        %v6911 = vmul.f32 %v6871, %v6897
        %v6912 = vmul.f32 %v6872, %v6893
        %v6913 = vmul.f32 %v6873, %v6897
        %v6914 = vmul.f32 %v6874, %v6893
        %v6915 = vmul.f32 %v6875, %v6897
        %v6916 = vmul.f32 %v6876, %v6893
        %v6917 = vmul.f32 %v6877, %v6897
        %v6918 = vmul.f32 %v6878, %v6893
        %v6919 = vmul.f32 %v6879, %v6897
        %v6920 = vmul.f32 %v6880, %v6893
        %v6921 = vmul.f32 %v6881, %v6897
        %v6922 = vmul.f32 %v6882, %v6893
        %v6923 = vmul.f32 %v6883, %v6897
        %v6924 = vmul.f32 %v6884, %v6893
        %v6925 = vmul.f32 %v6885, %v6897
        %v6926 = vmul.f32 %v6886, %v6893
        %v6927 = vmul.f32 %v6887, %v6897
        %v6928 = vmul.f32 %v6888, %v6893
        %v6929 = vmul.f32 %v6889, %v6897
        %v6962 = vrot.slane %v6898, 3
        %v6963 = vrot.slane %v6900, 3
        %v6964 = vsel %vm5376, %v6962, %v6963
        %v6965 = vrot.slane %v6899, 3
        %v6966 = vrot.slane %v6901, 3
        %v6967 = vsel %vm5376, %v6965, %v6966
        %v6968 = vrot.slane %v6902, 3
        %v6969 = vrot.slane %v6904, 3
        %v6970 = vsel %vm5376, %v6968, %v6969
        %v6971 = vrot.slane %v6903, 3
        %v6972 = vrot.slane %v6905, 3
        %v6973 = vsel %vm5376, %v6971, %v6972
        %v6974 = vrot.slane %v6906, 3
        %v6975 = vrot.slane %v6908, 3
        %v6976 = vsel %vm5376, %v6974, %v6975
        %v6977 = vrot.slane %v6907, 3
        %v6978 = vrot.slane %v6909, 3
        %v6979 = vsel %vm5376, %v6977, %v6978
        %v6980 = vrot.slane %v6910, 3
        %v6981 = vrot.slane %v6912, 3
        %v6982 = vsel %vm5376, %v6980, %v6981
        %v6983 = vrot.slane %v6911, 3
        %v6984 = vrot.slane %v6913, 3
        %v6985 = vsel %vm5376, %v6983, %v6984
        %v6986 = vrot.slane %v6914, 3
        %v6987 = vrot.slane %v6916, 3
        %v6988 = vsel %vm5376, %v6986, %v6987
        %v6989 = vrot.slane %v6915, 3
        %v6990 = vrot.slane %v6917, 3
        %v6991 = vsel %vm5376, %v6989, %v6990
        %v6992 = vrot.slane %v6918, 3
        %v6993 = vrot.slane %v6920, 3
        %v6994 = vsel %vm5376, %v6992, %v6993
        %v6995 = vrot.slane %v6919, 3
        %v6996 = vrot.slane %v6921, 3
        %v6997 = vsel %vm5376, %v6995, %v6996
        %v6998 = vrot.slane %v6922, 3
        %v6999 = vrot.slane %v6924, 3
        %v7000 = vsel %vm5376, %v6998, %v6999
        %v7001 = vrot.slane %v6923, 3
        %v7002 = vrot.slane %v6925, 3
        %v7003 = vsel %vm5376, %v7001, %v7002
        %v7004 = vrot.slane %v6926, 3
        %v7005 = vrot.slane %v6928, 3
        %v7006 = vsel %vm5376, %v7004, %v7005
        %v7007 = vrot.slane %v6927, 3
        %v7008 = vrot.slane %v6929, 3
        %v7009 = vsel %vm5376, %v7007, %v7008
        %v7026 = vadd.f32 %v6842, %v6964
        %v7027 = vadd.f32 %v6843, %v6967
        %v7028 = vadd.f32 %v6844, %v6970
        %v7029 = vadd.f32 %v6845, %v6973
        %v7030 = vadd.f32 %v6846, %v6976
        %v7031 = vadd.f32 %v6847, %v6979
        %v7032 = vadd.f32 %v6848, %v6982
        %v7033 = vadd.f32 %v6849, %v6985
        %v7034 = vadd.f32 %v6850, %v6988
        %v7035 = vadd.f32 %v6851, %v6991
        %v7036 = vadd.f32 %v6852, %v6994
        %v7037 = vadd.f32 %v6853, %v6997
        %v7038 = vadd.f32 %v6854, %v7000
        %v7039 = vadd.f32 %v6855, %v7003
        %v7040 = vadd.f32 %v6856, %v7006
        %v7041 = vadd.f32 %v6857, %v7009
        %v7042 = vld [vmem:[%s4801] sm:$0xf0]
        %v7043 = vld [vmem:[%s4801 + $0x8] sm:$0xf0]
        %v7044 = vld [vmem:[%s4801 + $0x10] sm:$0xf]
        %v7045 = vld [vmem:[%s4801 + $0x18] sm:$0xf]
        %v7046 = vld [vmem:[%s4801 + $0x20] sm:$0xf0]
        %v7047 = vld [vmem:[%s4801 + $0x28] sm:$0xf0]
        %v7048 = vld [vmem:[%s4801 + $0x30] sm:$0xf]
        %v7049 = vld [vmem:[%s4801 + $0x38] sm:$0xf]
        %v7050 = vld [vmem:[%s4801 + $0x40] sm:$0xf0]
        %v7051 = vld [vmem:[%s4801 + $0x48] sm:$0xf0]
        %v7052 = vld [vmem:[%s4801 + $0x50] sm:$0xf]
        %v7053 = vld [vmem:[%s4801 + $0x58] sm:$0xf]
        %v7054 = vld [vmem:[%s4801 + $0x60] sm:$0xf0]
        %v7055 = vld [vmem:[%s4801 + $0x68] sm:$0xf0]
        %v7056 = vld [vmem:[%s4801 + $0x70] sm:$0xf]
        %v7057 = vld [vmem:[%s4801 + $0x78] sm:$0xf]
        %v7058 = vld [vmem:[%s4801 + $0x80] sm:$0xf0]
        %v7059 = vld [vmem:[%s4801 + $0x88] sm:$0xf0]
        %v7060 = vld [vmem:[%s4801 + $0x90] sm:$0xf]
        %v7061 = vld [vmem:[%s4801 + $0x98] sm:$0xf]
        %v7062 = vld [vmem:[%s4801 + $0xa0] sm:$0xf0]
        %v7063 = vld [vmem:[%s4801 + $0xa8] sm:$0xf0]
        %v7064 = vld [vmem:[%s4801 + $0xb0] sm:$0xf]
        %v7065 = vld [vmem:[%s4801 + $0xb8] sm:$0xf]
        %v7066 = vld [vmem:[%s4801 + $0xc0] sm:$0xf0]
        %v7067 = vld [vmem:[%s4801 + $0xc8] sm:$0xf0]
        %v7068 = vld [vmem:[%s4801 + $0xd0] sm:$0xf]
        %v7069 = vld [vmem:[%s4801 + $0xd8] sm:$0xf]
        %v7070 = vld [vmem:[%s4801 + $0xe0] sm:$0xf0]
        %v7071 = vld [vmem:[%s4801 + $0xe8] sm:$0xf0]
        %v7072 = vld [vmem:[%s4801 + $0xf0] sm:$0xf]
        %v7073 = vld [vmem:[%s4801 + $0xf8] sm:$0xf]
        %v7074 = vlaneseq
        %v7075 = vshrl.u32 %v7074, 7
        %v7076 = vsub.s32 6, %v7075
        %v7077 = vrot.slane %v4838, %v7076
        %v7078 = vlaneseq
        %v7079 = vshrl.u32 %v7078, 7
        %v7080 = vsub.s32 6, %v7079
        %v7081 = vrot.slane %v4839, %v7080
        %v7082 = vmul.f32 %v7042, %v7077
        %v7083 = vmul.f32 %v7043, %v7081
        %v7084 = vmul.f32 %v7044, %v7077
        %v7085 = vmul.f32 %v7045, %v7081
        %v7086 = vmul.f32 %v7046, %v7077
        %v7087 = vmul.f32 %v7047, %v7081
        %v7088 = vmul.f32 %v7048, %v7077
        %v7089 = vmul.f32 %v7049, %v7081
        %v7090 = vmul.f32 %v7050, %v7077
        %v7091 = vmul.f32 %v7051, %v7081
        %v7092 = vmul.f32 %v7052, %v7077
        %v7093 = vmul.f32 %v7053, %v7081
        %v7094 = vmul.f32 %v7054, %v7077
        %v7095 = vmul.f32 %v7055, %v7081
        %v7096 = vmul.f32 %v7056, %v7077
        %v7097 = vmul.f32 %v7057, %v7081
        %v7098 = vmul.f32 %v7058, %v7077
        %v7099 = vmul.f32 %v7059, %v7081
        %v7100 = vmul.f32 %v7060, %v7077
        %v7101 = vmul.f32 %v7061, %v7081
        %v7102 = vmul.f32 %v7062, %v7077
        %v7103 = vmul.f32 %v7063, %v7081
        %v7104 = vmul.f32 %v7064, %v7077
        %v7105 = vmul.f32 %v7065, %v7081
        %v7106 = vmul.f32 %v7066, %v7077
        %v7107 = vmul.f32 %v7067, %v7081
        %v7108 = vmul.f32 %v7068, %v7077
        %v7109 = vmul.f32 %v7069, %v7081
        %v7110 = vmul.f32 %v7070, %v7077
        %v7111 = vmul.f32 %v7071, %v7081
        %v7112 = vmul.f32 %v7072, %v7077
        %v7113 = vmul.f32 %v7073, %v7081
        %v7146 = vrot.slane %v7082, 4
        %v7147 = vrot.slane %v7084, 4
        %v7148 = vsel %vm4201, %v7146, %v7147
        %v7149 = vrot.slane %v7083, 4
        %v7150 = vrot.slane %v7085, 4
        %v7151 = vsel %vm4201, %v7149, %v7150
        %v7152 = vrot.slane %v7086, 4
        %v7153 = vrot.slane %v7088, 4
        %v7154 = vsel %vm4201, %v7152, %v7153
        %v7155 = vrot.slane %v7087, 4
        %v7156 = vrot.slane %v7089, 4
        %v7157 = vsel %vm4201, %v7155, %v7156
        %v7158 = vrot.slane %v7090, 4
        %v7159 = vrot.slane %v7092, 4
        %v7160 = vsel %vm4201, %v7158, %v7159
        %v7161 = vrot.slane %v7091, 4
        %v7162 = vrot.slane %v7093, 4
        %v7163 = vsel %vm4201, %v7161, %v7162
        %v7164 = vrot.slane %v7094, 4
        %v7165 = vrot.slane %v7096, 4
        %v7166 = vsel %vm4201, %v7164, %v7165
        %v7167 = vrot.slane %v7095, 4
        %v7168 = vrot.slane %v7097, 4
        %v7169 = vsel %vm4201, %v7167, %v7168
        %v7170 = vrot.slane %v7098, 4
        %v7171 = vrot.slane %v7100, 4
        %v7172 = vsel %vm4201, %v7170, %v7171
        %v7173 = vrot.slane %v7099, 4
        %v7174 = vrot.slane %v7101, 4
        %v7175 = vsel %vm4201, %v7173, %v7174
        %v7176 = vrot.slane %v7102, 4
        %v7177 = vrot.slane %v7104, 4
        %v7178 = vsel %vm4201, %v7176, %v7177
        %v7179 = vrot.slane %v7103, 4
        %v7180 = vrot.slane %v7105, 4
        %v7181 = vsel %vm4201, %v7179, %v7180
        %v7182 = vrot.slane %v7106, 4
        %v7183 = vrot.slane %v7108, 4
        %v7184 = vsel %vm4201, %v7182, %v7183
        %v7185 = vrot.slane %v7107, 4
        %v7186 = vrot.slane %v7109, 4
        %v7187 = vsel %vm4201, %v7185, %v7186
        %v7188 = vrot.slane %v7110, 4
        %v7189 = vrot.slane %v7112, 4
        %v7190 = vsel %vm4201, %v7188, %v7189
        %v7191 = vrot.slane %v7111, 4
        %v7192 = vrot.slane %v7113, 4
        %v7193 = vsel %vm4201, %v7191, %v7192
        %v7210 = vadd.f32 %v7026, %v7148
        %v7211 = vadd.f32 %v7027, %v7151
        %v7212 = vadd.f32 %v7028, %v7154
        %v7213 = vadd.f32 %v7029, %v7157
        %v7214 = vadd.f32 %v7030, %v7160
        %v7215 = vadd.f32 %v7031, %v7163
        %v7216 = vadd.f32 %v7032, %v7166
        %v7217 = vadd.f32 %v7033, %v7169
        %v7218 = vadd.f32 %v7034, %v7172
        %v7219 = vadd.f32 %v7035, %v7175
        %v7220 = vadd.f32 %v7036, %v7178
        %v7221 = vadd.f32 %v7037, %v7181
        %v7222 = vadd.f32 %v7038, %v7184
        %v7223 = vadd.f32 %v7039, %v7187
        %v7224 = vadd.f32 %v7040, %v7190
        %v7225 = vadd.f32 %v7041, %v7193
        %s7226 = scalar_lea.vmem [#allocation4], 96
        %v7227 = vld [vmem:[%s7226] sm:$0xff]
        %v7228 = vld [vmem:[%s7226 + $0x8] sm:$0xff]
        %v7229 = vld [vmem:[%s7226 + $0x20] sm:$0xff]
        %v7230 = vld [vmem:[%s7226 + $0x28] sm:$0xff]
        %v7231 = vld [vmem:[%s7226 + $0x40] sm:$0xff]
        %v7232 = vld [vmem:[%s7226 + $0x48] sm:$0xff]
        %v7233 = vld [vmem:[%s7226 + $0x60] sm:$0xff]
        %v7234 = vld [vmem:[%s7226 + $0x68] sm:$0xff]
        %v7235 = vld [vmem:[%s7226 + $0x80] sm:$0xff]
        %v7236 = vld [vmem:[%s7226 + $0x88] sm:$0xff]
        %v7237 = vld [vmem:[%s7226 + $0xa0] sm:$0xff]
        %v7238 = vld [vmem:[%s7226 + $0xa8] sm:$0xff]
        %v7239 = vld [vmem:[%s7226 + $0xc0] sm:$0xff]
        %v7240 = vld [vmem:[%s7226 + $0xc8] sm:$0xff]
        %v7241 = vld [vmem:[%s7226 + $0xe0] sm:$0xff]
        %v7242 = vld [vmem:[%s7226 + $0xe8] sm:$0xff]
        %v7243 = vlaneseq
        %v7244 = vshrl.u32 %v7243, 7
        %v7245 = vsub.s32 7, %v7244
        %v7246 = vrot.slane %v4838, %v7245
        %v7247 = vlaneseq
        %v7248 = vshrl.u32 %v7247, 7
        %v7249 = vsub.s32 7, %v7248
        %v7250 = vrot.slane %v4839, %v7249
        %v7251 = vmul.f32 %v7227, %v7246
        %v7252 = vmul.f32 %v7228, %v7250
        %v7253 = vmul.f32 %v7229, %v7246
        %v7254 = vmul.f32 %v7230, %v7250
        %v7255 = vmul.f32 %v7231, %v7246
        %v7256 = vmul.f32 %v7232, %v7250
        %v7257 = vmul.f32 %v7233, %v7246
        %v7258 = vmul.f32 %v7234, %v7250
        %v7259 = vmul.f32 %v7235, %v7246
        %v7260 = vmul.f32 %v7236, %v7250
        %v7261 = vmul.f32 %v7237, %v7246
        %v7262 = vmul.f32 %v7238, %v7250
        %v7263 = vmul.f32 %v7239, %v7246
        %v7264 = vmul.f32 %v7240, %v7250
        %v7265 = vmul.f32 %v7241, %v7246
        %v7266 = vmul.f32 %v7242, %v7250
        %v7267 = vadd.f32 %v7210, %v7251
        %v7268 = vadd.f32 %v7211, %v7252
        %v7269 = vadd.f32 %v7212, %v7253
        %v7270 = vadd.f32 %v7213, %v7254
        %v7271 = vadd.f32 %v7214, %v7255
        %v7272 = vadd.f32 %v7215, %v7256
        %v7273 = vadd.f32 %v7216, %v7257
        %v7274 = vadd.f32 %v7217, %v7258
        %v7275 = vadd.f32 %v7218, %v7259
        %v7276 = vadd.f32 %v7219, %v7260
        %v7277 = vadd.f32 %v7220, %v7261
        %v7278 = vadd.f32 %v7221, %v7262
        %v7279 = vadd.f32 %v7222, %v7263
        %v7280 = vadd.f32 %v7223, %v7264
        %v7281 = vadd.f32 %v7224, %v7265
        %v7282 = vadd.f32 %v7225, %v7266
        %v7283 = vld [vmem:[%s7226] sm:$0xfe]
        %v7284 = vld [vmem:[%s7226 + $0x8] sm:$0xfe]
        %v7285 = vld [vmem:[%s7226 + $0x10] sm:$0x1]
        %v7286 = vld [vmem:[%s7226 + $0x18] sm:$0x1]
        %v7287 = vld [vmem:[%s7226 + $0x20] sm:$0xfe]
        %v7288 = vld [vmem:[%s7226 + $0x28] sm:$0xfe]
        %v7289 = vld [vmem:[%s7226 + $0x30] sm:$0x1]
        %v7290 = vld [vmem:[%s7226 + $0x38] sm:$0x1]
        %v7291 = vld [vmem:[%s7226 + $0x40] sm:$0xfe]
        %v7292 = vld [vmem:[%s7226 + $0x48] sm:$0xfe]
        %v7293 = vld [vmem:[%s7226 + $0x50] sm:$0x1]
        %v7294 = vld [vmem:[%s7226 + $0x58] sm:$0x1]
        %v7295 = vld [vmem:[%s7226 + $0x60] sm:$0xfe]
        %v7296 = vld [vmem:[%s7226 + $0x68] sm:$0xfe]
        %v7297 = vld [vmem:[%s7226 + $0x70] sm:$0x1]
        %v7298 = vld [vmem:[%s7226 + $0x78] sm:$0x1]
        %v7299 = vld [vmem:[%s7226 + $0x80] sm:$0xfe]
        %v7300 = vld [vmem:[%s7226 + $0x88] sm:$0xfe]
        %v7301 = vld [vmem:[%s7226 + $0x90] sm:$0x1]
        %v7302 = vld [vmem:[%s7226 + $0x98] sm:$0x1]
        %v7303 = vld [vmem:[%s7226 + $0xa0] sm:$0xfe]
        %v7304 = vld [vmem:[%s7226 + $0xa8] sm:$0xfe]
        %v7305 = vld [vmem:[%s7226 + $0xb0] sm:$0x1]
        %v7306 = vld [vmem:[%s7226 + $0xb8] sm:$0x1]
        %v7307 = vld [vmem:[%s7226 + $0xc0] sm:$0xfe]
        %v7308 = vld [vmem:[%s7226 + $0xc8] sm:$0xfe]
        %v7309 = vld [vmem:[%s7226 + $0xd0] sm:$0x1]
        %v7310 = vld [vmem:[%s7226 + $0xd8] sm:$0x1]
        %v7311 = vld [vmem:[%s7226 + $0xe0] sm:$0xfe]
        %v7312 = vld [vmem:[%s7226 + $0xe8] sm:$0xfe]
        %v7313 = vld [vmem:[%s7226 + $0xf0] sm:$0x1]
        %v7314 = vld [vmem:[%s7226 + $0xf8] sm:$0x1]
        %v7315 = vlaneseq
        %v7316 = vshrl.u32 %v7315, 7
        %v7317 = vsub.s32 0, %v7316
        %v7318 = vrot.slane %v4840, %v7317
        %v7319 = vlaneseq
        %v7320 = vshrl.u32 %v7319, 7
        %v7321 = vsub.s32 0, %v7320
        %v7322 = vrot.slane %v4841, %v7321
        %v7323 = vmul.f32 %v7283, %v7318
        %v7324 = vmul.f32 %v7284, %v7322
        %v7325 = vmul.f32 %v7285, %v7318
        %v7326 = vmul.f32 %v7286, %v7322
        %v7327 = vmul.f32 %v7287, %v7318
        %v7328 = vmul.f32 %v7288, %v7322
        %v7329 = vmul.f32 %v7289, %v7318
        %v7330 = vmul.f32 %v7290, %v7322
        %v7331 = vmul.f32 %v7291, %v7318
        %v7332 = vmul.f32 %v7292, %v7322
        %v7333 = vmul.f32 %v7293, %v7318
        %v7334 = vmul.f32 %v7294, %v7322
        %v7335 = vmul.f32 %v7295, %v7318
        %v7336 = vmul.f32 %v7296, %v7322
        %v7337 = vmul.f32 %v7297, %v7318
        %v7338 = vmul.f32 %v7298, %v7322
        %v7339 = vmul.f32 %v7299, %v7318
        %v7340 = vmul.f32 %v7300, %v7322
        %v7341 = vmul.f32 %v7301, %v7318
        %v7342 = vmul.f32 %v7302, %v7322
        %v7343 = vmul.f32 %v7303, %v7318
        %v7344 = vmul.f32 %v7304, %v7322
        %v7345 = vmul.f32 %v7305, %v7318
        %v7346 = vmul.f32 %v7306, %v7322
        %v7347 = vmul.f32 %v7307, %v7318
        %v7348 = vmul.f32 %v7308, %v7322
        %v7349 = vmul.f32 %v7309, %v7318
        %v7350 = vmul.f32 %v7310, %v7322
        %v7351 = vmul.f32 %v7311, %v7318
        %v7352 = vmul.f32 %v7312, %v7322
        %v7353 = vmul.f32 %v7313, %v7318
        %v7354 = vmul.f32 %v7314, %v7322
        %v7387 = vrot.slane %v7323, 1
        %v7388 = vrot.slane %v7325, 1
        %v7389 = vsel %vm5006, %v7387, %v7388
        %v7390 = vrot.slane %v7324, 1
        %v7391 = vrot.slane %v7326, 1
        %v7392 = vsel %vm5006, %v7390, %v7391
        %v7393 = vrot.slane %v7327, 1
        %v7394 = vrot.slane %v7329, 1
        %v7395 = vsel %vm5006, %v7393, %v7394
        %v7396 = vrot.slane %v7328, 1
        %v7397 = vrot.slane %v7330, 1
        %v7398 = vsel %vm5006, %v7396, %v7397
        %v7399 = vrot.slane %v7331, 1
        %v7400 = vrot.slane %v7333, 1
        %v7401 = vsel %vm5006, %v7399, %v7400
        %v7402 = vrot.slane %v7332, 1
        %v7403 = vrot.slane %v7334, 1
        %v7404 = vsel %vm5006, %v7402, %v7403
        %v7405 = vrot.slane %v7335, 1
        %v7406 = vrot.slane %v7337, 1
        %v7407 = vsel %vm5006, %v7405, %v7406
        %v7408 = vrot.slane %v7336, 1
        %v7409 = vrot.slane %v7338, 1
        %v7410 = vsel %vm5006, %v7408, %v7409
        %v7411 = vrot.slane %v7339, 1
        %v7412 = vrot.slane %v7341, 1
        %v7413 = vsel %vm5006, %v7411, %v7412
        %v7414 = vrot.slane %v7340, 1
        %v7415 = vrot.slane %v7342, 1
        %v7416 = vsel %vm5006, %v7414, %v7415
        %v7417 = vrot.slane %v7343, 1
        %v7418 = vrot.slane %v7345, 1
        %v7419 = vsel %vm5006, %v7417, %v7418
        %v7420 = vrot.slane %v7344, 1
        %v7421 = vrot.slane %v7346, 1
        %v7422 = vsel %vm5006, %v7420, %v7421
        %v7423 = vrot.slane %v7347, 1
        %v7424 = vrot.slane %v7349, 1
        %v7425 = vsel %vm5006, %v7423, %v7424
        %v7426 = vrot.slane %v7348, 1
        %v7427 = vrot.slane %v7350, 1
        %v7428 = vsel %vm5006, %v7426, %v7427
        %v7429 = vrot.slane %v7351, 1
        %v7430 = vrot.slane %v7353, 1
        %v7431 = vsel %vm5006, %v7429, %v7430
        %v7432 = vrot.slane %v7352, 1
        %v7433 = vrot.slane %v7354, 1
        %v7434 = vsel %vm5006, %v7432, %v7433
        %v7451 = vadd.f32 %v7267, %v7389
        %v7452 = vadd.f32 %v7268, %v7392
        %v7453 = vadd.f32 %v7269, %v7395
        %v7454 = vadd.f32 %v7270, %v7398
        %v7455 = vadd.f32 %v7271, %v7401
        %v7456 = vadd.f32 %v7272, %v7404
        %v7457 = vadd.f32 %v7273, %v7407
        %v7458 = vadd.f32 %v7274, %v7410
        %v7459 = vadd.f32 %v7275, %v7413
        %v7460 = vadd.f32 %v7276, %v7416
        %v7461 = vadd.f32 %v7277, %v7419
        %v7462 = vadd.f32 %v7278, %v7422
        %v7463 = vadd.f32 %v7279, %v7425
        %v7464 = vadd.f32 %v7280, %v7428
        %v7465 = vadd.f32 %v7281, %v7431
        %v7466 = vadd.f32 %v7282, %v7434
        %v7467 = vld [vmem:[%s7226] sm:$0xfc]
        %v7468 = vld [vmem:[%s7226 + $0x8] sm:$0xfc]
        %v7469 = vld [vmem:[%s7226 + $0x10] sm:$0x3]
        %v7470 = vld [vmem:[%s7226 + $0x18] sm:$0x3]
        %v7471 = vld [vmem:[%s7226 + $0x20] sm:$0xfc]
        %v7472 = vld [vmem:[%s7226 + $0x28] sm:$0xfc]
        %v7473 = vld [vmem:[%s7226 + $0x30] sm:$0x3]
        %v7474 = vld [vmem:[%s7226 + $0x38] sm:$0x3]
        %v7475 = vld [vmem:[%s7226 + $0x40] sm:$0xfc]
        %v7476 = vld [vmem:[%s7226 + $0x48] sm:$0xfc]
        %v7477 = vld [vmem:[%s7226 + $0x50] sm:$0x3]
        %v7478 = vld [vmem:[%s7226 + $0x58] sm:$0x3]
        %v7479 = vld [vmem:[%s7226 + $0x60] sm:$0xfc]
        %v7480 = vld [vmem:[%s7226 + $0x68] sm:$0xfc]
        %v7481 = vld [vmem:[%s7226 + $0x70] sm:$0x3]
        %v7482 = vld [vmem:[%s7226 + $0x78] sm:$0x3]
        %v7483 = vld [vmem:[%s7226 + $0x80] sm:$0xfc]
        %v7484 = vld [vmem:[%s7226 + $0x88] sm:$0xfc]
        %v7485 = vld [vmem:[%s7226 + $0x90] sm:$0x3]
        %v7486 = vld [vmem:[%s7226 + $0x98] sm:$0x3]
        %v7487 = vld [vmem:[%s7226 + $0xa0] sm:$0xfc]
        %v7488 = vld [vmem:[%s7226 + $0xa8] sm:$0xfc]
        %v7489 = vld [vmem:[%s7226 + $0xb0] sm:$0x3]
        %v7490 = vld [vmem:[%s7226 + $0xb8] sm:$0x3]
        %v7491 = vld [vmem:[%s7226 + $0xc0] sm:$0xfc]
        %v7492 = vld [vmem:[%s7226 + $0xc8] sm:$0xfc]
        %v7493 = vld [vmem:[%s7226 + $0xd0] sm:$0x3]
        %v7494 = vld [vmem:[%s7226 + $0xd8] sm:$0x3]
        %v7495 = vld [vmem:[%s7226 + $0xe0] sm:$0xfc]
        %v7496 = vld [vmem:[%s7226 + $0xe8] sm:$0xfc]
        %v7497 = vld [vmem:[%s7226 + $0xf0] sm:$0x3]
        %v7498 = vld [vmem:[%s7226 + $0xf8] sm:$0x3]
        %v7499 = vlaneseq
        %v7500 = vshrl.u32 %v7499, 7
        %v7501 = vsub.s32 1, %v7500
        %v7502 = vrot.slane %v4840, %v7501
        %v7503 = vlaneseq
        %v7504 = vshrl.u32 %v7503, 7
        %v7505 = vsub.s32 1, %v7504
        %v7506 = vrot.slane %v4841, %v7505
        %v7507 = vmul.f32 %v7467, %v7502
        %v7508 = vmul.f32 %v7468, %v7506
        %v7509 = vmul.f32 %v7469, %v7502
        %v7510 = vmul.f32 %v7470, %v7506
        %v7511 = vmul.f32 %v7471, %v7502
        %v7512 = vmul.f32 %v7472, %v7506
        %v7513 = vmul.f32 %v7473, %v7502
        %v7514 = vmul.f32 %v7474, %v7506
        %v7515 = vmul.f32 %v7475, %v7502
        %v7516 = vmul.f32 %v7476, %v7506
        %v7517 = vmul.f32 %v7477, %v7502
        %v7518 = vmul.f32 %v7478, %v7506
        %v7519 = vmul.f32 %v7479, %v7502
        %v7520 = vmul.f32 %v7480, %v7506
        %v7521 = vmul.f32 %v7481, %v7502
        %v7522 = vmul.f32 %v7482, %v7506
        %v7523 = vmul.f32 %v7483, %v7502
        %v7524 = vmul.f32 %v7484, %v7506
        %v7525 = vmul.f32 %v7485, %v7502
        %v7526 = vmul.f32 %v7486, %v7506
        %v7527 = vmul.f32 %v7487, %v7502
        %v7528 = vmul.f32 %v7488, %v7506
        %v7529 = vmul.f32 %v7489, %v7502
        %v7530 = vmul.f32 %v7490, %v7506
        %v7531 = vmul.f32 %v7491, %v7502
        %v7532 = vmul.f32 %v7492, %v7506
        %v7533 = vmul.f32 %v7493, %v7502
        %v7534 = vmul.f32 %v7494, %v7506
        %v7535 = vmul.f32 %v7495, %v7502
        %v7536 = vmul.f32 %v7496, %v7506
        %v7537 = vmul.f32 %v7497, %v7502
        %v7538 = vmul.f32 %v7498, %v7506
        %v7571 = vrot.slane %v7507, 2
        %v7572 = vrot.slane %v7509, 2
        %v7573 = vsel %vm5191, %v7571, %v7572
        %v7574 = vrot.slane %v7508, 2
        %v7575 = vrot.slane %v7510, 2
        %v7576 = vsel %vm5191, %v7574, %v7575
        %v7577 = vrot.slane %v7511, 2
        %v7578 = vrot.slane %v7513, 2
        %v7579 = vsel %vm5191, %v7577, %v7578
        %v7580 = vrot.slane %v7512, 2
        %v7581 = vrot.slane %v7514, 2
        %v7582 = vsel %vm5191, %v7580, %v7581
        %v7583 = vrot.slane %v7515, 2
        %v7584 = vrot.slane %v7517, 2
        %v7585 = vsel %vm5191, %v7583, %v7584
        %v7586 = vrot.slane %v7516, 2
        %v7587 = vrot.slane %v7518, 2
        %v7588 = vsel %vm5191, %v7586, %v7587
        %v7589 = vrot.slane %v7519, 2
        %v7590 = vrot.slane %v7521, 2
        %v7591 = vsel %vm5191, %v7589, %v7590
        %v7592 = vrot.slane %v7520, 2
        %v7593 = vrot.slane %v7522, 2
        %v7594 = vsel %vm5191, %v7592, %v7593
        %v7595 = vrot.slane %v7523, 2
        %v7596 = vrot.slane %v7525, 2
        %v7597 = vsel %vm5191, %v7595, %v7596
        %v7598 = vrot.slane %v7524, 2
        %v7599 = vrot.slane %v7526, 2
        %v7600 = vsel %vm5191, %v7598, %v7599
        %v7601 = vrot.slane %v7527, 2
        %v7602 = vrot.slane %v7529, 2
        %v7603 = vsel %vm5191, %v7601, %v7602
        %v7604 = vrot.slane %v7528, 2
        %v7605 = vrot.slane %v7530, 2
        %v7606 = vsel %vm5191, %v7604, %v7605
        %v7607 = vrot.slane %v7531, 2
        %v7608 = vrot.slane %v7533, 2
        %v7609 = vsel %vm5191, %v7607, %v7608
        %v7610 = vrot.slane %v7532, 2
        %v7611 = vrot.slane %v7534, 2
        %v7612 = vsel %vm5191, %v7610, %v7611
        %v7613 = vrot.slane %v7535, 2
        %v7614 = vrot.slane %v7537, 2
        %v7615 = vsel %vm5191, %v7613, %v7614
        %v7616 = vrot.slane %v7536, 2
        %v7617 = vrot.slane %v7538, 2
        %v7618 = vsel %vm5191, %v7616, %v7617
        %v7635 = vadd.f32 %v7451, %v7573
        %v7636 = vadd.f32 %v7452, %v7576
        %v7637 = vadd.f32 %v7453, %v7579
        %v7638 = vadd.f32 %v7454, %v7582
        %v7639 = vadd.f32 %v7455, %v7585
        %v7640 = vadd.f32 %v7456, %v7588
        %v7641 = vadd.f32 %v7457, %v7591
        %v7642 = vadd.f32 %v7458, %v7594
        %v7643 = vadd.f32 %v7459, %v7597
        %v7644 = vadd.f32 %v7460, %v7600
        %v7645 = vadd.f32 %v7461, %v7603
        %v7646 = vadd.f32 %v7462, %v7606
        %v7647 = vadd.f32 %v7463, %v7609
        %v7648 = vadd.f32 %v7464, %v7612
        %v7649 = vadd.f32 %v7465, %v7615
        %v7650 = vadd.f32 %v7466, %v7618
        %v7651 = vld [vmem:[%s7226] sm:$0xf8]
        %v7652 = vld [vmem:[%s7226 + $0x8] sm:$0xf8]
        %v7653 = vld [vmem:[%s7226 + $0x10] sm:$0x7]
        %v7654 = vld [vmem:[%s7226 + $0x18] sm:$0x7]
        %v7655 = vld [vmem:[%s7226 + $0x20] sm:$0xf8]
        %v7656 = vld [vmem:[%s7226 + $0x28] sm:$0xf8]
        %v7657 = vld [vmem:[%s7226 + $0x30] sm:$0x7]
        %v7658 = vld [vmem:[%s7226 + $0x38] sm:$0x7]
        %v7659 = vld [vmem:[%s7226 + $0x40] sm:$0xf8]
        %v7660 = vld [vmem:[%s7226 + $0x48] sm:$0xf8]
        %v7661 = vld [vmem:[%s7226 + $0x50] sm:$0x7]
        %v7662 = vld [vmem:[%s7226 + $0x58] sm:$0x7]
        %v7663 = vld [vmem:[%s7226 + $0x60] sm:$0xf8]
        %v7664 = vld [vmem:[%s7226 + $0x68] sm:$0xf8]
        %v7665 = vld [vmem:[%s7226 + $0x70] sm:$0x7]
        %v7666 = vld [vmem:[%s7226 + $0x78] sm:$0x7]
        %v7667 = vld [vmem:[%s7226 + $0x80] sm:$0xf8]
        %v7668 = vld [vmem:[%s7226 + $0x88] sm:$0xf8]
        %v7669 = vld [vmem:[%s7226 + $0x90] sm:$0x7]
        %v7670 = vld [vmem:[%s7226 + $0x98] sm:$0x7]
        %v7671 = vld [vmem:[%s7226 + $0xa0] sm:$0xf8]
        %v7672 = vld [vmem:[%s7226 + $0xa8] sm:$0xf8]
        %v7673 = vld [vmem:[%s7226 + $0xb0] sm:$0x7]
        %v7674 = vld [vmem:[%s7226 + $0xb8] sm:$0x7]
        %v7675 = vld [vmem:[%s7226 + $0xc0] sm:$0xf8]
        %v7676 = vld [vmem:[%s7226 + $0xc8] sm:$0xf8]
        %v7677 = vld [vmem:[%s7226 + $0xd0] sm:$0x7]
        %v7678 = vld [vmem:[%s7226 + $0xd8] sm:$0x7]
        %v7679 = vld [vmem:[%s7226 + $0xe0] sm:$0xf8]
        %v7680 = vld [vmem:[%s7226 + $0xe8] sm:$0xf8]
        %v7681 = vld [vmem:[%s7226 + $0xf0] sm:$0x7]
        %v7682 = vld [vmem:[%s7226 + $0xf8] sm:$0x7]
        %v7683 = vlaneseq
        %v7684 = vshrl.u32 %v7683, 7
        %v7685 = vsub.s32 2, %v7684
        %v7686 = vrot.slane %v4840, %v7685
        %v7687 = vlaneseq
        %v7688 = vshrl.u32 %v7687, 7
        %v7689 = vsub.s32 2, %v7688
        %v7690 = vrot.slane %v4841, %v7689
        %v7691 = vmul.f32 %v7651, %v7686
        %v7692 = vmul.f32 %v7652, %v7690
        %v7693 = vmul.f32 %v7653, %v7686
        %v7694 = vmul.f32 %v7654, %v7690
        %v7695 = vmul.f32 %v7655, %v7686
        %v7696 = vmul.f32 %v7656, %v7690
        %v7697 = vmul.f32 %v7657, %v7686
        %v7698 = vmul.f32 %v7658, %v7690
        %v7699 = vmul.f32 %v7659, %v7686
        %v7700 = vmul.f32 %v7660, %v7690
        %v7701 = vmul.f32 %v7661, %v7686
        %v7702 = vmul.f32 %v7662, %v7690
        %v7703 = vmul.f32 %v7663, %v7686
        %v7704 = vmul.f32 %v7664, %v7690
        %v7705 = vmul.f32 %v7665, %v7686
        %v7706 = vmul.f32 %v7666, %v7690
        %v7707 = vmul.f32 %v7667, %v7686
        %v7708 = vmul.f32 %v7668, %v7690
        %v7709 = vmul.f32 %v7669, %v7686
        %v7710 = vmul.f32 %v7670, %v7690
        %v7711 = vmul.f32 %v7671, %v7686
        %v7712 = vmul.f32 %v7672, %v7690
        %v7713 = vmul.f32 %v7673, %v7686
        %v7714 = vmul.f32 %v7674, %v7690
        %v7715 = vmul.f32 %v7675, %v7686
        %v7716 = vmul.f32 %v7676, %v7690
        %v7717 = vmul.f32 %v7677, %v7686
        %v7718 = vmul.f32 %v7678, %v7690
        %v7719 = vmul.f32 %v7679, %v7686
        %v7720 = vmul.f32 %v7680, %v7690
        %v7721 = vmul.f32 %v7681, %v7686
        %v7722 = vmul.f32 %v7682, %v7690
        %v7755 = vrot.slane %v7691, 3
        %v7756 = vrot.slane %v7693, 3
        %v7757 = vsel %vm5376, %v7755, %v7756
        %v7758 = vrot.slane %v7692, 3
        %v7759 = vrot.slane %v7694, 3
        %v7760 = vsel %vm5376, %v7758, %v7759
        %v7761 = vrot.slane %v7695, 3
        %v7762 = vrot.slane %v7697, 3
        %v7763 = vsel %vm5376, %v7761, %v7762
        %v7764 = vrot.slane %v7696, 3
        %v7765 = vrot.slane %v7698, 3
        %v7766 = vsel %vm5376, %v7764, %v7765
        %v7767 = vrot.slane %v7699, 3
        %v7768 = vrot.slane %v7701, 3
        %v7769 = vsel %vm5376, %v7767, %v7768
        %v7770 = vrot.slane %v7700, 3
        %v7771 = vrot.slane %v7702, 3
        %v7772 = vsel %vm5376, %v7770, %v7771
        %v7773 = vrot.slane %v7703, 3
        %v7774 = vrot.slane %v7705, 3
        %v7775 = vsel %vm5376, %v7773, %v7774
        %v7776 = vrot.slane %v7704, 3
        %v7777 = vrot.slane %v7706, 3
        %v7778 = vsel %vm5376, %v7776, %v7777
        %v7779 = vrot.slane %v7707, 3
        %v7780 = vrot.slane %v7709, 3
        %v7781 = vsel %vm5376, %v7779, %v7780
        %v7782 = vrot.slane %v7708, 3
        %v7783 = vrot.slane %v7710, 3
        %v7784 = vsel %vm5376, %v7782, %v7783
        %v7785 = vrot.slane %v7711, 3
        %v7786 = vrot.slane %v7713, 3
        %v7787 = vsel %vm5376, %v7785, %v7786
        %v7788 = vrot.slane %v7712, 3
        %v7789 = vrot.slane %v7714, 3
        %v7790 = vsel %vm5376, %v7788, %v7789
        %v7791 = vrot.slane %v7715, 3
        %v7792 = vrot.slane %v7717, 3
        %v7793 = vsel %vm5376, %v7791, %v7792
        %v7794 = vrot.slane %v7716, 3
        %v7795 = vrot.slane %v7718, 3
        %v7796 = vsel %vm5376, %v7794, %v7795
        %v7797 = vrot.slane %v7719, 3
        %v7798 = vrot.slane %v7721, 3
        %v7799 = vsel %vm5376, %v7797, %v7798
        %v7800 = vrot.slane %v7720, 3
        %v7801 = vrot.slane %v7722, 3
        %v7802 = vsel %vm5376, %v7800, %v7801
        %v7819 = vadd.f32 %v7635, %v7757
        %v7820 = vadd.f32 %v7636, %v7760
        %v7821 = vadd.f32 %v7637, %v7763
        %v7822 = vadd.f32 %v7638, %v7766
        %v7823 = vadd.f32 %v7639, %v7769
        %v7824 = vadd.f32 %v7640, %v7772
        %v7825 = vadd.f32 %v7641, %v7775
        %v7826 = vadd.f32 %v7642, %v7778
        %v7827 = vadd.f32 %v7643, %v7781
        %v7828 = vadd.f32 %v7644, %v7784
        %v7829 = vadd.f32 %v7645, %v7787
        %v7830 = vadd.f32 %v7646, %v7790
        %v7831 = vadd.f32 %v7647, %v7793
        %v7832 = vadd.f32 %v7648, %v7796
        %v7833 = vadd.f32 %v7649, %v7799
        %v7834 = vadd.f32 %v7650, %v7802
        %v7835 = vld [vmem:[%s7226] sm:$0xf0]
        %v7836 = vld [vmem:[%s7226 + $0x8] sm:$0xf0]
        %v7837 = vld [vmem:[%s7226 + $0x10] sm:$0xf]
        %v7838 = vld [vmem:[%s7226 + $0x18] sm:$0xf]
        %v7839 = vld [vmem:[%s7226 + $0x20] sm:$0xf0]
        %v7840 = vld [vmem:[%s7226 + $0x28] sm:$0xf0]
        %v7841 = vld [vmem:[%s7226 + $0x30] sm:$0xf]
        %v7842 = vld [vmem:[%s7226 + $0x38] sm:$0xf]
        %v7843 = vld [vmem:[%s7226 + $0x40] sm:$0xf0]
        %v7844 = vld [vmem:[%s7226 + $0x48] sm:$0xf0]
        %v7845 = vld [vmem:[%s7226 + $0x50] sm:$0xf]
        %v7846 = vld [vmem:[%s7226 + $0x58] sm:$0xf]
        %v7847 = vld [vmem:[%s7226 + $0x60] sm:$0xf0]
        %v7848 = vld [vmem:[%s7226 + $0x68] sm:$0xf0]
        %v7849 = vld [vmem:[%s7226 + $0x70] sm:$0xf]
        %v7850 = vld [vmem:[%s7226 + $0x78] sm:$0xf]
        %v7851 = vld [vmem:[%s7226 + $0x80] sm:$0xf0]
        %v7852 = vld [vmem:[%s7226 + $0x88] sm:$0xf0]
        %v7853 = vld [vmem:[%s7226 + $0x90] sm:$0xf]
        %v7854 = vld [vmem:[%s7226 + $0x98] sm:$0xf]
        %v7855 = vld [vmem:[%s7226 + $0xa0] sm:$0xf0]
        %v7856 = vld [vmem:[%s7226 + $0xa8] sm:$0xf0]
        %v7857 = vld [vmem:[%s7226 + $0xb0] sm:$0xf]
        %v7858 = vld [vmem:[%s7226 + $0xb8] sm:$0xf]
        %v7859 = vld [vmem:[%s7226 + $0xc0] sm:$0xf0]
        %v7860 = vld [vmem:[%s7226 + $0xc8] sm:$0xf0]
        %v7861 = vld [vmem:[%s7226 + $0xd0] sm:$0xf]
        %v7862 = vld [vmem:[%s7226 + $0xd8] sm:$0xf]
        %v7863 = vld [vmem:[%s7226 + $0xe0] sm:$0xf0]
        %v7864 = vld [vmem:[%s7226 + $0xe8] sm:$0xf0]
        %v7865 = vld [vmem:[%s7226 + $0xf0] sm:$0xf]
        %v7866 = vld [vmem:[%s7226 + $0xf8] sm:$0xf]
        %v7867 = vlaneseq
        %v7868 = vshrl.u32 %v7867, 7
        %v7869 = vsub.s32 3, %v7868
        %v7870 = vrot.slane %v4840, %v7869
        %v7871 = vlaneseq
        %v7872 = vshrl.u32 %v7871, 7
        %v7873 = vsub.s32 3, %v7872
        %v7874 = vrot.slane %v4841, %v7873
        %v7875 = vmul.f32 %v7835, %v7870
        %v7876 = vmul.f32 %v7836, %v7874
        %v7877 = vmul.f32 %v7837, %v7870
        %v7878 = vmul.f32 %v7838, %v7874
        %v7879 = vmul.f32 %v7839, %v7870
        %v7880 = vmul.f32 %v7840, %v7874
        %v7881 = vmul.f32 %v7841, %v7870
        %v7882 = vmul.f32 %v7842, %v7874
        %v7883 = vmul.f32 %v7843, %v7870
        %v7884 = vmul.f32 %v7844, %v7874
        %v7885 = vmul.f32 %v7845, %v7870
        %v7886 = vmul.f32 %v7846, %v7874
        %v7887 = vmul.f32 %v7847, %v7870
        %v7888 = vmul.f32 %v7848, %v7874
        %v7889 = vmul.f32 %v7849, %v7870
        %v7890 = vmul.f32 %v7850, %v7874
        %v7891 = vmul.f32 %v7851, %v7870
        %v7892 = vmul.f32 %v7852, %v7874
        %v7893 = vmul.f32 %v7853, %v7870
        %v7894 = vmul.f32 %v7854, %v7874
        %v7895 = vmul.f32 %v7855, %v7870
        %v7896 = vmul.f32 %v7856, %v7874
        %v7897 = vmul.f32 %v7857, %v7870
        %v7898 = vmul.f32 %v7858, %v7874
        %v7899 = vmul.f32 %v7859, %v7870
        %v7900 = vmul.f32 %v7860, %v7874
        %v7901 = vmul.f32 %v7861, %v7870
        %v7902 = vmul.f32 %v7862, %v7874
        %v7903 = vmul.f32 %v7863, %v7870
        %v7904 = vmul.f32 %v7864, %v7874
        %v7905 = vmul.f32 %v7865, %v7870
        %v7906 = vmul.f32 %v7866, %v7874
        %v7939 = vrot.slane %v7875, 4
        %v7940 = vrot.slane %v7877, 4
        %v7941 = vsel %vm4201, %v7939, %v7940
        %v7942 = vrot.slane %v7876, 4
        %v7943 = vrot.slane %v7878, 4
        %v7944 = vsel %vm4201, %v7942, %v7943
        %v7945 = vrot.slane %v7879, 4
        %v7946 = vrot.slane %v7881, 4
        %v7947 = vsel %vm4201, %v7945, %v7946
        %v7948 = vrot.slane %v7880, 4
        %v7949 = vrot.slane %v7882, 4
        %v7950 = vsel %vm4201, %v7948, %v7949
        %v7951 = vrot.slane %v7883, 4
        %v7952 = vrot.slane %v7885, 4
        %v7953 = vsel %vm4201, %v7951, %v7952
        %v7954 = vrot.slane %v7884, 4
        %v7955 = vrot.slane %v7886, 4
        %v7956 = vsel %vm4201, %v7954, %v7955
        %v7957 = vrot.slane %v7887, 4
        %v7958 = vrot.slane %v7889, 4
        %v7959 = vsel %vm4201, %v7957, %v7958
        %v7960 = vrot.slane %v7888, 4
        %v7961 = vrot.slane %v7890, 4
        %v7962 = vsel %vm4201, %v7960, %v7961
        %v7963 = vrot.slane %v7891, 4
        %v7964 = vrot.slane %v7893, 4
        %v7965 = vsel %vm4201, %v7963, %v7964
        %v7966 = vrot.slane %v7892, 4
        %v7967 = vrot.slane %v7894, 4
        %v7968 = vsel %vm4201, %v7966, %v7967
        %v7969 = vrot.slane %v7895, 4
        %v7970 = vrot.slane %v7897, 4
        %v7971 = vsel %vm4201, %v7969, %v7970
        %v7972 = vrot.slane %v7896, 4
        %v7973 = vrot.slane %v7898, 4
        %v7974 = vsel %vm4201, %v7972, %v7973
        %v7975 = vrot.slane %v7899, 4
        %v7976 = vrot.slane %v7901, 4
        %v7977 = vsel %vm4201, %v7975, %v7976
        %v7978 = vrot.slane %v7900, 4
        %v7979 = vrot.slane %v7902, 4
        %v7980 = vsel %vm4201, %v7978, %v7979
        %v7981 = vrot.slane %v7903, 4
        %v7982 = vrot.slane %v7905, 4
        %v7983 = vsel %vm4201, %v7981, %v7982
        %v7984 = vrot.slane %v7904, 4
        %v7985 = vrot.slane %v7906, 4
        %v7986 = vsel %vm4201, %v7984, %v7985
        %v8003 = vadd.f32 %v7819, %v7941
        %v8004 = vadd.f32 %v7820, %v7944
        %v8005 = vadd.f32 %v7821, %v7947
        %v8006 = vadd.f32 %v7822, %v7950
        %v8007 = vadd.f32 %v7823, %v7953
        %v8008 = vadd.f32 %v7824, %v7956
        %v8009 = vadd.f32 %v7825, %v7959
        %v8010 = vadd.f32 %v7826, %v7962
        %v8011 = vadd.f32 %v7827, %v7965
        %v8012 = vadd.f32 %v7828, %v7968
        %v8013 = vadd.f32 %v7829, %v7971
        %v8014 = vadd.f32 %v7830, %v7974
        %v8015 = vadd.f32 %v7831, %v7977
        %v8016 = vadd.f32 %v7832, %v7980
        %v8017 = vadd.f32 %v7833, %v7983
        %v8018 = vadd.f32 %v7834, %v7986
        %s8019 = scalar_lea.vmem [#allocation4], 128
        %v8020 = vld [vmem:[%s8019] sm:$0xff]
        %v8021 = vld [vmem:[%s8019 + $0x8] sm:$0xff]
        %v8022 = vld [vmem:[%s8019 + $0x20] sm:$0xff]
        %v8023 = vld [vmem:[%s8019 + $0x28] sm:$0xff]
        %v8024 = vld [vmem:[%s8019 + $0x40] sm:$0xff]
        %v8025 = vld [vmem:[%s8019 + $0x48] sm:$0xff]
        %v8026 = vld [vmem:[%s8019 + $0x60] sm:$0xff]
        %v8027 = vld [vmem:[%s8019 + $0x68] sm:$0xff]
        %v8028 = vld [vmem:[%s8019 + $0x80] sm:$0xff]
        %v8029 = vld [vmem:[%s8019 + $0x88] sm:$0xff]
        %v8030 = vld [vmem:[%s8019 + $0xa0] sm:$0xff]
        %v8031 = vld [vmem:[%s8019 + $0xa8] sm:$0xff]
        %v8032 = vld [vmem:[%s8019 + $0xc0] sm:$0xff]
        %v8033 = vld [vmem:[%s8019 + $0xc8] sm:$0xff]
        %v8034 = vld [vmem:[%s8019 + $0xe0] sm:$0xff]
        %v8035 = vld [vmem:[%s8019 + $0xe8] sm:$0xff]
        %v8036 = vlaneseq
        %v8037 = vshrl.u32 %v8036, 7
        %v8038 = vsub.s32 4, %v8037
        %v8039 = vrot.slane %v4840, %v8038
        %v8040 = vlaneseq
        %v8041 = vshrl.u32 %v8040, 7
        %v8042 = vsub.s32 4, %v8041
        %v8043 = vrot.slane %v4841, %v8042
        %v8044 = vmul.f32 %v8020, %v8039
        %v8045 = vmul.f32 %v8021, %v8043
        %v8046 = vmul.f32 %v8022, %v8039
        %v8047 = vmul.f32 %v8023, %v8043
        %v8048 = vmul.f32 %v8024, %v8039
        %v8049 = vmul.f32 %v8025, %v8043
        %v8050 = vmul.f32 %v8026, %v8039
        %v8051 = vmul.f32 %v8027, %v8043
        %v8052 = vmul.f32 %v8028, %v8039
        %v8053 = vmul.f32 %v8029, %v8043
        %v8054 = vmul.f32 %v8030, %v8039
        %v8055 = vmul.f32 %v8031, %v8043
        %v8056 = vmul.f32 %v8032, %v8039
        %v8057 = vmul.f32 %v8033, %v8043
        %v8058 = vmul.f32 %v8034, %v8039
        %v8059 = vmul.f32 %v8035, %v8043
        %v8060 = vadd.f32 %v8003, %v8044
        %v8061 = vadd.f32 %v8004, %v8045
        %v8062 = vadd.f32 %v8005, %v8046
        %v8063 = vadd.f32 %v8006, %v8047
        %v8064 = vadd.f32 %v8007, %v8048
        %v8065 = vadd.f32 %v8008, %v8049
        %v8066 = vadd.f32 %v8009, %v8050
        %v8067 = vadd.f32 %v8010, %v8051
        %v8068 = vadd.f32 %v8011, %v8052
        %v8069 = vadd.f32 %v8012, %v8053
        %v8070 = vadd.f32 %v8013, %v8054
        %v8071 = vadd.f32 %v8014, %v8055
        %v8072 = vadd.f32 %v8015, %v8056
        %v8073 = vadd.f32 %v8016, %v8057
        %v8074 = vadd.f32 %v8017, %v8058
        %v8075 = vadd.f32 %v8018, %v8059
        %v8076 = vld [vmem:[%s8019] sm:$0xfe]
        %v8077 = vld [vmem:[%s8019 + $0x8] sm:$0xfe]
        %v8078 = vld [vmem:[%s8019 + $0x10] sm:$0x1]
        %v8079 = vld [vmem:[%s8019 + $0x18] sm:$0x1]
        %v8080 = vld [vmem:[%s8019 + $0x20] sm:$0xfe]
        %v8081 = vld [vmem:[%s8019 + $0x28] sm:$0xfe]
        %v8082 = vld [vmem:[%s8019 + $0x30] sm:$0x1]
        %v8083 = vld [vmem:[%s8019 + $0x38] sm:$0x1]
        %v8084 = vld [vmem:[%s8019 + $0x40] sm:$0xfe]
        %v8085 = vld [vmem:[%s8019 + $0x48] sm:$0xfe]
        %v8086 = vld [vmem:[%s8019 + $0x50] sm:$0x1]
        %v8087 = vld [vmem:[%s8019 + $0x58] sm:$0x1]
        %v8088 = vld [vmem:[%s8019 + $0x60] sm:$0xfe]
        %v8089 = vld [vmem:[%s8019 + $0x68] sm:$0xfe]
        %v8090 = vld [vmem:[%s8019 + $0x70] sm:$0x1]
        %v8091 = vld [vmem:[%s8019 + $0x78] sm:$0x1]
        %v8092 = vld [vmem:[%s8019 + $0x80] sm:$0xfe]
        %v8093 = vld [vmem:[%s8019 + $0x88] sm:$0xfe]
        %v8094 = vld [vmem:[%s8019 + $0x90] sm:$0x1]
        %v8095 = vld [vmem:[%s8019 + $0x98] sm:$0x1]
        %v8096 = vld [vmem:[%s8019 + $0xa0] sm:$0xfe]
        %v8097 = vld [vmem:[%s8019 + $0xa8] sm:$0xfe]
        %v8098 = vld [vmem:[%s8019 + $0xb0] sm:$0x1]
        %v8099 = vld [vmem:[%s8019 + $0xb8] sm:$0x1]
        %v8100 = vld [vmem:[%s8019 + $0xc0] sm:$0xfe]
        %v8101 = vld [vmem:[%s8019 + $0xc8] sm:$0xfe]
        %v8102 = vld [vmem:[%s8019 + $0xd0] sm:$0x1]
        %v8103 = vld [vmem:[%s8019 + $0xd8] sm:$0x1]
        %v8104 = vld [vmem:[%s8019 + $0xe0] sm:$0xfe]
        %v8105 = vld [vmem:[%s8019 + $0xe8] sm:$0xfe]
        %v8106 = vld [vmem:[%s8019 + $0xf0] sm:$0x1]
        %v8107 = vld [vmem:[%s8019 + $0xf8] sm:$0x1]
        %v8108 = vlaneseq
        %v8109 = vshrl.u32 %v8108, 7
        %v8110 = vsub.s32 5, %v8109
        %v8111 = vrot.slane %v4840, %v8110
        %v8112 = vlaneseq
        %v8113 = vshrl.u32 %v8112, 7
        %v8114 = vsub.s32 5, %v8113
        %v8115 = vrot.slane %v4841, %v8114
        %v8116 = vmul.f32 %v8076, %v8111
        %v8117 = vmul.f32 %v8077, %v8115
        %v8118 = vmul.f32 %v8078, %v8111
        %v8119 = vmul.f32 %v8079, %v8115
        %v8120 = vmul.f32 %v8080, %v8111
        %v8121 = vmul.f32 %v8081, %v8115
        %v8122 = vmul.f32 %v8082, %v8111
        %v8123 = vmul.f32 %v8083, %v8115
        %v8124 = vmul.f32 %v8084, %v8111
        %v8125 = vmul.f32 %v8085, %v8115
        %v8126 = vmul.f32 %v8086, %v8111
        %v8127 = vmul.f32 %v8087, %v8115
        %v8128 = vmul.f32 %v8088, %v8111
        %v8129 = vmul.f32 %v8089, %v8115
        %v8130 = vmul.f32 %v8090, %v8111
        %v8131 = vmul.f32 %v8091, %v8115
        %v8132 = vmul.f32 %v8092, %v8111
        %v8133 = vmul.f32 %v8093, %v8115
        %v8134 = vmul.f32 %v8094, %v8111
        %v8135 = vmul.f32 %v8095, %v8115
        %v8136 = vmul.f32 %v8096, %v8111
        %v8137 = vmul.f32 %v8097, %v8115
        %v8138 = vmul.f32 %v8098, %v8111
        %v8139 = vmul.f32 %v8099, %v8115
        %v8140 = vmul.f32 %v8100, %v8111
        %v8141 = vmul.f32 %v8101, %v8115
        %v8142 = vmul.f32 %v8102, %v8111
        %v8143 = vmul.f32 %v8103, %v8115
        %v8144 = vmul.f32 %v8104, %v8111
        %v8145 = vmul.f32 %v8105, %v8115
        %v8146 = vmul.f32 %v8106, %v8111
        %v8147 = vmul.f32 %v8107, %v8115
        %v8180 = vrot.slane %v8116, 1
        %v8181 = vrot.slane %v8118, 1
        %v8182 = vsel %vm5006, %v8180, %v8181
        %v8183 = vrot.slane %v8117, 1
        %v8184 = vrot.slane %v8119, 1
        %v8185 = vsel %vm5006, %v8183, %v8184
        %v8186 = vrot.slane %v8120, 1
        %v8187 = vrot.slane %v8122, 1
        %v8188 = vsel %vm5006, %v8186, %v8187
        %v8189 = vrot.slane %v8121, 1
        %v8190 = vrot.slane %v8123, 1
        %v8191 = vsel %vm5006, %v8189, %v8190
        %v8192 = vrot.slane %v8124, 1
        %v8193 = vrot.slane %v8126, 1
        %v8194 = vsel %vm5006, %v8192, %v8193
        %v8195 = vrot.slane %v8125, 1
        %v8196 = vrot.slane %v8127, 1
        %v8197 = vsel %vm5006, %v8195, %v8196
        %v8198 = vrot.slane %v8128, 1
        %v8199 = vrot.slane %v8130, 1
        %v8200 = vsel %vm5006, %v8198, %v8199
        %v8201 = vrot.slane %v8129, 1
        %v8202 = vrot.slane %v8131, 1
        %v8203 = vsel %vm5006, %v8201, %v8202
        %v8204 = vrot.slane %v8132, 1
        %v8205 = vrot.slane %v8134, 1
        %v8206 = vsel %vm5006, %v8204, %v8205
        %v8207 = vrot.slane %v8133, 1
        %v8208 = vrot.slane %v8135, 1
        %v8209 = vsel %vm5006, %v8207, %v8208
        %v8210 = vrot.slane %v8136, 1
        %v8211 = vrot.slane %v8138, 1
        %v8212 = vsel %vm5006, %v8210, %v8211
        %v8213 = vrot.slane %v8137, 1
        %v8214 = vrot.slane %v8139, 1
        %v8215 = vsel %vm5006, %v8213, %v8214
        %v8216 = vrot.slane %v8140, 1
        %v8217 = vrot.slane %v8142, 1
        %v8218 = vsel %vm5006, %v8216, %v8217
        %v8219 = vrot.slane %v8141, 1
        %v8220 = vrot.slane %v8143, 1
        %v8221 = vsel %vm5006, %v8219, %v8220
        %v8222 = vrot.slane %v8144, 1
        %v8223 = vrot.slane %v8146, 1
        %v8224 = vsel %vm5006, %v8222, %v8223
        %v8225 = vrot.slane %v8145, 1
        %v8226 = vrot.slane %v8147, 1
        %v8227 = vsel %vm5006, %v8225, %v8226
        %v8244 = vadd.f32 %v8060, %v8182
        %v8245 = vadd.f32 %v8061, %v8185
        %v8246 = vadd.f32 %v8062, %v8188
        %v8247 = vadd.f32 %v8063, %v8191
        %v8248 = vadd.f32 %v8064, %v8194
        %v8249 = vadd.f32 %v8065, %v8197
        %v8250 = vadd.f32 %v8066, %v8200
        %v8251 = vadd.f32 %v8067, %v8203
        %v8252 = vadd.f32 %v8068, %v8206
        %v8253 = vadd.f32 %v8069, %v8209
        %v8254 = vadd.f32 %v8070, %v8212
        %v8255 = vadd.f32 %v8071, %v8215
        %v8256 = vadd.f32 %v8072, %v8218
        %v8257 = vadd.f32 %v8073, %v8221
        %v8258 = vadd.f32 %v8074, %v8224
        %v8259 = vadd.f32 %v8075, %v8227
        %v8260 = vld [vmem:[%s8019] sm:$0xfc]
        %v8261 = vld [vmem:[%s8019 + $0x8] sm:$0xfc]
        %v8262 = vld [vmem:[%s8019 + $0x10] sm:$0x3]
        %v8263 = vld [vmem:[%s8019 + $0x18] sm:$0x3]
        %v8264 = vld [vmem:[%s8019 + $0x20] sm:$0xfc]
        %v8265 = vld [vmem:[%s8019 + $0x28] sm:$0xfc]
        %v8266 = vld [vmem:[%s8019 + $0x30] sm:$0x3]
        %v8267 = vld [vmem:[%s8019 + $0x38] sm:$0x3]
        %v8268 = vld [vmem:[%s8019 + $0x40] sm:$0xfc]
        %v8269 = vld [vmem:[%s8019 + $0x48] sm:$0xfc]
        %v8270 = vld [vmem:[%s8019 + $0x50] sm:$0x3]
        %v8271 = vld [vmem:[%s8019 + $0x58] sm:$0x3]
        %v8272 = vld [vmem:[%s8019 + $0x60] sm:$0xfc]
        %v8273 = vld [vmem:[%s8019 + $0x68] sm:$0xfc]
        %v8274 = vld [vmem:[%s8019 + $0x70] sm:$0x3]
        %v8275 = vld [vmem:[%s8019 + $0x78] sm:$0x3]
        %v8276 = vld [vmem:[%s8019 + $0x80] sm:$0xfc]
        %v8277 = vld [vmem:[%s8019 + $0x88] sm:$0xfc]
        %v8278 = vld [vmem:[%s8019 + $0x90] sm:$0x3]
        %v8279 = vld [vmem:[%s8019 + $0x98] sm:$0x3]
        %v8280 = vld [vmem:[%s8019 + $0xa0] sm:$0xfc]
        %v8281 = vld [vmem:[%s8019 + $0xa8] sm:$0xfc]
        %v8282 = vld [vmem:[%s8019 + $0xb0] sm:$0x3]
        %v8283 = vld [vmem:[%s8019 + $0xb8] sm:$0x3]
        %v8284 = vld [vmem:[%s8019 + $0xc0] sm:$0xfc]
        %v8285 = vld [vmem:[%s8019 + $0xc8] sm:$0xfc]
        %v8286 = vld [vmem:[%s8019 + $0xd0] sm:$0x3]
        %v8287 = vld [vmem:[%s8019 + $0xd8] sm:$0x3]
        %v8288 = vld [vmem:[%s8019 + $0xe0] sm:$0xfc]
        %v8289 = vld [vmem:[%s8019 + $0xe8] sm:$0xfc]
        %v8290 = vld [vmem:[%s8019 + $0xf0] sm:$0x3]
        %v8291 = vld [vmem:[%s8019 + $0xf8] sm:$0x3]
        %v8292 = vlaneseq
        %v8293 = vshrl.u32 %v8292, 7
        %v8294 = vsub.s32 6, %v8293
        %v8295 = vrot.slane %v4840, %v8294
        %v8296 = vlaneseq
        %v8297 = vshrl.u32 %v8296, 7
        %v8298 = vsub.s32 6, %v8297
        %v8299 = vrot.slane %v4841, %v8298
        %v8300 = vmul.f32 %v8260, %v8295
        %v8301 = vmul.f32 %v8261, %v8299
        %v8302 = vmul.f32 %v8262, %v8295
        %v8303 = vmul.f32 %v8263, %v8299
        %v8304 = vmul.f32 %v8264, %v8295
        %v8305 = vmul.f32 %v8265, %v8299
        %v8306 = vmul.f32 %v8266, %v8295
        %v8307 = vmul.f32 %v8267, %v8299
        %v8308 = vmul.f32 %v8268, %v8295
        %v8309 = vmul.f32 %v8269, %v8299
        %v8310 = vmul.f32 %v8270, %v8295
        %v8311 = vmul.f32 %v8271, %v8299
        %v8312 = vmul.f32 %v8272, %v8295
        %v8313 = vmul.f32 %v8273, %v8299
        %v8314 = vmul.f32 %v8274, %v8295
        %v8315 = vmul.f32 %v8275, %v8299
        %v8316 = vmul.f32 %v8276, %v8295
        %v8317 = vmul.f32 %v8277, %v8299
        %v8318 = vmul.f32 %v8278, %v8295
        %v8319 = vmul.f32 %v8279, %v8299
        %v8320 = vmul.f32 %v8280, %v8295
        %v8321 = vmul.f32 %v8281, %v8299
        %v8322 = vmul.f32 %v8282, %v8295
        %v8323 = vmul.f32 %v8283, %v8299
        %v8324 = vmul.f32 %v8284, %v8295
        %v8325 = vmul.f32 %v8285, %v8299
        %v8326 = vmul.f32 %v8286, %v8295
        %v8327 = vmul.f32 %v8287, %v8299
        %v8328 = vmul.f32 %v8288, %v8295
        %v8329 = vmul.f32 %v8289, %v8299
        %v8330 = vmul.f32 %v8290, %v8295
        %v8331 = vmul.f32 %v8291, %v8299
        %v8364 = vrot.slane %v8300, 2
        %v8365 = vrot.slane %v8302, 2
        %v8366 = vsel %vm5191, %v8364, %v8365
        %v8367 = vrot.slane %v8301, 2
        %v8368 = vrot.slane %v8303, 2
        %v8369 = vsel %vm5191, %v8367, %v8368
        %v8370 = vrot.slane %v8304, 2
        %v8371 = vrot.slane %v8306, 2
        %v8372 = vsel %vm5191, %v8370, %v8371
        %v8373 = vrot.slane %v8305, 2
        %v8374 = vrot.slane %v8307, 2
        %v8375 = vsel %vm5191, %v8373, %v8374
        %v8376 = vrot.slane %v8308, 2
        %v8377 = vrot.slane %v8310, 2
        %v8378 = vsel %vm5191, %v8376, %v8377
        %v8379 = vrot.slane %v8309, 2
        %v8380 = vrot.slane %v8311, 2
        %v8381 = vsel %vm5191, %v8379, %v8380
        %v8382 = vrot.slane %v8312, 2
        %v8383 = vrot.slane %v8314, 2
        %v8384 = vsel %vm5191, %v8382, %v8383
        %v8385 = vrot.slane %v8313, 2
        %v8386 = vrot.slane %v8315, 2
        %v8387 = vsel %vm5191, %v8385, %v8386
        %v8388 = vrot.slane %v8316, 2
        %v8389 = vrot.slane %v8318, 2
        %v8390 = vsel %vm5191, %v8388, %v8389
        %v8391 = vrot.slane %v8317, 2
        %v8392 = vrot.slane %v8319, 2
        %v8393 = vsel %vm5191, %v8391, %v8392
        %v8394 = vrot.slane %v8320, 2
        %v8395 = vrot.slane %v8322, 2
        %v8396 = vsel %vm5191, %v8394, %v8395
        %v8397 = vrot.slane %v8321, 2
        %v8398 = vrot.slane %v8323, 2
        %v8399 = vsel %vm5191, %v8397, %v8398
        %v8400 = vrot.slane %v8324, 2
        %v8401 = vrot.slane %v8326, 2
        %v8402 = vsel %vm5191, %v8400, %v8401
        %v8403 = vrot.slane %v8325, 2
        %v8404 = vrot.slane %v8327, 2
        %v8405 = vsel %vm5191, %v8403, %v8404
        %v8406 = vrot.slane %v8328, 2
        %v8407 = vrot.slane %v8330, 2
        %v8408 = vsel %vm5191, %v8406, %v8407
        %v8409 = vrot.slane %v8329, 2
        %v8410 = vrot.slane %v8331, 2
        %v8411 = vsel %vm5191, %v8409, %v8410
        %v8428 = vadd.f32 %v8244, %v8366
        %v8429 = vadd.f32 %v8245, %v8369
        %v8430 = vadd.f32 %v8246, %v8372
        %v8431 = vadd.f32 %v8247, %v8375
        %v8432 = vadd.f32 %v8248, %v8378
        %v8433 = vadd.f32 %v8249, %v8381
        %v8434 = vadd.f32 %v8250, %v8384
        %v8435 = vadd.f32 %v8251, %v8387
        %v8436 = vadd.f32 %v8252, %v8390
        %v8437 = vadd.f32 %v8253, %v8393
        %v8438 = vadd.f32 %v8254, %v8396
        %v8439 = vadd.f32 %v8255, %v8399
        %v8440 = vadd.f32 %v8256, %v8402
        %v8441 = vadd.f32 %v8257, %v8405
        %v8442 = vadd.f32 %v8258, %v8408
        %v8443 = vadd.f32 %v8259, %v8411
        %v8444 = vld [vmem:[%s8019] sm:$0xf8]
        %v8445 = vld [vmem:[%s8019 + $0x8] sm:$0xf8]
        %v8446 = vld [vmem:[%s8019 + $0x10] sm:$0x7]
        %v8447 = vld [vmem:[%s8019 + $0x18] sm:$0x7]
        %v8448 = vld [vmem:[%s8019 + $0x20] sm:$0xf8]
        %v8449 = vld [vmem:[%s8019 + $0x28] sm:$0xf8]
        %v8450 = vld [vmem:[%s8019 + $0x30] sm:$0x7]
        %v8451 = vld [vmem:[%s8019 + $0x38] sm:$0x7]
        %v8452 = vld [vmem:[%s8019 + $0x40] sm:$0xf8]
        %v8453 = vld [vmem:[%s8019 + $0x48] sm:$0xf8]
        %v8454 = vld [vmem:[%s8019 + $0x50] sm:$0x7]
        %v8455 = vld [vmem:[%s8019 + $0x58] sm:$0x7]
        %v8456 = vld [vmem:[%s8019 + $0x60] sm:$0xf8]
        %v8457 = vld [vmem:[%s8019 + $0x68] sm:$0xf8]
        %v8458 = vld [vmem:[%s8019 + $0x70] sm:$0x7]
        %v8459 = vld [vmem:[%s8019 + $0x78] sm:$0x7]
        %v8460 = vld [vmem:[%s8019 + $0x80] sm:$0xf8]
        %v8461 = vld [vmem:[%s8019 + $0x88] sm:$0xf8]
        %v8462 = vld [vmem:[%s8019 + $0x90] sm:$0x7]
        %v8463 = vld [vmem:[%s8019 + $0x98] sm:$0x7]
        %v8464 = vld [vmem:[%s8019 + $0xa0] sm:$0xf8]
        %v8465 = vld [vmem:[%s8019 + $0xa8] sm:$0xf8]
        %v8466 = vld [vmem:[%s8019 + $0xb0] sm:$0x7]
        %v8467 = vld [vmem:[%s8019 + $0xb8] sm:$0x7]
        %v8468 = vld [vmem:[%s8019 + $0xc0] sm:$0xf8]
        %v8469 = vld [vmem:[%s8019 + $0xc8] sm:$0xf8]
        %v8470 = vld [vmem:[%s8019 + $0xd0] sm:$0x7]
        %v8471 = vld [vmem:[%s8019 + $0xd8] sm:$0x7]
        %v8472 = vld [vmem:[%s8019 + $0xe0] sm:$0xf8]
        %v8473 = vld [vmem:[%s8019 + $0xe8] sm:$0xf8]
        %v8474 = vld [vmem:[%s8019 + $0xf0] sm:$0x7]
        %v8475 = vld [vmem:[%s8019 + $0xf8] sm:$0x7]
        %v8476 = vlaneseq
        %v8477 = vshrl.u32 %v8476, 7
        %v8478 = vsub.s32 7, %v8477
        %v8479 = vrot.slane %v4840, %v8478
        %v8480 = vlaneseq
        %v8481 = vshrl.u32 %v8480, 7
        %v8482 = vsub.s32 7, %v8481
        %v8483 = vrot.slane %v4841, %v8482
        %v8484 = vmul.f32 %v8444, %v8479
        %v8485 = vmul.f32 %v8445, %v8483
        %v8486 = vmul.f32 %v8446, %v8479
        %v8487 = vmul.f32 %v8447, %v8483
        %v8488 = vmul.f32 %v8448, %v8479
        %v8489 = vmul.f32 %v8449, %v8483
        %v8490 = vmul.f32 %v8450, %v8479
        %v8491 = vmul.f32 %v8451, %v8483
        %v8492 = vmul.f32 %v8452, %v8479
        %v8493 = vmul.f32 %v8453, %v8483
        %v8494 = vmul.f32 %v8454, %v8479
        %v8495 = vmul.f32 %v8455, %v8483
        %v8496 = vmul.f32 %v8456, %v8479
        %v8497 = vmul.f32 %v8457, %v8483
        %v8498 = vmul.f32 %v8458, %v8479
        %v8499 = vmul.f32 %v8459, %v8483
        %v8500 = vmul.f32 %v8460, %v8479
        %v8501 = vmul.f32 %v8461, %v8483
        %v8502 = vmul.f32 %v8462, %v8479
        %v8503 = vmul.f32 %v8463, %v8483
        %v8504 = vmul.f32 %v8464, %v8479
        %v8505 = vmul.f32 %v8465, %v8483
        %v8506 = vmul.f32 %v8466, %v8479
        %v8507 = vmul.f32 %v8467, %v8483
        %v8508 = vmul.f32 %v8468, %v8479
        %v8509 = vmul.f32 %v8469, %v8483
        %v8510 = vmul.f32 %v8470, %v8479
        %v8511 = vmul.f32 %v8471, %v8483
        %v8512 = vmul.f32 %v8472, %v8479
        %v8513 = vmul.f32 %v8473, %v8483
        %v8514 = vmul.f32 %v8474, %v8479
        %v8515 = vmul.f32 %v8475, %v8483
        %v8548 = vrot.slane %v8484, 3
        %v8549 = vrot.slane %v8486, 3
        %v8550 = vsel %vm5376, %v8548, %v8549
        %v8551 = vrot.slane %v8485, 3
        %v8552 = vrot.slane %v8487, 3
        %v8553 = vsel %vm5376, %v8551, %v8552
        %v8554 = vrot.slane %v8488, 3
        %v8555 = vrot.slane %v8490, 3
        %v8556 = vsel %vm5376, %v8554, %v8555
        %v8557 = vrot.slane %v8489, 3
        %v8558 = vrot.slane %v8491, 3
        %v8559 = vsel %vm5376, %v8557, %v8558
        %v8560 = vrot.slane %v8492, 3
        %v8561 = vrot.slane %v8494, 3
        %v8562 = vsel %vm5376, %v8560, %v8561
        %v8563 = vrot.slane %v8493, 3
        %v8564 = vrot.slane %v8495, 3
        %v8565 = vsel %vm5376, %v8563, %v8564
        %v8566 = vrot.slane %v8496, 3
        %v8567 = vrot.slane %v8498, 3
        %v8568 = vsel %vm5376, %v8566, %v8567
        %v8569 = vrot.slane %v8497, 3
        %v8570 = vrot.slane %v8499, 3
        %v8571 = vsel %vm5376, %v8569, %v8570
        %v8572 = vrot.slane %v8500, 3
        %v8573 = vrot.slane %v8502, 3
        %v8574 = vsel %vm5376, %v8572, %v8573
        %v8575 = vrot.slane %v8501, 3
        %v8576 = vrot.slane %v8503, 3
        %v8577 = vsel %vm5376, %v8575, %v8576
        %v8578 = vrot.slane %v8504, 3
        %v8579 = vrot.slane %v8506, 3
        %v8580 = vsel %vm5376, %v8578, %v8579
        %v8581 = vrot.slane %v8505, 3
        %v8582 = vrot.slane %v8507, 3
        %v8583 = vsel %vm5376, %v8581, %v8582
        %v8584 = vrot.slane %v8508, 3
        %v8585 = vrot.slane %v8510, 3
        %v8586 = vsel %vm5376, %v8584, %v8585
        %v8587 = vrot.slane %v8509, 3
        %v8588 = vrot.slane %v8511, 3
        %v8589 = vsel %vm5376, %v8587, %v8588
        %v8590 = vrot.slane %v8512, 3
        %v8591 = vrot.slane %v8514, 3
        %v8592 = vsel %vm5376, %v8590, %v8591
        %v8593 = vrot.slane %v8513, 3
        %v8594 = vrot.slane %v8515, 3
        %v8595 = vsel %vm5376, %v8593, %v8594
        %v8612 = vadd.f32 %v8428, %v8550
        %v8613 = vadd.f32 %v8429, %v8553
        %v8614 = vadd.f32 %v8430, %v8556
        %v8615 = vadd.f32 %v8431, %v8559
        %v8616 = vadd.f32 %v8432, %v8562
        %v8617 = vadd.f32 %v8433, %v8565
        %v8618 = vadd.f32 %v8434, %v8568
        %v8619 = vadd.f32 %v8435, %v8571
        %v8620 = vadd.f32 %v8436, %v8574
        %v8621 = vadd.f32 %v8437, %v8577
        %v8622 = vadd.f32 %v8438, %v8580
        %v8623 = vadd.f32 %v8439, %v8583
        %v8624 = vadd.f32 %v8440, %v8586
        %v8625 = vadd.f32 %v8441, %v8589
        %v8626 = vadd.f32 %v8442, %v8592
        %v8627 = vadd.f32 %v8443, %v8595
        %v8628 = vld [vmem:[%s8019] sm:$0xf0]
        %v8629 = vld [vmem:[%s8019 + $0x8] sm:$0xf0]
        %v8630 = vld [vmem:[%s8019 + $0x10] sm:$0xf]
        %v8631 = vld [vmem:[%s8019 + $0x18] sm:$0xf]
        %v8632 = vld [vmem:[%s8019 + $0x20] sm:$0xf0]
        %v8633 = vld [vmem:[%s8019 + $0x28] sm:$0xf0]
        %v8634 = vld [vmem:[%s8019 + $0x30] sm:$0xf]
        %v8635 = vld [vmem:[%s8019 + $0x38] sm:$0xf]
        %v8636 = vld [vmem:[%s8019 + $0x40] sm:$0xf0]
        %v8637 = vld [vmem:[%s8019 + $0x48] sm:$0xf0]
        %v8638 = vld [vmem:[%s8019 + $0x50] sm:$0xf]
        %v8639 = vld [vmem:[%s8019 + $0x58] sm:$0xf]
        %v8640 = vld [vmem:[%s8019 + $0x60] sm:$0xf0]
        %v8641 = vld [vmem:[%s8019 + $0x68] sm:$0xf0]
        %v8642 = vld [vmem:[%s8019 + $0x70] sm:$0xf]
        %v8643 = vld [vmem:[%s8019 + $0x78] sm:$0xf]
        %v8644 = vld [vmem:[%s8019 + $0x80] sm:$0xf0]
        %v8645 = vld [vmem:[%s8019 + $0x88] sm:$0xf0]
        %v8646 = vld [vmem:[%s8019 + $0x90] sm:$0xf]
        %v8647 = vld [vmem:[%s8019 + $0x98] sm:$0xf]
        %v8648 = vld [vmem:[%s8019 + $0xa0] sm:$0xf0]
        %v8649 = vld [vmem:[%s8019 + $0xa8] sm:$0xf0]
        %v8650 = vld [vmem:[%s8019 + $0xb0] sm:$0xf]
        %v8651 = vld [vmem:[%s8019 + $0xb8] sm:$0xf]
        %v8652 = vld [vmem:[%s8019 + $0xc0] sm:$0xf0]
        %v8653 = vld [vmem:[%s8019 + $0xc8] sm:$0xf0]
        %v8654 = vld [vmem:[%s8019 + $0xd0] sm:$0xf]
        %v8655 = vld [vmem:[%s8019 + $0xd8] sm:$0xf]
        %v8656 = vld [vmem:[%s8019 + $0xe0] sm:$0xf0]
        %v8657 = vld [vmem:[%s8019 + $0xe8] sm:$0xf0]
        %v8658 = vld [vmem:[%s8019 + $0xf0] sm:$0xf]
        %v8659 = vld [vmem:[%s8019 + $0xf8] sm:$0xf]
        %v8660 = vlaneseq
        %v8661 = vshrl.u32 %v8660, 7
        %v8662 = vsub.s32 0, %v8661
        %v8663 = vrot.slane %v4842, %v8662
        %v8664 = vlaneseq
        %v8665 = vshrl.u32 %v8664, 7
        %v8666 = vsub.s32 0, %v8665
        %v8667 = vrot.slane %v4843, %v8666
        %v8668 = vmul.f32 %v8628, %v8663
        %v8669 = vmul.f32 %v8629, %v8667
        %v8670 = vmul.f32 %v8630, %v8663
        %v8671 = vmul.f32 %v8631, %v8667
        %v8672 = vmul.f32 %v8632, %v8663
        %v8673 = vmul.f32 %v8633, %v8667
        %v8674 = vmul.f32 %v8634, %v8663
        %v8675 = vmul.f32 %v8635, %v8667
        %v8676 = vmul.f32 %v8636, %v8663
        %v8677 = vmul.f32 %v8637, %v8667
        %v8678 = vmul.f32 %v8638, %v8663
        %v8679 = vmul.f32 %v8639, %v8667
        %v8680 = vmul.f32 %v8640, %v8663
        %v8681 = vmul.f32 %v8641, %v8667
        %v8682 = vmul.f32 %v8642, %v8663
        %v8683 = vmul.f32 %v8643, %v8667
        %v8684 = vmul.f32 %v8644, %v8663
        %v8685 = vmul.f32 %v8645, %v8667
        %v8686 = vmul.f32 %v8646, %v8663
        %v8687 = vmul.f32 %v8647, %v8667
        %v8688 = vmul.f32 %v8648, %v8663
        %v8689 = vmul.f32 %v8649, %v8667
        %v8690 = vmul.f32 %v8650, %v8663
        %v8691 = vmul.f32 %v8651, %v8667
        %v8692 = vmul.f32 %v8652, %v8663
        %v8693 = vmul.f32 %v8653, %v8667
        %v8694 = vmul.f32 %v8654, %v8663
        %v8695 = vmul.f32 %v8655, %v8667
        %v8696 = vmul.f32 %v8656, %v8663
        %v8697 = vmul.f32 %v8657, %v8667
        %v8698 = vmul.f32 %v8658, %v8663
        %v8699 = vmul.f32 %v8659, %v8667
        %v8732 = vrot.slane %v8668, 4
        %v8733 = vrot.slane %v8670, 4
        %v8734 = vsel %vm4201, %v8732, %v8733
        %v8735 = vrot.slane %v8669, 4
        %v8736 = vrot.slane %v8671, 4
        %v8737 = vsel %vm4201, %v8735, %v8736
        %v8738 = vrot.slane %v8672, 4
        %v8739 = vrot.slane %v8674, 4
        %v8740 = vsel %vm4201, %v8738, %v8739
        %v8741 = vrot.slane %v8673, 4
        %v8742 = vrot.slane %v8675, 4
        %v8743 = vsel %vm4201, %v8741, %v8742
        %v8744 = vrot.slane %v8676, 4
        %v8745 = vrot.slane %v8678, 4
        %v8746 = vsel %vm4201, %v8744, %v8745
        %v8747 = vrot.slane %v8677, 4
        %v8748 = vrot.slane %v8679, 4
        %v8749 = vsel %vm4201, %v8747, %v8748
        %v8750 = vrot.slane %v8680, 4
        %v8751 = vrot.slane %v8682, 4
        %v8752 = vsel %vm4201, %v8750, %v8751
        %v8753 = vrot.slane %v8681, 4
        %v8754 = vrot.slane %v8683, 4
        %v8755 = vsel %vm4201, %v8753, %v8754
        %v8756 = vrot.slane %v8684, 4
        %v8757 = vrot.slane %v8686, 4
        %v8758 = vsel %vm4201, %v8756, %v8757
        %v8759 = vrot.slane %v8685, 4
        %v8760 = vrot.slane %v8687, 4
        %v8761 = vsel %vm4201, %v8759, %v8760
        %v8762 = vrot.slane %v8688, 4
        %v8763 = vrot.slane %v8690, 4
        %v8764 = vsel %vm4201, %v8762, %v8763
        %v8765 = vrot.slane %v8689, 4
        %v8766 = vrot.slane %v8691, 4
        %v8767 = vsel %vm4201, %v8765, %v8766
        %v8768 = vrot.slane %v8692, 4
        %v8769 = vrot.slane %v8694, 4
        %v8770 = vsel %vm4201, %v8768, %v8769
        %v8771 = vrot.slane %v8693, 4
        %v8772 = vrot.slane %v8695, 4
        %v8773 = vsel %vm4201, %v8771, %v8772
        %v8774 = vrot.slane %v8696, 4
        %v8775 = vrot.slane %v8698, 4
        %v8776 = vsel %vm4201, %v8774, %v8775
        %v8777 = vrot.slane %v8697, 4
        %v8778 = vrot.slane %v8699, 4
        %v8779 = vsel %vm4201, %v8777, %v8778
        %v8796 = vadd.f32 %v8612, %v8734
        %v8797 = vadd.f32 %v8613, %v8737
        %v8798 = vadd.f32 %v8614, %v8740
        %v8799 = vadd.f32 %v8615, %v8743
        %v8800 = vadd.f32 %v8616, %v8746
        %v8801 = vadd.f32 %v8617, %v8749
        %v8802 = vadd.f32 %v8618, %v8752
        %v8803 = vadd.f32 %v8619, %v8755
        %v8804 = vadd.f32 %v8620, %v8758
        %v8805 = vadd.f32 %v8621, %v8761
        %v8806 = vadd.f32 %v8622, %v8764
        %v8807 = vadd.f32 %v8623, %v8767
        %v8808 = vadd.f32 %v8624, %v8770
        %v8809 = vadd.f32 %v8625, %v8773
        %v8810 = vadd.f32 %v8626, %v8776
        %v8811 = vadd.f32 %v8627, %v8779
        %v8813 = vlaneseq
        %v8814 = vshrl.u32 %v8813, 7
        %v8815 = vsub.s32 0, %v8814
        %v8816 = vrot.slane %v4845, %v8815
        %v8817 = vlaneseq
        %v8818 = vshrl.u32 %v8817, 7
        %v8819 = vsub.s32 1, %v8818
        %v8820 = vrot.slane %v4845, %v8819
        %v8823 = vadd.f32 %v8796, %v8816
        %v8824 = vadd.f32 %v8797, %v8820
        %v8825 = vadd.f32 %v8798, %v8816
        %v8826 = vadd.f32 %v8799, %v8820
        %v8827 = vadd.f32 %v8800, %v8816
        %v8828 = vadd.f32 %v8801, %v8820
        %v8829 = vadd.f32 %v8802, %v8816
        %v8830 = vadd.f32 %v8803, %v8820
        %v8831 = vadd.f32 %v8804, %v8816
        %v8832 = vadd.f32 %v8805, %v8820
        %v8833 = vadd.f32 %v8806, %v8816
        %v8834 = vadd.f32 %v8807, %v8820
        %v8835 = vadd.f32 %v8808, %v8816
        %v8836 = vadd.f32 %v8809, %v8820
        %v8837 = vadd.f32 %v8810, %v8816
        %v8838 = vadd.f32 %v8811, %v8820
        %v8839 = vxor.u32 %v8823, 2147483648
        %v8840 = vxor.u32 %v8824, 2147483648
        %v8841 = vxor.u32 %v8825, 2147483648
        %v8842 = vxor.u32 %v8826, 2147483648
        %v8843 = vxor.u32 %v8827, 2147483648
        %v8844 = vxor.u32 %v8828, 2147483648
        %v8845 = vxor.u32 %v8829, 2147483648
        %v8846 = vxor.u32 %v8830, 2147483648
        %v8847 = vxor.u32 %v8831, 2147483648
        %v8848 = vxor.u32 %v8832, 2147483648
        %v8849 = vxor.u32 %v8833, 2147483648
        %v8850 = vxor.u32 %v8834, 2147483648
        %v8851 = vxor.u32 %v8835, 2147483648
        %v8852 = vxor.u32 %v8836, 2147483648
        %v8853 = vxor.u32 %v8837, 2147483648
        %v8854 = vxor.u32 %v8838, 2147483648
        %v8855 = vmul.f32 %v8839, 1.442695
        %v8856 = vpow.pop %v8855
        %v8857 = vmul.f32 %v8840, 1.442695
        %v8858 = vpow.pop %v8857
        %v8859 = vmul.f32 %v8841, 1.442695
        %v8860 = vpow.pop %v8859
        %v8861 = vmul.f32 %v8842, 1.442695
        %v8862 = vpow.pop %v8861
        %v8863 = vmul.f32 %v8843, 1.442695
        %v8864 = vpow.pop %v8863
        %v8865 = vmul.f32 %v8844, 1.442695
        %v8866 = vpow.pop %v8865
        %v8867 = vmul.f32 %v8845, 1.442695
        %v8868 = vpow.pop %v8867
        %v8869 = vmul.f32 %v8846, 1.442695
        %v8870 = vpow.pop %v8869
        %v8871 = vmul.f32 %v8847, 1.442695
        %v8872 = vpow.pop %v8871
        %v8873 = vmul.f32 %v8848, 1.442695
        %v8874 = vpow.pop %v8873
        %v8875 = vmul.f32 %v8849, 1.442695
        %v8876 = vpow.pop %v8875
        %v8877 = vmul.f32 %v8850, 1.442695
        %v8878 = vpow.pop %v8877
        %v8879 = vmul.f32 %v8851, 1.442695
        %v8880 = vpow.pop %v8879
        %v8881 = vmul.f32 %v8852, 1.442695
        %v8882 = vpow.pop %v8881
        %v8883 = vmul.f32 %v8853, 1.442695
        %v8884 = vpow.pop %v8883
        %v8885 = vmul.f32 %v8854, 1.442695
        %v8886 = vpow.pop %v8885
        %v8887 = vadd.f32 %v8856, 1.0
        %v8888 = vadd.f32 %v8858, 1.0
        %v8889 = vadd.f32 %v8860, 1.0
        %v8890 = vadd.f32 %v8862, 1.0
        %v8891 = vadd.f32 %v8864, 1.0
        %v8892 = vadd.f32 %v8866, 1.0
        %v8893 = vadd.f32 %v8868, 1.0
        %v8894 = vadd.f32 %v8870, 1.0
        %v8895 = vadd.f32 %v8872, 1.0
        %v8896 = vadd.f32 %v8874, 1.0
        %v8897 = vadd.f32 %v8876, 1.0
        %v8898 = vadd.f32 %v8878, 1.0
        %v8899 = vadd.f32 %v8880, 1.0
        %v8900 = vadd.f32 %v8882, 1.0
        %v8901 = vadd.f32 %v8884, 1.0
        %v8902 = vadd.f32 %v8886, 1.0
        %v8903 = vrcp.pop %v8887
        %v8904 = vmul.f32 1.0, %v8903
        %v8905 = vrcp.pop %v8888
        %v8906 = vmul.f32 1.0, %v8905
        %v8907 = vrcp.pop %v8889
        %v8908 = vmul.f32 1.0, %v8907
        %v8909 = vrcp.pop %v8890
        %v8910 = vmul.f32 1.0, %v8909
        %v8911 = vrcp.pop %v8891
        %v8912 = vmul.f32 1.0, %v8911
        %v8913 = vrcp.pop %v8892
        %v8914 = vmul.f32 1.0, %v8913
        %v8915 = vrcp.pop %v8893
        %v8916 = vmul.f32 1.0, %v8915
        %v8917 = vrcp.pop %v8894
        %v8918 = vmul.f32 1.0, %v8917
        %v8919 = vrcp.pop %v8895
        %v8920 = vmul.f32 1.0, %v8919
        %v8921 = vrcp.pop %v8896
        %v8922 = vmul.f32 1.0, %v8921
        %v8923 = vrcp.pop %v8897
        %v8924 = vmul.f32 1.0, %v8923
        %v8925 = vrcp.pop %v8898
        %v8926 = vmul.f32 1.0, %v8925
        %v8927 = vrcp.pop %v8899
        %v8928 = vmul.f32 1.0, %v8927
        %v8929 = vrcp.pop %v8900
        %v8930 = vmul.f32 1.0, %v8929
        %v8931 = vrcp.pop %v8901
        %v8932 = vmul.f32 1.0, %v8931
        %v8933 = vrcp.pop %v8902
        %v8934 = vmul.f32 1.0, %v8933
        %v8935 = vmul.f32 %v8823, %v8904
        %v8936 = vmul.f32 %v8824, %v8906
        %v8937 = vmul.f32 %v8825, %v8908
        %v8938 = vmul.f32 %v8826, %v8910
        %v8939 = vmul.f32 %v8827, %v8912
        %v8940 = vmul.f32 %v8828, %v8914
        %v8941 = vmul.f32 %v8829, %v8916
        %v8942 = vmul.f32 %v8830, %v8918
        %v8943 = vmul.f32 %v8831, %v8920
        %v8944 = vmul.f32 %v8832, %v8922
        %v8945 = vmul.f32 %v8833, %v8924
        %v8946 = vmul.f32 %v8834, %v8926
        %v8947 = vmul.f32 %v8835, %v8928
        %v8948 = vmul.f32 %v8836, %v8930
        %v8949 = vmul.f32 %v8837, %v8932
        %v8950 = vmul.f32 %v8838, %v8934
        %v8951 = vadd.f32 %v8935, %v8937
        %v8952 = vadd.f32 %v8951, %v8939
        %v8953 = vadd.f32 %v8952, %v8941
        %v8954 = vadd.f32 %v8953, %v8943
        %v8955 = vadd.f32 %v8954, %v8945
        %v8956 = vadd.f32 %v8955, %v8947
        %v8957 = vadd.f32 %v8956, %v8949
        %v8958 = vrot.slane %v8957, 4
        %v8959 = vadd.f32 %v8957, %v8958
        %v8960 = vrot.slane %v8959, 2
        %v8961 = vadd.f32 %v8959, %v8960
        %v8962 = vrot.slane %v8961, 1
        %v8963 = vadd.f32 %v8961, %v8962
        %v8964 = vsel %vm2050, %v8936, 0.0
        %v8965 = vsel %vm2050, %v8938, 0.0
        %v8966 = vadd.f32 %v8964, %v8965
        %v8967 = vsel %vm2050, %v8940, 0.0
        %v8968 = vadd.f32 %v8966, %v8967
        %v8969 = vsel %vm2050, %v8942, 0.0
        %v8970 = vadd.f32 %v8968, %v8969
        %v8971 = vsel %vm2050, %v8944, 0.0
        %v8972 = vadd.f32 %v8970, %v8971
        %v8973 = vsel %vm2050, %v8946, 0.0
        %v8974 = vadd.f32 %v8972, %v8973
        %v8975 = vsel %vm2050, %v8948, 0.0
        %v8976 = vadd.f32 %v8974, %v8975
        %v8977 = vsel %vm2050, %v8950, 0.0
        %v8978 = vadd.f32 %v8976, %v8977
        %v8979 = vrot.slane %v8978, 4
        %v8980 = vadd.f32 %v8978, %v8979
        %v8981 = vrot.slane %v8980, 2
        %v8982 = vadd.f32 %v8980, %v8981
        %v8983 = vrot.slane %v8982, 1
        %v8984 = vadd.f32 %v8982, %v8983
        %v8985 = vmul.f32 %v8963, 0.015625
        %v8986 = vmul.f32 %v8984, 0.015625
        %v8987 = vld [vmem:[%s1 + $0x360] sm:$0xff]
        %v8988 = vld [vmem:[%s1 + $0x370] sm:$0xff]
        %v8989 = vld [vmem:[%s1 + $0x380] sm:$0xff]
        %v8990 = vld [vmem:[%s1 + $0x390] sm:$0xff]
        %v8991 = vld [vmem:[%s1 + $0x3a0] sm:$0xff]
        %v8992 = vld [vmem:[%s1 + $0x3b0] sm:$0xff]
        %v8993 = vld [vmem:[%s1 + $0x3c0] sm:$0xff]
        %v8994 = vld [vmem:[%s1 + $0x3d0] sm:$0xff]
        %v8995 = vld [vmem:[%s1 + $0x3e0] sm:$0xff]
        %v8996 = vld [vmem:[%s1 + $0x3f0] sm:$0xff]
        %v8997 = vld [vmem:[%s1 + $0x400] sm:$0xff]
        %v8998 = vld [vmem:[%s1 + $0x410] sm:$0xff]
        %v8999 = vld [vmem:[%s1 + $0x420] sm:$0xff]
        %v9000 = vld [vmem:[%s1 + $0x430] sm:$0xff]
        %v9001 = vld [vmem:[%s1 + $0x440] sm:$0xff]
        %v9002 = vld [vmem:[%s1 + $0x450] sm:$0xff]
        %v9003 = vld [vmem:[%s1 + $0x460] sm:$0xff]
        %v9004 = vld [vmem:[%s1 + $0x470] sm:$0xff]
        %v9005 = vld [vmem:[%s1 + $0x480] ss:$0 sm:$0xff]
        %v9006 = vld [vmem:[%s1 + $0x490] sm:$0x3f]
        %v9007 = vld [vmem:[%s1 + $0x498] sm:$0x3f]
        %s9008 = scalar_lea.vmem %s1, 1184
        %v9009 = vld [vmem:[%s9008] ss:$8 sm:$0x3]
        %v9011 = vsel %vm2050, %v8986, 0
        %9013 = vmatprep.subr.mxu0 0.0
        %9014 = vmatpush1.msra.mxu0 %v9002
        %9015 = vmatprep.subr.mxu0 0.0
        %9016 = vmatpush1.msra.mxu0 %v9001
        %9017 = vmatprep.subr.mxu0 0.0
        %9018 = vmatpush1.msra.mxu0 %v9000
        %9019 = vmatprep.subr.mxu0 0.0
        %9020 = vmatpush1.msra.mxu0 %v8999
        %9021 = vmatprep.subr.mxu0 0.0
        %9022 = vmatpush1.msra.mxu0 %v8998
        %9023 = vmatprep.subr.mxu0 0.0
        %9024 = vmatpush1.msra.mxu0 %v8997
        %9025 = vmatprep.subr.mxu0 0.0
        %9026 = vmatpush1.msra.mxu0 %v8996
        %9027 = vmatprep.subr.mxu0 0.0
        %9028 = vmatpush1.msra.mxu0 %v8995
        %9029 = vmatprep.subr.mxu0 0.0
        %9030 = vmatpush1.msra.mxu0 %v8994
        %9031 = vmatprep.subr.mxu0 0.0
        %9032 = vmatpush1.msra.mxu0 %v8993
        %9033 = vmatprep.subr.mxu0 0.0
        %9034 = vmatpush1.msra.mxu0 %v8992
        %9035 = vmatprep.subr.mxu0 0.0
        %9036 = vmatpush1.msra.mxu0 %v8991
        %9037 = vmatprep.subr.mxu0 0.0
        %9038 = vmatpush1.msra.mxu0 %v8990
        %9039 = vmatprep.subr.mxu0 0.0
        %9040 = vmatpush1.msra.mxu0 %v8989
        %9041 = vmatprep.subr.mxu0 0.0
        %9042 = vmatpush1.msra.mxu0 %v8988
        %9043 = vmatprep.subr.mxu0 0.0
        %9044 = vmatpush1.msra.mxu0 %v8987
        %9045 = vmatprep.subr.mxu0 0.0
        %9046 = vmatpush2.msra.mxu0 0.0
        %9047 = vmatprep.subr.mxu0 0.0
        %9048 = vmatpush2.msra.mxu0 0.0
        %9049 = vmatprep.subr.mxu0 0.0
        %9050 = vmatpush2.msra.mxu0 0.0
        %9051 = vmatprep.subr.mxu0 0.0
        %9052 = vmatpush2.msra.mxu0 0.0
        %9053 = vmatprep.subr.mxu0 0.0
        %9054 = vmatpush2.msra.mxu0 0.0
        %9055 = vmatprep.subr.mxu0 0.0
        %9056 = vmatpush2.msra.mxu0 0.0
        %9057 = vmatprep.subr.mxu0 0.0
        %9058 = vmatpush2.msra.mxu0 0.0
        %9059 = vmatprep.subr.mxu0 0.0
        %9060 = vmatpush2.msra.mxu0 0.0
        %9061 = vmatprep.subr.mxu0 0.0
        %9062 = vmatpush2.msra.mxu0 0.0
        %9063 = vmatprep.subr.mxu0 0.0
        %9064 = vmatpush2.msra.mxu0 0.0
        %9065 = vmatprep.subr.mxu0 0.0
        %9066 = vmatpush2.msra.mxu0 0.0
        %9067 = vmatprep.subr.mxu0 0.0
        %9068 = vmatpush2.msra.mxu0 0.0
        %9069 = vmatprep.subr.mxu0 0.0
        %9070 = vmatpush2.msra.mxu0 0.0
        %9071 = vmatprep.subr.mxu0 0.0
        %9072 = vmatpush2.msra.mxu0 0.0
        %9073 = vmatprep.subr.mxu0 0.0
        %9074 = vmatpush2.msra.mxu0 %v9004
        %9075 = vmatprep.subr.mxu0 0.0
        %9076 = vmatpush2.msra.mxu0 %v9003
        %9077 = vmatprep.mubr.f32.mxu0 %v9011
        %9078 = vmatmul.mubr.f32.gmra.mxu0 %v8985
        %v9079 = vpop.f32.mrf.mxu0
        %v9080 = vadd.f32 %v9005, %v9079
        %v9081 = vpop.f32.mrf.mxu0
        %9082 = vdwg.mxu0
        %v9083 = vxor.u32 %v9080, 2147483648
        %v9084 = vmul.f32 %v9083, 1.442695
        %v9085 = vpow.pop %v9084
        %v9086 = vadd.f32 %v9085, 1.0
        %v9087 = vrcp.pop %v9086
        %v9088 = vmul.f32 1.0, %v9087
        %v9089 = vmul.f32 %v9080, %v9088
        %v9091 = vlaneseq
        %v9092 = vshrl.u32 %v9091, 7
        %v9093 = vsub.s32 0, %v9092
        %v9094 = vrot.slane %v9009, %v9093
        %v9095 = vlaneseq
        %v9096 = vshrl.u32 %v9095, 7
        %v9097 = vsub.s32 1, %v9096
        %v9098 = vrot.slane %v9009, %v9097
        %vm9101 = vcmask 48128
        %v9103 = vsel %vm9101, %v9089, 0
        %v9106 = vsel %vm5191, %v9006, 0
        %v9109 = vsel %vm5191, %v9007, 0
        %9111 = vmatprep.subr.mxu0 0.0
        %9112 = vmatpush1.msra.mxu0 0.0
        %9113 = vmatprep.subr.mxu0 0.0
        %9114 = vmatpush1.msra.mxu0 0.0
        %9115 = vmatprep.subr.mxu0 0.0
        %9116 = vmatpush1.msra.mxu0 0.0
        %9117 = vmatprep.subr.mxu0 0.0
        %9118 = vmatpush1.msra.mxu0 0.0
        %9119 = vmatprep.subr.mxu0 0.0
        %9120 = vmatpush1.msra.mxu0 0.0
        %9121 = vmatprep.subr.mxu0 0.0
        %9122 = vmatpush1.msra.mxu0 0.0
        %9123 = vmatprep.subr.mxu0 0.0
        %9124 = vmatpush1.msra.mxu0 0.0
        %9125 = vmatprep.subr.mxu0 0.0
        %9126 = vmatpush1.msra.mxu0 0.0
        %9127 = vmatprep.subr.mxu0 0.0
        %9128 = vmatpush1.msra.mxu0 0.0
        %9129 = vmatprep.subr.mxu0 0.0
        %9130 = vmatpush1.msra.mxu0 0.0
        %9131 = vmatprep.subr.mxu0 0.0
        %9132 = vmatpush1.msra.mxu0 0.0
        %9133 = vmatprep.subr.mxu0 0.0
        %9134 = vmatpush1.msra.mxu0 0.0
        %9135 = vmatprep.subr.mxu0 0.0
        %9136 = vmatpush1.msra.mxu0 0.0
        %9137 = vmatprep.subr.mxu0 0.0
        %9138 = vmatpush1.msra.mxu0 0.0
        %9139 = vmatprep.subr.mxu0 0.0
        %9140 = vmatpush1.msra.mxu0 0.0
        %9141 = vmatprep.subr.mxu0 %v9109
        %9142 = vmatpush1.msra.mxu0 %v9106
        %9143 = vmatprep.subr.mxu0 0.0
        %9144 = vmatpush2.msra.mxu0 0.0
        %9145 = vmatprep.subr.mxu0 0.0
        %9146 = vmatpush2.msra.mxu0 0.0
        %9147 = vmatprep.subr.mxu0 0.0
        %9148 = vmatpush2.msra.mxu0 0.0
        %9149 = vmatprep.subr.mxu0 0.0
        %9150 = vmatpush2.msra.mxu0 0.0
        %9151 = vmatprep.subr.mxu0 0.0
        %9152 = vmatpush2.msra.mxu0 0.0
        %9153 = vmatprep.subr.mxu0 0.0
        %9154 = vmatpush2.msra.mxu0 0.0
        %9155 = vmatprep.subr.mxu0 0.0
        %9156 = vmatpush2.msra.mxu0 0.0
        %9157 = vmatprep.subr.mxu0 0.0
        %9158 = vmatpush2.msra.mxu0 0.0
        %9159 = vmatprep.subr.mxu0 0.0
        %9160 = vmatpush2.msra.mxu0 0.0
        %9161 = vmatprep.subr.mxu0 0.0
        %9162 = vmatpush2.msra.mxu0 0.0
        %9163 = vmatprep.subr.mxu0 0.0
        %9164 = vmatpush2.msra.mxu0 0.0
        %9165 = vmatprep.subr.mxu0 0.0
        %9166 = vmatpush2.msra.mxu0 0.0
        %9167 = vmatprep.subr.mxu0 0.0
        %9168 = vmatpush2.msra.mxu0 0.0
        %9169 = vmatprep.subr.mxu0 0.0
        %9170 = vmatpush2.msra.mxu0 0.0
        %9171 = vmatprep.subr.mxu0 0.0
        %9172 = vmatpush2.msra.mxu0 0.0
        %9173 = vmatprep.subr.mxu0 0.0
        %9174 = vmatpush2.msra.mxu0 0.0
        %9175 = vmatprep.mubr.f32.mxu0 0.0
        %9176 = vmatmul.mubr.f32.gmra.mxu0 %v9103
        %v9177 = vpop.f32.mrf.mxu0
        %v9178 = vadd.f32 %v9094, %v9177
        %v9179 = vpop.f32.mrf.mxu0
        %v9180 = vadd.f32 %v9098, %v9179
        %9181 = vdwg.mxu0
        %v9182 = vxor.u32 %v9178, 2147483648
        %v9183 = vxor.u32 %v9180, 2147483648
        %v9184 = vmul.f32 %v9182, 1.442695
        %v9185 = vpow.pop %v9184
        %v9186 = vmul.f32 %v9183, 1.442695
        %v9187 = vpow.pop %v9186
        %v9188 = vadd.f32 %v9185, 1.0
        %v9189 = vadd.f32 %v9187, 1.0
        %v9190 = vrcp.pop %v9188
        %v9191 = vmul.f32 1.0, %v9190
        %v9192 = vrcp.pop %v9189
        %v9193 = vmul.f32 1.0, %v9192
        %v9194 = vld [vmem:[%s1 + $0x4b0] sm:$0xff]
        %v9195 = vld [vmem:[%s1 + $0x4c0] sm:$0xff]
        %v9196 = vld [vmem:[%s1 + $0x4d0] sm:$0xff]
        %v9197 = vld [vmem:[%s1 + $0x4e0] sm:$0xff]
        %v9198 = vld [vmem:[%s1 + $0x4f0] sm:$0xff]
        %v9199 = vld [vmem:[%s1 + $0x500] sm:$0xff]
        %v9200 = vld [vmem:[%s1 + $0x510] sm:$0xff]
        %v9201 = vld [vmem:[%s1 + $0x520] sm:$0xff]
        %v9202 = vld [vmem:[%s1 + $0x530] sm:$0xff]
        %v9203 = vld [vmem:[%s1 + $0x540] sm:$0xff]
        %v9204 = vld [vmem:[%s1 + $0x550] sm:$0xff]
        %v9205 = vld [vmem:[%s1 + $0x560] sm:$0xff]
        %v9206 = vld [vmem:[%s1 + $0x570] sm:$0xff]
        %v9207 = vld [vmem:[%s1 + $0x580] sm:$0xff]
        %v9208 = vld [vmem:[%s1 + $0x590] sm:$0xff]
        %v9209 = vld [vmem:[%s1 + $0x5a0] sm:$0xff]
        %v9210 = vld [vmem:[%s1 + $0x5b0] sm:$0xff]
        %v9211 = vld [vmem:[%s1 + $0x5c0] sm:$0xff]
        %v9212 = vld [vmem:[%s1 + $0x5d0] ss:$0 sm:$0xff]
        %v9213 = vlaneseq
        %v9214 = vshrl.u32 %v9213, 7
        %v9215 = vsub.s32 0, %v9214
        %v9216 = vrot.slane %v9191, %v9215
        %v9217 = vlaneseq
        %v9218 = vshrl.u32 %v9217, 7
        %v9219 = vsub.s32 0, %v9218
        %v9220 = vrot.slane %v9193, %v9219
        %v9221 = vmul.f32 %v8935, %v9216
        %v9222 = vmul.f32 %v8936, %v9220
        %v9223 = vmul.f32 %v8937, %v9216
        %v9224 = vmul.f32 %v8938, %v9220
        %v9225 = vmul.f32 %v8939, %v9216
        %v9226 = vmul.f32 %v8940, %v9220
        %v9227 = vmul.f32 %v8941, %v9216
        %v9228 = vmul.f32 %v8942, %v9220
        %v9229 = vmul.f32 %v8943, %v9216
        %v9230 = vmul.f32 %v8944, %v9220
        %v9231 = vmul.f32 %v8945, %v9216
        %v9232 = vmul.f32 %v8946, %v9220
        %v9233 = vmul.f32 %v8947, %v9216
        %v9234 = vmul.f32 %v8948, %v9220
        %v9235 = vmul.f32 %v8949, %v9216
        %v9236 = vmul.f32 %v8950, %v9220
        %v9238 = vsel %vm2050, %v9222, 0
        %v9241 = vsel %vm2050, %v9224, 0
        %v9244 = vsel %vm2050, %v9226, 0
        %v9247 = vsel %vm2050, %v9228, 0
        %v9250 = vsel %vm2050, %v9230, 0
        %v9253 = vsel %vm2050, %v9232, 0
        %v9256 = vsel %vm2050, %v9234, 0
        %v9259 = vsel %vm2050, %v9236, 0
        %9261 = vmatprep.subr.mxu0 0.0
        %9262 = vmatpush1.msra.mxu0 %v9209
        %9263 = vmatprep.subr.mxu0 0.0
        %9264 = vmatpush1.msra.mxu0 %v9208
        %9265 = vmatprep.subr.mxu0 0.0
        %9266 = vmatpush1.msra.mxu0 %v9207
        %9267 = vmatprep.subr.mxu0 0.0
        %9268 = vmatpush1.msra.mxu0 %v9206
        %9269 = vmatprep.subr.mxu0 0.0
        %9270 = vmatpush1.msra.mxu0 %v9205
        %9271 = vmatprep.subr.mxu0 0.0
        %9272 = vmatpush1.msra.mxu0 %v9204
        %9273 = vmatprep.subr.mxu0 0.0
        %9274 = vmatpush1.msra.mxu0 %v9203
        %9275 = vmatprep.subr.mxu0 0.0
        %9276 = vmatpush1.msra.mxu0 %v9202
        %9277 = vmatprep.subr.mxu0 0.0
        %9278 = vmatpush1.msra.mxu0 %v9201
        %9279 = vmatprep.subr.mxu0 0.0
        %9280 = vmatpush1.msra.mxu0 %v9200
        %9281 = vmatprep.subr.mxu0 0.0
        %9282 = vmatpush1.msra.mxu0 %v9199
        %9283 = vmatprep.subr.mxu0 0.0
        %9284 = vmatpush1.msra.mxu0 %v9198
        %9285 = vmatprep.subr.mxu0 0.0
        %9286 = vmatpush1.msra.mxu0 %v9197
        %9287 = vmatprep.subr.mxu0 0.0
        %9288 = vmatpush1.msra.mxu0 %v9196
        %9289 = vmatprep.subr.mxu0 0.0
        %9290 = vmatpush1.msra.mxu0 %v9195
        %9291 = vmatprep.subr.mxu0 0.0
        %9292 = vmatpush1.msra.mxu0 %v9194
        %9293 = vmatprep.subr.mxu0 0.0
        %9294 = vmatpush2.msra.mxu0 0.0
        %9295 = vmatprep.subr.mxu0 0.0
        %9296 = vmatpush2.msra.mxu0 0.0
        %9297 = vmatprep.subr.mxu0 0.0
        %9298 = vmatpush2.msra.mxu0 0.0
        %9299 = vmatprep.subr.mxu0 0.0
        %9300 = vmatpush2.msra.mxu0 0.0
        %9301 = vmatprep.subr.mxu0 0.0
        %9302 = vmatpush2.msra.mxu0 0.0
        %9303 = vmatprep.subr.mxu0 0.0
        %9304 = vmatpush2.msra.mxu0 0.0
        %9305 = vmatprep.subr.mxu0 0.0
        %9306 = vmatpush2.msra.mxu0 0.0
        %9307 = vmatprep.subr.mxu0 0.0
        %9308 = vmatpush2.msra.mxu0 0.0
        %9309 = vmatprep.subr.mxu0 0.0
        %9310 = vmatpush2.msra.mxu0 0.0
        %9311 = vmatprep.subr.mxu0 0.0
        %9312 = vmatpush2.msra.mxu0 0.0
        %9313 = vmatprep.subr.mxu0 0.0
        %9314 = vmatpush2.msra.mxu0 0.0
        %9315 = vmatprep.subr.mxu0 0.0
        %9316 = vmatpush2.msra.mxu0 0.0
        %9317 = vmatprep.subr.mxu0 0.0
        %9318 = vmatpush2.msra.mxu0 0.0
        %9319 = vmatprep.subr.mxu0 0.0
        %9320 = vmatpush2.msra.mxu0 0.0
        %9321 = vmatprep.subr.mxu0 0.0
        %9322 = vmatpush2.msra.mxu0 %v9211
        %9323 = vmatprep.subr.mxu0 0.0
        %9324 = vmatpush2.msra.mxu0 %v9210
        %9325 = vmatprep.mubr.f32.mxu0 %v9238
        %9326 = vmatmul.mubr.f32.gmra.mxu0 %v9221
        %v9327 = vpop.f32.mrf.mxu0
        %v9328 = vadd.f32 %v9212, %v9327
        %v9329 = vpop.f32.mrf.mxu0
        %9330 = vmatprep.mubr.f32.mxu0 %v9241
        %9331 = vmatmul.mubr.f32.gmra.mxu0 %v9223
        %v9332 = vpop.f32.mrf.mxu0
        %v9333 = vadd.f32 %v9212, %v9332
        %v9334 = vpop.f32.mrf.mxu0
        %9335 = vmatprep.mubr.f32.mxu0 %v9244
        %9336 = vmatmul.mubr.f32.gmra.mxu0 %v9225
        %v9337 = vpop.f32.mrf.mxu0
        %v9338 = vadd.f32 %v9212, %v9337
        %v9339 = vpop.f32.mrf.mxu0
        %9340 = vmatprep.mubr.f32.mxu0 %v9247
        %9341 = vmatmul.mubr.f32.gmra.mxu0 %v9227
        %v9342 = vpop.f32.mrf.mxu0
        %v9343 = vadd.f32 %v9212, %v9342
        %v9344 = vpop.f32.mrf.mxu0
        %9345 = vmatprep.mubr.f32.mxu0 %v9250
        %9346 = vmatmul.mubr.f32.gmra.mxu0 %v9229
        %v9347 = vpop.f32.mrf.mxu0
        %v9348 = vadd.f32 %v9212, %v9347
        %v9349 = vpop.f32.mrf.mxu0
        %9350 = vmatprep.mubr.f32.mxu0 %v9253
        %9351 = vmatmul.mubr.f32.gmra.mxu0 %v9231
        %v9352 = vpop.f32.mrf.mxu0
        %v9353 = vadd.f32 %v9212, %v9352
        %v9354 = vpop.f32.mrf.mxu0
        %9355 = vmatprep.mubr.f32.mxu0 %v9256
        %9356 = vmatmul.mubr.f32.gmra.mxu0 %v9233
        %v9357 = vpop.f32.mrf.mxu0
        %v9358 = vadd.f32 %v9212, %v9357
        %v9359 = vpop.f32.mrf.mxu0
        %9360 = vmatprep.mubr.f32.mxu0 %v9259
        %9361 = vmatmul.mubr.f32.gmra.mxu0 %v9235
        %v9362 = vpop.f32.mrf.mxu0
        %v9363 = vadd.f32 %v9212, %v9362
        %v9364 = vpop.f32.mrf.mxu0
        %9365 = vdwg.mxu0
        %v9366 = vadd.f32 %v9328, %v4397
        %v9367 = vadd.f32 %v9333, %v4402
        %v9368 = vadd.f32 %v9338, %v4407
        %v9369 = vadd.f32 %v9343, %v4412
        %v9370 = vadd.f32 %v9348, %v4417
        %v9371 = vadd.f32 %v9353, %v4422
        %v9372 = vadd.f32 %v9358, %v4427
        %v9373 = vadd.f32 %v9363, %v4432
        %v9374 = vld [vmem:[%s1 + $0x5e0] sm:$0xff]
        %v9375 = vld [vmem:[%s1 + $0x5f0] sm:$0xff]
        %v9376 = vld [vmem:[%s1 + $0x600] sm:$0xff]
        %v9377 = vld [vmem:[%s1 + $0x610] ss:$0 sm:$0xff]
        %v9379 = vsel %vm4454, %v9366, 0
        %v9382 = vsel %vm4454, %v9367, 0
        %v9385 = vsel %vm4454, %v9368, 0
        %v9388 = vsel %vm4454, %v9369, 0
        %v9391 = vsel %vm4454, %v9370, 0
        %v9394 = vsel %vm4454, %v9371, 0
        %v9397 = vsel %vm4454, %v9372, 0
        %v9400 = vsel %vm4454, %v9373, 0
        %9402 = vmatprep.subr.mxu0 0.0
        %9403 = vmatpush1.msra.mxu0 0.0
        %9404 = vmatprep.subr.mxu0 0.0
        %9405 = vmatpush1.msra.mxu0 0.0
        %9406 = vmatprep.subr.mxu0 0.0
        %9407 = vmatpush1.msra.mxu0 0.0
        %9408 = vmatprep.subr.mxu0 0.0
        %9409 = vmatpush1.msra.mxu0 0.0
        %9410 = vmatprep.subr.mxu0 0.0
        %9411 = vmatpush1.msra.mxu0 0.0
        %9412 = vmatprep.subr.mxu0 0.0
        %9413 = vmatpush1.msra.mxu0 0.0
        %9414 = vmatprep.subr.mxu0 0.0
        %9415 = vmatpush1.msra.mxu0 0.0
        %9416 = vmatprep.subr.mxu0 0.0
        %9417 = vmatpush1.msra.mxu0 0.0
        %9418 = vmatprep.subr.mxu0 0.0
        %9419 = vmatpush1.msra.mxu0 0.0
        %9420 = vmatprep.subr.mxu0 0.0
        %9421 = vmatpush1.msra.mxu0 0.0
        %9422 = vmatprep.subr.mxu0 0.0
        %9423 = vmatpush1.msra.mxu0 0.0
        %9424 = vmatprep.subr.mxu0 0.0
        %9425 = vmatpush1.msra.mxu0 0.0
        %9426 = vmatprep.subr.mxu0 0.0
        %9427 = vmatpush1.msra.mxu0 0.0
        %9428 = vmatprep.subr.mxu0 0.0
        %9429 = vmatpush1.msra.mxu0 %v9376
        %9430 = vmatprep.subr.mxu0 0.0
        %9431 = vmatpush1.msra.mxu0 %v9375
        %9432 = vmatprep.subr.mxu0 0.0
        %9433 = vmatpush1.msra.mxu0 %v9374
        %9434 = vmatprep.subr.mxu0 0.0
        %9435 = vmatpush2.msra.mxu0 0.0
        %9436 = vmatprep.subr.mxu0 0.0
        %9437 = vmatpush2.msra.mxu0 0.0
        %9438 = vmatprep.subr.mxu0 0.0
        %9439 = vmatpush2.msra.mxu0 0.0
        %9440 = vmatprep.subr.mxu0 0.0
        %9441 = vmatpush2.msra.mxu0 0.0
        %9442 = vmatprep.subr.mxu0 0.0
        %9443 = vmatpush2.msra.mxu0 0.0
        %9444 = vmatprep.subr.mxu0 0.0
        %9445 = vmatpush2.msra.mxu0 0.0
        %9446 = vmatprep.subr.mxu0 0.0
        %9447 = vmatpush2.msra.mxu0 0.0
        %9448 = vmatprep.subr.mxu0 0.0
        %9449 = vmatpush2.msra.mxu0 0.0
        %9450 = vmatprep.subr.mxu0 0.0
        %9451 = vmatpush2.msra.mxu0 0.0
        %9452 = vmatprep.subr.mxu0 0.0
        %9453 = vmatpush2.msra.mxu0 0.0
        %9454 = vmatprep.subr.mxu0 0.0
        %9455 = vmatpush2.msra.mxu0 0.0
        %9456 = vmatprep.subr.mxu0 0.0
        %9457 = vmatpush2.msra.mxu0 0.0
        %9458 = vmatprep.subr.mxu0 0.0
        %9459 = vmatpush2.msra.mxu0 0.0
        %9460 = vmatprep.subr.mxu0 0.0
        %9461 = vmatpush2.msra.mxu0 0.0
        %9462 = vmatprep.subr.mxu0 0.0
        %9463 = vmatpush2.msra.mxu0 0.0
        %9464 = vmatprep.subr.mxu0 0.0
        %9465 = vmatpush2.msra.mxu0 0.0
        %9466 = vmatprep.mubr.f32.mxu0 0.0
        %9467 = vmatmul.mubr.f32.gmra.mxu0 %v9379
        %v9468 = vpop.f32.mrf.mxu0
        %v9469 = vadd.f32 %v9377, %v9468
        %v9470 = vpop.f32.mrf.mxu0
        %9471 = vmatprep.mubr.f32.mxu0 0.0
        %9472 = vmatmul.mubr.f32.gmra.mxu0 %v9382
        %v9473 = vpop.f32.mrf.mxu0
        %v9474 = vadd.f32 %v9377, %v9473
        %v9475 = vpop.f32.mrf.mxu0
        %9476 = vmatprep.mubr.f32.mxu0 0.0
        %9477 = vmatmul.mubr.f32.gmra.mxu0 %v9385
        %v9478 = vpop.f32.mrf.mxu0
        %v9479 = vadd.f32 %v9377, %v9478
        %v9480 = vpop.f32.mrf.mxu0
        %9481 = vmatprep.mubr.f32.mxu0 0.0
        %9482 = vmatmul.mubr.f32.gmra.mxu0 %v9388
        %v9483 = vpop.f32.mrf.mxu0
        %v9484 = vadd.f32 %v9377, %v9483
        %v9485 = vpop.f32.mrf.mxu0
        %9486 = vmatprep.mubr.f32.mxu0 0.0
        %9487 = vmatmul.mubr.f32.gmra.mxu0 %v9391
        %v9488 = vpop.f32.mrf.mxu0
        %v9489 = vadd.f32 %v9377, %v9488
        %v9490 = vpop.f32.mrf.mxu0
        %9491 = vmatprep.mubr.f32.mxu0 0.0
        %9492 = vmatmul.mubr.f32.gmra.mxu0 %v9394
        %v9493 = vpop.f32.mrf.mxu0
        %v9494 = vadd.f32 %v9377, %v9493
        %v9495 = vpop.f32.mrf.mxu0
        %9496 = vmatprep.mubr.f32.mxu0 0.0
        %9497 = vmatmul.mubr.f32.gmra.mxu0 %v9397
        %v9498 = vpop.f32.mrf.mxu0
        %v9499 = vadd.f32 %v9377, %v9498
        %v9500 = vpop.f32.mrf.mxu0
        %9501 = vmatprep.mubr.f32.mxu0 0.0
        %9502 = vmatmul.mubr.f32.gmra.mxu0 %v9400
        %v9503 = vpop.f32.mrf.mxu0
        %v9504 = vadd.f32 %v9377, %v9503
        %v9505 = vpop.f32.mrf.mxu0
        %9506 = vdwg.mxu0
        %v9507 = vxor.u32 %v9469, 2147483648
        %v9508 = vxor.u32 %v9474, 2147483648
        %v9509 = vxor.u32 %v9479, 2147483648
        %v9510 = vxor.u32 %v9484, 2147483648
        %v9511 = vxor.u32 %v9489, 2147483648
        %v9512 = vxor.u32 %v9494, 2147483648
        %v9513 = vxor.u32 %v9499, 2147483648
        %v9514 = vxor.u32 %v9504, 2147483648
        %v9515 = vmul.f32 %v9507, 1.442695
        %v9516 = vpow.pop %v9515
        %v9517 = vmul.f32 %v9508, 1.442695
        %v9518 = vpow.pop %v9517
        %v9519 = vmul.f32 %v9509, 1.442695
        %v9520 = vpow.pop %v9519
        %v9521 = vmul.f32 %v9510, 1.442695
        %v9522 = vpow.pop %v9521
        %v9523 = vmul.f32 %v9511, 1.442695
        %v9524 = vpow.pop %v9523
        %v9525 = vmul.f32 %v9512, 1.442695
        %v9526 = vpow.pop %v9525
        %v9527 = vmul.f32 %v9513, 1.442695
        %v9528 = vpow.pop %v9527
        %v9529 = vmul.f32 %v9514, 1.442695
        %v9530 = vpow.pop %v9529
        %v9531 = vadd.f32 %v9516, 1.0
        %v9532 = vadd.f32 %v9518, 1.0
        %v9533 = vadd.f32 %v9520, 1.0
        %v9534 = vadd.f32 %v9522, 1.0
        %v9535 = vadd.f32 %v9524, 1.0
        %v9536 = vadd.f32 %v9526, 1.0
        %v9537 = vadd.f32 %v9528, 1.0
        %v9538 = vadd.f32 %v9530, 1.0
        %v9539 = vrcp.pop %v9531
        %v9540 = vmul.f32 1.0, %v9539
        %v9541 = vrcp.pop %v9532
        %v9542 = vmul.f32 1.0, %v9541
        %v9543 = vrcp.pop %v9533
        %v9544 = vmul.f32 1.0, %v9543
        %v9545 = vrcp.pop %v9534
        %v9546 = vmul.f32 1.0, %v9545
        %v9547 = vrcp.pop %v9535
        %v9548 = vmul.f32 1.0, %v9547
        %v9549 = vrcp.pop %v9536
        %v9550 = vmul.f32 1.0, %v9549
        %v9551 = vrcp.pop %v9537
        %v9552 = vmul.f32 1.0, %v9551
        %v9553 = vrcp.pop %v9538
        %v9554 = vmul.f32 1.0, %v9553
        %v9555 = vmul.f32 %v9469, %v9540
        %v9556 = vmul.f32 %v9474, %v9542
        %v9557 = vmul.f32 %v9479, %v9544
        %v9558 = vmul.f32 %v9484, %v9546
        %v9559 = vmul.f32 %v9489, %v9548
        %v9560 = vmul.f32 %v9494, %v9550
        %v9561 = vmul.f32 %v9499, %v9552
        %v9562 = vmul.f32 %v9504, %v9554
        %vm9563 = vcmask 523264
        %9564 = vst.msk [vmem:[%s163] sm:$0xff] %vm9563, %v9555
        %9565 = vst.msk [vmem:[%s163 + $0x8] sm:$0xff] %vm9563, %v9556
        %9566 = vst.msk [vmem:[%s163 + $0x10] sm:$0xff] %vm9563, %v9557
        %9567 = vst.msk [vmem:[%s163 + $0x18] sm:$0xff] %vm9563, %v9558
        %9568 = vst.msk [vmem:[%s163 + $0x20] sm:$0xff] %vm9563, %v9559
        %9569 = vst.msk [vmem:[%s163 + $0x28] sm:$0xff] %vm9563, %v9560
        %9570 = vst.msk [vmem:[%s163 + $0x30] sm:$0xff] %vm9563, %v9561
        %9571 = vst.msk [vmem:[%s163 + $0x38] sm:$0xff] %vm9563, %v9562
        %s9572 = sand.u32 %s93, 1
        %s9573 = scalar_lea.sflag [#allocation6], %s9572
        %s9574 = sand.u32 %s93, 1
        %s9575 = smul.addr %s9574, 64
        %s9576 = scalar_lea.vmem [#allocation5], %s9575
        // Predicated region
        $region33: #{_lambda_.1} parent=31 // pred_check
          %p9577 = pneg %p103
        $region34: #{_lambda_.1} parent=31 // pred_check_branch
          %9579 = sbr.rel (%p9577) target = $region36
        $region35: #{_lambda_.1} parent=31 // pred_region
          %s9581 = ssub.s32 1024, 1024
          %9582 = vsyncadd %s9573, %s9581
          %s9583 = smul.addr %s17, 8
          %s9584 = smul.addr %s9583, 128
          %s9585 = scalar_lea.hbm %s3, %s9584
          %s9586 = sshll.u32 %s9576, 4
          %s9587 = int_to_ptr.vmem [resolvable:$true] %s9586
          %9592 = dma.vmem_to_hbm [thread:$0]  %s9587, 1024, %s9585, %s9573, 128, 128, 8
        $region36: #{_lambda_.1} parent=31 // pred_fallthru
          _
      $region32: #{_lambda_.1} parent=5 // pred_fallthru
        _
      %p9593 = scmp.le.s32.totalorder 2, %s12
      // Predicated region
      $region37: #{_lambda_.1} parent=5 // pred_check
        %p9594 = pneg %p9593
      $region38: #{_lambda_.1} parent=5 // pred_check_branch
        %9596 = sbr.rel (%p9594) target = $region40
      $region39: #{_lambda_.1} parent=5 // pred_region
        %s9597 = ssub.s32 %s12, 2
        // Predicated region
        $region41: #{_lambda_.1} parent=39 // pred_check
          %p9598 = pneg %p109
        $region42: #{_lambda_.1} parent=39 // pred_check_branch
          %9600 = sbr.rel (%p9598) target = $region44
        $region43: #{_lambda_.1} parent=39 // pred_region
          %s9601 = sand.u32 %s94, 1
          %s9602 = scalar_lea.sflag [#allocation6], %s9601
          %s9603 = sand.u32 %s94, 1
          %s9604 = smul.addr %s9603, 64
          %s9605 = scalar_lea.vmem [#allocation5], %s9604
          %9606 = dma.done %s9602, 1024
        $region44: #{_lambda_.1} parent=39 // pred_fallthru
          _
      $region40: #{_lambda_.1} parent=5 // pred_fallthru
        _
    $region6: #{_lambda_.1} parent=1 // loop_footer
      %s16 = sadd.s32 1, %s12
    $region7: #{_lambda_.1} parent=1 // loop_footer_branch
      %11 = sbr.rel target = $region3
    $region8: #{_lambda_.1} parent=1 // loop_exit
      _
    %9607 = vsyncpa [#allocation6], 1
    %s9608 = scalar_lea.sflag [#allocation6], 1
    %9609 = vsyncpa %s9608, 1

</llo_original>
